<compile_context>
chip_gen: v5e
topology: v5e:2x2
jax: 0.10.0
libtpu: 0.0.40
codegen_flags: <defaults>
</compile_context>

<pallas_src>
import functools

import jax
import jax.numpy as jnp
from jax import lax
from jax.experimental import pallas as pl
from jax.experimental.pallas import tpu as pltpu


# ----------------------------- in-kernel math helpers -----------------------------

def _squash(s):
    # squash(s) = (|s|^2 / (1+|s|^2)) * s / sqrt(|s|^2 + 1e-8) along the last axis.
    sq = jnp.sum(s * s, axis=-1, keepdims=True)
    scale = sq * pl.reciprocal(1.0 + sq, approx=True) * lax.rsqrt(sq + 1e-8)
    return scale * s


def _softmax_lastdim(x):
    # Numerically-stable softmax over the tiny lane-resident last axis (num_caps).
    m = jnp.max(x, axis=-1, keepdims=True)
    e = jnp.exp(x - m)
    return e * pl.reciprocal(jnp.sum(e, axis=-1, keepdims=True), approx=True)


def _route(w_t, b_flat, m, q, *, num_caps, dim_caps, num_routing,
           pearson_sign, couple_with_q):
    """Dynamic-memory capsule routing (shared-W form) for one (m, q) problem.

    w_t     [H, nc*dc]  bf16  pre-transposed / flattened capsule weights
    b_flat  [ic, nc*dc] f32   capsule bias, flattened capsule-major
    m       [ic, H]     f32   memory rows / class prototypes
    q       [B, H]      f32   samples to adapt
    returns [B, nc*dc]  f32   (== torch v_out.view(B, -1))
    """
    nc, dc = num_caps, dim_caps
    C = nc * dc
    ic = m.shape[0]
    B = q.shape[0]

    # --- ONE MXU matmul for both projections (bf16 operands, f32 accumulation) ---
    mq = jnp.concatenate([m, q], axis=0).astype(jnp.bfloat16)          # [ic+B, H]
    proj = lax.dot_general(mq, w_t, (((1,), (0,)), ((), ())),
                           preferred_element_type=jnp.float32)          # [ic+B, C]
    hat_m = proj[:ic] + b_flat                                          # [ic, C]
    hat_q = proj[ic:]                                                   # [B, C]

    hat_m3 = hat_m.reshape(ic, nc, dc)                                  # [ic, nc, dc]
    hat_q3 = hat_q.reshape(B, nc, dc)                                   # [B, nc, dc]

    # --- Loop-invariant Pearson statistics & broadcasts of hat_m (hoisted) ---
    xm3 = hat_m3 - jnp.mean(hat_m3, axis=-1, keepdims=True)             # [ic, nc, dc]
    ssx = jnp.sum(xm3 * xm3, axis=-1)                                   # [ic, nc]
    xm_b = [xm3[i][None] for i in range(ic)]                            # ic x [1, nc, dc]
    ssx_b = [ssx[i][None] for i in range(ic)]                           # ic x [1, nc]
    hat_m_b = [hat_m3[i][None] for i in range(ic)]                      # ic x [1, nc, dc]

    def pearson(thq3):
        # tanh(sign * pearsonr(hat_m, tmp_hat_q)) per (sample, capsule, in_cap).
        ym3 = thq3 - jnp.mean(thq3, axis=-1, keepdims=True)             # [B, nc, dc]
        ssy = jnp.sum(ym3 * ym3, axis=-1)                               # [B, nc]
        out = []
        for i in range(ic):
            num = jnp.sum(xm_b[i] * ym3, axis=-1)                       # [B, nc]
            out.append(jnp.tanh(pearson_sign * num *
                                lax.rsqrt(ssx_b[i] * ssy + 1e-12)))     # eps guards 0 var
        return out                                                      # ic x [B, nc]

    def weighted_caps(coef):
        # sum_i coef_i[b, j] * hat_m[i, j, :]  -> [B, nc, dc]
        hv = coef[0][:, :, None] * hat_m_b[0]
        for i in range(1, ic):
            hv = hv + coef[i][:, :, None] * hat_m_b[i]
        return hv

    a = [jnp.zeros((B, nc), jnp.float32) for _ in range(ic)]
    tmp_hat_q3 = hat_q3
    p = pearson(tmp_hat_q3)

    for _ in range(num_routing - 1):                                    # unrolled at trace time
        d = [_softmax_lastdim(a_i) for a_i in a]                        # softmax over capsules
        v3 = _squash(weighted_caps([d[i] + p[i] for i in range(ic)]))   # [B, nc, dc]
        hmv = [jnp.sum(hat_m_b[i] * v3, axis=-1) for i in range(ic)]    # ic x [B, nc]
        if couple_with_q:        # DynamicMemoryInduction (QIM)
            # TODO(synk): scalar q-coupling (dim_caps mean) keeps routing logits [B, nc]
            #             per in_cap; the non-runnable reference would broadcast over dim_caps.
            qbar = jnp.mean(tmp_hat_q3, axis=-1)                        # [B, nc]
            a = [a[i] + qbar * hmv[i] for i in range(ic)]
        else:                    # DynamicTaskMemoryInduction (DTMR)
            a = [a[i] + p[i] * hmv[i] for i in range(ic)]
        tmp_hat_q3 = (tmp_hat_q3 + v3) * 0.5
        p = pearson(tmp_hat_q3)

    d = [_softmax_lastdim(a_i) for a_i in a]
    v_out3 = _squash(weighted_caps([d[i] + p[i] for i in range(ic)]))   # [B, nc, dc]
    return v_out3.reshape(B, C)                                         # lane-dense [B, nc*dc]


# ----------------------------- fused DMR kernel -----------------------------

def _dmr_fused_kernel(wd_ref, bd_ref, wq_ref, bq_ref, mem_ref, sup_ref, qry_ref,
                      sim_ref, *, num_caps, dim_caps, n_routing):
    # ---- Stage 1: DTMR — adapt this class's support rows with the retrieved memory ----
    sup = sup_ref[0]                                                    # [k_samples, H]
    e_cs_g = _route(wd_ref[...], bd_ref[...], mem_ref[...], sup,
                    num_caps=num_caps, dim_caps=dim_caps, num_routing=n_routing,
                    pearson_sign=-1.0, couple_with_q=False)             # [k_samples, H]

    # ---- Stage 2: QIM — adapt the queries with this class's prototypes (VMEM-resident) ----
    qry = qry_ref[...]                                                  # [Bq, H]
    e_c_g = _route(wq_ref[...], bq_ref[...], e_cs_g, qry,
                   num_caps=num_caps, dim_caps=dim_caps, num_routing=n_routing,
                   pearson_sign=1.0, couple_with_q=True)                # [Bq, H]

    # ---- Stage 3: SimilarityClassifier column for this class: cosine(e_c_g, query) ----
    eps2 = 1e-24                                                        # (F.normalize eps=1e-12)^2
    qn = qry * lax.rsqrt(jnp.maximum(jnp.sum(qry * qry, axis=-1, keepdims=True), eps2))
    cn = e_c_g * lax.rsqrt(jnp.maximum(jnp.sum(e_c_g * e_c_g, axis=-1, keepdims=True), eps2))
    sim_ref[...] = jnp.sum(cn * qn, axis=-1, keepdims=True)[None]       # [1, Bq, 1]


# ----------------------------- full DMRInduction forward -----------------------------

def dmr_induction_forward(pooled, memory, params, *, n_class, k_samples, n_routing):
    H = pooled.shape[1]
    dim_caps = H // n_class
    C = n_class * dim_caps
    n_support = n_class * k_samples
    support = pooled[:n_support]                                        # [n_support, H]
    query = pooled[n_support:]                                          # [Bq, H]
    Bq = query.shape[0]

    # --- TaskRetrieval (top_k = 1), plain JAX: far below pallas_call fixed cost ---
    eps = 1e-8                                                          # F.cosine_similarity eps
    task_emb = jnp.mean(support, axis=0, keepdims=True)                 # [1, H]
    mem_n = jnp.maximum(jnp.sqrt(jnp.sum(memory * memory, axis=-1)), eps)
    t_n = jnp.maximum(jnp.sqrt(jnp.sum(task_emb * task_emb, axis=-1)), eps)
    cos = jnp.sum(memory * task_emb, axis=-1) / (mem_n * t_n)           # [n_memory]
    idx = jnp.argmax(cos)
    ret_mem = lax.dynamic_slice_in_dim(memory, idx, 1, axis=0)          # [1, H]

    # --- Pre-transposed / flattened capsule params (lane-dense; bf16 weights for the MXU) ---
    def flat_w(W):   # [nc, dc, H] -> [H, nc*dc] bf16
        return jnp.transpose(W.reshape(C, H)).astype(jnp.bfloat16)

    def flat_b(b):   # [nc, ic, dc] -> [ic, nc*dc] f32
        return jnp.transpose(b, (1, 0, 2)).reshape(b.shape[1], C).astype(jnp.float32)

    wd, bd = flat_w(params["W_dtmr"]), flat_b(params["b_dtmr"])
    wq, bq = flat_w(params["W_qim"]), flat_b(params["b_qim"])
    sup3 = support.reshape(n_class, k_samples, H)                       # class-major support

    kernel = functools.partial(_dmr_fused_kernel, num_caps=n_class,
                               dim_caps=dim_caps, n_routing=n_routing)
    sim = pl.pallas_call(
        kernel,
        grid=(n_class,),
        in_specs=[
            pl.BlockSpec((H, C), lambda g: (0, 0)),                     # W_dtmr^T (VMEM-resident)
            pl.BlockSpec((1, C), lambda g: (0, 0)),                     # b_dtmr flat
            pl.BlockSpec((H, C), lambda g: (0, 0)),                     # W_qim^T
            pl.BlockSpec((k_samples, C), lambda g: (0, 0)),             # b_qim flat
            pl.BlockSpec((1, H), lambda g: (0, 0)),                     # retrieved memory
            pl.BlockSpec((1, k_samples, H), lambda g: (g, 0, 0)),       # class-g support rows
            pl.BlockSpec((Bq, H), lambda g: (0, 0)),                    # queries
        ],
        out_specs=pl.BlockSpec((1, Bq, 1), lambda g: (g, 0, 0)),
        out_shape=jax.ShapeDtypeStruct((n_class, Bq, 1), jnp.float32),
        compiler_params=pltpu.CompilerParams(
            dimension_semantics=("parallel",)),      # class axis shards across TCs on v7x
    )(wd, bd, wq, bq, ret_mem, sup3, query)

    # tau * cosine table, transposed to [Bq, n_class] (as in SimilarityClassifier).
    return params["tau"][0, 0] * jnp.transpose(sim[:, :, 0])


# ----------------------------- demo -----------------------------

if __name__ == "__main__":
    n_class, k_samples, n_query = 2, 4, 4      # reference hard-codes e_cs[0], e_cs[1] -> n_class = 2
    hidden = 128
    n_memory = 8
    n_routing = 3
    dim_caps = hidden // n_class
    n_support = n_class * k_samples
    n_query_total = n_class * n_query

    key = jax.random.PRNGKey(0)
    k_mem, k_wd, k_wq, k_x = jax.random.split(key, 4)

    memory = jax.random.normal(k_mem, (n_memory, hidden), jnp.float32)

    params = {
        # DTMR capsule params (in_caps = TaskRetrieval.top_k = 1)
        "W_dtmr": 0.01 * jax.random.normal(k_wd, (n_class, dim_caps, hidden), jnp.float32),
        "b_dtmr": jnp.ones((n_class, 1, dim_caps), jnp.float32),
        # QIM capsule params (in_caps = k_samples); W_share shared over in_caps (not tiled)
        "W_qim": 0.01 * jax.random.normal(k_wq, (n_class, dim_caps, hidden), jnp.float32),
        "b_qim": jnp.ones((n_class, k_samples, dim_caps), jnp.float32),
        # SimilarityClassifier temperature
        "tau": 0.01 * jnp.ones((1, 1), jnp.float32),
    }

    # Surrogate for the (frozen) BERT pooler output: [n_support + n_query_total, hidden]
    pooled = jax.random.normal(k_x, (n_support + n_query_total, hidden), jnp.float32)

    fwd = jax.jit(functools.partial(dmr_induction_forward, n_class=n_class,
                                    k_samples=k_samples, n_routing=n_routing))
    logits = fwd(pooled, memory, params)
    logits = jax.block_until_ready(logits)

    assert logits.shape == (n_query_total, n_class)
    assert bool(jnp.all(jnp.isfinite(logits)))
    print("KERNEL_OK")
</pallas_src>

<mosaic_0001>
module attributes {stable_mosaic.version = 11 : i64} {
  func.func @_dmr_fused_kernel(%arg0: i32, %arg1: memref<128x128xbf16, #tpu.memory_space<vmem>>, %arg2: memref<1x128xf32, #tpu.memory_space<vmem>>, %arg3: memref<128x128xbf16, #tpu.memory_space<vmem>>, %arg4: memref<4x128xf32, #tpu.memory_space<vmem>>, %arg5: memref<1x128xf32, #tpu.memory_space<vmem>>, %arg6: memref<1x4x128xf32, #tpu.memory_space<vmem>>, %arg7: memref<8x128xf32, #tpu.memory_space<vmem>>, %arg8: memref<1x8x1xf32, #tpu.memory_space<vmem>>) attributes {dimension_semantics = [#tpu.dimension_semantics<parallel>], iteration_bounds = array<i64: 2>, scalar_prefetch = 0 : i64, scratch_operands = 0 : i64, tpu.core_type = #tpu.core_type<tc>, window_params = [{pipeline_mode = #tpu.pipeline_mode<synchronous>, transform_indices = @transform_0, window_bounds = array<i64: 128, 128>}, {pipeline_mode = #tpu.pipeline_mode<synchronous>, transform_indices = @transform_1, window_bounds = array<i64: 1, 128>}, {pipeline_mode = #tpu.pipeline_mode<synchronous>, transform_indices = @transform_2, window_bounds = array<i64: 128, 128>}, {pipeline_mode = #tpu.pipeline_mode<synchronous>, transform_indices = @transform_3, window_bounds = array<i64: 4, 128>}, {pipeline_mode = #tpu.pipeline_mode<synchronous>, transform_indices = @transform_4, window_bounds = array<i64: 1, 128>}, {transform_indices = @transform_5, window_bounds = array<i64: 1, 4, 128>}, {pipeline_mode = #tpu.pipeline_mode<synchronous>, transform_indices = @transform_6, window_bounds = array<i64: 8, 128>}, {transform_indices = @transform_7, window_bounds = array<i64: 1, 8, 1>}]} {
    %c0 = arith.constant 0 : index
    %c0_0 = arith.constant 0 : index
    %c0_1 = arith.constant 0 : index
    %0 = vector.load %arg6[%c0, %c0_0, %c0_1] : memref<1x4x128xf32, #tpu.memory_space<vmem>>, vector<1x4x128xf32>
    %1 = vector.shape_cast %0 : vector<1x4x128xf32> to vector<4x128xf32>
    %c0_2 = arith.constant 0 : index
    %c0_3 = arith.constant 0 : index
    %2 = vector.load %arg1[%c0_2, %c0_3] : memref<128x128xbf16, #tpu.memory_space<vmem>>, vector<128x128xbf16>
    %c0_4 = arith.constant 0 : index
    %c0_5 = arith.constant 0 : index
    %3 = vector.load %arg2[%c0_4, %c0_5] : memref<1x128xf32, #tpu.memory_space<vmem>>, vector<1x128xf32>
    %c0_6 = arith.constant 0 : index
    %c0_7 = arith.constant 0 : index
    %4 = vector.load %arg5[%c0_6, %c0_7] : memref<1x128xf32, #tpu.memory_space<vmem>>, vector<1x128xf32>
    %5 = tpu.concatenate %4, %1 in 0 : vector<1x128xf32>, vector<4x128xf32> -> vector<5x128xf32>
    %6 = arith.truncf %5 : vector<5x128xf32> to vector<5x128xbf16>
    %cst = arith.constant dense<0.000000e+00> : vector<5x128xf32>
    %7 = tpu.matmul %6, %2, %cst {dimension_numbers = #tpu.dot_dimension_numbers<[1], [0], [0], [1], [0, 0, 1, 1], [], []>} : vector<5x128xbf16>, vector<128x128xbf16>, vector<5x128xf32> -> vector<5x128xf32>
    %8 = vector.extract_strided_slice %7 {offsets = [0, 0], sizes = [1, 128], strides = [1, 1]} : vector<5x128xf32> to vector<1x128xf32>
    %9 = arith.addf %8, %3 : vector<1x128xf32>
    %10 = vector.extract_strided_slice %7 {offsets = [1, 0], sizes = [4, 128], strides = [1, 1]} : vector<5x128xf32> to vector<4x128xf32>
    %11 = vector.shape_cast %9 : vector<1x128xf32> to vector<1x2x64xf32>
    %12 = vector.shape_cast %10 : vector<4x128xf32> to vector<4x2x64xf32>
    %cst_8 = arith.constant dense<0.000000e+00> : vector<1x2xf32>
    %13 = vector.multi_reduction <add>, %11, %cst_8 [2] : vector<1x2x64xf32> to vector<1x2xf32>
    %14 = vector.shape_cast %13 : vector<1x2xf32> to vector<1x2x1xf32>
    %cst_9 = arith.constant 6.400000e+01 : f32
    %15 = vector.broadcast %cst_9 : f32 to vector<1x2x1xf32>
    %16 = arith.divf %14, %15 : vector<1x2x1xf32>
    %17 = vector.broadcast %16 : vector<1x2x1xf32> to vector<1x2x64xf32>
    %18 = arith.subf %11, %17 : vector<1x2x64xf32>
    %19 = arith.mulf %18, %18 : vector<1x2x64xf32>
    %cst_10 = arith.constant dense<0.000000e+00> : vector<1x2xf32>
    %20 = vector.multi_reduction <add>, %19, %cst_10 [2] : vector<1x2x64xf32> to vector<1x2xf32>
    %21 = vector.shape_cast %18 : vector<1x2x64xf32> to vector<2x64xf32>
    %22 = vector.shape_cast %21 : vector<2x64xf32> to vector<1x2x64xf32>
    %23 = vector.shape_cast %20 : vector<1x2xf32> to vector<2xf32>
    %24 = vector.shape_cast %23 : vector<2xf32> to vector<1x2xf32>
    %25 = vector.shape_cast %11 : vector<1x2x64xf32> to vector<2x64xf32>
    %26 = vector.shape_cast %25 : vector<2x64xf32> to vector<1x2x64xf32>
    %cst_11 = arith.constant 0.000000e+00 : f32
    %27 = vector.broadcast %cst_11 : f32 to vector<4x2xf32>
    %cst_12 = arith.constant dense<0.000000e+00> : vector<4x2xf32>
    %28 = vector.multi_reduction <add>, %12, %cst_12 [2] : vector<4x2x64xf32> to vector<4x2xf32>
    %29 = vector.shape_cast %28 : vector<4x2xf32> to vector<4x2x1xf32>
    %cst_13 = arith.constant 6.400000e+01 : f32
    %30 = vector.broadcast %cst_13 : f32 to vector<4x2x1xf32>
    %31 = arith.divf %29, %30 : vector<4x2x1xf32>
    %32 = vector.broadcast %31 : vector<4x2x1xf32> to vector<4x2x64xf32>
    %33 = arith.subf %12, %32 : vector<4x2x64xf32>
    %34 = arith.mulf %33, %33 : vector<4x2x64xf32>
    %cst_14 = arith.constant dense<0.000000e+00> : vector<4x2xf32>
    %35 = vector.multi_reduction <add>, %34, %cst_14 [2] : vector<4x2x64xf32> to vector<4x2xf32>
    %36 = vector.broadcast %22 : vector<1x2x64xf32> to vector<4x2x64xf32>
    %37 = arith.mulf %36, %33 : vector<4x2x64xf32>
    %cst_15 = arith.constant dense<0.000000e+00> : vector<4x2xf32>
    %38 = vector.multi_reduction <add>, %37, %cst_15 [2] : vector<4x2x64xf32> to vector<4x2xf32>
    %cst_16 = arith.constant -1.000000e+00 : f32
    %39 = vector.broadcast %cst_16 : f32 to vector<4x2xf32>
    %40 = arith.mulf %39, %38 : vector<4x2xf32>
    %41 = vector.broadcast %24 : vector<1x2xf32> to vector<4x2xf32>
    %42 = arith.mulf %41, %35 : vector<4x2xf32>
    %cst_17 = arith.constant 9.99999996E-13 : f32
    %43 = vector.broadcast %cst_17 : f32 to vector<4x2xf32>
    %44 = arith.addf %42, %43 : vector<4x2xf32>
    %45 = math.rsqrt %44 : vector<4x2xf32>
    %46 = arith.mulf %40, %45 : vector<4x2xf32>
    %47 = math.tanh %46 : vector<4x2xf32>
    %cst_18 = arith.constant dense<0xFF800000> : vector<4xf32>
    %48 = vector.multi_reduction <maximumf>, %27, %cst_18 [1] : vector<4x2xf32> to vector<4xf32>
    %49 = vector.shape_cast %48 : vector<4xf32> to vector<4x1xf32>
    %50 = vector.broadcast %49 : vector<4x1xf32> to vector<4x2xf32>
    %51 = arith.subf %27, %50 : vector<4x2xf32>
    %52 = math.exp %51 : vector<4x2xf32>
    %cst_19 = arith.constant dense<0.000000e+00> : vector<4xf32>
    %53 = vector.multi_reduction <add>, %52, %cst_19 [1] : vector<4x2xf32> to vector<4xf32>
    %54 = vector.shape_cast %53 : vector<4xf32> to vector<4x1xf32>
    %55 = tpu.reciprocal %54 {approx = true} : vector<4x1xf32> -> vector<4x1xf32>
    %56 = vector.broadcast %55 : vector<4x1xf32> to vector<4x2xf32>
    %57 = arith.mulf %52, %56 : vector<4x2xf32>
    %58 = arith.addf %57, %47 : vector<4x2xf32>
    %59 = vector.shape_cast %58 : vector<4x2xf32> to vector<4x2x1xf32>
    %60 = vector.broadcast %59 : vector<4x2x1xf32> to vector<4x2x64xf32>
    %61 = vector.broadcast %26 : vector<1x2x64xf32> to vector<4x2x64xf32>
    %62 = arith.mulf %60, %61 : vector<4x2x64xf32>
    %63 = arith.mulf %62, %62 : vector<4x2x64xf32>
    %cst_20 = arith.constant dense<0.000000e+00> : vector<4x2xf32>
    %64 = vector.multi_reduction <add>, %63, %cst_20 [2] : vector<4x2x64xf32> to vector<4x2xf32>
    %65 = vector.shape_cast %64 : vector<4x2xf32> to vector<4x2x1xf32>
    %cst_21 = arith.constant 1.000000e+00 : f32
    %66 = vector.broadcast %cst_21 : f32 to vector<4x2x1xf32>
    %67 = arith.addf %66, %65 : vector<4x2x1xf32>
    %68 = tpu.reciprocal %67 {approx = true} : vector<4x2x1xf32> -> vector<4x2x1xf32>
    %69 = arith.mulf %65, %68 : vector<4x2x1xf32>
    %cst_22 = arith.constant 9.99999993E-9 : f32
    %70 = vector.broadcast %cst_22 : f32 to vector<4x2x1xf32>
    %71 = arith.addf %65, %70 : vector<4x2x1xf32>
    %72 = math.rsqrt %71 : vector<4x2x1xf32>
    %73 = arith.mulf %69, %72 : vector<4x2x1xf32>
    %74 = vector.broadcast %73 : vector<4x2x1xf32> to vector<4x2x64xf32>
    %75 = arith.mulf %74, %62 : vector<4x2x64xf32>
    %76 = vector.broadcast %26 : vector<1x2x64xf32> to vector<4x2x64xf32>
    %77 = arith.mulf %76, %75 : vector<4x2x64xf32>
    %cst_23 = arith.constant dense<0.000000e+00> : vector<4x2xf32>
    %78 = vector.multi_reduction <add>, %77, %cst_23 [2] : vector<4x2x64xf32> to vector<4x2xf32>
    %79 = arith.mulf %47, %78 : vector<4x2xf32>
    %80 = arith.addf %27, %79 : vector<4x2xf32>
    %81 = arith.addf %12, %75 : vector<4x2x64xf32>
    %cst_24 = arith.constant 5.000000e-01 : f32
    %82 = vector.broadcast %cst_24 : f32 to vector<4x2x64xf32>
    %83 = arith.mulf %81, %82 : vector<4x2x64xf32>
    %cst_25 = arith.constant dense<0.000000e+00> : vector<4x2xf32>
    %84 = vector.multi_reduction <add>, %83, %cst_25 [2] : vector<4x2x64xf32> to vector<4x2xf32>
    %85 = vector.shape_cast %84 : vector<4x2xf32> to vector<4x2x1xf32>
    %cst_26 = arith.constant 6.400000e+01 : f32
    %86 = vector.broadcast %cst_26 : f32 to vector<4x2x1xf32>
    %87 = arith.divf %85, %86 : vector<4x2x1xf32>
    %88 = vector.broadcast %87 : vector<4x2x1xf32> to vector<4x2x64xf32>
    %89 = arith.subf %83, %88 : vector<4x2x64xf32>
    %90 = arith.mulf %89, %89 : vector<4x2x64xf32>
    %cst_27 = arith.constant dense<0.000000e+00> : vector<4x2xf32>
    %91 = vector.multi_reduction <add>, %90, %cst_27 [2] : vector<4x2x64xf32> to vector<4x2xf32>
    %92 = vector.broadcast %22 : vector<1x2x64xf32> to vector<4x2x64xf32>
    %93 = arith.mulf %92, %89 : vector<4x2x64xf32>
    %cst_28 = arith.constant dense<0.000000e+00> : vector<4x2xf32>
    %94 = vector.multi_reduction <add>, %93, %cst_28 [2] : vector<4x2x64xf32> to vector<4x2xf32>
    %cst_29 = arith.constant -1.000000e+00 : f32
    %95 = vector.broadcast %cst_29 : f32 to vector<4x2xf32>
    %96 = arith.mulf %95, %94 : vector<4x2xf32>
    %97 = vector.broadcast %24 : vector<1x2xf32> to vector<4x2xf32>
    %98 = arith.mulf %97, %91 : vector<4x2xf32>
    %cst_30 = arith.constant 9.99999996E-13 : f32
    %99 = vector.broadcast %cst_30 : f32 to vector<4x2xf32>
    %100 = arith.addf %98, %99 : vector<4x2xf32>
    %101 = math.rsqrt %100 : vector<4x2xf32>
    %102 = arith.mulf %96, %101 : vector<4x2xf32>
    %103 = math.tanh %102 : vector<4x2xf32>
    %cst_31 = arith.constant dense<0xFF800000> : vector<4xf32>
    %104 = vector.multi_reduction <maximumf>, %80, %cst_31 [1] : vector<4x2xf32> to vector<4xf32>
    %105 = vector.shape_cast %104 : vector<4xf32> to vector<4x1xf32>
    %106 = vector.broadcast %105 : vector<4x1xf32> to vector<4x2xf32>
    %107 = arith.subf %80, %106 : vector<4x2xf32>
    %108 = math.exp %107 : vector<4x2xf32>
    %cst_32 = arith.constant dense<0.000000e+00> : vector<4xf32>
    %109 = vector.multi_reduction <add>, %108, %cst_32 [1] : vector<4x2xf32> to vector<4xf32>
    %110 = vector.shape_cast %109 : vector<4xf32> to vector<4x1xf32>
    %111 = tpu.reciprocal %110 {approx = true} : vector<4x1xf32> -> vector<4x1xf32>
    %112 = vector.broadcast %111 : vector<4x1xf32> to vector<4x2xf32>
    %113 = arith.mulf %108, %112 : vector<4x2xf32>
    %114 = arith.addf %113, %103 : vector<4x2xf32>
    %115 = vector.shape_cast %114 : vector<4x2xf32> to vector<4x2x1xf32>
    %116 = vector.broadcast %115 : vector<4x2x1xf32> to vector<4x2x64xf32>
    %117 = vector.broadcast %26 : vector<1x2x64xf32> to vector<4x2x64xf32>
    %118 = arith.mulf %116, %117 : vector<4x2x64xf32>
    %119 = arith.mulf %118, %118 : vector<4x2x64xf32>
    %cst_33 = arith.constant dense<0.000000e+00> : vector<4x2xf32>
    %120 = vector.multi_reduction <add>, %119, %cst_33 [2] : vector<4x2x64xf32> to vector<4x2xf32>
    %121 = vector.shape_cast %120 : vector<4x2xf32> to vector<4x2x1xf32>
    %cst_34 = arith.constant 1.000000e+00 : f32
    %122 = vector.broadcast %cst_34 : f32 to vector<4x2x1xf32>
    %123 = arith.addf %122, %121 : vector<4x2x1xf32>
    %124 = tpu.reciprocal %123 {approx = true} : vector<4x2x1xf32> -> vector<4x2x1xf32>
    %125 = arith.mulf %121, %124 : vector<4x2x1xf32>
    %cst_35 = arith.constant 9.99999993E-9 : f32
    %126 = vector.broadcast %cst_35 : f32 to vector<4x2x1xf32>
    %127 = arith.addf %121, %126 : vector<4x2x1xf32>
    %128 = math.rsqrt %127 : vector<4x2x1xf32>
    %129 = arith.mulf %125, %128 : vector<4x2x1xf32>
    %130 = vector.broadcast %129 : vector<4x2x1xf32> to vector<4x2x64xf32>
    %131 = arith.mulf %130, %118 : vector<4x2x64xf32>
    %132 = vector.broadcast %26 : vector<1x2x64xf32> to vector<4x2x64xf32>
    %133 = arith.mulf %132, %131 : vector<4x2x64xf32>
    %cst_36 = arith.constant dense<0.000000e+00> : vector<4x2xf32>
    %134 = vector.multi_reduction <add>, %133, %cst_36 [2] : vector<4x2x64xf32> to vector<4x2xf32>
    %135 = arith.mulf %103, %134 : vector<4x2xf32>
    %136 = arith.addf %80, %135 : vector<4x2xf32>
    %137 = arith.addf %83, %131 : vector<4x2x64xf32>
    %cst_37 = arith.constant 5.000000e-01 : f32
    %138 = vector.broadcast %cst_37 : f32 to vector<4x2x64xf32>
    %139 = arith.mulf %137, %138 : vector<4x2x64xf32>
    %cst_38 = arith.constant dense<0.000000e+00> : vector<4x2xf32>
    %140 = vector.multi_reduction <add>, %139, %cst_38 [2] : vector<4x2x64xf32> to vector<4x2xf32>
    %141 = vector.shape_cast %140 : vector<4x2xf32> to vector<4x2x1xf32>
    %cst_39 = arith.constant 6.400000e+01 : f32
    %142 = vector.broadcast %cst_39 : f32 to vector<4x2x1xf32>
    %143 = arith.divf %141, %142 : vector<4x2x1xf32>
    %144 = vector.broadcast %143 : vector<4x2x1xf32> to vector<4x2x64xf32>
    %145 = arith.subf %139, %144 : vector<4x2x64xf32>
    %146 = arith.mulf %145, %145 : vector<4x2x64xf32>
    %cst_40 = arith.constant dense<0.000000e+00> : vector<4x2xf32>
    %147 = vector.multi_reduction <add>, %146, %cst_40 [2] : vector<4x2x64xf32> to vector<4x2xf32>
    %148 = vector.broadcast %22 : vector<1x2x64xf32> to vector<4x2x64xf32>
    %149 = arith.mulf %148, %145 : vector<4x2x64xf32>
    %cst_41 = arith.constant dense<0.000000e+00> : vector<4x2xf32>
    %150 = vector.multi_reduction <add>, %149, %cst_41 [2] : vector<4x2x64xf32> to vector<4x2xf32>
    %cst_42 = arith.constant -1.000000e+00 : f32
    %151 = vector.broadcast %cst_42 : f32 to vector<4x2xf32>
    %152 = arith.mulf %151, %150 : vector<4x2xf32>
    %153 = vector.broadcast %24 : vector<1x2xf32> to vector<4x2xf32>
    %154 = arith.mulf %153, %147 : vector<4x2xf32>
    %cst_43 = arith.constant 9.99999996E-13 : f32
    %155 = vector.broadcast %cst_43 : f32 to vector<4x2xf32>
    %156 = arith.addf %154, %155 : vector<4x2xf32>
    %157 = math.rsqrt %156 : vector<4x2xf32>
    %158 = arith.mulf %152, %157 : vector<4x2xf32>
    %159 = math.tanh %158 : vector<4x2xf32>
    %cst_44 = arith.constant dense<0xFF800000> : vector<4xf32>
    %160 = vector.multi_reduction <maximumf>, %136, %cst_44 [1] : vector<4x2xf32> to vector<4xf32>
    %161 = vector.shape_cast %160 : vector<4xf32> to vector<4x1xf32>
    %162 = vector.broadcast %161 : vector<4x1xf32> to vector<4x2xf32>
    %163 = arith.subf %136, %162 : vector<4x2xf32>
    %164 = math.exp %163 : vector<4x2xf32>
    %cst_45 = arith.constant dense<0.000000e+00> : vector<4xf32>
    %165 = vector.multi_reduction <add>, %164, %cst_45 [1] : vector<4x2xf32> to vector<4xf32>
    %166 = vector.shape_cast %165 : vector<4xf32> to vector<4x1xf32>
    %167 = tpu.reciprocal %166 {approx = true} : vector<4x1xf32> -> vector<4x1xf32>
    %168 = vector.broadcast %167 : vector<4x1xf32> to vector<4x2xf32>
    %169 = arith.mulf %164, %168 : vector<4x2xf32>
    %170 = arith.addf %169, %159 : vector<4x2xf32>
    %171 = vector.shape_cast %170 : vector<4x2xf32> to vector<4x2x1xf32>
    %172 = vector.broadcast %171 : vector<4x2x1xf32> to vector<4x2x64xf32>
    %173 = vector.broadcast %26 : vector<1x2x64xf32> to vector<4x2x64xf32>
    %174 = arith.mulf %172, %173 : vector<4x2x64xf32>
    %175 = arith.mulf %174, %174 : vector<4x2x64xf32>
    %cst_46 = arith.constant dense<0.000000e+00> : vector<4x2xf32>
    %176 = vector.multi_reduction <add>, %175, %cst_46 [2] : vector<4x2x64xf32> to vector<4x2xf32>
    %177 = vector.shape_cast %176 : vector<4x2xf32> to vector<4x2x1xf32>
    %cst_47 = arith.constant 1.000000e+00 : f32
    %178 = vector.broadcast %cst_47 : f32 to vector<4x2x1xf32>
    %179 = arith.addf %178, %177 : vector<4x2x1xf32>
    %180 = tpu.reciprocal %179 {approx = true} : vector<4x2x1xf32> -> vector<4x2x1xf32>
    %181 = arith.mulf %177, %180 : vector<4x2x1xf32>
    %cst_48 = arith.constant 9.99999993E-9 : f32
    %182 = vector.broadcast %cst_48 : f32 to vector<4x2x1xf32>
    %183 = arith.addf %177, %182 : vector<4x2x1xf32>
    %184 = math.rsqrt %183 : vector<4x2x1xf32>
    %185 = arith.mulf %181, %184 : vector<4x2x1xf32>
    %186 = vector.broadcast %185 : vector<4x2x1xf32> to vector<4x2x64xf32>
    %187 = arith.mulf %186, %174 : vector<4x2x64xf32>
    %188 = vector.shape_cast %187 : vector<4x2x64xf32> to vector<4x128xf32>
    %c0_49 = arith.constant 0 : index
    %c0_50 = arith.constant 0 : index
    %189 = vector.load %arg7[%c0_49, %c0_50] : memref<8x128xf32, #tpu.memory_space<vmem>>, vector<8x128xf32>
    %c0_51 = arith.constant 0 : index
    %c0_52 = arith.constant 0 : index
    %190 = vector.load %arg3[%c0_51, %c0_52] : memref<128x128xbf16, #tpu.memory_space<vmem>>, vector<128x128xbf16>
    %c0_53 = arith.constant 0 : index
    %c0_54 = arith.constant 0 : index
    %191 = vector.load %arg4[%c0_53, %c0_54] : memref<4x128xf32, #tpu.memory_space<vmem>>, vector<4x128xf32>
    %192 = tpu.concatenate %188, %189 in 0 : vector<4x128xf32>, vector<8x128xf32> -> vector<12x128xf32>
    %193 = arith.truncf %192 : vector<12x128xf32> to vector<12x128xbf16>
    %cst_55 = arith.constant dense<0.000000e+00> : vector<12x128xf32>
    %194 = tpu.matmul %193, %190, %cst_55 {dimension_numbers = #tpu.dot_dimension_numbers<[1], [0], [0], [1], [0, 0, 1, 1], [], []>} : vector<12x128xbf16>, vector<128x128xbf16>, vector<12x128xf32> -> vector<12x128xf32>
    %195 = vector.extract_strided_slice %194 {offsets = [0, 0], sizes = [4, 128], strides = [1, 1]} : vector<12x128xf32> to vector<4x128xf32>
    %196 = arith.addf %195, %191 : vector<4x128xf32>
    %197 = vector.extract_strided_slice %194 {offsets = [4, 0], sizes = [8, 128], strides = [1, 1]} : vector<12x128xf32> to vector<8x128xf32>
    %198 = vector.shape_cast %196 : vector<4x128xf32> to vector<4x2x64xf32>
    %199 = vector.shape_cast %197 : vector<8x128xf32> to vector<8x2x64xf32>
    %cst_56 = arith.constant dense<0.000000e+00> : vector<4x2xf32>
    %200 = vector.multi_reduction <add>, %198, %cst_56 [2] : vector<4x2x64xf32> to vector<4x2xf32>
    %201 = vector.shape_cast %200 : vector<4x2xf32> to vector<4x2x1xf32>
    %cst_57 = arith.constant 6.400000e+01 : f32
    %202 = vector.broadcast %cst_57 : f32 to vector<4x2x1xf32>
    %203 = arith.divf %201, %202 : vector<4x2x1xf32>
    %204 = vector.broadcast %203 : vector<4x2x1xf32> to vector<4x2x64xf32>
    %205 = arith.subf %198, %204 : vector<4x2x64xf32>
    %206 = arith.mulf %205, %205 : vector<4x2x64xf32>
    %cst_58 = arith.constant dense<0.000000e+00> : vector<4x2xf32>
    %207 = vector.multi_reduction <add>, %206, %cst_58 [2] : vector<4x2x64xf32> to vector<4x2xf32>
    %208 = vector.extract_strided_slice %205 {offsets = [0, 0, 0], sizes = [1, 2, 64], strides = [1, 1, 1]} : vector<4x2x64xf32> to vector<1x2x64xf32>
    %209 = vector.shape_cast %208 : vector<1x2x64xf32> to vector<2x64xf32>
    %210 = vector.shape_cast %209 : vector<2x64xf32> to vector<1x2x64xf32>
    %211 = vector.extract_strided_slice %205 {offsets = [1, 0, 0], sizes = [1, 2, 64], strides = [1, 1, 1]} : vector<4x2x64xf32> to vector<1x2x64xf32>
    %212 = vector.shape_cast %211 : vector<1x2x64xf32> to vector<2x64xf32>
    %213 = vector.shape_cast %212 : vector<2x64xf32> to vector<1x2x64xf32>
    %214 = vector.extract_strided_slice %205 {offsets = [2, 0, 0], sizes = [1, 2, 64], strides = [1, 1, 1]} : vector<4x2x64xf32> to vector<1x2x64xf32>
    %215 = vector.shape_cast %214 : vector<1x2x64xf32> to vector<2x64xf32>
    %216 = vector.shape_cast %215 : vector<2x64xf32> to vector<1x2x64xf32>
    %217 = vector.extract_strided_slice %205 {offsets = [3, 0, 0], sizes = [1, 2, 64], strides = [1, 1, 1]} : vector<4x2x64xf32> to vector<1x2x64xf32>
    %218 = vector.shape_cast %217 : vector<1x2x64xf32> to vector<2x64xf32>
    %219 = vector.shape_cast %218 : vector<2x64xf32> to vector<1x2x64xf32>
    %220 = vector.extract_strided_slice %207 {offsets = [0, 0], sizes = [1, 2], strides = [1, 1]} : vector<4x2xf32> to vector<1x2xf32>
    %221 = vector.shape_cast %220 : vector<1x2xf32> to vector<2xf32>
    %222 = vector.shape_cast %221 : vector<2xf32> to vector<1x2xf32>
    %223 = vector.extract_strided_slice %207 {offsets = [1, 0], sizes = [1, 2], strides = [1, 1]} : vector<4x2xf32> to vector<1x2xf32>
    %224 = vector.shape_cast %223 : vector<1x2xf32> to vector<2xf32>
    %225 = vector.shape_cast %224 : vector<2xf32> to vector<1x2xf32>
    %226 = vector.extract_strided_slice %207 {offsets = [2, 0], sizes = [1, 2], strides = [1, 1]} : vector<4x2xf32> to vector<1x2xf32>
    %227 = vector.shape_cast %226 : vector<1x2xf32> to vector<2xf32>
    %228 = vector.shape_cast %227 : vector<2xf32> to vector<1x2xf32>
    %229 = vector.extract_strided_slice %207 {offsets = [3, 0], sizes = [1, 2], strides = [1, 1]} : vector<4x2xf32> to vector<1x2xf32>
    %230 = vector.shape_cast %229 : vector<1x2xf32> to vector<2xf32>
    %231 = vector.shape_cast %230 : vector<2xf32> to vector<1x2xf32>
    %232 = vector.extract_strided_slice %198 {offsets = [0, 0, 0], sizes = [1, 2, 64], strides = [1, 1, 1]} : vector<4x2x64xf32> to vector<1x2x64xf32>
    %233 = vector.shape_cast %232 : vector<1x2x64xf32> to vector<2x64xf32>
    %234 = vector.shape_cast %233 : vector<2x64xf32> to vector<1x2x64xf32>
    %235 = vector.extract_strided_slice %198 {offsets = [1, 0, 0], sizes = [1, 2, 64], strides = [1, 1, 1]} : vector<4x2x64xf32> to vector<1x2x64xf32>
    %236 = vector.shape_cast %235 : vector<1x2x64xf32> to vector<2x64xf32>
    %237 = vector.shape_cast %236 : vector<2x64xf32> to vector<1x2x64xf32>
    %238 = vector.extract_strided_slice %198 {offsets = [2, 0, 0], sizes = [1, 2, 64], strides = [1, 1, 1]} : vector<4x2x64xf32> to vector<1x2x64xf32>
    %239 = vector.shape_cast %238 : vector<1x2x64xf32> to vector<2x64xf32>
    %240 = vector.shape_cast %239 : vector<2x64xf32> to vector<1x2x64xf32>
    %241 = vector.extract_strided_slice %198 {offsets = [3, 0, 0], sizes = [1, 2, 64], strides = [1, 1, 1]} : vector<4x2x64xf32> to vector<1x2x64xf32>
    %242 = vector.shape_cast %241 : vector<1x2x64xf32> to vector<2x64xf32>
    %243 = vector.shape_cast %242 : vector<2x64xf32> to vector<1x2x64xf32>
    %cst_59 = arith.constant 0.000000e+00 : f32
    %244 = vector.broadcast %cst_59 : f32 to vector<8x2xf32>
    %cst_60 = arith.constant 0.000000e+00 : f32
    %245 = vector.broadcast %cst_60 : f32 to vector<8x2xf32>
    %cst_61 = arith.constant 0.000000e+00 : f32
    %246 = vector.broadcast %cst_61 : f32 to vector<8x2xf32>
    %cst_62 = arith.constant 0.000000e+00 : f32
    %247 = vector.broadcast %cst_62 : f32 to vector<8x2xf32>
    %cst_63 = arith.constant dense<0.000000e+00> : vector<8x2xf32>
    %248 = vector.multi_reduction <add>, %199, %cst_63 [2] : vector<8x2x64xf32> to vector<8x2xf32>
    %249 = vector.shape_cast %248 : vector<8x2xf32> to vector<8x2x1xf32>
    %cst_64 = arith.constant 6.400000e+01 : f32
    %250 = vector.broadcast %cst_64 : f32 to vector<8x2x1xf32>
    %251 = arith.divf %249, %250 : vector<8x2x1xf32>
    %252 = vector.broadcast %251 : vector<8x2x1xf32> to vector<8x2x64xf32>
    %253 = arith.subf %199, %252 : vector<8x2x64xf32>
    %254 = arith.mulf %253, %253 : vector<8x2x64xf32>
    %cst_65 = arith.constant dense<0.000000e+00> : vector<8x2xf32>
    %255 = vector.multi_reduction <add>, %254, %cst_65 [2] : vector<8x2x64xf32> to vector<8x2xf32>
    %256 = vector.broadcast %210 : vector<1x2x64xf32> to vector<8x2x64xf32>
    %257 = arith.mulf %256, %253 : vector<8x2x64xf32>
    %cst_66 = arith.constant dense<0.000000e+00> : vector<8x2xf32>
    %258 = vector.multi_reduction <add>, %257, %cst_66 [2] : vector<8x2x64xf32> to vector<8x2xf32>
    %cst_67 = arith.constant 1.000000e+00 : f32
    %259 = vector.broadcast %cst_67 : f32 to vector<8x2xf32>
    %260 = arith.mulf %259, %258 : vector<8x2xf32>
    %261 = vector.broadcast %222 : vector<1x2xf32> to vector<8x2xf32>
    %262 = arith.mulf %261, %255 : vector<8x2xf32>
    %cst_68 = arith.constant 9.99999996E-13 : f32
    %263 = vector.broadcast %cst_68 : f32 to vector<8x2xf32>
    %264 = arith.addf %262, %263 : vector<8x2xf32>
    %265 = math.rsqrt %264 : vector<8x2xf32>
    %266 = arith.mulf %260, %265 : vector<8x2xf32>
    %267 = math.tanh %266 : vector<8x2xf32>
    %268 = vector.broadcast %213 : vector<1x2x64xf32> to vector<8x2x64xf32>
    %269 = arith.mulf %268, %253 : vector<8x2x64xf32>
    %cst_69 = arith.constant dense<0.000000e+00> : vector<8x2xf32>
    %270 = vector.multi_reduction <add>, %269, %cst_69 [2] : vector<8x2x64xf32> to vector<8x2xf32>
    %cst_70 = arith.constant 1.000000e+00 : f32
    %271 = vector.broadcast %cst_70 : f32 to vector<8x2xf32>
    %272 = arith.mulf %271, %270 : vector<8x2xf32>
    %273 = vector.broadcast %225 : vector<1x2xf32> to vector<8x2xf32>
    %274 = arith.mulf %273, %255 : vector<8x2xf32>
    %cst_71 = arith.constant 9.99999996E-13 : f32
    %275 = vector.broadcast %cst_71 : f32 to vector<8x2xf32>
    %276 = arith.addf %274, %275 : vector<8x2xf32>
    %277 = math.rsqrt %276 : vector<8x2xf32>
    %278 = arith.mulf %272, %277 : vector<8x2xf32>
    %279 = math.tanh %278 : vector<8x2xf32>
    %280 = vector.broadcast %216 : vector<1x2x64xf32> to vector<8x2x64xf32>
    %281 = arith.mulf %280, %253 : vector<8x2x64xf32>
    %cst_72 = arith.constant dense<0.000000e+00> : vector<8x2xf32>
    %282 = vector.multi_reduction <add>, %281, %cst_72 [2] : vector<8x2x64xf32> to vector<8x2xf32>
    %cst_73 = arith.constant 1.000000e+00 : f32
    %283 = vector.broadcast %cst_73 : f32 to vector<8x2xf32>
    %284 = arith.mulf %283, %282 : vector<8x2xf32>
    %285 = vector.broadcast %228 : vector<1x2xf32> to vector<8x2xf32>
    %286 = arith.mulf %285, %255 : vector<8x2xf32>
    %cst_74 = arith.constant 9.99999996E-13 : f32
    %287 = vector.broadcast %cst_74 : f32 to vector<8x2xf32>
    %288 = arith.addf %286, %287 : vector<8x2xf32>
    %289 = math.rsqrt %288 : vector<8x2xf32>
    %290 = arith.mulf %284, %289 : vector<8x2xf32>
    %291 = math.tanh %290 : vector<8x2xf32>
    %292 = vector.broadcast %219 : vector<1x2x64xf32> to vector<8x2x64xf32>
    %293 = arith.mulf %292, %253 : vector<8x2x64xf32>
    %cst_75 = arith.constant dense<0.000000e+00> : vector<8x2xf32>
    %294 = vector.multi_reduction <add>, %293, %cst_75 [2] : vector<8x2x64xf32> to vector<8x2xf32>
    %cst_76 = arith.constant 1.000000e+00 : f32
    %295 = vector.broadcast %cst_76 : f32 to vector<8x2xf32>
    %296 = arith.mulf %295, %294 : vector<8x2xf32>
    %297 = vector.broadcast %231 : vector<1x2xf32> to vector<8x2xf32>
    %298 = arith.mulf %297, %255 : vector<8x2xf32>
    %cst_77 = arith.constant 9.99999996E-13 : f32
    %299 = vector.broadcast %cst_77 : f32 to vector<8x2xf32>
    %300 = arith.addf %298, %299 : vector<8x2xf32>
    %301 = math.rsqrt %300 : vector<8x2xf32>
    %302 = arith.mulf %296, %301 : vector<8x2xf32>
    %303 = math.tanh %302 : vector<8x2xf32>
    %cst_78 = arith.constant dense<0xFF800000> : vector<8xf32>
    %304 = vector.multi_reduction <maximumf>, %244, %cst_78 [1] : vector<8x2xf32> to vector<8xf32>
    %305 = vector.shape_cast %304 : vector<8xf32> to vector<8x1xf32>
    %306 = vector.broadcast %305 : vector<8x1xf32> to vector<8x2xf32>
    %307 = arith.subf %244, %306 : vector<8x2xf32>
    %308 = math.exp %307 : vector<8x2xf32>
    %cst_79 = arith.constant dense<0.000000e+00> : vector<8xf32>
    %309 = vector.multi_reduction <add>, %308, %cst_79 [1] : vector<8x2xf32> to vector<8xf32>
    %310 = vector.shape_cast %309 : vector<8xf32> to vector<8x1xf32>
    %311 = tpu.reciprocal %310 {approx = true} : vector<8x1xf32> -> vector<8x1xf32>
    %312 = vector.broadcast %311 : vector<8x1xf32> to vector<8x2xf32>
    %313 = arith.mulf %308, %312 : vector<8x2xf32>
    %cst_80 = arith.constant dense<0xFF800000> : vector<8xf32>
    %314 = vector.multi_reduction <maximumf>, %245, %cst_80 [1] : vector<8x2xf32> to vector<8xf32>
    %315 = vector.shape_cast %314 : vector<8xf32> to vector<8x1xf32>
    %316 = vector.broadcast %315 : vector<8x1xf32> to vector<8x2xf32>
    %317 = arith.subf %245, %316 : vector<8x2xf32>
    %318 = math.exp %317 : vector<8x2xf32>
    %cst_81 = arith.constant dense<0.000000e+00> : vector<8xf32>
    %319 = vector.multi_reduction <add>, %318, %cst_81 [1] : vector<8x2xf32> to vector<8xf32>
    %320 = vector.shape_cast %319 : vector<8xf32> to vector<8x1xf32>
    %321 = tpu.reciprocal %320 {approx = true} : vector<8x1xf32> -> vector<8x1xf32>
    %322 = vector.broadcast %321 : vector<8x1xf32> to vector<8x2xf32>
    %323 = arith.mulf %318, %322 : vector<8x2xf32>
    %cst_82 = arith.constant dense<0xFF800000> : vector<8xf32>
    %324 = vector.multi_reduction <maximumf>, %246, %cst_82 [1] : vector<8x2xf32> to vector<8xf32>
    %325 = vector.shape_cast %324 : vector<8xf32> to vector<8x1xf32>
    %326 = vector.broadcast %325 : vector<8x1xf32> to vector<8x2xf32>
    %327 = arith.subf %246, %326 : vector<8x2xf32>
    %328 = math.exp %327 : vector<8x2xf32>
    %cst_83 = arith.constant dense<0.000000e+00> : vector<8xf32>
    %329 = vector.multi_reduction <add>, %328, %cst_83 [1] : vector<8x2xf32> to vector<8xf32>
    %330 = vector.shape_cast %329 : vector<8xf32> to vector<8x1xf32>
    %331 = tpu.reciprocal %330 {approx = true} : vector<8x1xf32> -> vector<8x1xf32>
    %332 = vector.broadcast %331 : vector<8x1xf32> to vector<8x2xf32>
    %333 = arith.mulf %328, %332 : vector<8x2xf32>
    %cst_84 = arith.constant dense<0xFF800000> : vector<8xf32>
    %334 = vector.multi_reduction <maximumf>, %247, %cst_84 [1] : vector<8x2xf32> to vector<8xf32>
    %335 = vector.shape_cast %334 : vector<8xf32> to vector<8x1xf32>
    %336 = vector.broadcast %335 : vector<8x1xf32> to vector<8x2xf32>
    %337 = arith.subf %247, %336 : vector<8x2xf32>
    %338 = math.exp %337 : vector<8x2xf32>
    %cst_85 = arith.constant dense<0.000000e+00> : vector<8xf32>
    %339 = vector.multi_reduction <add>, %338, %cst_85 [1] : vector<8x2xf32> to vector<8xf32>
    %340 = vector.shape_cast %339 : vector<8xf32> to vector<8x1xf32>
    %341 = tpu.reciprocal %340 {approx = true} : vector<8x1xf32> -> vector<8x1xf32>
    %342 = vector.broadcast %341 : vector<8x1xf32> to vector<8x2xf32>
    %343 = arith.mulf %338, %342 : vector<8x2xf32>
    %344 = arith.addf %313, %267 : vector<8x2xf32>
    %345 = arith.addf %323, %279 : vector<8x2xf32>
    %346 = arith.addf %333, %291 : vector<8x2xf32>
    %347 = arith.addf %343, %303 : vector<8x2xf32>
    %348 = vector.shape_cast %344 : vector<8x2xf32> to vector<8x2x1xf32>
    %349 = vector.broadcast %348 : vector<8x2x1xf32> to vector<8x2x64xf32>
    %350 = vector.broadcast %234 : vector<1x2x64xf32> to vector<8x2x64xf32>
    %351 = arith.mulf %349, %350 : vector<8x2x64xf32>
    %352 = vector.shape_cast %345 : vector<8x2xf32> to vector<8x2x1xf32>
    %353 = vector.broadcast %352 : vector<8x2x1xf32> to vector<8x2x64xf32>
    %354 = vector.broadcast %237 : vector<1x2x64xf32> to vector<8x2x64xf32>
    %355 = arith.mulf %353, %354 : vector<8x2x64xf32>
    %356 = arith.addf %351, %355 : vector<8x2x64xf32>
    %357 = vector.shape_cast %346 : vector<8x2xf32> to vector<8x2x1xf32>
    %358 = vector.broadcast %357 : vector<8x2x1xf32> to vector<8x2x64xf32>
    %359 = vector.broadcast %240 : vector<1x2x64xf32> to vector<8x2x64xf32>
    %360 = arith.mulf %358, %359 : vector<8x2x64xf32>
    %361 = arith.addf %356, %360 : vector<8x2x64xf32>
    %362 = vector.shape_cast %347 : vector<8x2xf32> to vector<8x2x1xf32>
    %363 = vector.broadcast %362 : vector<8x2x1xf32> to vector<8x2x64xf32>
    %364 = vector.broadcast %243 : vector<1x2x64xf32> to vector<8x2x64xf32>
    %365 = arith.mulf %363, %364 : vector<8x2x64xf32>
    %366 = arith.addf %361, %365 : vector<8x2x64xf32>
    %367 = arith.mulf %366, %366 : vector<8x2x64xf32>
    %cst_86 = arith.constant dense<0.000000e+00> : vector<8x2xf32>
    %368 = vector.multi_reduction <add>, %367, %cst_86 [2] : vector<8x2x64xf32> to vector<8x2xf32>
    %369 = vector.shape_cast %368 : vector<8x2xf32> to vector<8x2x1xf32>
    %cst_87 = arith.constant 1.000000e+00 : f32
    %370 = vector.broadcast %cst_87 : f32 to vector<8x2x1xf32>
    %371 = arith.addf %370, %369 : vector<8x2x1xf32>
    %372 = tpu.reciprocal %371 {approx = true} : vector<8x2x1xf32> -> vector<8x2x1xf32>
    %373 = arith.mulf %369, %372 : vector<8x2x1xf32>
    %cst_88 = arith.constant 9.99999993E-9 : f32
    %374 = vector.broadcast %cst_88 : f32 to vector<8x2x1xf32>
    %375 = arith.addf %369, %374 : vector<8x2x1xf32>
    %376 = math.rsqrt %375 : vector<8x2x1xf32>
    %377 = arith.mulf %373, %376 : vector<8x2x1xf32>
    %378 = vector.broadcast %377 : vector<8x2x1xf32> to vector<8x2x64xf32>
    %379 = arith.mulf %378, %366 : vector<8x2x64xf32>
    %380 = vector.broadcast %234 : vector<1x2x64xf32> to vector<8x2x64xf32>
    %381 = arith.mulf %380, %379 : vector<8x2x64xf32>
    %cst_89 = arith.constant dense<0.000000e+00> : vector<8x2xf32>
    %382 = vector.multi_reduction <add>, %381, %cst_89 [2] : vector<8x2x64xf32> to vector<8x2xf32>
    %383 = vector.broadcast %237 : vector<1x2x64xf32> to vector<8x2x64xf32>
    %384 = arith.mulf %383, %379 : vector<8x2x64xf32>
    %cst_90 = arith.constant dense<0.000000e+00> : vector<8x2xf32>
    %385 = vector.multi_reduction <add>, %384, %cst_90 [2] : vector<8x2x64xf32> to vector<8x2xf32>
    %386 = vector.broadcast %240 : vector<1x2x64xf32> to vector<8x2x64xf32>
    %387 = arith.mulf %386, %379 : vector<8x2x64xf32>
    %cst_91 = arith.constant dense<0.000000e+00> : vector<8x2xf32>
    %388 = vector.multi_reduction <add>, %387, %cst_91 [2] : vector<8x2x64xf32> to vector<8x2xf32>
    %389 = vector.broadcast %243 : vector<1x2x64xf32> to vector<8x2x64xf32>
    %390 = arith.mulf %389, %379 : vector<8x2x64xf32>
    %cst_92 = arith.constant dense<0.000000e+00> : vector<8x2xf32>
    %391 = vector.multi_reduction <add>, %390, %cst_92 [2] : vector<8x2x64xf32> to vector<8x2xf32>
    %cst_93 = arith.constant dense<0.000000e+00> : vector<8x2xf32>
    %392 = vector.multi_reduction <add>, %199, %cst_93 [2] : vector<8x2x64xf32> to vector<8x2xf32>
    %cst_94 = arith.constant 6.400000e+01 : f32
    %393 = vector.broadcast %cst_94 : f32 to vector<8x2xf32>
    %394 = arith.divf %392, %393 : vector<8x2xf32>
    %395 = arith.mulf %394, %382 : vector<8x2xf32>
    %396 = arith.addf %244, %395 : vector<8x2xf32>
    %397 = arith.mulf %394, %385 : vector<8x2xf32>
    %398 = arith.addf %245, %397 : vector<8x2xf32>
    %399 = arith.mulf %394, %388 : vector<8x2xf32>
    %400 = arith.addf %246, %399 : vector<8x2xf32>
    %401 = arith.mulf %394, %391 : vector<8x2xf32>
    %402 = arith.addf %247, %401 : vector<8x2xf32>
    %403 = arith.addf %199, %379 : vector<8x2x64xf32>
    %cst_95 = arith.constant 5.000000e-01 : f32
    %404 = vector.broadcast %cst_95 : f32 to vector<8x2x64xf32>
    %405 = arith.mulf %403, %404 : vector<8x2x64xf32>
    %cst_96 = arith.constant dense<0.000000e+00> : vector<8x2xf32>
    %406 = vector.multi_reduction <add>, %405, %cst_96 [2] : vector<8x2x64xf32> to vector<8x2xf32>
    %407 = vector.shape_cast %406 : vector<8x2xf32> to vector<8x2x1xf32>
    %cst_97 = arith.constant 6.400000e+01 : f32
    %408 = vector.broadcast %cst_97 : f32 to vector<8x2x1xf32>
    %409 = arith.divf %407, %408 : vector<8x2x1xf32>
    %410 = vector.broadcast %409 : vector<8x2x1xf32> to vector<8x2x64xf32>
    %411 = arith.subf %405, %410 : vector<8x2x64xf32>
    %412 = arith.mulf %411, %411 : vector<8x2x64xf32>
    %cst_98 = arith.constant dense<0.000000e+00> : vector<8x2xf32>
    %413 = vector.multi_reduction <add>, %412, %cst_98 [2] : vector<8x2x64xf32> to vector<8x2xf32>
    %414 = vector.broadcast %210 : vector<1x2x64xf32> to vector<8x2x64xf32>
    %415 = arith.mulf %414, %411 : vector<8x2x64xf32>
    %cst_99 = arith.constant dense<0.000000e+00> : vector<8x2xf32>
    %416 = vector.multi_reduction <add>, %415, %cst_99 [2] : vector<8x2x64xf32> to vector<8x2xf32>
    %cst_100 = arith.constant 1.000000e+00 : f32
    %417 = vector.broadcast %cst_100 : f32 to vector<8x2xf32>
    %418 = arith.mulf %417, %416 : vector<8x2xf32>
    %419 = vector.broadcast %222 : vector<1x2xf32> to vector<8x2xf32>
    %420 = arith.mulf %419, %413 : vector<8x2xf32>
    %cst_101 = arith.constant 9.99999996E-13 : f32
    %421 = vector.broadcast %cst_101 : f32 to vector<8x2xf32>
    %422 = arith.addf %420, %421 : vector<8x2xf32>
    %423 = math.rsqrt %422 : vector<8x2xf32>
    %424 = arith.mulf %418, %423 : vector<8x2xf32>
    %425 = math.tanh %424 : vector<8x2xf32>
    %426 = vector.broadcast %213 : vector<1x2x64xf32> to vector<8x2x64xf32>
    %427 = arith.mulf %426, %411 : vector<8x2x64xf32>
    %cst_102 = arith.constant dense<0.000000e+00> : vector<8x2xf32>
    %428 = vector.multi_reduction <add>, %427, %cst_102 [2] : vector<8x2x64xf32> to vector<8x2xf32>
    %cst_103 = arith.constant 1.000000e+00 : f32
    %429 = vector.broadcast %cst_103 : f32 to vector<8x2xf32>
    %430 = arith.mulf %429, %428 : vector<8x2xf32>
    %431 = vector.broadcast %225 : vector<1x2xf32> to vector<8x2xf32>
    %432 = arith.mulf %431, %413 : vector<8x2xf32>
    %cst_104 = arith.constant 9.99999996E-13 : f32
    %433 = vector.broadcast %cst_104 : f32 to vector<8x2xf32>
    %434 = arith.addf %432, %433 : vector<8x2xf32>
    %435 = math.rsqrt %434 : vector<8x2xf32>
    %436 = arith.mulf %430, %435 : vector<8x2xf32>
    %437 = math.tanh %436 : vector<8x2xf32>
    %438 = vector.broadcast %216 : vector<1x2x64xf32> to vector<8x2x64xf32>
    %439 = arith.mulf %438, %411 : vector<8x2x64xf32>
    %cst_105 = arith.constant dense<0.000000e+00> : vector<8x2xf32>
    %440 = vector.multi_reduction <add>, %439, %cst_105 [2] : vector<8x2x64xf32> to vector<8x2xf32>
    %cst_106 = arith.constant 1.000000e+00 : f32
    %441 = vector.broadcast %cst_106 : f32 to vector<8x2xf32>
    %442 = arith.mulf %441, %440 : vector<8x2xf32>
    %443 = vector.broadcast %228 : vector<1x2xf32> to vector<8x2xf32>
    %444 = arith.mulf %443, %413 : vector<8x2xf32>
    %cst_107 = arith.constant 9.99999996E-13 : f32
    %445 = vector.broadcast %cst_107 : f32 to vector<8x2xf32>
    %446 = arith.addf %444, %445 : vector<8x2xf32>
    %447 = math.rsqrt %446 : vector<8x2xf32>
    %448 = arith.mulf %442, %447 : vector<8x2xf32>
    %449 = math.tanh %448 : vector<8x2xf32>
    %450 = vector.broadcast %219 : vector<1x2x64xf32> to vector<8x2x64xf32>
    %451 = arith.mulf %450, %411 : vector<8x2x64xf32>
    %cst_108 = arith.constant dense<0.000000e+00> : vector<8x2xf32>
    %452 = vector.multi_reduction <add>, %451, %cst_108 [2] : vector<8x2x64xf32> to vector<8x2xf32>
    %cst_109 = arith.constant 1.000000e+00 : f32
    %453 = vector.broadcast %cst_109 : f32 to vector<8x2xf32>
    %454 = arith.mulf %453, %452 : vector<8x2xf32>
    %455 = vector.broadcast %231 : vector<1x2xf32> to vector<8x2xf32>
    %456 = arith.mulf %455, %413 : vector<8x2xf32>
    %cst_110 = arith.constant 9.99999996E-13 : f32
    %457 = vector.broadcast %cst_110 : f32 to vector<8x2xf32>
    %458 = arith.addf %456, %457 : vector<8x2xf32>
    %459 = math.rsqrt %458 : vector<8x2xf32>
    %460 = arith.mulf %454, %459 : vector<8x2xf32>
    %461 = math.tanh %460 : vector<8x2xf32>
    %cst_111 = arith.constant dense<0xFF800000> : vector<8xf32>
    %462 = vector.multi_reduction <maximumf>, %396, %cst_111 [1] : vector<8x2xf32> to vector<8xf32>
    %463 = vector.shape_cast %462 : vector<8xf32> to vector<8x1xf32>
    %464 = vector.broadcast %463 : vector<8x1xf32> to vector<8x2xf32>
    %465 = arith.subf %396, %464 : vector<8x2xf32>
    %466 = math.exp %465 : vector<8x2xf32>
    %cst_112 = arith.constant dense<0.000000e+00> : vector<8xf32>
    %467 = vector.multi_reduction <add>, %466, %cst_112 [1] : vector<8x2xf32> to vector<8xf32>
    %468 = vector.shape_cast %467 : vector<8xf32> to vector<8x1xf32>
    %469 = tpu.reciprocal %468 {approx = true} : vector<8x1xf32> -> vector<8x1xf32>
    %470 = vector.broadcast %469 : vector<8x1xf32> to vector<8x2xf32>
    %471 = arith.mulf %466, %470 : vector<8x2xf32>
    %cst_113 = arith.constant dense<0xFF800000> : vector<8xf32>
    %472 = vector.multi_reduction <maximumf>, %398, %cst_113 [1] : vector<8x2xf32> to vector<8xf32>
    %473 = vector.shape_cast %472 : vector<8xf32> to vector<8x1xf32>
    %474 = vector.broadcast %473 : vector<8x1xf32> to vector<8x2xf32>
    %475 = arith.subf %398, %474 : vector<8x2xf32>
    %476 = math.exp %475 : vector<8x2xf32>
    %cst_114 = arith.constant dense<0.000000e+00> : vector<8xf32>
    %477 = vector.multi_reduction <add>, %476, %cst_114 [1] : vector<8x2xf32> to vector<8xf32>
    %478 = vector.shape_cast %477 : vector<8xf32> to vector<8x1xf32>
    %479 = tpu.reciprocal %478 {approx = true} : vector<8x1xf32> -> vector<8x1xf32>
    %480 = vector.broadcast %479 : vector<8x1xf32> to vector<8x2xf32>
    %481 = arith.mulf %476, %480 : vector<8x2xf32>
    %cst_115 = arith.constant dense<0xFF800000> : vector<8xf32>
    %482 = vector.multi_reduction <maximumf>, %400, %cst_115 [1] : vector<8x2xf32> to vector<8xf32>
    %483 = vector.shape_cast %482 : vector<8xf32> to vector<8x1xf32>
    %484 = vector.broadcast %483 : vector<8x1xf32> to vector<8x2xf32>
    %485 = arith.subf %400, %484 : vector<8x2xf32>
    %486 = math.exp %485 : vector<8x2xf32>
    %cst_116 = arith.constant dense<0.000000e+00> : vector<8xf32>
    %487 = vector.multi_reduction <add>, %486, %cst_116 [1] : vector<8x2xf32> to vector<8xf32>
    %488 = vector.shape_cast %487 : vector<8xf32> to vector<8x1xf32>
    %489 = tpu.reciprocal %488 {approx = true} : vector<8x1xf32> -> vector<8x1xf32>
    %490 = vector.broadcast %489 : vector<8x1xf32> to vector<8x2xf32>
    %491 = arith.mulf %486, %490 : vector<8x2xf32>
    %cst_117 = arith.constant dense<0xFF800000> : vector<8xf32>
    %492 = vector.multi_reduction <maximumf>, %402, %cst_117 [1] : vector<8x2xf32> to vector<8xf32>
    %493 = vector.shape_cast %492 : vector<8xf32> to vector<8x1xf32>
    %494 = vector.broadcast %493 : vector<8x1xf32> to vector<8x2xf32>
    %495 = arith.subf %402, %494 : vector<8x2xf32>
    %496 = math.exp %495 : vector<8x2xf32>
    %cst_118 = arith.constant dense<0.000000e+00> : vector<8xf32>
    %497 = vector.multi_reduction <add>, %496, %cst_118 [1] : vector<8x2xf32> to vector<8xf32>
    %498 = vector.shape_cast %497 : vector<8xf32> to vector<8x1xf32>
    %499 = tpu.reciprocal %498 {approx = true} : vector<8x1xf32> -> vector<8x1xf32>
    %500 = vector.broadcast %499 : vector<8x1xf32> to vector<8x2xf32>
    %501 = arith.mulf %496, %500 : vector<8x2xf32>
    %502 = arith.addf %471, %425 : vector<8x2xf32>
    %503 = arith.addf %481, %437 : vector<8x2xf32>
    %504 = arith.addf %491, %449 : vector<8x2xf32>
    %505 = arith.addf %501, %461 : vector<8x2xf32>
    %506 = vector.shape_cast %502 : vector<8x2xf32> to vector<8x2x1xf32>
    %507 = vector.broadcast %506 : vector<8x2x1xf32> to vector<8x2x64xf32>
    %508 = vector.broadcast %234 : vector<1x2x64xf32> to vector<8x2x64xf32>
    %509 = arith.mulf %507, %508 : vector<8x2x64xf32>
    %510 = vector.shape_cast %503 : vector<8x2xf32> to vector<8x2x1xf32>
    %511 = vector.broadcast %510 : vector<8x2x1xf32> to vector<8x2x64xf32>
    %512 = vector.broadcast %237 : vector<1x2x64xf32> to vector<8x2x64xf32>
    %513 = arith.mulf %511, %512 : vector<8x2x64xf32>
    %514 = arith.addf %509, %513 : vector<8x2x64xf32>
    %515 = vector.shape_cast %504 : vector<8x2xf32> to vector<8x2x1xf32>
    %516 = vector.broadcast %515 : vector<8x2x1xf32> to vector<8x2x64xf32>
    %517 = vector.broadcast %240 : vector<1x2x64xf32> to vector<8x2x64xf32>
    %518 = arith.mulf %516, %517 : vector<8x2x64xf32>
    %519 = arith.addf %514, %518 : vector<8x2x64xf32>
    %520 = vector.shape_cast %505 : vector<8x2xf32> to vector<8x2x1xf32>
    %521 = vector.broadcast %520 : vector<8x2x1xf32> to vector<8x2x64xf32>
    %522 = vector.broadcast %243 : vector<1x2x64xf32> to vector<8x2x64xf32>
    %523 = arith.mulf %521, %522 : vector<8x2x64xf32>
    %524 = arith.addf %519, %523 : vector<8x2x64xf32>
    %525 = arith.mulf %524, %524 : vector<8x2x64xf32>
    %cst_119 = arith.constant dense<0.000000e+00> : vector<8x2xf32>
    %526 = vector.multi_reduction <add>, %525, %cst_119 [2] : vector<8x2x64xf32> to vector<8x2xf32>
    %527 = vector.shape_cast %526 : vector<8x2xf32> to vector<8x2x1xf32>
    %cst_120 = arith.constant 1.000000e+00 : f32
    %528 = vector.broadcast %cst_120 : f32 to vector<8x2x1xf32>
    %529 = arith.addf %528, %527 : vector<8x2x1xf32>
    %530 = tpu.reciprocal %529 {approx = true} : vector<8x2x1xf32> -> vector<8x2x1xf32>
    %531 = arith.mulf %527, %530 : vector<8x2x1xf32>
    %cst_121 = arith.constant 9.99999993E-9 : f32
    %532 = vector.broadcast %cst_121 : f32 to vector<8x2x1xf32>
    %533 = arith.addf %527, %532 : vector<8x2x1xf32>
    %534 = math.rsqrt %533 : vector<8x2x1xf32>
    %535 = arith.mulf %531, %534 : vector<8x2x1xf32>
    %536 = vector.broadcast %535 : vector<8x2x1xf32> to vector<8x2x64xf32>
    %537 = arith.mulf %536, %524 : vector<8x2x64xf32>
    %538 = vector.broadcast %234 : vector<1x2x64xf32> to vector<8x2x64xf32>
    %539 = arith.mulf %538, %537 : vector<8x2x64xf32>
    %cst_122 = arith.constant dense<0.000000e+00> : vector<8x2xf32>
    %540 = vector.multi_reduction <add>, %539, %cst_122 [2] : vector<8x2x64xf32> to vector<8x2xf32>
    %541 = vector.broadcast %237 : vector<1x2x64xf32> to vector<8x2x64xf32>
    %542 = arith.mulf %541, %537 : vector<8x2x64xf32>
    %cst_123 = arith.constant dense<0.000000e+00> : vector<8x2xf32>
    %543 = vector.multi_reduction <add>, %542, %cst_123 [2] : vector<8x2x64xf32> to vector<8x2xf32>
    %544 = vector.broadcast %240 : vector<1x2x64xf32> to vector<8x2x64xf32>
    %545 = arith.mulf %544, %537 : vector<8x2x64xf32>
    %cst_124 = arith.constant dense<0.000000e+00> : vector<8x2xf32>
    %546 = vector.multi_reduction <add>, %545, %cst_124 [2] : vector<8x2x64xf32> to vector<8x2xf32>
    %547 = vector.broadcast %243 : vector<1x2x64xf32> to vector<8x2x64xf32>
    %548 = arith.mulf %547, %537 : vector<8x2x64xf32>
    %cst_125 = arith.constant dense<0.000000e+00> : vector<8x2xf32>
    %549 = vector.multi_reduction <add>, %548, %cst_125 [2] : vector<8x2x64xf32> to vector<8x2xf32>
    %cst_126 = arith.constant dense<0.000000e+00> : vector<8x2xf32>
    %550 = vector.multi_reduction <add>, %405, %cst_126 [2] : vector<8x2x64xf32> to vector<8x2xf32>
    %cst_127 = arith.constant 6.400000e+01 : f32
    %551 = vector.broadcast %cst_127 : f32 to vector<8x2xf32>
    %552 = arith.divf %550, %551 : vector<8x2xf32>
    %553 = arith.mulf %552, %540 : vector<8x2xf32>
    %554 = arith.addf %396, %553 : vector<8x2xf32>
    %555 = arith.mulf %552, %543 : vector<8x2xf32>
    %556 = arith.addf %398, %555 : vector<8x2xf32>
    %557 = arith.mulf %552, %546 : vector<8x2xf32>
    %558 = arith.addf %400, %557 : vector<8x2xf32>
    %559 = arith.mulf %552, %549 : vector<8x2xf32>
    %560 = arith.addf %402, %559 : vector<8x2xf32>
    %561 = arith.addf %405, %537 : vector<8x2x64xf32>
    %cst_128 = arith.constant 5.000000e-01 : f32
    %562 = vector.broadcast %cst_128 : f32 to vector<8x2x64xf32>
    %563 = arith.mulf %561, %562 : vector<8x2x64xf32>
    %cst_129 = arith.constant dense<0.000000e+00> : vector<8x2xf32>
    %564 = vector.multi_reduction <add>, %563, %cst_129 [2] : vector<8x2x64xf32> to vector<8x2xf32>
    %565 = vector.shape_cast %564 : vector<8x2xf32> to vector<8x2x1xf32>
    %cst_130 = arith.constant 6.400000e+01 : f32
    %566 = vector.broadcast %cst_130 : f32 to vector<8x2x1xf32>
    %567 = arith.divf %565, %566 : vector<8x2x1xf32>
    %568 = vector.broadcast %567 : vector<8x2x1xf32> to vector<8x2x64xf32>
    %569 = arith.subf %563, %568 : vector<8x2x64xf32>
    %570 = arith.mulf %569, %569 : vector<8x2x64xf32>
    %cst_131 = arith.constant dense<0.000000e+00> : vector<8x2xf32>
    %571 = vector.multi_reduction <add>, %570, %cst_131 [2] : vector<8x2x64xf32> to vector<8x2xf32>
    %572 = vector.broadcast %210 : vector<1x2x64xf32> to vector<8x2x64xf32>
    %573 = arith.mulf %572, %569 : vector<8x2x64xf32>
    %cst_132 = arith.constant dense<0.000000e+00> : vector<8x2xf32>
    %574 = vector.multi_reduction <add>, %573, %cst_132 [2] : vector<8x2x64xf32> to vector<8x2xf32>
    %cst_133 = arith.constant 1.000000e+00 : f32
    %575 = vector.broadcast %cst_133 : f32 to vector<8x2xf32>
    %576 = arith.mulf %575, %574 : vector<8x2xf32>
    %577 = vector.broadcast %222 : vector<1x2xf32> to vector<8x2xf32>
    %578 = arith.mulf %577, %571 : vector<8x2xf32>
    %cst_134 = arith.constant 9.99999996E-13 : f32
    %579 = vector.broadcast %cst_134 : f32 to vector<8x2xf32>
    %580 = arith.addf %578, %579 : vector<8x2xf32>
    %581 = math.rsqrt %580 : vector<8x2xf32>
    %582 = arith.mulf %576, %581 : vector<8x2xf32>
    %583 = math.tanh %582 : vector<8x2xf32>
    %584 = vector.broadcast %213 : vector<1x2x64xf32> to vector<8x2x64xf32>
    %585 = arith.mulf %584, %569 : vector<8x2x64xf32>
    %cst_135 = arith.constant dense<0.000000e+00> : vector<8x2xf32>
    %586 = vector.multi_reduction <add>, %585, %cst_135 [2] : vector<8x2x64xf32> to vector<8x2xf32>
    %cst_136 = arith.constant 1.000000e+00 : f32
    %587 = vector.broadcast %cst_136 : f32 to vector<8x2xf32>
    %588 = arith.mulf %587, %586 : vector<8x2xf32>
    %589 = vector.broadcast %225 : vector<1x2xf32> to vector<8x2xf32>
    %590 = arith.mulf %589, %571 : vector<8x2xf32>
    %cst_137 = arith.constant 9.99999996E-13 : f32
    %591 = vector.broadcast %cst_137 : f32 to vector<8x2xf32>
    %592 = arith.addf %590, %591 : vector<8x2xf32>
    %593 = math.rsqrt %592 : vector<8x2xf32>
    %594 = arith.mulf %588, %593 : vector<8x2xf32>
    %595 = math.tanh %594 : vector<8x2xf32>
    %596 = vector.broadcast %216 : vector<1x2x64xf32> to vector<8x2x64xf32>
    %597 = arith.mulf %596, %569 : vector<8x2x64xf32>
    %cst_138 = arith.constant dense<0.000000e+00> : vector<8x2xf32>
    %598 = vector.multi_reduction <add>, %597, %cst_138 [2] : vector<8x2x64xf32> to vector<8x2xf32>
    %cst_139 = arith.constant 1.000000e+00 : f32
    %599 = vector.broadcast %cst_139 : f32 to vector<8x2xf32>
    %600 = arith.mulf %599, %598 : vector<8x2xf32>
    %601 = vector.broadcast %228 : vector<1x2xf32> to vector<8x2xf32>
    %602 = arith.mulf %601, %571 : vector<8x2xf32>
    %cst_140 = arith.constant 9.99999996E-13 : f32
    %603 = vector.broadcast %cst_140 : f32 to vector<8x2xf32>
    %604 = arith.addf %602, %603 : vector<8x2xf32>
    %605 = math.rsqrt %604 : vector<8x2xf32>
    %606 = arith.mulf %600, %605 : vector<8x2xf32>
    %607 = math.tanh %606 : vector<8x2xf32>
    %608 = vector.broadcast %219 : vector<1x2x64xf32> to vector<8x2x64xf32>
    %609 = arith.mulf %608, %569 : vector<8x2x64xf32>
    %cst_141 = arith.constant dense<0.000000e+00> : vector<8x2xf32>
    %610 = vector.multi_reduction <add>, %609, %cst_141 [2] : vector<8x2x64xf32> to vector<8x2xf32>
    %cst_142 = arith.constant 1.000000e+00 : f32
    %611 = vector.broadcast %cst_142 : f32 to vector<8x2xf32>
    %612 = arith.mulf %611, %610 : vector<8x2xf32>
    %613 = vector.broadcast %231 : vector<1x2xf32> to vector<8x2xf32>
    %614 = arith.mulf %613, %571 : vector<8x2xf32>
    %cst_143 = arith.constant 9.99999996E-13 : f32
    %615 = vector.broadcast %cst_143 : f32 to vector<8x2xf32>
    %616 = arith.addf %614, %615 : vector<8x2xf32>
    %617 = math.rsqrt %616 : vector<8x2xf32>
    %618 = arith.mulf %612, %617 : vector<8x2xf32>
    %619 = math.tanh %618 : vector<8x2xf32>
    %cst_144 = arith.constant dense<0xFF800000> : vector<8xf32>
    %620 = vector.multi_reduction <maximumf>, %554, %cst_144 [1] : vector<8x2xf32> to vector<8xf32>
    %621 = vector.shape_cast %620 : vector<8xf32> to vector<8x1xf32>
    %622 = vector.broadcast %621 : vector<8x1xf32> to vector<8x2xf32>
    %623 = arith.subf %554, %622 : vector<8x2xf32>
    %624 = math.exp %623 : vector<8x2xf32>
    %cst_145 = arith.constant dense<0.000000e+00> : vector<8xf32>
    %625 = vector.multi_reduction <add>, %624, %cst_145 [1] : vector<8x2xf32> to vector<8xf32>
    %626 = vector.shape_cast %625 : vector<8xf32> to vector<8x1xf32>
    %627 = tpu.reciprocal %626 {approx = true} : vector<8x1xf32> -> vector<8x1xf32>
    %628 = vector.broadcast %627 : vector<8x1xf32> to vector<8x2xf32>
    %629 = arith.mulf %624, %628 : vector<8x2xf32>
    %cst_146 = arith.constant dense<0xFF800000> : vector<8xf32>
    %630 = vector.multi_reduction <maximumf>, %556, %cst_146 [1] : vector<8x2xf32> to vector<8xf32>
    %631 = vector.shape_cast %630 : vector<8xf32> to vector<8x1xf32>
    %632 = vector.broadcast %631 : vector<8x1xf32> to vector<8x2xf32>
    %633 = arith.subf %556, %632 : vector<8x2xf32>
    %634 = math.exp %633 : vector<8x2xf32>
    %cst_147 = arith.constant dense<0.000000e+00> : vector<8xf32>
    %635 = vector.multi_reduction <add>, %634, %cst_147 [1] : vector<8x2xf32> to vector<8xf32>
    %636 = vector.shape_cast %635 : vector<8xf32> to vector<8x1xf32>
    %637 = tpu.reciprocal %636 {approx = true} : vector<8x1xf32> -> vector<8x1xf32>
    %638 = vector.broadcast %637 : vector<8x1xf32> to vector<8x2xf32>
    %639 = arith.mulf %634, %638 : vector<8x2xf32>
    %cst_148 = arith.constant dense<0xFF800000> : vector<8xf32>
    %640 = vector.multi_reduction <maximumf>, %558, %cst_148 [1] : vector<8x2xf32> to vector<8xf32>
    %641 = vector.shape_cast %640 : vector<8xf32> to vector<8x1xf32>
    %642 = vector.broadcast %641 : vector<8x1xf32> to vector<8x2xf32>
    %643 = arith.subf %558, %642 : vector<8x2xf32>
    %644 = math.exp %643 : vector<8x2xf32>
    %cst_149 = arith.constant dense<0.000000e+00> : vector<8xf32>
    %645 = vector.multi_reduction <add>, %644, %cst_149 [1] : vector<8x2xf32> to vector<8xf32>
    %646 = vector.shape_cast %645 : vector<8xf32> to vector<8x1xf32>
    %647 = tpu.reciprocal %646 {approx = true} : vector<8x1xf32> -> vector<8x1xf32>
    %648 = vector.broadcast %647 : vector<8x1xf32> to vector<8x2xf32>
    %649 = arith.mulf %644, %648 : vector<8x2xf32>
    %cst_150 = arith.constant dense<0xFF800000> : vector<8xf32>
    %650 = vector.multi_reduction <maximumf>, %560, %cst_150 [1] : vector<8x2xf32> to vector<8xf32>
    %651 = vector.shape_cast %650 : vector<8xf32> to vector<8x1xf32>
    %652 = vector.broadcast %651 : vector<8x1xf32> to vector<8x2xf32>
    %653 = arith.subf %560, %652 : vector<8x2xf32>
    %654 = math.exp %653 : vector<8x2xf32>
    %cst_151 = arith.constant dense<0.000000e+00> : vector<8xf32>
    %655 = vector.multi_reduction <add>, %654, %cst_151 [1] : vector<8x2xf32> to vector<8xf32>
    %656 = vector.shape_cast %655 : vector<8xf32> to vector<8x1xf32>
    %657 = tpu.reciprocal %656 {approx = true} : vector<8x1xf32> -> vector<8x1xf32>
    %658 = vector.broadcast %657 : vector<8x1xf32> to vector<8x2xf32>
    %659 = arith.mulf %654, %658 : vector<8x2xf32>
    %660 = arith.addf %629, %583 : vector<8x2xf32>
    %661 = arith.addf %639, %595 : vector<8x2xf32>
    %662 = arith.addf %649, %607 : vector<8x2xf32>
    %663 = arith.addf %659, %619 : vector<8x2xf32>
    %664 = vector.shape_cast %660 : vector<8x2xf32> to vector<8x2x1xf32>
    %665 = vector.broadcast %664 : vector<8x2x1xf32> to vector<8x2x64xf32>
    %666 = vector.broadcast %234 : vector<1x2x64xf32> to vector<8x2x64xf32>
    %667 = arith.mulf %665, %666 : vector<8x2x64xf32>
    %668 = vector.shape_cast %661 : vector<8x2xf32> to vector<8x2x1xf32>
    %669 = vector.broadcast %668 : vector<8x2x1xf32> to vector<8x2x64xf32>
    %670 = vector.broadcast %237 : vector<1x2x64xf32> to vector<8x2x64xf32>
    %671 = arith.mulf %669, %670 : vector<8x2x64xf32>
    %672 = arith.addf %667, %671 : vector<8x2x64xf32>
    %673 = vector.shape_cast %662 : vector<8x2xf32> to vector<8x2x1xf32>
    %674 = vector.broadcast %673 : vector<8x2x1xf32> to vector<8x2x64xf32>
    %675 = vector.broadcast %240 : vector<1x2x64xf32> to vector<8x2x64xf32>
    %676 = arith.mulf %674, %675 : vector<8x2x64xf32>
    %677 = arith.addf %672, %676 : vector<8x2x64xf32>
    %678 = vector.shape_cast %663 : vector<8x2xf32> to vector<8x2x1xf32>
    %679 = vector.broadcast %678 : vector<8x2x1xf32> to vector<8x2x64xf32>
    %680 = vector.broadcast %243 : vector<1x2x64xf32> to vector<8x2x64xf32>
    %681 = arith.mulf %679, %680 : vector<8x2x64xf32>
    %682 = arith.addf %677, %681 : vector<8x2x64xf32>
    %683 = arith.mulf %682, %682 : vector<8x2x64xf32>
    %cst_152 = arith.constant dense<0.000000e+00> : vector<8x2xf32>
    %684 = vector.multi_reduction <add>, %683, %cst_152 [2] : vector<8x2x64xf32> to vector<8x2xf32>
    %685 = vector.shape_cast %684 : vector<8x2xf32> to vector<8x2x1xf32>
    %cst_153 = arith.constant 1.000000e+00 : f32
    %686 = vector.broadcast %cst_153 : f32 to vector<8x2x1xf32>
    %687 = arith.addf %686, %685 : vector<8x2x1xf32>
    %688 = tpu.reciprocal %687 {approx = true} : vector<8x2x1xf32> -> vector<8x2x1xf32>
    %689 = arith.mulf %685, %688 : vector<8x2x1xf32>
    %cst_154 = arith.constant 9.99999993E-9 : f32
    %690 = vector.broadcast %cst_154 : f32 to vector<8x2x1xf32>
    %691 = arith.addf %685, %690 : vector<8x2x1xf32>
    %692 = math.rsqrt %691 : vector<8x2x1xf32>
    %693 = arith.mulf %689, %692 : vector<8x2x1xf32>
    %694 = vector.broadcast %693 : vector<8x2x1xf32> to vector<8x2x64xf32>
    %695 = arith.mulf %694, %682 : vector<8x2x64xf32>
    %696 = vector.shape_cast %695 : vector<8x2x64xf32> to vector<8x128xf32>
    %697 = arith.mulf %189, %189 : vector<8x128xf32>
    %cst_155 = arith.constant dense<0.000000e+00> : vector<8xf32>
    %698 = vector.multi_reduction <add>, %697, %cst_155 [1] : vector<8x128xf32> to vector<8xf32>
    %699 = vector.shape_cast %698 : vector<8xf32> to vector<8x1xf32>
    %cst_156 = arith.constant 1.000000e-24 : f32
    %700 = vector.broadcast %cst_156 : f32 to vector<8x1xf32>
    %701 = arith.maximumf %699, %700 : vector<8x1xf32>
    %702 = math.rsqrt %701 : vector<8x1xf32>
    %703 = vector.broadcast %702 : vector<8x1xf32> to vector<8x128xf32>
    %704 = arith.mulf %189, %703 : vector<8x128xf32>
    %705 = arith.mulf %696, %696 : vector<8x128xf32>
    %cst_157 = arith.constant dense<0.000000e+00> : vector<8xf32>
    %706 = vector.multi_reduction <add>, %705, %cst_157 [1] : vector<8x128xf32> to vector<8xf32>
    %707 = vector.shape_cast %706 : vector<8xf32> to vector<8x1xf32>
    %cst_158 = arith.constant 1.000000e-24 : f32
    %708 = vector.broadcast %cst_158 : f32 to vector<8x1xf32>
    %709 = arith.maximumf %707, %708 : vector<8x1xf32>
    %710 = math.rsqrt %709 : vector<8x1xf32>
    %711 = vector.broadcast %710 : vector<8x1xf32> to vector<8x128xf32>
    %712 = arith.mulf %696, %711 : vector<8x128xf32>
    %713 = arith.mulf %712, %704 : vector<8x128xf32>
    %cst_159 = arith.constant dense<0.000000e+00> : vector<8xf32>
    %714 = vector.multi_reduction <add>, %713, %cst_159 [1] : vector<8x128xf32> to vector<8xf32>
    %715 = vector.shape_cast %714 : vector<8xf32> to vector<8x1xf32>
    %716 = vector.shape_cast %715 : vector<8x1xf32> to vector<1x8x1xf32>
    %c0_160 = arith.constant 0 : index
    %c0_161 = arith.constant 0 : index
    %c0_162 = arith.constant 0 : index
    %717 = vector.load %arg8[%c0_160, %c0_161, %c0_162] : memref<1x8x1xf32, #tpu.memory_space<vmem>>, vector<1x8x1xf32>
    tpu.vector_store %arg8[%c0_160, %c0_161, %c0_162], %716 {strides = array<i32>} : memref<1x8x1xf32, #tpu.memory_space<vmem>>, vector<1x8x1xf32>,
    return
  }
  func.func @transform_0(%arg0: i32) -> (i32, i32) {
    %c0_i32 = arith.constant 0 : i32
    %c0_i32_0 = arith.constant 0 : i32
    %c0_i32_1 = arith.constant 0 : i32
    return %c0_i32, %c0_i32_0 : i32, i32
  }
  func.func @transform_1(%arg0: i32) -> (i32, i32) {
    %c0_i32 = arith.constant 0 : i32
    %c0_i32_0 = arith.constant 0 : i32
    %c0_i32_1 = arith.constant 0 : i32
    return %c0_i32, %c0_i32_0 : i32, i32
  }
  func.func @transform_2(%arg0: i32) -> (i32, i32) {
    %c0_i32 = arith.constant 0 : i32
    %c0_i32_0 = arith.constant 0 : i32
    %c0_i32_1 = arith.constant 0 : i32
    return %c0_i32, %c0_i32_0 : i32, i32
  }
  func.func @transform_3(%arg0: i32) -> (i32, i32) {
    %c0_i32 = arith.constant 0 : i32
    %c0_i32_0 = arith.constant 0 : i32
    %c0_i32_1 = arith.constant 0 : i32
    return %c0_i32, %c0_i32_0 : i32, i32
  }
  func.func @transform_4(%arg0: i32) -> (i32, i32) {
    %c0_i32 = arith.constant 0 : i32
    %c0_i32_0 = arith.constant 0 : i32
    %c0_i32_1 = arith.constant 0 : i32
    return %c0_i32, %c0_i32_0 : i32, i32
  }
  func.func @transform_5(%arg0: i32) -> (i32, i32, i32) {
    %c0_i32 = arith.constant 0 : i32
    %c0_i32_0 = arith.constant 0 : i32
    %c0_i32_1 = arith.constant 0 : i32
    return %arg0, %c0_i32, %c0_i32_0 : i32, i32, i32
  }
  func.func @transform_6(%arg0: i32) -> (i32, i32) {
    %c0_i32 = arith.constant 0 : i32
    %c0_i32_0 = arith.constant 0 : i32
    %c0_i32_1 = arith.constant 0 : i32
    return %c0_i32, %c0_i32_0 : i32, i32
  }
  func.func @transform_7(%arg0: i32) -> (i32, i32, i32) {
    %c0_i32 = arith.constant 0 : i32
    %c0_i32_0 = arith.constant 0 : i32
    %c0_i32_1 = arith.constant 0 : i32
    return %arg0, %c0_i32, %c0_i32_0 : i32, i32, i32
  }
}

</mosaic_0001>

<llo_original>
// kernel: dmr_induction_forward.1
$region0: #{dmr_induction_forward.1}
  #allocation0 [shape = 'u32[]', space=smem, size = 0x4, offset = 0x4, fixed_abs, tag = 'smem constant byte address 0x4 - core index']
  #allocation1 [shape = 'u32[72,128]{1,0:T(1,128)}', space=vmem, size = 0x9000, scoped, tag = 'internal scratch']
  %s0 = inlined_call_operand.vmem [shape: bf16[128,128], index: 0, kind: input, shape index: {}]
  %s1 = inlined_call_operand.vmem [shape: f32[1,128], index: 1, kind: input, shape index: {}]
  %s2 = inlined_call_operand.vmem [shape: bf16[128,128], index: 2, kind: input, shape index: {}]
  %s3 = inlined_call_operand.vmem [shape: f32[4,128], index: 3, kind: input, shape index: {}]
  %s4 = inlined_call_operand.vmem [shape: f32[1,128], index: 4, kind: input, shape index: {}]
  %s5 = inlined_call_operand.vmem [shape: f32[2,4,128], index: 5, kind: input, shape index: {}]
  %s6 = inlined_call_operand.vmem [shape: f32[8,128], index: 6, kind: input, shape index: {}]
  %s7 = inlined_call_operand.vmem [shape: f32[2,8,1], index: 7, kind: output, shape index: {}]
  %s8 = sld [smem:[#allocation0]]
  $region61: #{dmr_induction_forward.1} parent=0
    _
  %s10 = ssub.s32 1, %s8
  %s11 = scalar_select 0, %s10, %s8
  loop: start=0, step=1, limit=4
  $region2: #{dmr_induction_forward.1} parent=0 // loop_pre_header
    _
  $region3: #{dmr_induction_forward.1} parent=0 // loop_header
    %s13 = sphi 0, %s17
    %p14 = scmp.ge.s32.totalorder %s13, 4
    %s21 = sphi 0, %s21
    %s23 = sphi 0, %s21
    %s24 = sphi 0, %s23
    %s38 = sphi 0, %s24
    %s42 = sphi 0, %s42
    %s44 = sphi 0, %s42
    %s45 = sphi 0, %s44
    %s59 = sphi 0, %s45
    %s63 = sphi 0, %s63
    %s65 = sphi 0, %s63
    %s66 = sphi 0, %s65
    %s80 = sphi 0, %s66
    %s84 = sphi 0, %s84
    %s86 = sphi 0, %s84
    %s87 = sphi 0, %s86
    %s101 = sphi 0, %s87
    %s105 = sphi 0, %s105
    %s107 = sphi 0, %s105
    %s108 = sphi 0, %s107
    %s122 = sphi 0, %s108
    %s128 = sphi 0, %s130
    %s131 = sphi 0, %s128
    %s132 = sphi 0, %s131
    %s148 = sphi 0, %s132
    %s152 = sphi 0, %s152
    %s154 = sphi 0, %s152
    %s155 = sphi 0, %s154
    %s169 = sphi 0, %s155
    %s175 = sphi 0, %s177
    %s178 = sphi 0, %s175
    %s179 = sphi 0, %s178
    %s195 = sphi 0, %s179
  $region4: #{dmr_induction_forward.1} parent=0 // loop_header_branch
    %16 = sbr.rel (%p14) target = $region8
  $region5: #{dmr_induction_forward.1} parent=0 // loop_body
    %s18 = ssub.s32 %s13, 1
    %s19 = ssub.s32 %s13, 2
    %s20 = sadd.s32 %s13, 1
    %s22 = sadd.s32 %s21, 1
    %p25 = scmp.eq.s32.totalorder %s13, 1
    %p26 = scmp.ne.s32.totalorder %s21, %s23
    %p27 = scmp.eq.s32.totalorder %s13, 0
    %p28 = por %p26, %p27
    %p29 = scmp.ne.s32.totalorder %s21, %s23
    %p30 = scmp.eq.s32.totalorder %s18, 1
    %p31 = por %p29, %p30
    %p32 = scmp.ne.s32.totalorder %s23, %s24
    %p33 = scmp.eq.s32.totalorder %s18, 0
    %p34 = por %p32, %p33
    %p35 = scmp.ne.s32.totalorder %s23, %s24
    %p36 = scmp.eq.s32.totalorder %s19, 1
    %p37 = por %p35, %p36
    %p39 = scmp.ne.s32.totalorder %s24, %s38
    %p40 = scmp.eq.s32.totalorder %s19, 0
    %p41 = por %p39, %p40
    %s43 = sadd.s32 %s42, 1
    %p46 = scmp.eq.s32.totalorder %s13, 1
    %p47 = scmp.ne.s32.totalorder %s42, %s44
    %p48 = scmp.eq.s32.totalorder %s13, 0
    %p49 = por %p47, %p48
    %p50 = scmp.ne.s32.totalorder %s42, %s44
    %p51 = scmp.eq.s32.totalorder %s18, 1
    %p52 = por %p50, %p51
    %p53 = scmp.ne.s32.totalorder %s44, %s45
    %p54 = scmp.eq.s32.totalorder %s18, 0
    %p55 = por %p53, %p54
    %p56 = scmp.ne.s32.totalorder %s44, %s45
    %p57 = scmp.eq.s32.totalorder %s19, 1
    %p58 = por %p56, %p57
    %p60 = scmp.ne.s32.totalorder %s45, %s59
    %p61 = scmp.eq.s32.totalorder %s19, 0
    %p62 = por %p60, %p61
    %s64 = sadd.s32 %s63, 1
    %p67 = scmp.eq.s32.totalorder %s13, 1
    %p68 = scmp.ne.s32.totalorder %s63, %s65
    %p69 = scmp.eq.s32.totalorder %s13, 0
    %p70 = por %p68, %p69
    %p71 = scmp.ne.s32.totalorder %s63, %s65
    %p72 = scmp.eq.s32.totalorder %s18, 1
    %p73 = por %p71, %p72
    %p74 = scmp.ne.s32.totalorder %s65, %s66
    %p75 = scmp.eq.s32.totalorder %s18, 0
    %p76 = por %p74, %p75
    %p77 = scmp.ne.s32.totalorder %s65, %s66
    %p78 = scmp.eq.s32.totalorder %s19, 1
    %p79 = por %p77, %p78
    %p81 = scmp.ne.s32.totalorder %s66, %s80
    %p82 = scmp.eq.s32.totalorder %s19, 0
    %p83 = por %p81, %p82
    %s85 = sadd.s32 %s84, 1
    %p88 = scmp.eq.s32.totalorder %s13, 1
    %p89 = scmp.ne.s32.totalorder %s84, %s86
    %p90 = scmp.eq.s32.totalorder %s13, 0
    %p91 = por %p89, %p90
    %p92 = scmp.ne.s32.totalorder %s84, %s86
    %p93 = scmp.eq.s32.totalorder %s18, 1
    %p94 = por %p92, %p93
    %p95 = scmp.ne.s32.totalorder %s86, %s87
    %p96 = scmp.eq.s32.totalorder %s18, 0
    %p97 = por %p95, %p96
    %p98 = scmp.ne.s32.totalorder %s86, %s87
    %p99 = scmp.eq.s32.totalorder %s19, 1
    %p100 = por %p98, %p99
    %p102 = scmp.ne.s32.totalorder %s87, %s101
    %p103 = scmp.eq.s32.totalorder %s19, 0
    %p104 = por %p102, %p103
    %s106 = sadd.s32 %s105, 1
    %p109 = scmp.eq.s32.totalorder %s13, 1
    %p110 = scmp.ne.s32.totalorder %s105, %s107
    %p111 = scmp.eq.s32.totalorder %s13, 0
    %p112 = por %p110, %p111
    %p113 = scmp.ne.s32.totalorder %s105, %s107
    %p114 = scmp.eq.s32.totalorder %s18, 1
    %p115 = por %p113, %p114
    %p116 = scmp.ne.s32.totalorder %s107, %s108
    %p117 = scmp.eq.s32.totalorder %s18, 0
    %p118 = por %p116, %p117
    %p119 = scmp.ne.s32.totalorder %s107, %s108
    %p120 = scmp.eq.s32.totalorder %s19, 1
    %p121 = por %p119, %p120
    %p123 = scmp.ne.s32.totalorder %s108, %s122
    %p124 = scmp.eq.s32.totalorder %s19, 0
    %p125 = por %p123, %p124
    %s126 = ssub.s32 %s13, %s20
    %p127 = scmp.eq.s32.totalorder %s126, 0
    %s129 = sadd.s32 %s128, 1
    %s130 = scalar_select %p127, %s128, %s129
    %p133 = pneg %p127
    %p134 = scmp.eq.s32.totalorder %s13, 1
    %p135 = por %p133, %p134
    %p136 = scmp.ne.s32.totalorder %s128, %s131
    %p137 = scmp.eq.s32.totalorder %s13, 0
    %p138 = por %p136, %p137
    %p139 = scmp.ne.s32.totalorder %s128, %s131
    %p140 = scmp.eq.s32.totalorder %s18, 1
    %p141 = por %p139, %p140
    %p142 = scmp.ne.s32.totalorder %s131, %s132
    %p143 = scmp.eq.s32.totalorder %s18, 0
    %p144 = por %p142, %p143
    %p145 = scmp.ne.s32.totalorder %s131, %s132
    %p146 = scmp.eq.s32.totalorder %s19, 1
    %p147 = por %p145, %p146
    %p149 = scmp.ne.s32.totalorder %s132, %s148
    %p150 = scmp.eq.s32.totalorder %s19, 0
    %p151 = por %p149, %p150
    %s153 = sadd.s32 %s152, 1
    %p156 = scmp.eq.s32.totalorder %s13, 1
    %p157 = scmp.ne.s32.totalorder %s152, %s154
    %p158 = scmp.eq.s32.totalorder %s13, 0
    %p159 = por %p157, %p158
    %p160 = scmp.ne.s32.totalorder %s152, %s154
    %p161 = scmp.eq.s32.totalorder %s18, 1
    %p162 = por %p160, %p161
    %p163 = scmp.ne.s32.totalorder %s154, %s155
    %p164 = scmp.eq.s32.totalorder %s18, 0
    %p165 = por %p163, %p164
    %p166 = scmp.ne.s32.totalorder %s154, %s155
    %p167 = scmp.eq.s32.totalorder %s19, 1
    %p168 = por %p166, %p167
    %p170 = scmp.ne.s32.totalorder %s155, %s169
    %p171 = scmp.eq.s32.totalorder %s19, 0
    %p172 = por %p170, %p171
    %s173 = ssub.s32 %s13, %s20
    %p174 = scmp.eq.s32.totalorder %s173, 0
    %s176 = sadd.s32 %s175, 1
    %s177 = scalar_select %p174, %s175, %s176
    %p180 = pneg %p174
    %p181 = scmp.eq.s32.totalorder %s13, 1
    %p182 = por %p180, %p181
    %p183 = scmp.ne.s32.totalorder %s175, %s178
    %p184 = scmp.eq.s32.totalorder %s13, 0
    %p185 = por %p183, %p184
    %p186 = scmp.ne.s32.totalorder %s175, %s178
    %p187 = scmp.eq.s32.totalorder %s18, 1
    %p188 = por %p186, %p187
    %p189 = scmp.ne.s32.totalorder %s178, %s179
    %p190 = scmp.eq.s32.totalorder %s18, 0
    %p191 = por %p189, %p190
    %p192 = scmp.ne.s32.totalorder %s178, %s179
    %p193 = scmp.eq.s32.totalorder %s19, 1
    %p194 = por %p192, %p193
    %p196 = scmp.ne.s32.totalorder %s179, %s195
    %p197 = scmp.eq.s32.totalorder %s19, 0
    %p198 = por %p196, %p197
    %p199 = scmp.le.s32.totalorder 1, %s13
    %p200 = scmp.lt.s32.totalorder %s13, 3
    %p201 = pnand %p199, %p200
    %p202 = pneg %p201
    // Predicated region
    $region9: #{dmr_induction_forward.1} parent=5 // pred_check
      _
    $region10: #{dmr_induction_forward.1} parent=5 // pred_check_branch
      %204 = sbr.rel (%p201) target = $region12
    $region11: #{dmr_induction_forward.1} parent=5 // pred_region
      %s205 = ssub.s32 %s13, 1
      // Predicated region
      $region13: #{dmr_induction_forward.1} parent=11 // pred_check
        %p206 = pneg %p34
      $region14: #{dmr_induction_forward.1} parent=11 // pred_check_branch
        %208 = sbr.rel (%p206) target = $region16
      $region15: #{dmr_induction_forward.1} parent=11 // pred_region
        _
      $region16: #{dmr_induction_forward.1} parent=11 // pred_fallthru
        _
      // Predicated region
      $region17: #{dmr_induction_forward.1} parent=11 // pred_check
        %p209 = pneg %p55
      $region18: #{dmr_induction_forward.1} parent=11 // pred_check_branch
        %211 = sbr.rel (%p209) target = $region20
      $region19: #{dmr_induction_forward.1} parent=11 // pred_region
        _
      $region20: #{dmr_induction_forward.1} parent=11 // pred_fallthru
        _
      // Predicated region
      $region21: #{dmr_induction_forward.1} parent=11 // pred_check
        %p212 = pneg %p76
      $region22: #{dmr_induction_forward.1} parent=11 // pred_check_branch
        %214 = sbr.rel (%p212) target = $region24
      $region23: #{dmr_induction_forward.1} parent=11 // pred_region
        _
      $region24: #{dmr_induction_forward.1} parent=11 // pred_fallthru
        _
      // Predicated region
      $region25: #{dmr_induction_forward.1} parent=11 // pred_check
        %p215 = pneg %p97
      $region26: #{dmr_induction_forward.1} parent=11 // pred_check_branch
        %217 = sbr.rel (%p215) target = $region28
      $region27: #{dmr_induction_forward.1} parent=11 // pred_region
        _
      $region28: #{dmr_induction_forward.1} parent=11 // pred_fallthru
        _
      // Predicated region
      $region29: #{dmr_induction_forward.1} parent=11 // pred_check
        %p218 = pneg %p118
      $region30: #{dmr_induction_forward.1} parent=11 // pred_check_branch
        %220 = sbr.rel (%p218) target = $region32
      $region31: #{dmr_induction_forward.1} parent=11 // pred_region
        _
      $region32: #{dmr_induction_forward.1} parent=11 // pred_fallthru
        _
      // Predicated region
      $region33: #{dmr_induction_forward.1} parent=11 // pred_check
        %p221 = pneg %p165
      $region34: #{dmr_induction_forward.1} parent=11 // pred_check_branch
        %223 = sbr.rel (%p221) target = $region36
      $region35: #{dmr_induction_forward.1} parent=11 // pred_region
        _
      $region36: #{dmr_induction_forward.1} parent=11 // pred_fallthru
        _
    $region12: #{dmr_induction_forward.1} parent=5 // pred_fallthru
      _
    %p224 = scmp.lt.s32.totalorder %s13, 2
    // Predicated region
    $region37: #{dmr_induction_forward.1} parent=5 // pred_check
      %p225 = pneg %p224
    $region38: #{dmr_induction_forward.1} parent=5 // pred_check_branch
      %227 = sbr.rel (%p225) target = $region40
    $region39: #{dmr_induction_forward.1} parent=5 // pred_region
      // Predicated region
      $region41: #{dmr_induction_forward.1} parent=39 // pred_check
        %p228 = pneg %p138
      $region42: #{dmr_induction_forward.1} parent=39 // pred_check_branch
        %230 = sbr.rel (%p228) target = $region44
      $region43: #{dmr_induction_forward.1} parent=39 // pred_region
        %p231 = scmp.lt.s32.totalorder %s13, 1
        %s232 = scalar_select %p231, %s13, 1
        %s233 = smul.addr %s232, 4
        %s234 = scalar_lea.vmem %s5, %s233
      $region44: #{dmr_induction_forward.1} parent=39 // pred_fallthru
        _
    $region40: #{dmr_induction_forward.1} parent=5 // pred_fallthru
      _
    %p235 = scmp.le.s32.totalorder 1, %s13
    %p236 = scmp.lt.s32.totalorder %s13, 3
    %p237 = pnand %p235, %p236
    %p238 = pneg %p237
    // Predicated region
    $region45: #{dmr_induction_forward.1} parent=5 // pred_check
      _
    $region46: #{dmr_induction_forward.1} parent=5 // pred_check_branch
      %240 = sbr.rel (%p237) target = $region48
    $region47: #{dmr_induction_forward.1} parent=5 // pred_region
      %s241 = ssub.s32 %s13, 1
      %p242 = pneg %p34
      %p243 = pneg %p31
      %p244 = pneg %p55
      %p245 = pneg %p52
      %p246 = pneg %p76
      %p247 = pneg %p73
      %p248 = pneg %p97
      %p249 = pneg %p94
      %p250 = pneg %p118
      %p251 = pneg %p115
      %p252 = scmp.lt.s32.totalorder %s18, 1
      %s253 = scalar_select %p252, %s18, 1
      %s254 = smul.addr %s253, 4
      %s255 = scalar_lea.vmem %s5, %s254
      %p256 = pneg %p144
      %p257 = pneg %p141
      %p258 = pneg %p165
      %p259 = pneg %p162
      %p260 = pneg %p191
      %p261 = pneg %p188
      %p262 = scmp.lt.s32.totalorder %s18, 1
      %s263 = scalar_select %p262, %s18, 1
      %s264 = smul.addr %s263, 8
      %s265 = scalar_lea.vmem %s7, %s264
      %p266 = scmp.lt.s32.totalorder %s18, 1
      %s267 = scalar_select %p266, %s18, 1
      %s268 = smul.addr %s267, 4
      %s269 = scalar_lea.vmem %s5, %s268
      %p270 = scmp.lt.s32.totalorder %s18, 1
      %s271 = scalar_select %p270, %s18, 1
      %s272 = smul.addr %s271, 8
      %s273 = scalar_lea.vmem %s7, %s272
      %v274 = vld [vmem:[%s269] sm:$0xf]
      %v275 = vld [vmem:[%s0] sm:$0xf]
      %v276 = vld [vmem:[%s0 + $0x4] sm:$0xf]
      %v277 = vld [vmem:[%s0 + $0x8] sm:$0xf]
      %v278 = vld [vmem:[%s0 + $0xc] sm:$0xf]
      %v279 = vld [vmem:[%s0 + $0x10] sm:$0xf]
      %v280 = vld [vmem:[%s0 + $0x14] sm:$0xf]
      %v281 = vld [vmem:[%s0 + $0x18] sm:$0xf]
      %v282 = vld [vmem:[%s0 + $0x1c] sm:$0xf]
      %v283 = vld [vmem:[%s0 + $0x20] sm:$0xf]
      %v284 = vld [vmem:[%s0 + $0x24] sm:$0xf]
      %v285 = vld [vmem:[%s0 + $0x28] sm:$0xf]
      %v286 = vld [vmem:[%s0 + $0x2c] sm:$0xf]
      %v287 = vld [vmem:[%s0 + $0x30] sm:$0xf]
      %v288 = vld [vmem:[%s0 + $0x34] sm:$0xf]
      %v289 = vld [vmem:[%s0 + $0x38] sm:$0xf]
      %v290 = vld [vmem:[%s0 + $0x3c] sm:$0xf]
      %v291 = vld [vmem:[%s1] sm:$0x1]
      %v292 = vld [vmem:[%s4] sm:$0x1]
      %v294 = vrot.slane %v274, 7
      %vm296 = vcmask 1040384
      %v297 = vsel %vm296, %v292, %v294
      %v298 = vpack.c.bf16 %v297, %v297
      %v315 = vunpack.c.l.b16 %v275
      %v316 = vunpack.c.l.b16 %v276
      %v317 = vunpack.c.l.b16 %v277
      %v318 = vunpack.c.l.b16 %v278
      %v319 = vunpack.c.l.b16 %v279
      %v320 = vunpack.c.l.b16 %v280
      %v321 = vunpack.c.l.b16 %v281
      %v322 = vunpack.c.l.b16 %v282
      %v323 = vunpack.c.l.b16 %v283
      %v324 = vunpack.c.l.b16 %v284
      %v325 = vunpack.c.l.b16 %v285
      %v326 = vunpack.c.l.b16 %v286
      %v327 = vunpack.c.l.b16 %v287
      %v328 = vunpack.c.l.b16 %v288
      %v329 = vunpack.c.l.b16 %v289
      %v330 = vunpack.c.l.b16 %v290
      %v331 = vpack.c.b16 %v316, %v315
      %v332 = vpack.c.b16 %v318, %v317
      %v333 = vpack.c.b16 %v320, %v319
      %v334 = vpack.c.b16 %v322, %v321
      %v335 = vpack.c.b16 %v324, %v323
      %v336 = vpack.c.b16 %v326, %v325
      %v337 = vpack.c.b16 %v328, %v327
      %v338 = vpack.c.b16 %v330, %v329
      %347 = vmatpush.bf16.msra.mxu0 %v338
      %348 = vmatpush.bf16.msra.mxu0 %v337
      %349 = vmatpush.bf16.msra.mxu0 %v336
      %350 = vmatpush.bf16.msra.mxu0 %v335
      %351 = vmatpush.bf16.msra.mxu0 %v334
      %352 = vmatpush.bf16.msra.mxu0 %v333
      %353 = vmatpush.bf16.msra.mxu0 %v332
      %354 = vmatpush.bf16.msra.mxu0 %v331
      %355 = vmatmul.bf16.gmra.mxu0 %v298
      %v356 = vpop.f32.mrf.mxu0
      %v357 = vadd.f32 0.0, %v356
      %v358 = vpop.f32.mrf.mxu0
      %359 = vdwg.mxu0
      %v360 = vadd.f32 %v357, %v291
      %362 = vrot.lane.b32.xlu0 %v360, 64
      %v363 = vpop.permute.xlu0 %362
      %v365 = vrot.slane %v363, 4
      %vm366 = vcmask 1047556
      %v367 = vsel %vm366, %v365, %v360
      %v369 = vunpack.c.l.s4 1934713408
      %v370 = vunpack.c.0.s8 %v369
      %v371 = vperm.slane %v367, %v370
      %373 = vrot.lane.b32.xlu0 %v357, 64
      %v374 = vpop.permute.xlu0 %373
      %v375 = vrot.slane %v357, 1
      %v376 = vrot.slane %v374, 1
      %v379 = vunpack.c.l.s4 1983009808
      %v380 = vunpack.c.0.s8 %v379
      %v381 = vperm.slane %v375, %v380
      %v384 = vunpack.c.l.s4 1983009808
      %v385 = vunpack.c.0.s8 %v384
      %v386 = vperm.slane %v376, %v385
      %v387 = vrot.slane %v386, 4
      %v388 = vsel %vm366, %v387, %v381
      %v389 = vrot.slane %v381, 4
      %v390 = vsel %vm366, %v386, %v389
      %v392 = vunpack.c.l.s4 1934713408
      %v393 = vunpack.c.0.s8 %v392
      %v394 = vperm.slane %v388, %v393
      %v396 = vunpack.c.l.s4 1934713408
      %v397 = vunpack.c.0.s8 %v396
      %v398 = vperm.slane %v390, %v397
      %v399 = vrot.slane %v394, 4
      %v400 = vsel %vm366, 0.0, %v399
      %v401 = vrot.slane %v398, 4
      %v402 = vsel %vm366, 0.0, %v401
      %vm403 = vcmask 517120
      %v404 = vsel %vm403, %v371, 0.0
      %405 = vadd.xlane.f32.xlu0 %v404
      %v406 = vpop.xlane.xlu0 %405
      %v407 = vrcp.pop 64.0
      %v408 = vmul.f32 64.0, %v407
      %v409 = vsub.f32 1.0, %v408
      %v410 = vmul.f32 %v407, %v409
      %v411 = vadd.f32 %v407, %v410
      %vm412 = vweird.f32 %v407
      %v413 = vsel %vm412, %v407, %v411
      %v414 = vmul.f32 %v406, %v413
      %v415 = vsub.f32 %v371, %v414
      %v416 = vmul.f32 %v415, %v415
      %v417 = vsel %vm403, %v416, 0.0
      %418 = vadd.xlane.f32.xlu0 %v417
      %v419 = vpop.xlane.xlu0 %418
      %v420 = vsel %vm403, %v394, 0.0
      %421 = vadd.xlane.f32.xlu0 %v420
      %v422 = vpop.xlane.xlu0 %421
      %v423 = vsel %vm403, %v400, 0.0
      %424 = vadd.xlane.f32.xlu0 %v423
      %v425 = vpop.xlane.xlu0 %424
      %v426 = vsel %vm403, %v398, 0.0
      %427 = vadd.xlane.f32.xlu0 %v426
      %v428 = vpop.xlane.xlu0 %427
      %v429 = vsel %vm403, %v402, 0.0
      %430 = vadd.xlane.f32.xlu0 %v429
      %v431 = vpop.xlane.xlu0 %430
      %v432 = vmul.f32 %v422, %v413
      %v433 = vmul.f32 %v425, %v413
      %v434 = vmul.f32 %v428, %v413
      %v435 = vmul.f32 %v431, %v413
      %v436 = vsub.f32 %v394, %v432
      %v437 = vsub.f32 %v400, %v433
      %v438 = vsub.f32 %v398, %v434
      %v439 = vsub.f32 %v402, %v435
      %v440 = vmul.f32 %v436, %v436
      %v441 = vmul.f32 %v437, %v437
      %v442 = vmul.f32 %v438, %v438
      %v443 = vmul.f32 %v439, %v439
      %v444 = vsel %vm403, %v440, 0.0
      %445 = vadd.xlane.f32.xlu0 %v444
      %v446 = vpop.xlane.xlu0 %445
      %v447 = vsel %vm403, %v441, 0.0
      %448 = vadd.xlane.f32.xlu0 %v447
      %v449 = vpop.xlane.xlu0 %448
      %v450 = vsel %vm403, %v442, 0.0
      %451 = vadd.xlane.f32.xlu0 %v450
      %v452 = vpop.xlane.xlu0 %451
      %v453 = vsel %vm403, %v443, 0.0
      %454 = vadd.xlane.f32.xlu0 %v453
      %v455 = vpop.xlane.xlu0 %454
      %v456 = vmul.f32 %v415, %v436
      %v457 = vmul.f32 %v415, %v437
      %v458 = vmul.f32 %v415, %v438
      %v459 = vmul.f32 %v415, %v439
      %v460 = vsel %vm403, %v456, 0.0
      %461 = vadd.xlane.f32.xlu0 %v460
      %v462 = vpop.xlane.xlu0 %461
      %v463 = vsel %vm403, %v457, 0.0
      %464 = vadd.xlane.f32.xlu0 %v463
      %v465 = vpop.xlane.xlu0 %464
      %v466 = vsel %vm403, %v458, 0.0
      %467 = vadd.xlane.f32.xlu0 %v466
      %v468 = vpop.xlane.xlu0 %467
      %v469 = vsel %vm403, %v459, 0.0
      %470 = vadd.xlane.f32.xlu0 %v469
      %v471 = vpop.xlane.xlu0 %470
      %v472 = vmul.f32 %v462, -1.0
      %v473 = vmul.f32 %v465, -1.0
      %v474 = vmul.f32 %v468, -1.0
      %v475 = vmul.f32 %v471, -1.0
      %v476 = vmul.f32 %v419, %v446
      %v477 = vmul.f32 %v419, %v449
      %v478 = vmul.f32 %v419, %v452
      %v479 = vmul.f32 %v419, %v455
      %v480 = vadd.f32 %v476, 1e-12
      %v481 = vadd.f32 %v477, 1e-12
      %v482 = vadd.f32 %v478, 1e-12
      %v483 = vadd.f32 %v479, 1e-12
      %v484 = vrsqrt.pop %v480
      %v485 = vmul.f32 %v484, %v480
      %v486 = vmul.f32 %v485, %v484
      %v487 = vmul.f32 0.5, %v486
      %v488 = vsub.f32 1.5, %v487
      %v489 = vmul.f32 %v484, %v488
      %vm490 = vweird.f32 %v480
      %vm491 = vweird.f32 %v484
      %vm492 = vmor %vm490, %vm491
      %v493 = vsel %vm492, %v484, %v489
      %v494 = vrsqrt.pop %v481
      %v495 = vmul.f32 %v494, %v481
      %v496 = vmul.f32 %v495, %v494
      %v497 = vmul.f32 0.5, %v496
      %v498 = vsub.f32 1.5, %v497
      %v499 = vmul.f32 %v494, %v498
      %vm500 = vweird.f32 %v481
      %vm501 = vweird.f32 %v494
      %vm502 = vmor %vm500, %vm501
      %v503 = vsel %vm502, %v494, %v499
      %v504 = vrsqrt.pop %v482
      %v505 = vmul.f32 %v504, %v482
      %v506 = vmul.f32 %v505, %v504
      %v507 = vmul.f32 0.5, %v506
      %v508 = vsub.f32 1.5, %v507
      %v509 = vmul.f32 %v504, %v508
      %vm510 = vweird.f32 %v482
      %vm511 = vweird.f32 %v504
      %vm512 = vmor %vm510, %vm511
      %v513 = vsel %vm512, %v504, %v509
      %v514 = vrsqrt.pop %v483
      %v515 = vmul.f32 %v514, %v483
      %v516 = vmul.f32 %v515, %v514
      %v517 = vmul.f32 0.5, %v516
      %v518 = vsub.f32 1.5, %v517
      %v519 = vmul.f32 %v514, %v518
      %vm520 = vweird.f32 %v483
      %vm521 = vweird.f32 %v514
      %vm522 = vmor %vm520, %vm521
      %v523 = vsel %vm522, %v514, %v519
      %v524 = vmul.f32 %v472, %v493
      %v525 = vmul.f32 %v473, %v503
      %v526 = vmul.f32 %v474, %v513
      %v527 = vmul.f32 %v475, %v523
      %v528 = vtanh.pop %v524
      %v529 = vtanh.pop %v525
      %v530 = vtanh.pop %v526
      %v531 = vtanh.pop %v527
      %vm532 = vcmask 15360
      %v533 = vsel %vm532, 1.0, 0.0
      %534 = vadd.xlane.f32.xlu0 %v533
      %v535 = vpop.xlane.xlu0 %534
      %v536 = vrcp.pop %v535
      %v537 = vadd.f32 %v536, %v528
      %v538 = vadd.f32 %v536, %v529
      %v539 = vadd.f32 %v536, %v530
      %v540 = vadd.f32 %v536, %v531
      %v541 = vmul.f32 %v537, %v371
      %v542 = vmul.f32 %v538, %v371
      %v543 = vmul.f32 %v539, %v371
      %v544 = vmul.f32 %v540, %v371
      %v545 = vmul.f32 %v541, %v541
      %v546 = vmul.f32 %v542, %v542
      %v547 = vmul.f32 %v543, %v543
      %v548 = vmul.f32 %v544, %v544
      %v549 = vsel %vm403, %v545, 0.0
      %550 = vadd.xlane.f32.xlu0 %v549
      %v551 = vpop.xlane.xlu0 %550
      %v552 = vsel %vm403, %v546, 0.0
      %553 = vadd.xlane.f32.xlu0 %v552
      %v554 = vpop.xlane.xlu0 %553
      %v555 = vsel %vm403, %v547, 0.0
      %556 = vadd.xlane.f32.xlu0 %v555
      %v557 = vpop.xlane.xlu0 %556
      %v558 = vsel %vm403, %v548, 0.0
      %559 = vadd.xlane.f32.xlu0 %v558
      %v560 = vpop.xlane.xlu0 %559
      %v561 = vadd.f32 %v551, 1.0
      %v562 = vadd.f32 %v554, 1.0
      %v563 = vadd.f32 %v557, 1.0
      %v564 = vadd.f32 %v560, 1.0
      %v565 = vrcp.pop %v561
      %v566 = vrcp.pop %v562
      %v567 = vrcp.pop %v563
      %v568 = vrcp.pop %v564
      %v569 = vmul.f32 %v551, %v565
      %v570 = vmul.f32 %v554, %v566
      %v571 = vmul.f32 %v557, %v567
      %v572 = vmul.f32 %v560, %v568
      %v573 = vadd.f32 %v551, 1e-08
      %v574 = vadd.f32 %v554, 1e-08
      %v575 = vadd.f32 %v557, 1e-08
      %v576 = vadd.f32 %v560, 1e-08
      %v577 = vrsqrt.pop %v573
      %v578 = vmul.f32 %v577, %v573
      %v579 = vmul.f32 %v578, %v577
      %v580 = vmul.f32 0.5, %v579
      %v581 = vsub.f32 1.5, %v580
      %v582 = vmul.f32 %v577, %v581
      %vm583 = vweird.f32 %v573
      %vm584 = vweird.f32 %v577
      %vm585 = vmor %vm583, %vm584
      %v586 = vsel %vm585, %v577, %v582
      %v587 = vrsqrt.pop %v574
      %v588 = vmul.f32 %v587, %v574
      %v589 = vmul.f32 %v588, %v587
      %v590 = vmul.f32 0.5, %v589
      %v591 = vsub.f32 1.5, %v590
      %v592 = vmul.f32 %v587, %v591
      %vm593 = vweird.f32 %v574
      %vm594 = vweird.f32 %v587
      %vm595 = vmor %vm593, %vm594
      %v596 = vsel %vm595, %v587, %v592
      %v597 = vrsqrt.pop %v575
      %v598 = vmul.f32 %v597, %v575
      %v599 = vmul.f32 %v598, %v597
      %v600 = vmul.f32 0.5, %v599
      %v601 = vsub.f32 1.5, %v600
      %v602 = vmul.f32 %v597, %v601
      %vm603 = vweird.f32 %v575
      %vm604 = vweird.f32 %v597
      %vm605 = vmor %vm603, %vm604
      %v606 = vsel %vm605, %v597, %v602
      %v607 = vrsqrt.pop %v576
      %v608 = vmul.f32 %v607, %v576
      %v609 = vmul.f32 %v608, %v607
      %v610 = vmul.f32 0.5, %v609
      %v611 = vsub.f32 1.5, %v610
      %v612 = vmul.f32 %v607, %v611
      %vm613 = vweird.f32 %v576
      %vm614 = vweird.f32 %v607
      %vm615 = vmor %vm613, %vm614
      %v616 = vsel %vm615, %v607, %v612
      %v617 = vmul.f32 %v569, %v586
      %v618 = vmul.f32 %v570, %v596
      %v619 = vmul.f32 %v571, %v606
      %v620 = vmul.f32 %v572, %v616
      %v621 = vmul.f32 %v617, %v541
      %v622 = vmul.f32 %v618, %v542
      %v623 = vmul.f32 %v619, %v543
      %v624 = vmul.f32 %v620, %v544
      %v625 = vmul.f32 %v371, %v621
      %v626 = vmul.f32 %v371, %v622
      %v627 = vmul.f32 %v371, %v623
      %v628 = vmul.f32 %v371, %v624
      %v629 = vsel %vm403, %v625, 0.0
      %630 = vadd.xlane.f32.xlu0 %v629
      %v631 = vpop.xlane.xlu0 %630
      %v632 = vsel %vm403, %v626, 0.0
      %633 = vadd.xlane.f32.xlu0 %v632
      %v634 = vpop.xlane.xlu0 %633
      %v635 = vsel %vm403, %v627, 0.0
      %636 = vadd.xlane.f32.xlu0 %v635
      %v637 = vpop.xlane.xlu0 %636
      %v638 = vsel %vm403, %v628, 0.0
      %639 = vadd.xlane.f32.xlu0 %v638
      %v640 = vpop.xlane.xlu0 %639
      %v641 = vmul.f32 %v528, %v631
      %v642 = vmul.f32 %v529, %v634
      %v643 = vmul.f32 %v530, %v637
      %v644 = vmul.f32 %v531, %v640
      %v645 = vadd.f32 %v641, 0.0
      %v646 = vadd.f32 %v642, 0.0
      %v647 = vadd.f32 %v643, 0.0
      %v648 = vadd.f32 %v644, 0.0
      %v649 = vadd.f32 %v394, %v621
      %v650 = vadd.f32 %v400, %v622
      %v651 = vadd.f32 %v398, %v623
      %v652 = vadd.f32 %v402, %v624
      %v653 = vmul.f32 %v649, 0.5
      %v654 = vmul.f32 %v650, 0.5
      %v655 = vmul.f32 %v651, 0.5
      %v656 = vmul.f32 %v652, 0.5
      %v657 = vsel %vm403, %v653, 0.0
      %658 = vadd.xlane.f32.xlu0 %v657
      %v659 = vpop.xlane.xlu0 %658
      %v660 = vsel %vm403, %v654, 0.0
      %661 = vadd.xlane.f32.xlu0 %v660
      %v662 = vpop.xlane.xlu0 %661
      %v663 = vsel %vm403, %v655, 0.0
      %664 = vadd.xlane.f32.xlu0 %v663
      %v665 = vpop.xlane.xlu0 %664
      %v666 = vsel %vm403, %v656, 0.0
      %667 = vadd.xlane.f32.xlu0 %v666
      %v668 = vpop.xlane.xlu0 %667
      %v669 = vmul.f32 %v659, %v413
      %v670 = vmul.f32 %v662, %v413
      %v671 = vmul.f32 %v665, %v413
      %v672 = vmul.f32 %v668, %v413
      %v673 = vsub.f32 %v653, %v669
      %v674 = vsub.f32 %v654, %v670
      %v675 = vsub.f32 %v655, %v671
      %v676 = vsub.f32 %v656, %v672
      %v677 = vmul.f32 %v673, %v673
      %v678 = vmul.f32 %v674, %v674
      %v679 = vmul.f32 %v675, %v675
      %v680 = vmul.f32 %v676, %v676
      %v681 = vsel %vm403, %v677, 0.0
      %682 = vadd.xlane.f32.xlu0 %v681
      %v683 = vpop.xlane.xlu0 %682
      %v684 = vsel %vm403, %v678, 0.0
      %685 = vadd.xlane.f32.xlu0 %v684
      %v686 = vpop.xlane.xlu0 %685
      %v687 = vsel %vm403, %v679, 0.0
      %688 = vadd.xlane.f32.xlu0 %v687
      %v689 = vpop.xlane.xlu0 %688
      %v690 = vsel %vm403, %v680, 0.0
      %691 = vadd.xlane.f32.xlu0 %v690
      %v692 = vpop.xlane.xlu0 %691
      %v693 = vmul.f32 %v415, %v673
      %v694 = vmul.f32 %v415, %v674
      %v695 = vmul.f32 %v415, %v675
      %v696 = vmul.f32 %v415, %v676
      %v697 = vsel %vm403, %v693, 0.0
      %698 = vadd.xlane.f32.xlu0 %v697
      %v699 = vpop.xlane.xlu0 %698
      %v700 = vsel %vm403, %v694, 0.0
      %701 = vadd.xlane.f32.xlu0 %v700
      %v702 = vpop.xlane.xlu0 %701
      %v703 = vsel %vm403, %v695, 0.0
      %704 = vadd.xlane.f32.xlu0 %v703
      %v705 = vpop.xlane.xlu0 %704
      %v706 = vsel %vm403, %v696, 0.0
      %707 = vadd.xlane.f32.xlu0 %v706
      %v708 = vpop.xlane.xlu0 %707
      %v709 = vmul.f32 %v699, -1.0
      %v710 = vmul.f32 %v702, -1.0
      %v711 = vmul.f32 %v705, -1.0
      %v712 = vmul.f32 %v708, -1.0
      %v713 = vmul.f32 %v419, %v683
      %v714 = vmul.f32 %v419, %v686
      %v715 = vmul.f32 %v419, %v689
      %v716 = vmul.f32 %v419, %v692
      %v717 = vadd.f32 %v713, 1e-12
      %v718 = vadd.f32 %v714, 1e-12
      %v719 = vadd.f32 %v715, 1e-12
      %v720 = vadd.f32 %v716, 1e-12
      %v721 = vrsqrt.pop %v717
      %v722 = vmul.f32 %v721, %v717
      %v723 = vmul.f32 %v722, %v721
      %v724 = vmul.f32 0.5, %v723
      %v725 = vsub.f32 1.5, %v724
      %v726 = vmul.f32 %v721, %v725
      %vm727 = vweird.f32 %v717
      %vm728 = vweird.f32 %v721
      %vm729 = vmor %vm727, %vm728
      %v730 = vsel %vm729, %v721, %v726
      %v731 = vrsqrt.pop %v718
      %v732 = vmul.f32 %v731, %v718
      %v733 = vmul.f32 %v732, %v731
      %v734 = vmul.f32 0.5, %v733
      %v735 = vsub.f32 1.5, %v734
      %v736 = vmul.f32 %v731, %v735
      %vm737 = vweird.f32 %v718
      %vm738 = vweird.f32 %v731
      %vm739 = vmor %vm737, %vm738
      %v740 = vsel %vm739, %v731, %v736
      %v741 = vrsqrt.pop %v719
      %v742 = vmul.f32 %v741, %v719
      %v743 = vmul.f32 %v742, %v741
      %v744 = vmul.f32 0.5, %v743
      %v745 = vsub.f32 1.5, %v744
      %v746 = vmul.f32 %v741, %v745
      %vm747 = vweird.f32 %v719
      %vm748 = vweird.f32 %v741
      %vm749 = vmor %vm747, %vm748
      %v750 = vsel %vm749, %v741, %v746
      %v751 = vrsqrt.pop %v720
      %v752 = vmul.f32 %v751, %v720
      %v753 = vmul.f32 %v752, %v751
      %v754 = vmul.f32 0.5, %v753
      %v755 = vsub.f32 1.5, %v754
      %v756 = vmul.f32 %v751, %v755
      %vm757 = vweird.f32 %v720
      %vm758 = vweird.f32 %v751
      %vm759 = vmor %vm757, %vm758
      %v760 = vsel %vm759, %v751, %v756
      %v761 = vmul.f32 %v709, %v730
      %v762 = vmul.f32 %v710, %v740
      %v763 = vmul.f32 %v711, %v750
      %v764 = vmul.f32 %v712, %v760
      %v765 = vtanh.pop %v761
      %v766 = vtanh.pop %v762
      %v767 = vtanh.pop %v763
      %v768 = vtanh.pop %v764
      %v773 = vlaneseq
      %v774 = vand.u32 %v773, 127
      %v775 = vperm.slane %v645, %v774
      %v776 = vperm.slane %v646, %v774
      %v777 = vperm.slane %v647, %v774
      %v778 = vperm.slane %v648, %v774
      %vm779 = vcmask 1041409
      %v780 = vsel %vm779, %v776, %v775
      %vm781 = vcmask 1042434
      %v782 = vsel %vm781, %v777, %v780
      %vm783 = vcmask 1043459
      %v784 = vsel %vm783, %v778, %v782
      %vm786 = vcmask 11264
      %v787 = vsel %vm786, %v784, -inf
      %788 = vmax.xlane.f32.xlu0 %v787
      %v789 = vpop.xlane.xlu0 %788
      %v791 = vperm.slane %v789, 0
      %v792 = vperm.slane %v789, 1
      %v793 = vperm.slane %v789, 2
      %v794 = vperm.slane %v789, 3
      %v799 = vsub.f32 %v645, %v791
      %v800 = vsub.f32 %v646, %v792
      %v801 = vsub.f32 %v647, %v793
      %v802 = vsub.f32 %v648, %v794
      %v803 = vmul.f32 %v799, 1.442695
      %v804 = vpow.pop %v803
      %v805 = vmul.f32 %v800, 1.442695
      %v806 = vpow.pop %v805
      %v807 = vmul.f32 %v801, 1.442695
      %v808 = vpow.pop %v807
      %v809 = vmul.f32 %v802, 1.442695
      %v810 = vpow.pop %v809
      %815 = vset.pattern.permute.xlu0 0
      %816 = vperm.xlu0 %815, %v804
      %v817 = vpop.permute.xlu0 %816
      %818 = vset.pattern.permute.xlu0 0
      %819 = vperm.xlu0 %818, %v806
      %v820 = vpop.permute.xlu0 %819
      %821 = vset.pattern.permute.xlu0 0
      %822 = vperm.xlu0 %821, %v808
      %v823 = vpop.permute.xlu0 %822
      %824 = vset.pattern.permute.xlu0 0
      %825 = vperm.xlu0 %824, %v810
      %v826 = vpop.permute.xlu0 %825
      %v827 = vperm.slane %v817, %v774
      %v828 = vperm.slane %v820, %v774
      %v829 = vperm.slane %v823, %v774
      %v830 = vperm.slane %v826, %v774
      %v831 = vsel %vm779, %v828, %v827
      %v832 = vsel %vm781, %v829, %v831
      %v833 = vsel %vm783, %v830, %v832
      %v835 = vsel %vm786, %v833, 0.0
      %836 = vadd.xlane.f32.xlu0 %v835
      %v837 = vpop.xlane.xlu0 %836
      %v838 = vrcp.pop %v837
      %v840 = vperm.slane %v838, 0
      %v841 = vperm.slane %v838, 1
      %v842 = vperm.slane %v838, 2
      %v843 = vperm.slane %v838, 3
      %v848 = vmul.f32 %v804, %v840
      %v849 = vmul.f32 %v806, %v841
      %v850 = vmul.f32 %v808, %v842
      %v851 = vmul.f32 %v810, %v843
      %v852 = vadd.f32 %v848, %v765
      %v853 = vadd.f32 %v849, %v766
      %v854 = vadd.f32 %v850, %v767
      %v855 = vadd.f32 %v851, %v768
      %857 = vset.pattern.permute.xlu0 0
      %858 = vperm.xlu0 %857, %v852
      %v859 = vpop.permute.xlu0 %858
      %862 = vset.pattern.permute.xlu0 0
      %863 = vperm.xlu0 %862, %v853
      %v864 = vpop.permute.xlu0 %863
      %867 = vset.pattern.permute.xlu0 0
      %868 = vperm.xlu0 %867, %v854
      %v869 = vpop.permute.xlu0 %868
      %872 = vset.pattern.permute.xlu0 0
      %873 = vperm.xlu0 %872, %v855
      %v874 = vpop.permute.xlu0 %873
      %v876 = vmul.f32 %v859, %v371
      %v877 = vmul.f32 %v864, %v371
      %v878 = vmul.f32 %v869, %v371
      %v879 = vmul.f32 %v874, %v371
      %v880 = vmul.f32 %v876, %v876
      %v881 = vmul.f32 %v877, %v877
      %v882 = vmul.f32 %v878, %v878
      %v883 = vmul.f32 %v879, %v879
      %v884 = vsel %vm403, %v880, 0.0
      %885 = vadd.xlane.f32.xlu0 %v884
      %v886 = vpop.xlane.xlu0 %885
      %v887 = vsel %vm403, %v881, 0.0
      %888 = vadd.xlane.f32.xlu0 %v887
      %v889 = vpop.xlane.xlu0 %888
      %v890 = vsel %vm403, %v882, 0.0
      %891 = vadd.xlane.f32.xlu0 %v890
      %v892 = vpop.xlane.xlu0 %891
      %v893 = vsel %vm403, %v883, 0.0
      %894 = vadd.xlane.f32.xlu0 %v893
      %v895 = vpop.xlane.xlu0 %894
      %v896 = vadd.f32 %v886, 1.0
      %v897 = vadd.f32 %v889, 1.0
      %v898 = vadd.f32 %v892, 1.0
      %v899 = vadd.f32 %v895, 1.0
      %v900 = vrcp.pop %v896
      %v901 = vrcp.pop %v897
      %v902 = vrcp.pop %v898
      %v903 = vrcp.pop %v899
      %v904 = vmul.f32 %v886, %v900
      %v905 = vmul.f32 %v889, %v901
      %v906 = vmul.f32 %v892, %v902
      %v907 = vmul.f32 %v895, %v903
      %v908 = vadd.f32 %v886, 1e-08
      %v909 = vadd.f32 %v889, 1e-08
      %v910 = vadd.f32 %v892, 1e-08
      %v911 = vadd.f32 %v895, 1e-08
      %v912 = vrsqrt.pop %v908
      %v913 = vmul.f32 %v912, %v908
      %v914 = vmul.f32 %v913, %v912
      %v915 = vmul.f32 0.5, %v914
      %v916 = vsub.f32 1.5, %v915
      %v917 = vmul.f32 %v912, %v916
      %vm918 = vweird.f32 %v908
      %vm919 = vweird.f32 %v912
      %vm920 = vmor %vm918, %vm919
      %v921 = vsel %vm920, %v912, %v917
      %v922 = vrsqrt.pop %v909
      %v923 = vmul.f32 %v922, %v909
      %v924 = vmul.f32 %v923, %v922
      %v925 = vmul.f32 0.5, %v924
      %v926 = vsub.f32 1.5, %v925
      %v927 = vmul.f32 %v922, %v926
      %vm928 = vweird.f32 %v909
      %vm929 = vweird.f32 %v922
      %vm930 = vmor %vm928, %vm929
      %v931 = vsel %vm930, %v922, %v927
      %v932 = vrsqrt.pop %v910
      %v933 = vmul.f32 %v932, %v910
      %v934 = vmul.f32 %v933, %v932
      %v935 = vmul.f32 0.5, %v934
      %v936 = vsub.f32 1.5, %v935
      %v937 = vmul.f32 %v932, %v936
      %vm938 = vweird.f32 %v910
      %vm939 = vweird.f32 %v932
      %vm940 = vmor %vm938, %vm939
      %v941 = vsel %vm940, %v932, %v937
      %v942 = vrsqrt.pop %v911
      %v943 = vmul.f32 %v942, %v911
      %v944 = vmul.f32 %v943, %v942
      %v945 = vmul.f32 0.5, %v944
      %v946 = vsub.f32 1.5, %v945
      %v947 = vmul.f32 %v942, %v946
      %vm948 = vweird.f32 %v911
      %vm949 = vweird.f32 %v942
      %vm950 = vmor %vm948, %vm949
      %v951 = vsel %vm950, %v942, %v947
      %v952 = vmul.f32 %v904, %v921
      %v953 = vmul.f32 %v905, %v931
      %v954 = vmul.f32 %v906, %v941
      %v955 = vmul.f32 %v907, %v951
      %v956 = vmul.f32 %v952, %v876
      %v957 = vmul.f32 %v953, %v877
      %v958 = vmul.f32 %v954, %v878
      %v959 = vmul.f32 %v955, %v879
      %v960 = vmul.f32 %v371, %v956
      %v961 = vmul.f32 %v371, %v957
      %v962 = vmul.f32 %v371, %v958
      %v963 = vmul.f32 %v371, %v959
      %v964 = vsel %vm403, %v960, 0.0
      %965 = vadd.xlane.f32.xlu0 %v964
      %v966 = vpop.xlane.xlu0 %965
      %v967 = vsel %vm403, %v961, 0.0
      %968 = vadd.xlane.f32.xlu0 %v967
      %v969 = vpop.xlane.xlu0 %968
      %v970 = vsel %vm403, %v962, 0.0
      %971 = vadd.xlane.f32.xlu0 %v970
      %v972 = vpop.xlane.xlu0 %971
      %v973 = vsel %vm403, %v963, 0.0
      %974 = vadd.xlane.f32.xlu0 %v973
      %v975 = vpop.xlane.xlu0 %974
      %v976 = vmul.f32 %v765, %v966
      %v977 = vmul.f32 %v766, %v969
      %v978 = vmul.f32 %v767, %v972
      %v979 = vmul.f32 %v768, %v975
      %v980 = vadd.f32 %v645, %v976
      %v981 = vadd.f32 %v646, %v977
      %v982 = vadd.f32 %v647, %v978
      %v983 = vadd.f32 %v648, %v979
      %v984 = vadd.f32 %v653, %v956
      %v985 = vadd.f32 %v654, %v957
      %v986 = vadd.f32 %v655, %v958
      %v987 = vadd.f32 %v656, %v959
      %v988 = vmul.f32 %v984, 0.5
      %v989 = vmul.f32 %v985, 0.5
      %v990 = vmul.f32 %v986, 0.5
      %v991 = vmul.f32 %v987, 0.5
      %v992 = vsel %vm403, %v988, 0.0
      %993 = vadd.xlane.f32.xlu0 %v992
      %v994 = vpop.xlane.xlu0 %993
      %v995 = vsel %vm403, %v989, 0.0
      %996 = vadd.xlane.f32.xlu0 %v995
      %v997 = vpop.xlane.xlu0 %996
      %v998 = vsel %vm403, %v990, 0.0
      %999 = vadd.xlane.f32.xlu0 %v998
      %v1000 = vpop.xlane.xlu0 %999
      %v1001 = vsel %vm403, %v991, 0.0
      %1002 = vadd.xlane.f32.xlu0 %v1001
      %v1003 = vpop.xlane.xlu0 %1002
      %v1004 = vmul.f32 %v994, %v413
      %v1005 = vmul.f32 %v997, %v413
      %v1006 = vmul.f32 %v1000, %v413
      %v1007 = vmul.f32 %v1003, %v413
      %v1008 = vsub.f32 %v988, %v1004
      %v1009 = vsub.f32 %v989, %v1005
      %v1010 = vsub.f32 %v990, %v1006
      %v1011 = vsub.f32 %v991, %v1007
      %v1012 = vmul.f32 %v1008, %v1008
      %v1013 = vmul.f32 %v1009, %v1009
      %v1014 = vmul.f32 %v1010, %v1010
      %v1015 = vmul.f32 %v1011, %v1011
      %v1016 = vsel %vm403, %v1012, 0.0
      %1017 = vadd.xlane.f32.xlu0 %v1016
      %v1018 = vpop.xlane.xlu0 %1017
      %v1019 = vsel %vm403, %v1013, 0.0
      %1020 = vadd.xlane.f32.xlu0 %v1019
      %v1021 = vpop.xlane.xlu0 %1020
      %v1022 = vsel %vm403, %v1014, 0.0
      %1023 = vadd.xlane.f32.xlu0 %v1022
      %v1024 = vpop.xlane.xlu0 %1023
      %v1025 = vsel %vm403, %v1015, 0.0
      %1026 = vadd.xlane.f32.xlu0 %v1025
      %v1027 = vpop.xlane.xlu0 %1026
      %v1028 = vmul.f32 %v415, %v1008
      %v1029 = vmul.f32 %v415, %v1009
      %v1030 = vmul.f32 %v415, %v1010
      %v1031 = vmul.f32 %v415, %v1011
      %v1032 = vsel %vm403, %v1028, 0.0
      %1033 = vadd.xlane.f32.xlu0 %v1032
      %v1034 = vpop.xlane.xlu0 %1033
      %v1035 = vsel %vm403, %v1029, 0.0
      %1036 = vadd.xlane.f32.xlu0 %v1035
      %v1037 = vpop.xlane.xlu0 %1036
      %v1038 = vsel %vm403, %v1030, 0.0
      %1039 = vadd.xlane.f32.xlu0 %v1038
      %v1040 = vpop.xlane.xlu0 %1039
      %v1041 = vsel %vm403, %v1031, 0.0
      %1042 = vadd.xlane.f32.xlu0 %v1041
      %v1043 = vpop.xlane.xlu0 %1042
      %v1044 = vmul.f32 %v1034, -1.0
      %v1045 = vmul.f32 %v1037, -1.0
      %v1046 = vmul.f32 %v1040, -1.0
      %v1047 = vmul.f32 %v1043, -1.0
      %v1048 = vmul.f32 %v419, %v1018
      %v1049 = vmul.f32 %v419, %v1021
      %v1050 = vmul.f32 %v419, %v1024
      %v1051 = vmul.f32 %v419, %v1027
      %v1052 = vadd.f32 %v1048, 1e-12
      %v1053 = vadd.f32 %v1049, 1e-12
      %v1054 = vadd.f32 %v1050, 1e-12
      %v1055 = vadd.f32 %v1051, 1e-12
      %v1056 = vrsqrt.pop %v1052
      %v1057 = vmul.f32 %v1056, %v1052
      %v1058 = vmul.f32 %v1057, %v1056
      %v1059 = vmul.f32 0.5, %v1058
      %v1060 = vsub.f32 1.5, %v1059
      %v1061 = vmul.f32 %v1056, %v1060
      %vm1062 = vweird.f32 %v1052
      %vm1063 = vweird.f32 %v1056
      %vm1064 = vmor %vm1062, %vm1063
      %v1065 = vsel %vm1064, %v1056, %v1061
      %v1066 = vrsqrt.pop %v1053
      %v1067 = vmul.f32 %v1066, %v1053
      %v1068 = vmul.f32 %v1067, %v1066
      %v1069 = vmul.f32 0.5, %v1068
      %v1070 = vsub.f32 1.5, %v1069
      %v1071 = vmul.f32 %v1066, %v1070
      %vm1072 = vweird.f32 %v1053
      %vm1073 = vweird.f32 %v1066
      %vm1074 = vmor %vm1072, %vm1073
      %v1075 = vsel %vm1074, %v1066, %v1071
      %v1076 = vrsqrt.pop %v1054
      %v1077 = vmul.f32 %v1076, %v1054
      %v1078 = vmul.f32 %v1077, %v1076
      %v1079 = vmul.f32 0.5, %v1078
      %v1080 = vsub.f32 1.5, %v1079
      %v1081 = vmul.f32 %v1076, %v1080
      %vm1082 = vweird.f32 %v1054
      %vm1083 = vweird.f32 %v1076
      %vm1084 = vmor %vm1082, %vm1083
      %v1085 = vsel %vm1084, %v1076, %v1081
      %v1086 = vrsqrt.pop %v1055
      %v1087 = vmul.f32 %v1086, %v1055
      %v1088 = vmul.f32 %v1087, %v1086
      %v1089 = vmul.f32 0.5, %v1088
      %v1090 = vsub.f32 1.5, %v1089
      %v1091 = vmul.f32 %v1086, %v1090
      %vm1092 = vweird.f32 %v1055
      %vm1093 = vweird.f32 %v1086
      %vm1094 = vmor %vm1092, %vm1093
      %v1095 = vsel %vm1094, %v1086, %v1091
      %v1096 = vmul.f32 %v1044, %v1065
      %v1097 = vmul.f32 %v1045, %v1075
      %v1098 = vmul.f32 %v1046, %v1085
      %v1099 = vmul.f32 %v1047, %v1095
      %v1100 = vtanh.pop %v1096
      %v1101 = vtanh.pop %v1097
      %v1102 = vtanh.pop %v1098
      %v1103 = vtanh.pop %v1099
      %v1108 = vperm.slane %v980, %v774
      %v1109 = vperm.slane %v981, %v774
      %v1110 = vperm.slane %v982, %v774
      %v1111 = vperm.slane %v983, %v774
      %v1112 = vsel %vm779, %v1109, %v1108
      %v1113 = vsel %vm781, %v1110, %v1112
      %v1114 = vsel %vm783, %v1111, %v1113
      %v1116 = vsel %vm786, %v1114, -inf
      %1117 = vmax.xlane.f32.xlu0 %v1116
      %v1118 = vpop.xlane.xlu0 %1117
      %v1120 = vperm.slane %v1118, 0
      %v1121 = vperm.slane %v1118, 1
      %v1122 = vperm.slane %v1118, 2
      %v1123 = vperm.slane %v1118, 3
      %v1128 = vsub.f32 %v980, %v1120
      %v1129 = vsub.f32 %v981, %v1121
      %v1130 = vsub.f32 %v982, %v1122
      %v1131 = vsub.f32 %v983, %v1123
      %v1132 = vmul.f32 %v1128, 1.442695
      %v1133 = vpow.pop %v1132
      %v1134 = vmul.f32 %v1129, 1.442695
      %v1135 = vpow.pop %v1134
      %v1136 = vmul.f32 %v1130, 1.442695
      %v1137 = vpow.pop %v1136
      %v1138 = vmul.f32 %v1131, 1.442695
      %v1139 = vpow.pop %v1138
      %1144 = vset.pattern.permute.xlu0 0
      %1145 = vperm.xlu0 %1144, %v1133
      %v1146 = vpop.permute.xlu0 %1145
      %1147 = vset.pattern.permute.xlu0 0
      %1148 = vperm.xlu0 %1147, %v1135
      %v1149 = vpop.permute.xlu0 %1148
      %1150 = vset.pattern.permute.xlu0 0
      %1151 = vperm.xlu0 %1150, %v1137
      %v1152 = vpop.permute.xlu0 %1151
      %1153 = vset.pattern.permute.xlu0 0
      %1154 = vperm.xlu0 %1153, %v1139
      %v1155 = vpop.permute.xlu0 %1154
      %v1156 = vperm.slane %v1146, %v774
      %v1157 = vperm.slane %v1149, %v774
      %v1158 = vperm.slane %v1152, %v774
      %v1159 = vperm.slane %v1155, %v774
      %v1160 = vsel %vm779, %v1157, %v1156
      %v1161 = vsel %vm781, %v1158, %v1160
      %v1162 = vsel %vm783, %v1159, %v1161
      %v1164 = vsel %vm786, %v1162, 0.0
      %1165 = vadd.xlane.f32.xlu0 %v1164
      %v1166 = vpop.xlane.xlu0 %1165
      %v1167 = vrcp.pop %v1166
      %v1169 = vperm.slane %v1167, 0
      %v1170 = vperm.slane %v1167, 1
      %v1171 = vperm.slane %v1167, 2
      %v1172 = vperm.slane %v1167, 3
      %v1177 = vmul.f32 %v1133, %v1169
      %v1178 = vmul.f32 %v1135, %v1170
      %v1179 = vmul.f32 %v1137, %v1171
      %v1180 = vmul.f32 %v1139, %v1172
      %v1181 = vadd.f32 %v1177, %v1100
      %v1182 = vadd.f32 %v1178, %v1101
      %v1183 = vadd.f32 %v1179, %v1102
      %v1184 = vadd.f32 %v1180, %v1103
      %1186 = vset.pattern.permute.xlu0 0
      %1187 = vperm.xlu0 %1186, %v1181
      %v1188 = vpop.permute.xlu0 %1187
      %1191 = vset.pattern.permute.xlu0 0
      %1192 = vperm.xlu0 %1191, %v1182
      %v1193 = vpop.permute.xlu0 %1192
      %1196 = vset.pattern.permute.xlu0 0
      %1197 = vperm.xlu0 %1196, %v1183
      %v1198 = vpop.permute.xlu0 %1197
      %1201 = vset.pattern.permute.xlu0 0
      %1202 = vperm.xlu0 %1201, %v1184
      %v1203 = vpop.permute.xlu0 %1202
      %v1205 = vmul.f32 %v1188, %v371
      %v1206 = vmul.f32 %v1193, %v371
      %v1207 = vmul.f32 %v1198, %v371
      %v1208 = vmul.f32 %v1203, %v371
      %v1209 = vmul.f32 %v1205, %v1205
      %v1210 = vmul.f32 %v1206, %v1206
      %v1211 = vmul.f32 %v1207, %v1207
      %v1212 = vmul.f32 %v1208, %v1208
      %v1213 = vsel %vm403, %v1209, 0.0
      %1214 = vadd.xlane.f32.xlu0 %v1213
      %v1215 = vpop.xlane.xlu0 %1214
      %v1216 = vsel %vm403, %v1210, 0.0
      %1217 = vadd.xlane.f32.xlu0 %v1216
      %v1218 = vpop.xlane.xlu0 %1217
      %v1219 = vsel %vm403, %v1211, 0.0
      %1220 = vadd.xlane.f32.xlu0 %v1219
      %v1221 = vpop.xlane.xlu0 %1220
      %v1222 = vsel %vm403, %v1212, 0.0
      %1223 = vadd.xlane.f32.xlu0 %v1222
      %v1224 = vpop.xlane.xlu0 %1223
      %v1225 = vadd.f32 %v1215, 1.0
      %v1226 = vadd.f32 %v1218, 1.0
      %v1227 = vadd.f32 %v1221, 1.0
      %v1228 = vadd.f32 %v1224, 1.0
      %v1229 = vrcp.pop %v1225
      %v1230 = vrcp.pop %v1226
      %v1231 = vrcp.pop %v1227
      %v1232 = vrcp.pop %v1228
      %v1233 = vmul.f32 %v1215, %v1229
      %v1234 = vmul.f32 %v1218, %v1230
      %v1235 = vmul.f32 %v1221, %v1231
      %v1236 = vmul.f32 %v1224, %v1232
      %v1237 = vadd.f32 %v1215, 1e-08
      %v1238 = vadd.f32 %v1218, 1e-08
      %v1239 = vadd.f32 %v1221, 1e-08
      %v1240 = vadd.f32 %v1224, 1e-08
      %v1241 = vrsqrt.pop %v1237
      %v1242 = vmul.f32 %v1241, %v1237
      %v1243 = vmul.f32 %v1242, %v1241
      %v1244 = vmul.f32 0.5, %v1243
      %v1245 = vsub.f32 1.5, %v1244
      %v1246 = vmul.f32 %v1241, %v1245
      %vm1247 = vweird.f32 %v1237
      %vm1248 = vweird.f32 %v1241
      %vm1249 = vmor %vm1247, %vm1248
      %v1250 = vsel %vm1249, %v1241, %v1246
      %v1251 = vrsqrt.pop %v1238
      %v1252 = vmul.f32 %v1251, %v1238
      %v1253 = vmul.f32 %v1252, %v1251
      %v1254 = vmul.f32 0.5, %v1253
      %v1255 = vsub.f32 1.5, %v1254
      %v1256 = vmul.f32 %v1251, %v1255
      %vm1257 = vweird.f32 %v1238
      %vm1258 = vweird.f32 %v1251
      %vm1259 = vmor %vm1257, %vm1258
      %v1260 = vsel %vm1259, %v1251, %v1256
      %v1261 = vrsqrt.pop %v1239
      %v1262 = vmul.f32 %v1261, %v1239
      %v1263 = vmul.f32 %v1262, %v1261
      %v1264 = vmul.f32 0.5, %v1263
      %v1265 = vsub.f32 1.5, %v1264
      %v1266 = vmul.f32 %v1261, %v1265
      %vm1267 = vweird.f32 %v1239
      %vm1268 = vweird.f32 %v1261
      %vm1269 = vmor %vm1267, %vm1268
      %v1270 = vsel %vm1269, %v1261, %v1266
      %v1271 = vrsqrt.pop %v1240
      %v1272 = vmul.f32 %v1271, %v1240
      %v1273 = vmul.f32 %v1272, %v1271
      %v1274 = vmul.f32 0.5, %v1273
      %v1275 = vsub.f32 1.5, %v1274
      %v1276 = vmul.f32 %v1271, %v1275
      %vm1277 = vweird.f32 %v1240
      %vm1278 = vweird.f32 %v1271
      %vm1279 = vmor %vm1277, %vm1278
      %v1280 = vsel %vm1279, %v1271, %v1276
      %v1281 = vmul.f32 %v1233, %v1250
      %v1282 = vmul.f32 %v1234, %v1260
      %v1283 = vmul.f32 %v1235, %v1270
      %v1284 = vmul.f32 %v1236, %v1280
      %v1285 = vmul.f32 %v1281, %v1205
      %v1286 = vmul.f32 %v1282, %v1206
      %v1287 = vmul.f32 %v1283, %v1207
      %v1288 = vmul.f32 %v1284, %v1208
      %v1289 = vrot.slane %v1287, 4
      %v1290 = vsel %vm366, %v1289, %v1285
      %v1292 = vunpack.c.l.s4 1983009808
      %v1293 = vunpack.c.0.s8 %v1292
      %v1294 = vperm.slane %v1290, %v1293
      %v1295 = vrot.slane %v1288, 4
      %v1296 = vsel %vm366, %v1295, %v1286
      %v1298 = vunpack.c.l.s4 1983009808
      %v1299 = vunpack.c.0.s8 %v1298
      %v1300 = vperm.slane %v1296, %v1299
      %v1301 = vrot.slane %v1300, 4
      %v1302 = vsel %vm366, %v1301, %v1294
      %v1304 = vunpack.c.l.s4 1934713408
      %v1305 = vunpack.c.0.s8 %v1304
      %v1306 = vperm.slane %v1302, %v1305
      %v1307 = vrot.slane %v1306, 4
      %v1308 = vsel %vm366, 0.0, %v1307
      %1310 = vrot.lane.b32.xlu0 %v1308, 64
      %v1311 = vpop.permute.xlu0 %1310
      %vm1313 = vcmask 523264
      %v1314 = vsel %vm1313, %v1306, %v1311
      %v1315 = vld [vmem:[%s6] sm:$0xff]
      %v1316 = vld [vmem:[%s2] sm:$0xf]
      %v1317 = vld [vmem:[%s2 + $0x4] sm:$0xf]
      %v1318 = vld [vmem:[%s2 + $0x8] sm:$0xf]
      %v1319 = vld [vmem:[%s2 + $0xc] sm:$0xf]
      %v1320 = vld [vmem:[%s2 + $0x10] sm:$0xf]
      %v1321 = vld [vmem:[%s2 + $0x14] sm:$0xf]
      %v1322 = vld [vmem:[%s2 + $0x18] sm:$0xf]
      %v1323 = vld [vmem:[%s2 + $0x1c] sm:$0xf]
      %v1324 = vld [vmem:[%s2 + $0x20] sm:$0xf]
      %v1325 = vld [vmem:[%s2 + $0x24] sm:$0xf]
      %v1326 = vld [vmem:[%s2 + $0x28] sm:$0xf]
      %v1327 = vld [vmem:[%s2 + $0x2c] sm:$0xf]
      %v1328 = vld [vmem:[%s2 + $0x30] sm:$0xf]
      %v1329 = vld [vmem:[%s2 + $0x34] sm:$0xf]
      %v1330 = vld [vmem:[%s2 + $0x38] sm:$0xf]
      %v1331 = vld [vmem:[%s2 + $0x3c] sm:$0xf]
      %v1332 = vld [vmem:[%s3] sm:$0xf]
      %v1334 = vrot.slane %v1315, 4
      %vm1336 = vcmask 1043456
      %v1337 = vsel %vm1336, %v1314, %v1334
      %v1338 = vpack.c.bf16 %v1334, %v1337
      %v1355 = vunpack.c.l.b16 %v1316
      %v1356 = vunpack.c.l.b16 %v1317
      %v1357 = vunpack.c.l.b16 %v1318
      %v1358 = vunpack.c.l.b16 %v1319
      %v1359 = vunpack.c.l.b16 %v1320
      %v1360 = vunpack.c.l.b16 %v1321
      %v1361 = vunpack.c.l.b16 %v1322
      %v1362 = vunpack.c.l.b16 %v1323
      %v1363 = vunpack.c.l.b16 %v1324
      %v1364 = vunpack.c.l.b16 %v1325
      %v1365 = vunpack.c.l.b16 %v1326
      %v1366 = vunpack.c.l.b16 %v1327
      %v1367 = vunpack.c.l.b16 %v1328
      %v1368 = vunpack.c.l.b16 %v1329
      %v1369 = vunpack.c.l.b16 %v1330
      %v1370 = vunpack.c.l.b16 %v1331
      %v1371 = vpack.c.b16 %v1356, %v1355
      %v1372 = vpack.c.b16 %v1358, %v1357
      %v1373 = vpack.c.b16 %v1360, %v1359
      %v1374 = vpack.c.b16 %v1362, %v1361
      %v1375 = vpack.c.b16 %v1364, %v1363
      %v1376 = vpack.c.b16 %v1366, %v1365
      %v1377 = vpack.c.b16 %v1368, %v1367
      %v1378 = vpack.c.b16 %v1370, %v1369
      %1387 = vmatpush.bf16.msra.mxu0 %v1378
      %1388 = vmatpush.bf16.msra.mxu0 %v1377
      %1389 = vmatpush.bf16.msra.mxu0 %v1376
      %1390 = vmatpush.bf16.msra.mxu0 %v1375
      %1391 = vmatpush.bf16.msra.mxu0 %v1374
      %1392 = vmatpush.bf16.msra.mxu0 %v1373
      %1393 = vmatpush.bf16.msra.mxu0 %v1372
      %1394 = vmatpush.bf16.msra.mxu0 %v1371
      %1395 = vmatmul.bf16.gmra.mxu0 %v1338
      %v1396 = vpop.f32.mrf.mxu0
      %v1397 = vadd.f32 0.0, %v1396
      %v1398 = vpop.f32.mrf.mxu0
      %v1399 = vadd.f32 0.0, %v1398
      %1400 = vdwg.mxu0
      %v1401 = vadd.f32 %v1397, %v1332
      %1403 = vrot.lane.b32.xlu0 %v1401, 64
      %v1404 = vpop.permute.xlu0 %1403
      %v1406 = vunpack.c.l.s4 1983009808
      %v1407 = vunpack.c.0.s8 %v1406
      %v1408 = vperm.slane %v1401, %v1407
      %v1411 = vunpack.c.l.s4 1983009808
      %v1412 = vunpack.c.0.s8 %v1411
      %v1413 = vperm.slane %v1404, %v1412
      %v1414 = vrot.slane %v1413, 4
      %v1415 = vsel %vm366, %v1414, %v1408
      %v1416 = vrot.slane %v1408, 4
      %v1417 = vsel %vm366, %v1413, %v1416
      %v1419 = vunpack.c.l.s4 1934713408
      %v1420 = vunpack.c.0.s8 %v1419
      %v1421 = vperm.slane %v1415, %v1420
      %v1423 = vunpack.c.l.s4 1934713408
      %v1424 = vunpack.c.0.s8 %v1423
      %v1425 = vperm.slane %v1417, %v1424
      %v1426 = vrot.slane %v1421, 4
      %v1427 = vsel %vm366, 0.0, %v1426
      %v1428 = vrot.slane %v1425, 4
      %v1429 = vsel %vm366, 0.0, %v1428
      %1432 = vrot.lane.b32.xlu0 %v1397, 64
      %v1433 = vpop.permute.xlu0 %1432
      %1434 = vrot.lane.b32.xlu0 %v1399, 64
      %v1435 = vpop.permute.xlu0 %1434
      %v1436 = vrot.slane %v1397, 4
      %v1437 = vrot.slane %v1399, 4
      %v1438 = vsel %vm1336, %v1436, %v1437
      %v1439 = vrot.slane %v1433, 4
      %v1440 = vrot.slane %v1435, 4
      %v1441 = vsel %vm1336, %v1439, %v1440
      %v1444 = vrot.slane %v1438, 4
      %v1445 = vsel %vm366, 0.0, %v1444
      %v1447 = vunpack.c.l.s4 1983009808
      %v1448 = vunpack.c.0.s8 %v1447
      %v1449 = vperm.slane %v1438, %v1448
      %v1451 = vunpack.c.l.s4 1983009808
      %v1452 = vunpack.c.0.s8 %v1451
      %v1453 = vperm.slane %v1445, %v1452
      %v1454 = vrot.slane %v1441, 4
      %v1455 = vsel %vm366, 0.0, %v1454
      %v1457 = vunpack.c.l.s4 1983009808
      %v1458 = vunpack.c.0.s8 %v1457
      %v1459 = vperm.slane %v1441, %v1458
      %v1461 = vunpack.c.l.s4 1983009808
      %v1462 = vunpack.c.0.s8 %v1461
      %v1463 = vperm.slane %v1455, %v1462
      %v1464 = vrot.slane %v1459, 4
      %v1465 = vsel %vm366, %v1464, %v1449
      %v1466 = vrot.slane %v1449, 4
      %v1467 = vsel %vm366, %v1459, %v1466
      %v1469 = vunpack.c.l.s4 1934713408
      %v1470 = vunpack.c.0.s8 %v1469
      %v1471 = vperm.slane %v1465, %v1470
      %v1473 = vunpack.c.l.s4 1934713408
      %v1474 = vunpack.c.0.s8 %v1473
      %v1475 = vperm.slane %v1467, %v1474
      %v1476 = vrot.slane %v1463, 4
      %v1477 = vsel %vm366, %v1476, %v1453
      %v1478 = vrot.slane %v1453, 4
      %v1479 = vsel %vm366, %v1463, %v1478
      %v1481 = vunpack.c.l.s4 1934713408
      %v1482 = vunpack.c.0.s8 %v1481
      %v1483 = vperm.slane %v1477, %v1482
      %v1485 = vunpack.c.l.s4 1934713408
      %v1486 = vunpack.c.0.s8 %v1485
      %v1487 = vperm.slane %v1479, %v1486
      %v1488 = vrot.slane %v1471, 4
      %v1489 = vsel %vm366, 0.0, %v1488
      %v1490 = vrot.slane %v1475, 4
      %v1491 = vsel %vm366, 0.0, %v1490
      %v1492 = vrot.slane %v1483, 4
      %v1493 = vsel %vm366, 0.0, %v1492
      %v1494 = vrot.slane %v1487, 4
      %v1495 = vsel %vm366, 0.0, %v1494
      %v1496 = vsel %vm403, %v1421, 0.0
      %1497 = vadd.xlane.f32.xlu0 %v1496
      %v1498 = vpop.xlane.xlu0 %1497
      %v1499 = vsel %vm403, %v1427, 0.0
      %1500 = vadd.xlane.f32.xlu0 %v1499
      %v1501 = vpop.xlane.xlu0 %1500
      %v1502 = vsel %vm403, %v1425, 0.0
      %1503 = vadd.xlane.f32.xlu0 %v1502
      %v1504 = vpop.xlane.xlu0 %1503
      %v1505 = vsel %vm403, %v1429, 0.0
      %1506 = vadd.xlane.f32.xlu0 %v1505
      %v1507 = vpop.xlane.xlu0 %1506
      %v1508 = vmul.f32 %v1498, %v413
      %v1509 = vmul.f32 %v1501, %v413
      %v1510 = vmul.f32 %v1504, %v413
      %v1511 = vmul.f32 %v1507, %v413
      %v1512 = vsub.f32 %v1421, %v1508
      %v1513 = vsub.f32 %v1427, %v1509
      %v1514 = vsub.f32 %v1425, %v1510
      %v1515 = vsub.f32 %v1429, %v1511
      %v1516 = vmul.f32 %v1512, %v1512
      %v1517 = vmul.f32 %v1513, %v1513
      %v1518 = vmul.f32 %v1514, %v1514
      %v1519 = vmul.f32 %v1515, %v1515
      %v1520 = vsel %vm403, %v1516, 0.0
      %1521 = vadd.xlane.f32.xlu0 %v1520
      %v1522 = vpop.xlane.xlu0 %1521
      %v1523 = vsel %vm403, %v1517, 0.0
      %1524 = vadd.xlane.f32.xlu0 %v1523
      %v1525 = vpop.xlane.xlu0 %1524
      %v1526 = vsel %vm403, %v1518, 0.0
      %1527 = vadd.xlane.f32.xlu0 %v1526
      %v1528 = vpop.xlane.xlu0 %1527
      %v1529 = vsel %vm403, %v1519, 0.0
      %1530 = vadd.xlane.f32.xlu0 %v1529
      %v1531 = vpop.xlane.xlu0 %1530
      %v1532 = vsel %vm403, %v1471, 0.0
      %1533 = vadd.xlane.f32.xlu0 %v1532
      %v1534 = vpop.xlane.xlu0 %1533
      %v1535 = vsel %vm403, %v1489, 0.0
      %1536 = vadd.xlane.f32.xlu0 %v1535
      %v1537 = vpop.xlane.xlu0 %1536
      %v1538 = vsel %vm403, %v1475, 0.0
      %1539 = vadd.xlane.f32.xlu0 %v1538
      %v1540 = vpop.xlane.xlu0 %1539
      %v1541 = vsel %vm403, %v1491, 0.0
      %1542 = vadd.xlane.f32.xlu0 %v1541
      %v1543 = vpop.xlane.xlu0 %1542
      %v1544 = vsel %vm403, %v1483, 0.0
      %1545 = vadd.xlane.f32.xlu0 %v1544
      %v1546 = vpop.xlane.xlu0 %1545
      %v1547 = vsel %vm403, %v1493, 0.0
      %1548 = vadd.xlane.f32.xlu0 %v1547
      %v1549 = vpop.xlane.xlu0 %1548
      %v1550 = vsel %vm403, %v1487, 0.0
      %1551 = vadd.xlane.f32.xlu0 %v1550
      %v1552 = vpop.xlane.xlu0 %1551
      %v1553 = vsel %vm403, %v1495, 0.0
      %1554 = vadd.xlane.f32.xlu0 %v1553
      %v1555 = vpop.xlane.xlu0 %1554
      %v1556 = vmul.f32 %v1534, %v413
      %v1557 = vmul.f32 %v1537, %v413
      %v1558 = vmul.f32 %v1540, %v413
      %v1559 = vmul.f32 %v1543, %v413
      %v1560 = vmul.f32 %v1546, %v413
      %v1561 = vmul.f32 %v1549, %v413
      %v1562 = vmul.f32 %v1552, %v413
      %v1563 = vmul.f32 %v1555, %v413
      %v1564 = vsub.f32 %v1471, %v1556
      %v1565 = vsub.f32 %v1489, %v1557
      %v1566 = vsub.f32 %v1475, %v1558
      %v1567 = vsub.f32 %v1491, %v1559
      %v1568 = vsub.f32 %v1483, %v1560
      %v1569 = vsub.f32 %v1493, %v1561
      %v1570 = vsub.f32 %v1487, %v1562
      %v1571 = vsub.f32 %v1495, %v1563
      %v1572 = vmul.f32 %v1564, %v1564
      %v1573 = vmul.f32 %v1565, %v1565
      %v1574 = vmul.f32 %v1566, %v1566
      %v1575 = vmul.f32 %v1567, %v1567
      %v1576 = vmul.f32 %v1568, %v1568
      %v1577 = vmul.f32 %v1569, %v1569
      %v1578 = vmul.f32 %v1570, %v1570
      %v1579 = vmul.f32 %v1571, %v1571
      %v1580 = vsel %vm403, %v1572, 0.0
      %1581 = vadd.xlane.f32.xlu0 %v1580
      %v1582 = vpop.xlane.xlu0 %1581
      %v1583 = vsel %vm403, %v1573, 0.0
      %1584 = vadd.xlane.f32.xlu0 %v1583
      %v1585 = vpop.xlane.xlu0 %1584
      %v1586 = vsel %vm403, %v1574, 0.0
      %1587 = vadd.xlane.f32.xlu0 %v1586
      %v1588 = vpop.xlane.xlu0 %1587
      %v1589 = vsel %vm403, %v1575, 0.0
      %1590 = vadd.xlane.f32.xlu0 %v1589
      %v1591 = vpop.xlane.xlu0 %1590
      %v1592 = vsel %vm403, %v1576, 0.0
      %1593 = vadd.xlane.f32.xlu0 %v1592
      %v1594 = vpop.xlane.xlu0 %1593
      %v1595 = vsel %vm403, %v1577, 0.0
      %1596 = vadd.xlane.f32.xlu0 %v1595
      %v1597 = vpop.xlane.xlu0 %1596
      %v1598 = vsel %vm403, %v1578, 0.0
      %1599 = vadd.xlane.f32.xlu0 %v1598
      %v1600 = vpop.xlane.xlu0 %1599
      %v1601 = vsel %vm403, %v1579, 0.0
      %1602 = vadd.xlane.f32.xlu0 %v1601
      %v1603 = vpop.xlane.xlu0 %1602
      %v1604 = vmul.f32 %v1512, %v1564
      %v1605 = vmul.f32 %v1512, %v1565
      %v1606 = vmul.f32 %v1512, %v1566
      %v1607 = vmul.f32 %v1512, %v1567
      %v1608 = vmul.f32 %v1512, %v1568
      %v1609 = vmul.f32 %v1512, %v1569
      %v1610 = vmul.f32 %v1512, %v1570
      %v1611 = vmul.f32 %v1512, %v1571
      %v1612 = vsel %vm403, %v1604, 0.0
      %1613 = vadd.xlane.f32.xlu0 %v1612
      %v1614 = vpop.xlane.xlu0 %1613
      %v1615 = vsel %vm403, %v1605, 0.0
      %1616 = vadd.xlane.f32.xlu0 %v1615
      %v1617 = vpop.xlane.xlu0 %1616
      %v1618 = vsel %vm403, %v1606, 0.0
      %1619 = vadd.xlane.f32.xlu0 %v1618
      %v1620 = vpop.xlane.xlu0 %1619
      %v1621 = vsel %vm403, %v1607, 0.0
      %1622 = vadd.xlane.f32.xlu0 %v1621
      %v1623 = vpop.xlane.xlu0 %1622
      %v1624 = vsel %vm403, %v1608, 0.0
      %1625 = vadd.xlane.f32.xlu0 %v1624
      %v1626 = vpop.xlane.xlu0 %1625
      %v1627 = vsel %vm403, %v1609, 0.0
      %1628 = vadd.xlane.f32.xlu0 %v1627
      %v1629 = vpop.xlane.xlu0 %1628
      %v1630 = vsel %vm403, %v1610, 0.0
      %1631 = vadd.xlane.f32.xlu0 %v1630
      %v1632 = vpop.xlane.xlu0 %1631
      %v1633 = vsel %vm403, %v1611, 0.0
      %1634 = vadd.xlane.f32.xlu0 %v1633
      %v1635 = vpop.xlane.xlu0 %1634
      %v1636 = vmul.f32 %v1522, %v1582
      %v1637 = vmul.f32 %v1522, %v1585
      %v1638 = vmul.f32 %v1522, %v1588
      %v1639 = vmul.f32 %v1522, %v1591
      %v1640 = vmul.f32 %v1522, %v1594
      %v1641 = vmul.f32 %v1522, %v1597
      %v1642 = vmul.f32 %v1522, %v1600
      %v1643 = vmul.f32 %v1522, %v1603
      %v1644 = vadd.f32 %v1636, 1e-12
      %v1645 = vadd.f32 %v1637, 1e-12
      %v1646 = vadd.f32 %v1638, 1e-12
      %v1647 = vadd.f32 %v1639, 1e-12
      %v1648 = vadd.f32 %v1640, 1e-12
      %v1649 = vadd.f32 %v1641, 1e-12
      %v1650 = vadd.f32 %v1642, 1e-12
      %v1651 = vadd.f32 %v1643, 1e-12
      %v1652 = vrsqrt.pop %v1644
      %v1653 = vmul.f32 %v1652, %v1644
      %v1654 = vmul.f32 %v1653, %v1652
      %v1655 = vmul.f32 0.5, %v1654
      %v1656 = vsub.f32 1.5, %v1655
      %v1657 = vmul.f32 %v1652, %v1656
      %vm1658 = vweird.f32 %v1644
      %vm1659 = vweird.f32 %v1652
      %vm1660 = vmor %vm1658, %vm1659
      %v1661 = vsel %vm1660, %v1652, %v1657
      %v1662 = vrsqrt.pop %v1645
      %v1663 = vmul.f32 %v1662, %v1645
      %v1664 = vmul.f32 %v1663, %v1662
      %v1665 = vmul.f32 0.5, %v1664
      %v1666 = vsub.f32 1.5, %v1665
      %v1667 = vmul.f32 %v1662, %v1666
      %vm1668 = vweird.f32 %v1645
      %vm1669 = vweird.f32 %v1662
      %vm1670 = vmor %vm1668, %vm1669
      %v1671 = vsel %vm1670, %v1662, %v1667
      %v1672 = vrsqrt.pop %v1646
      %v1673 = vmul.f32 %v1672, %v1646
      %v1674 = vmul.f32 %v1673, %v1672
      %v1675 = vmul.f32 0.5, %v1674
      %v1676 = vsub.f32 1.5, %v1675
      %v1677 = vmul.f32 %v1672, %v1676
      %vm1678 = vweird.f32 %v1646
      %vm1679 = vweird.f32 %v1672
      %vm1680 = vmor %vm1678, %vm1679
      %v1681 = vsel %vm1680, %v1672, %v1677
      %v1682 = vrsqrt.pop %v1647
      %v1683 = vmul.f32 %v1682, %v1647
      %v1684 = vmul.f32 %v1683, %v1682
      %v1685 = vmul.f32 0.5, %v1684
      %v1686 = vsub.f32 1.5, %v1685
      %v1687 = vmul.f32 %v1682, %v1686
      %vm1688 = vweird.f32 %v1647
      %vm1689 = vweird.f32 %v1682
      %vm1690 = vmor %vm1688, %vm1689
      %v1691 = vsel %vm1690, %v1682, %v1687
      %v1692 = vrsqrt.pop %v1648
      %v1693 = vmul.f32 %v1692, %v1648
      %v1694 = vmul.f32 %v1693, %v1692
      %v1695 = vmul.f32 0.5, %v1694
      %v1696 = vsub.f32 1.5, %v1695
      %v1697 = vmul.f32 %v1692, %v1696
      %vm1698 = vweird.f32 %v1648
      %vm1699 = vweird.f32 %v1692
      %vm1700 = vmor %vm1698, %vm1699
      %v1701 = vsel %vm1700, %v1692, %v1697
      %v1702 = vrsqrt.pop %v1649
      %v1703 = vmul.f32 %v1702, %v1649
      %v1704 = vmul.f32 %v1703, %v1702
      %v1705 = vmul.f32 0.5, %v1704
      %v1706 = vsub.f32 1.5, %v1705
      %v1707 = vmul.f32 %v1702, %v1706
      %vm1708 = vweird.f32 %v1649
      %vm1709 = vweird.f32 %v1702
      %vm1710 = vmor %vm1708, %vm1709
      %v1711 = vsel %vm1710, %v1702, %v1707
      %v1712 = vrsqrt.pop %v1650
      %v1713 = vmul.f32 %v1712, %v1650
      %v1714 = vmul.f32 %v1713, %v1712
      %v1715 = vmul.f32 0.5, %v1714
      %v1716 = vsub.f32 1.5, %v1715
      %v1717 = vmul.f32 %v1712, %v1716
      %vm1718 = vweird.f32 %v1650
      %vm1719 = vweird.f32 %v1712
      %vm1720 = vmor %vm1718, %vm1719
      %v1721 = vsel %vm1720, %v1712, %v1717
      %v1722 = vrsqrt.pop %v1651
      %v1723 = vmul.f32 %v1722, %v1651
      %v1724 = vmul.f32 %v1723, %v1722
      %v1725 = vmul.f32 0.5, %v1724
      %v1726 = vsub.f32 1.5, %v1725
      %v1727 = vmul.f32 %v1722, %v1726
      %vm1728 = vweird.f32 %v1651
      %vm1729 = vweird.f32 %v1722
      %vm1730 = vmor %vm1728, %vm1729
      %v1731 = vsel %vm1730, %v1722, %v1727
      %v1732 = vmul.f32 %v1614, %v1661
      %v1733 = vmul.f32 %v1617, %v1671
      %v1734 = vmul.f32 %v1620, %v1681
      %v1735 = vmul.f32 %v1623, %v1691
      %v1736 = vmul.f32 %v1626, %v1701
      %v1737 = vmul.f32 %v1629, %v1711
      %v1738 = vmul.f32 %v1632, %v1721
      %v1739 = vmul.f32 %v1635, %v1731
      %v1740 = vtanh.pop %v1732
      %v1741 = vtanh.pop %v1733
      %v1742 = vtanh.pop %v1734
      %v1743 = vtanh.pop %v1735
      %v1744 = vtanh.pop %v1736
      %v1745 = vtanh.pop %v1737
      %v1746 = vtanh.pop %v1738
      %v1747 = vtanh.pop %v1739
      %v1748 = vmul.f32 %v1513, %v1564
      %v1749 = vmul.f32 %v1513, %v1565
      %v1750 = vmul.f32 %v1513, %v1566
      %v1751 = vmul.f32 %v1513, %v1567
      %v1752 = vmul.f32 %v1513, %v1568
      %v1753 = vmul.f32 %v1513, %v1569
      %v1754 = vmul.f32 %v1513, %v1570
      %v1755 = vmul.f32 %v1513, %v1571
      %v1756 = vsel %vm403, %v1748, 0.0
      %1757 = vadd.xlane.f32.xlu0 %v1756
      %v1758 = vpop.xlane.xlu0 %1757
      %v1759 = vsel %vm403, %v1749, 0.0
      %1760 = vadd.xlane.f32.xlu0 %v1759
      %v1761 = vpop.xlane.xlu0 %1760
      %v1762 = vsel %vm403, %v1750, 0.0
      %1763 = vadd.xlane.f32.xlu0 %v1762
      %v1764 = vpop.xlane.xlu0 %1763
      %v1765 = vsel %vm403, %v1751, 0.0
      %1766 = vadd.xlane.f32.xlu0 %v1765
      %v1767 = vpop.xlane.xlu0 %1766
      %v1768 = vsel %vm403, %v1752, 0.0
      %1769 = vadd.xlane.f32.xlu0 %v1768
      %v1770 = vpop.xlane.xlu0 %1769
      %v1771 = vsel %vm403, %v1753, 0.0
      %1772 = vadd.xlane.f32.xlu0 %v1771
      %v1773 = vpop.xlane.xlu0 %1772
      %v1774 = vsel %vm403, %v1754, 0.0
      %1775 = vadd.xlane.f32.xlu0 %v1774
      %v1776 = vpop.xlane.xlu0 %1775
      %v1777 = vsel %vm403, %v1755, 0.0
      %1778 = vadd.xlane.f32.xlu0 %v1777
      %v1779 = vpop.xlane.xlu0 %1778
      %v1780 = vmul.f32 %v1525, %v1582
      %v1781 = vmul.f32 %v1525, %v1585
      %v1782 = vmul.f32 %v1525, %v1588
      %v1783 = vmul.f32 %v1525, %v1591
      %v1784 = vmul.f32 %v1525, %v1594
      %v1785 = vmul.f32 %v1525, %v1597
      %v1786 = vmul.f32 %v1525, %v1600
      %v1787 = vmul.f32 %v1525, %v1603
      %v1788 = vadd.f32 %v1780, 1e-12
      %v1789 = vadd.f32 %v1781, 1e-12
      %v1790 = vadd.f32 %v1782, 1e-12
      %v1791 = vadd.f32 %v1783, 1e-12
      %v1792 = vadd.f32 %v1784, 1e-12
      %v1793 = vadd.f32 %v1785, 1e-12
      %v1794 = vadd.f32 %v1786, 1e-12
      %v1795 = vadd.f32 %v1787, 1e-12
      %v1796 = vrsqrt.pop %v1788
      %v1797 = vmul.f32 %v1796, %v1788
      %v1798 = vmul.f32 %v1797, %v1796
      %v1799 = vmul.f32 0.5, %v1798
      %v1800 = vsub.f32 1.5, %v1799
      %v1801 = vmul.f32 %v1796, %v1800
      %vm1802 = vweird.f32 %v1788
      %vm1803 = vweird.f32 %v1796
      %vm1804 = vmor %vm1802, %vm1803
      %v1805 = vsel %vm1804, %v1796, %v1801
      %v1806 = vrsqrt.pop %v1789
      %v1807 = vmul.f32 %v1806, %v1789
      %v1808 = vmul.f32 %v1807, %v1806
      %v1809 = vmul.f32 0.5, %v1808
      %v1810 = vsub.f32 1.5, %v1809
      %v1811 = vmul.f32 %v1806, %v1810
      %vm1812 = vweird.f32 %v1789
      %vm1813 = vweird.f32 %v1806
      %vm1814 = vmor %vm1812, %vm1813
      %v1815 = vsel %vm1814, %v1806, %v1811
      %v1816 = vrsqrt.pop %v1790
      %v1817 = vmul.f32 %v1816, %v1790
      %v1818 = vmul.f32 %v1817, %v1816
      %v1819 = vmul.f32 0.5, %v1818
      %v1820 = vsub.f32 1.5, %v1819
      %v1821 = vmul.f32 %v1816, %v1820
      %vm1822 = vweird.f32 %v1790
      %vm1823 = vweird.f32 %v1816
      %vm1824 = vmor %vm1822, %vm1823
      %v1825 = vsel %vm1824, %v1816, %v1821
      %v1826 = vrsqrt.pop %v1791
      %v1827 = vmul.f32 %v1826, %v1791
      %v1828 = vmul.f32 %v1827, %v1826
      %v1829 = vmul.f32 0.5, %v1828
      %v1830 = vsub.f32 1.5, %v1829
      %v1831 = vmul.f32 %v1826, %v1830
      %vm1832 = vweird.f32 %v1791
      %vm1833 = vweird.f32 %v1826
      %vm1834 = vmor %vm1832, %vm1833
      %v1835 = vsel %vm1834, %v1826, %v1831
      %v1836 = vrsqrt.pop %v1792
      %v1837 = vmul.f32 %v1836, %v1792
      %v1838 = vmul.f32 %v1837, %v1836
      %v1839 = vmul.f32 0.5, %v1838
      %v1840 = vsub.f32 1.5, %v1839
      %v1841 = vmul.f32 %v1836, %v1840
      %vm1842 = vweird.f32 %v1792
      %vm1843 = vweird.f32 %v1836
      %vm1844 = vmor %vm1842, %vm1843
      %v1845 = vsel %vm1844, %v1836, %v1841
      %v1846 = vrsqrt.pop %v1793
      %v1847 = vmul.f32 %v1846, %v1793
      %v1848 = vmul.f32 %v1847, %v1846
      %v1849 = vmul.f32 0.5, %v1848
      %v1850 = vsub.f32 1.5, %v1849
      %v1851 = vmul.f32 %v1846, %v1850
      %vm1852 = vweird.f32 %v1793
      %vm1853 = vweird.f32 %v1846
      %vm1854 = vmor %vm1852, %vm1853
      %v1855 = vsel %vm1854, %v1846, %v1851
      %v1856 = vrsqrt.pop %v1794
      %v1857 = vmul.f32 %v1856, %v1794
      %v1858 = vmul.f32 %v1857, %v1856
      %v1859 = vmul.f32 0.5, %v1858
      %v1860 = vsub.f32 1.5, %v1859
      %v1861 = vmul.f32 %v1856, %v1860
      %vm1862 = vweird.f32 %v1794
      %vm1863 = vweird.f32 %v1856
      %vm1864 = vmor %vm1862, %vm1863
      %v1865 = vsel %vm1864, %v1856, %v1861
      %v1866 = vrsqrt.pop %v1795
      %v1867 = vmul.f32 %v1866, %v1795
      %v1868 = vmul.f32 %v1867, %v1866
      %v1869 = vmul.f32 0.5, %v1868
      %v1870 = vsub.f32 1.5, %v1869
      %v1871 = vmul.f32 %v1866, %v1870
      %vm1872 = vweird.f32 %v1795
      %vm1873 = vweird.f32 %v1866
      %vm1874 = vmor %vm1872, %vm1873
      %v1875 = vsel %vm1874, %v1866, %v1871
      %v1876 = vmul.f32 %v1758, %v1805
      %v1877 = vmul.f32 %v1761, %v1815
      %v1878 = vmul.f32 %v1764, %v1825
      %v1879 = vmul.f32 %v1767, %v1835
      %v1880 = vmul.f32 %v1770, %v1845
      %v1881 = vmul.f32 %v1773, %v1855
      %v1882 = vmul.f32 %v1776, %v1865
      %v1883 = vmul.f32 %v1779, %v1875
      %v1884 = vtanh.pop %v1876
      %v1885 = vtanh.pop %v1877
      %v1886 = vtanh.pop %v1878
      %v1887 = vtanh.pop %v1879
      %v1888 = vtanh.pop %v1880
      %v1889 = vtanh.pop %v1881
      %v1890 = vtanh.pop %v1882
      %v1891 = vtanh.pop %v1883
      %v1892 = vmul.f32 %v1514, %v1564
      %v1893 = vmul.f32 %v1514, %v1565
      %v1894 = vmul.f32 %v1514, %v1566
      %v1895 = vmul.f32 %v1514, %v1567
      %v1896 = vmul.f32 %v1514, %v1568
      %v1897 = vmul.f32 %v1514, %v1569
      %v1898 = vmul.f32 %v1514, %v1570
      %v1899 = vmul.f32 %v1514, %v1571
      %v1900 = vsel %vm403, %v1892, 0.0
      %1901 = vadd.xlane.f32.xlu0 %v1900
      %v1902 = vpop.xlane.xlu0 %1901
      %v1903 = vsel %vm403, %v1893, 0.0
      %1904 = vadd.xlane.f32.xlu0 %v1903
      %v1905 = vpop.xlane.xlu0 %1904
      %v1906 = vsel %vm403, %v1894, 0.0
      %1907 = vadd.xlane.f32.xlu0 %v1906
      %v1908 = vpop.xlane.xlu0 %1907
      %v1909 = vsel %vm403, %v1895, 0.0
      %1910 = vadd.xlane.f32.xlu0 %v1909
      %v1911 = vpop.xlane.xlu0 %1910
      %v1912 = vsel %vm403, %v1896, 0.0
      %1913 = vadd.xlane.f32.xlu0 %v1912
      %v1914 = vpop.xlane.xlu0 %1913
      %v1915 = vsel %vm403, %v1897, 0.0
      %1916 = vadd.xlane.f32.xlu0 %v1915
      %v1917 = vpop.xlane.xlu0 %1916
      %v1918 = vsel %vm403, %v1898, 0.0
      %1919 = vadd.xlane.f32.xlu0 %v1918
      %v1920 = vpop.xlane.xlu0 %1919
      %v1921 = vsel %vm403, %v1899, 0.0
      %1922 = vadd.xlane.f32.xlu0 %v1921
      %v1923 = vpop.xlane.xlu0 %1922
      %v1924 = vmul.f32 %v1528, %v1582
      %v1925 = vmul.f32 %v1528, %v1585
      %v1926 = vmul.f32 %v1528, %v1588
      %v1927 = vmul.f32 %v1528, %v1591
      %v1928 = vmul.f32 %v1528, %v1594
      %v1929 = vmul.f32 %v1528, %v1597
      %v1930 = vmul.f32 %v1528, %v1600
      %v1931 = vmul.f32 %v1528, %v1603
      %v1932 = vadd.f32 %v1924, 1e-12
      %v1933 = vadd.f32 %v1925, 1e-12
      %v1934 = vadd.f32 %v1926, 1e-12
      %v1935 = vadd.f32 %v1927, 1e-12
      %v1936 = vadd.f32 %v1928, 1e-12
      %v1937 = vadd.f32 %v1929, 1e-12
      %v1938 = vadd.f32 %v1930, 1e-12
      %v1939 = vadd.f32 %v1931, 1e-12
      %v1940 = vrsqrt.pop %v1932
      %v1941 = vmul.f32 %v1940, %v1932
      %v1942 = vmul.f32 %v1941, %v1940
      %v1943 = vmul.f32 0.5, %v1942
      %v1944 = vsub.f32 1.5, %v1943
      %v1945 = vmul.f32 %v1940, %v1944
      %vm1946 = vweird.f32 %v1932
      %vm1947 = vweird.f32 %v1940
      %vm1948 = vmor %vm1946, %vm1947
      %v1949 = vsel %vm1948, %v1940, %v1945
      %v1950 = vrsqrt.pop %v1933
      %v1951 = vmul.f32 %v1950, %v1933
      %v1952 = vmul.f32 %v1951, %v1950
      %v1953 = vmul.f32 0.5, %v1952
      %v1954 = vsub.f32 1.5, %v1953
      %v1955 = vmul.f32 %v1950, %v1954
      %vm1956 = vweird.f32 %v1933
      %vm1957 = vweird.f32 %v1950
      %vm1958 = vmor %vm1956, %vm1957
      %v1959 = vsel %vm1958, %v1950, %v1955
      %v1960 = vrsqrt.pop %v1934
      %v1961 = vmul.f32 %v1960, %v1934
      %v1962 = vmul.f32 %v1961, %v1960
      %v1963 = vmul.f32 0.5, %v1962
      %v1964 = vsub.f32 1.5, %v1963
      %v1965 = vmul.f32 %v1960, %v1964
      %vm1966 = vweird.f32 %v1934
      %vm1967 = vweird.f32 %v1960
      %vm1968 = vmor %vm1966, %vm1967
      %v1969 = vsel %vm1968, %v1960, %v1965
      %v1970 = vrsqrt.pop %v1935
      %v1971 = vmul.f32 %v1970, %v1935
      %v1972 = vmul.f32 %v1971, %v1970
      %v1973 = vmul.f32 0.5, %v1972
      %v1974 = vsub.f32 1.5, %v1973
      %v1975 = vmul.f32 %v1970, %v1974
      %vm1976 = vweird.f32 %v1935
      %vm1977 = vweird.f32 %v1970
      %vm1978 = vmor %vm1976, %vm1977
      %v1979 = vsel %vm1978, %v1970, %v1975
      %v1980 = vrsqrt.pop %v1936
      %v1981 = vmul.f32 %v1980, %v1936
      %v1982 = vmul.f32 %v1981, %v1980
      %v1983 = vmul.f32 0.5, %v1982
      %v1984 = vsub.f32 1.5, %v1983
      %v1985 = vmul.f32 %v1980, %v1984
      %vm1986 = vweird.f32 %v1936
      %vm1987 = vweird.f32 %v1980
      %vm1988 = vmor %vm1986, %vm1987
      %v1989 = vsel %vm1988, %v1980, %v1985
      %v1990 = vrsqrt.pop %v1937
      %v1991 = vmul.f32 %v1990, %v1937
      %v1992 = vmul.f32 %v1991, %v1990
      %v1993 = vmul.f32 0.5, %v1992
      %v1994 = vsub.f32 1.5, %v1993
      %v1995 = vmul.f32 %v1990, %v1994
      %vm1996 = vweird.f32 %v1937
      %vm1997 = vweird.f32 %v1990
      %vm1998 = vmor %vm1996, %vm1997
      %v1999 = vsel %vm1998, %v1990, %v1995
      %v2000 = vrsqrt.pop %v1938
      %v2001 = vmul.f32 %v2000, %v1938
      %v2002 = vmul.f32 %v2001, %v2000
      %v2003 = vmul.f32 0.5, %v2002
      %v2004 = vsub.f32 1.5, %v2003
      %v2005 = vmul.f32 %v2000, %v2004
      %vm2006 = vweird.f32 %v1938
      %vm2007 = vweird.f32 %v2000
      %vm2008 = vmor %vm2006, %vm2007
      %v2009 = vsel %vm2008, %v2000, %v2005
      %v2010 = vrsqrt.pop %v1939
      %v2011 = vmul.f32 %v2010, %v1939
      %v2012 = vmul.f32 %v2011, %v2010
      %v2013 = vmul.f32 0.5, %v2012
      %v2014 = vsub.f32 1.5, %v2013
      %v2015 = vmul.f32 %v2010, %v2014
      %vm2016 = vweird.f32 %v1939
      %vm2017 = vweird.f32 %v2010
      %vm2018 = vmor %vm2016, %vm2017
      %v2019 = vsel %vm2018, %v2010, %v2015
      %v2020 = vmul.f32 %v1902, %v1949
      %v2021 = vmul.f32 %v1905, %v1959
      %v2022 = vmul.f32 %v1908, %v1969
      %v2023 = vmul.f32 %v1911, %v1979
      %v2024 = vmul.f32 %v1914, %v1989
      %v2025 = vmul.f32 %v1917, %v1999
      %v2026 = vmul.f32 %v1920, %v2009
      %v2027 = vmul.f32 %v1923, %v2019
      %v2028 = vtanh.pop %v2020
      %v2029 = vtanh.pop %v2021
      %v2030 = vtanh.pop %v2022
      %v2031 = vtanh.pop %v2023
      %v2032 = vtanh.pop %v2024
      %v2033 = vtanh.pop %v2025
      %v2034 = vtanh.pop %v2026
      %v2035 = vtanh.pop %v2027
      %v2036 = vmul.f32 %v1515, %v1564
      %v2037 = vmul.f32 %v1515, %v1565
      %v2038 = vmul.f32 %v1515, %v1566
      %v2039 = vmul.f32 %v1515, %v1567
      %v2040 = vmul.f32 %v1515, %v1568
      %v2041 = vmul.f32 %v1515, %v1569
      %v2042 = vmul.f32 %v1515, %v1570
      %v2043 = vmul.f32 %v1515, %v1571
      %v2044 = vsel %vm403, %v2036, 0.0
      %2045 = vadd.xlane.f32.xlu0 %v2044
      %v2046 = vpop.xlane.xlu0 %2045
      %v2047 = vsel %vm403, %v2037, 0.0
      %2048 = vadd.xlane.f32.xlu0 %v2047
      %v2049 = vpop.xlane.xlu0 %2048
      %v2050 = vsel %vm403, %v2038, 0.0
      %2051 = vadd.xlane.f32.xlu0 %v2050
      %v2052 = vpop.xlane.xlu0 %2051
      %v2053 = vsel %vm403, %v2039, 0.0
      %2054 = vadd.xlane.f32.xlu0 %v2053
      %v2055 = vpop.xlane.xlu0 %2054
      %v2056 = vsel %vm403, %v2040, 0.0
      %2057 = vadd.xlane.f32.xlu0 %v2056
      %v2058 = vpop.xlane.xlu0 %2057
      %v2059 = vsel %vm403, %v2041, 0.0
      %2060 = vadd.xlane.f32.xlu0 %v2059
      %v2061 = vpop.xlane.xlu0 %2060
      %v2062 = vsel %vm403, %v2042, 0.0
      %2063 = vadd.xlane.f32.xlu0 %v2062
      %v2064 = vpop.xlane.xlu0 %2063
      %v2065 = vsel %vm403, %v2043, 0.0
      %2066 = vadd.xlane.f32.xlu0 %v2065
      %v2067 = vpop.xlane.xlu0 %2066
      %v2068 = vmul.f32 %v1531, %v1582
      %v2069 = vmul.f32 %v1531, %v1585
      %v2070 = vmul.f32 %v1531, %v1588
      %v2071 = vmul.f32 %v1531, %v1591
      %v2072 = vmul.f32 %v1531, %v1594
      %v2073 = vmul.f32 %v1531, %v1597
      %v2074 = vmul.f32 %v1531, %v1600
      %v2075 = vmul.f32 %v1531, %v1603
      %v2076 = vadd.f32 %v2068, 1e-12
      %v2077 = vadd.f32 %v2069, 1e-12
      %v2078 = vadd.f32 %v2070, 1e-12
      %v2079 = vadd.f32 %v2071, 1e-12
      %v2080 = vadd.f32 %v2072, 1e-12
      %v2081 = vadd.f32 %v2073, 1e-12
      %v2082 = vadd.f32 %v2074, 1e-12
      %v2083 = vadd.f32 %v2075, 1e-12
      %v2084 = vrsqrt.pop %v2076
      %v2085 = vmul.f32 %v2084, %v2076
      %v2086 = vmul.f32 %v2085, %v2084
      %v2087 = vmul.f32 0.5, %v2086
      %v2088 = vsub.f32 1.5, %v2087
      %v2089 = vmul.f32 %v2084, %v2088
      %vm2090 = vweird.f32 %v2076
      %vm2091 = vweird.f32 %v2084
      %vm2092 = vmor %vm2090, %vm2091
      %v2093 = vsel %vm2092, %v2084, %v2089
      %v2094 = vrsqrt.pop %v2077
      %v2095 = vmul.f32 %v2094, %v2077
      %v2096 = vmul.f32 %v2095, %v2094
      %v2097 = vmul.f32 0.5, %v2096
      %v2098 = vsub.f32 1.5, %v2097
      %v2099 = vmul.f32 %v2094, %v2098
      %vm2100 = vweird.f32 %v2077
      %vm2101 = vweird.f32 %v2094
      %vm2102 = vmor %vm2100, %vm2101
      %v2103 = vsel %vm2102, %v2094, %v2099
      %v2104 = vrsqrt.pop %v2078
      %v2105 = vmul.f32 %v2104, %v2078
      %v2106 = vmul.f32 %v2105, %v2104
      %v2107 = vmul.f32 0.5, %v2106
      %v2108 = vsub.f32 1.5, %v2107
      %v2109 = vmul.f32 %v2104, %v2108
      %vm2110 = vweird.f32 %v2078
      %vm2111 = vweird.f32 %v2104
      %vm2112 = vmor %vm2110, %vm2111
      %v2113 = vsel %vm2112, %v2104, %v2109
      %v2114 = vrsqrt.pop %v2079
      %v2115 = vmul.f32 %v2114, %v2079
      %v2116 = vmul.f32 %v2115, %v2114
      %v2117 = vmul.f32 0.5, %v2116
      %v2118 = vsub.f32 1.5, %v2117
      %v2119 = vmul.f32 %v2114, %v2118
      %vm2120 = vweird.f32 %v2079
      %vm2121 = vweird.f32 %v2114
      %vm2122 = vmor %vm2120, %vm2121
      %v2123 = vsel %vm2122, %v2114, %v2119
      %v2124 = vrsqrt.pop %v2080
      %v2125 = vmul.f32 %v2124, %v2080
      %v2126 = vmul.f32 %v2125, %v2124
      %v2127 = vmul.f32 0.5, %v2126
      %v2128 = vsub.f32 1.5, %v2127
      %v2129 = vmul.f32 %v2124, %v2128
      %vm2130 = vweird.f32 %v2080
      %vm2131 = vweird.f32 %v2124
      %vm2132 = vmor %vm2130, %vm2131
      %v2133 = vsel %vm2132, %v2124, %v2129
      %v2134 = vrsqrt.pop %v2081
      %v2135 = vmul.f32 %v2134, %v2081
      %v2136 = vmul.f32 %v2135, %v2134
      %v2137 = vmul.f32 0.5, %v2136
      %v2138 = vsub.f32 1.5, %v2137
      %v2139 = vmul.f32 %v2134, %v2138
      %vm2140 = vweird.f32 %v2081
      %vm2141 = vweird.f32 %v2134
      %vm2142 = vmor %vm2140, %vm2141
      %v2143 = vsel %vm2142, %v2134, %v2139
      %v2144 = vrsqrt.pop %v2082
      %v2145 = vmul.f32 %v2144, %v2082
      %v2146 = vmul.f32 %v2145, %v2144
      %v2147 = vmul.f32 0.5, %v2146
      %v2148 = vsub.f32 1.5, %v2147
      %v2149 = vmul.f32 %v2144, %v2148
      %vm2150 = vweird.f32 %v2082
      %vm2151 = vweird.f32 %v2144
      %vm2152 = vmor %vm2150, %vm2151
      %v2153 = vsel %vm2152, %v2144, %v2149
      %v2154 = vrsqrt.pop %v2083
      %v2155 = vmul.f32 %v2154, %v2083
      %v2156 = vmul.f32 %v2155, %v2154
      %v2157 = vmul.f32 0.5, %v2156
      %v2158 = vsub.f32 1.5, %v2157
      %v2159 = vmul.f32 %v2154, %v2158
      %vm2160 = vweird.f32 %v2083
      %vm2161 = vweird.f32 %v2154
      %vm2162 = vmor %vm2160, %vm2161
      %v2163 = vsel %vm2162, %v2154, %v2159
      %v2164 = vmul.f32 %v2046, %v2093
      %v2165 = vmul.f32 %v2049, %v2103
      %v2166 = vmul.f32 %v2052, %v2113
      %v2167 = vmul.f32 %v2055, %v2123
      %v2168 = vmul.f32 %v2058, %v2133
      %v2169 = vmul.f32 %v2061, %v2143
      %v2170 = vmul.f32 %v2064, %v2153
      %v2171 = vmul.f32 %v2067, %v2163
      %v2172 = vtanh.pop %v2164
      %v2173 = vtanh.pop %v2165
      %v2174 = vtanh.pop %v2166
      %v2175 = vtanh.pop %v2167
      %v2176 = vtanh.pop %v2168
      %v2177 = vtanh.pop %v2169
      %v2178 = vtanh.pop %v2170
      %v2179 = vtanh.pop %v2171
      %v2180 = vadd.f32 %v536, %v1740
      %v2181 = vadd.f32 %v536, %v1741
      %v2182 = vadd.f32 %v536, %v1742
      %v2183 = vadd.f32 %v536, %v1743
      %v2184 = vadd.f32 %v536, %v1744
      %v2185 = vadd.f32 %v536, %v1745
      %v2186 = vadd.f32 %v536, %v1746
      %v2187 = vadd.f32 %v536, %v1747
      %v2188 = vadd.f32 %v536, %v1884
      %v2189 = vadd.f32 %v536, %v1885
      %v2190 = vadd.f32 %v536, %v1886
      %v2191 = vadd.f32 %v536, %v1887
      %v2192 = vadd.f32 %v536, %v1888
      %v2193 = vadd.f32 %v536, %v1889
      %v2194 = vadd.f32 %v536, %v1890
      %v2195 = vadd.f32 %v536, %v1891
      %v2196 = vadd.f32 %v536, %v2028
      %v2197 = vadd.f32 %v536, %v2029
      %v2198 = vadd.f32 %v536, %v2030
      %v2199 = vadd.f32 %v536, %v2031
      %v2200 = vadd.f32 %v536, %v2032
      %v2201 = vadd.f32 %v536, %v2033
      %v2202 = vadd.f32 %v536, %v2034
      %v2203 = vadd.f32 %v536, %v2035
      %v2204 = vadd.f32 %v536, %v2172
      %v2205 = vadd.f32 %v536, %v2173
      %v2206 = vadd.f32 %v536, %v2174
      %v2207 = vadd.f32 %v536, %v2175
      %v2208 = vadd.f32 %v536, %v2176
      %v2209 = vadd.f32 %v536, %v2177
      %v2210 = vadd.f32 %v536, %v2178
      %v2211 = vadd.f32 %v536, %v2179
      %v2212 = vmul.f32 %v2180, %v1421
      %v2213 = vmul.f32 %v2181, %v1421
      %v2214 = vmul.f32 %v2182, %v1421
      %v2215 = vmul.f32 %v2183, %v1421
      %v2216 = vmul.f32 %v2184, %v1421
      %v2217 = vmul.f32 %v2185, %v1421
      %v2218 = vmul.f32 %v2186, %v1421
      %v2219 = vmul.f32 %v2187, %v1421
      %v2220 = vmul.f32 %v2188, %v1427
      %v2221 = vmul.f32 %v2189, %v1427
      %v2222 = vmul.f32 %v2190, %v1427
      %v2223 = vmul.f32 %v2191, %v1427
      %v2224 = vmul.f32 %v2192, %v1427
      %v2225 = vmul.f32 %v2193, %v1427
      %v2226 = vmul.f32 %v2194, %v1427
      %v2227 = vmul.f32 %v2195, %v1427
      %v2228 = vadd.f32 %v2212, %v2220
      %v2229 = vadd.f32 %v2213, %v2221
      %v2230 = vadd.f32 %v2214, %v2222
      %v2231 = vadd.f32 %v2215, %v2223
      %v2232 = vadd.f32 %v2216, %v2224
      %v2233 = vadd.f32 %v2217, %v2225
      %v2234 = vadd.f32 %v2218, %v2226
      %v2235 = vadd.f32 %v2219, %v2227
      %v2236 = vmul.f32 %v2196, %v1425
      %v2237 = vmul.f32 %v2197, %v1425
      %v2238 = vmul.f32 %v2198, %v1425
      %v2239 = vmul.f32 %v2199, %v1425
      %v2240 = vmul.f32 %v2200, %v1425
      %v2241 = vmul.f32 %v2201, %v1425
      %v2242 = vmul.f32 %v2202, %v1425
      %v2243 = vmul.f32 %v2203, %v1425
      %v2244 = vadd.f32 %v2228, %v2236
      %v2245 = vadd.f32 %v2229, %v2237
      %v2246 = vadd.f32 %v2230, %v2238
      %v2247 = vadd.f32 %v2231, %v2239
      %v2248 = vadd.f32 %v2232, %v2240
      %v2249 = vadd.f32 %v2233, %v2241
      %v2250 = vadd.f32 %v2234, %v2242
      %v2251 = vadd.f32 %v2235, %v2243
      %v2252 = vmul.f32 %v2204, %v1429
      %v2253 = vmul.f32 %v2205, %v1429
      %v2254 = vmul.f32 %v2206, %v1429
      %v2255 = vmul.f32 %v2207, %v1429
      %v2256 = vmul.f32 %v2208, %v1429
      %v2257 = vmul.f32 %v2209, %v1429
      %v2258 = vmul.f32 %v2210, %v1429
      %v2259 = vmul.f32 %v2211, %v1429
      %v2260 = vadd.f32 %v2244, %v2252
      %v2261 = vadd.f32 %v2245, %v2253
      %v2262 = vadd.f32 %v2246, %v2254
      %v2263 = vadd.f32 %v2247, %v2255
      %v2264 = vadd.f32 %v2248, %v2256
      %v2265 = vadd.f32 %v2249, %v2257
      %v2266 = vadd.f32 %v2250, %v2258
      %v2267 = vadd.f32 %v2251, %v2259
      %v2268 = vmul.f32 %v2260, %v2260
      %v2269 = vmul.f32 %v2261, %v2261
      %v2270 = vmul.f32 %v2262, %v2262
      %v2271 = vmul.f32 %v2263, %v2263
      %v2272 = vmul.f32 %v2264, %v2264
      %v2273 = vmul.f32 %v2265, %v2265
      %v2274 = vmul.f32 %v2266, %v2266
      %v2275 = vmul.f32 %v2267, %v2267
      %v2276 = vsel %vm403, %v2268, 0.0
      %2277 = vadd.xlane.f32.xlu0 %v2276
      %v2278 = vpop.xlane.xlu0 %2277
      %v2279 = vsel %vm403, %v2269, 0.0
      %2280 = vadd.xlane.f32.xlu0 %v2279
      %v2281 = vpop.xlane.xlu0 %2280
      %v2282 = vsel %vm403, %v2270, 0.0
      %2283 = vadd.xlane.f32.xlu0 %v2282
      %v2284 = vpop.xlane.xlu0 %2283
      %v2285 = vsel %vm403, %v2271, 0.0
      %2286 = vadd.xlane.f32.xlu0 %v2285
      %v2287 = vpop.xlane.xlu0 %2286
      %v2288 = vsel %vm403, %v2272, 0.0
      %2289 = vadd.xlane.f32.xlu0 %v2288
      %v2290 = vpop.xlane.xlu0 %2289
      %v2291 = vsel %vm403, %v2273, 0.0
      %2292 = vadd.xlane.f32.xlu0 %v2291
      %v2293 = vpop.xlane.xlu0 %2292
      %v2294 = vsel %vm403, %v2274, 0.0
      %2295 = vadd.xlane.f32.xlu0 %v2294
      %v2296 = vpop.xlane.xlu0 %2295
      %v2297 = vsel %vm403, %v2275, 0.0
      %2298 = vadd.xlane.f32.xlu0 %v2297
      %v2299 = vpop.xlane.xlu0 %2298
      %v2300 = vadd.f32 %v2278, 1.0
      %v2301 = vadd.f32 %v2281, 1.0
      %v2302 = vadd.f32 %v2284, 1.0
      %v2303 = vadd.f32 %v2287, 1.0
      %v2304 = vadd.f32 %v2290, 1.0
      %v2305 = vadd.f32 %v2293, 1.0
      %v2306 = vadd.f32 %v2296, 1.0
      %v2307 = vadd.f32 %v2299, 1.0
      %v2308 = vrcp.pop %v2300
      %v2309 = vrcp.pop %v2301
      %v2310 = vrcp.pop %v2302
      %v2311 = vrcp.pop %v2303
      %v2312 = vrcp.pop %v2304
      %v2313 = vrcp.pop %v2305
      %v2314 = vrcp.pop %v2306
      %v2315 = vrcp.pop %v2307
      %v2316 = vmul.f32 %v2278, %v2308
      %v2317 = vmul.f32 %v2281, %v2309
      %v2318 = vmul.f32 %v2284, %v2310
      %v2319 = vmul.f32 %v2287, %v2311
      %v2320 = vmul.f32 %v2290, %v2312
      %v2321 = vmul.f32 %v2293, %v2313
      %v2322 = vmul.f32 %v2296, %v2314
      %v2323 = vmul.f32 %v2299, %v2315
      %v2324 = vadd.f32 %v2278, 1e-08
      %v2325 = vadd.f32 %v2281, 1e-08
      %v2326 = vadd.f32 %v2284, 1e-08
      %v2327 = vadd.f32 %v2287, 1e-08
      %v2328 = vadd.f32 %v2290, 1e-08
      %v2329 = vadd.f32 %v2293, 1e-08
      %v2330 = vadd.f32 %v2296, 1e-08
      %v2331 = vadd.f32 %v2299, 1e-08
      %v2332 = vrsqrt.pop %v2324
      %v2333 = vmul.f32 %v2332, %v2324
      %v2334 = vmul.f32 %v2333, %v2332
      %v2335 = vmul.f32 0.5, %v2334
      %v2336 = vsub.f32 1.5, %v2335
      %v2337 = vmul.f32 %v2332, %v2336
      %vm2338 = vweird.f32 %v2324
      %vm2339 = vweird.f32 %v2332
      %vm2340 = vmor %vm2338, %vm2339
      %v2341 = vsel %vm2340, %v2332, %v2337
      %v2342 = vrsqrt.pop %v2325
      %v2343 = vmul.f32 %v2342, %v2325
      %v2344 = vmul.f32 %v2343, %v2342
      %v2345 = vmul.f32 0.5, %v2344
      %v2346 = vsub.f32 1.5, %v2345
      %v2347 = vmul.f32 %v2342, %v2346
      %vm2348 = vweird.f32 %v2325
      %vm2349 = vweird.f32 %v2342
      %vm2350 = vmor %vm2348, %vm2349
      %v2351 = vsel %vm2350, %v2342, %v2347
      %v2352 = vrsqrt.pop %v2326
      %v2353 = vmul.f32 %v2352, %v2326
      %v2354 = vmul.f32 %v2353, %v2352
      %v2355 = vmul.f32 0.5, %v2354
      %v2356 = vsub.f32 1.5, %v2355
      %v2357 = vmul.f32 %v2352, %v2356
      %vm2358 = vweird.f32 %v2326
      %vm2359 = vweird.f32 %v2352
      %vm2360 = vmor %vm2358, %vm2359
      %v2361 = vsel %vm2360, %v2352, %v2357
      %v2362 = vrsqrt.pop %v2327
      %v2363 = vmul.f32 %v2362, %v2327
      %v2364 = vmul.f32 %v2363, %v2362
      %v2365 = vmul.f32 0.5, %v2364
      %v2366 = vsub.f32 1.5, %v2365
      %v2367 = vmul.f32 %v2362, %v2366
      %vm2368 = vweird.f32 %v2327
      %vm2369 = vweird.f32 %v2362
      %vm2370 = vmor %vm2368, %vm2369
      %v2371 = vsel %vm2370, %v2362, %v2367
      %v2372 = vrsqrt.pop %v2328
      %v2373 = vmul.f32 %v2372, %v2328
      %v2374 = vmul.f32 %v2373, %v2372
      %v2375 = vmul.f32 0.5, %v2374
      %v2376 = vsub.f32 1.5, %v2375
      %v2377 = vmul.f32 %v2372, %v2376
      %vm2378 = vweird.f32 %v2328
      %vm2379 = vweird.f32 %v2372
      %vm2380 = vmor %vm2378, %vm2379
      %v2381 = vsel %vm2380, %v2372, %v2377
      %v2382 = vrsqrt.pop %v2329
      %v2383 = vmul.f32 %v2382, %v2329
      %v2384 = vmul.f32 %v2383, %v2382
      %v2385 = vmul.f32 0.5, %v2384
      %v2386 = vsub.f32 1.5, %v2385
      %v2387 = vmul.f32 %v2382, %v2386
      %vm2388 = vweird.f32 %v2329
      %vm2389 = vweird.f32 %v2382
      %vm2390 = vmor %vm2388, %vm2389
      %v2391 = vsel %vm2390, %v2382, %v2387
      %v2392 = vrsqrt.pop %v2330
      %v2393 = vmul.f32 %v2392, %v2330
      %v2394 = vmul.f32 %v2393, %v2392
      %v2395 = vmul.f32 0.5, %v2394
      %v2396 = vsub.f32 1.5, %v2395
      %v2397 = vmul.f32 %v2392, %v2396
      %vm2398 = vweird.f32 %v2330
      %vm2399 = vweird.f32 %v2392
      %vm2400 = vmor %vm2398, %vm2399
      %v2401 = vsel %vm2400, %v2392, %v2397
      %v2402 = vrsqrt.pop %v2331
      %v2403 = vmul.f32 %v2402, %v2331
      %v2404 = vmul.f32 %v2403, %v2402
      %v2405 = vmul.f32 0.5, %v2404
      %v2406 = vsub.f32 1.5, %v2405
      %v2407 = vmul.f32 %v2402, %v2406
      %vm2408 = vweird.f32 %v2331
      %vm2409 = vweird.f32 %v2402
      %vm2410 = vmor %vm2408, %vm2409
      %v2411 = vsel %vm2410, %v2402, %v2407
      %v2412 = vmul.f32 %v2316, %v2341
      %v2413 = vmul.f32 %v2317, %v2351
      %v2414 = vmul.f32 %v2318, %v2361
      %v2415 = vmul.f32 %v2319, %v2371
      %v2416 = vmul.f32 %v2320, %v2381
      %v2417 = vmul.f32 %v2321, %v2391
      %v2418 = vmul.f32 %v2322, %v2401
      %v2419 = vmul.f32 %v2323, %v2411
      %v2420 = vmul.f32 %v2412, %v2260
      %v2421 = vmul.f32 %v2413, %v2261
      %v2422 = vmul.f32 %v2414, %v2262
      %v2423 = vmul.f32 %v2415, %v2263
      %v2424 = vmul.f32 %v2416, %v2264
      %v2425 = vmul.f32 %v2417, %v2265
      %v2426 = vmul.f32 %v2418, %v2266
      %v2427 = vmul.f32 %v2419, %v2267
      %v2428 = vmul.f32 %v1421, %v2420
      %v2429 = vmul.f32 %v1421, %v2421
      %v2430 = vmul.f32 %v1421, %v2422
      %v2431 = vmul.f32 %v1421, %v2423
      %v2432 = vmul.f32 %v1421, %v2424
      %v2433 = vmul.f32 %v1421, %v2425
      %v2434 = vmul.f32 %v1421, %v2426
      %v2435 = vmul.f32 %v1421, %v2427
      %v2436 = vsel %vm403, %v2428, 0.0
      %2437 = vadd.xlane.f32.xlu0 %v2436
      %v2438 = vpop.xlane.xlu0 %2437
      %v2439 = vsel %vm403, %v2429, 0.0
      %2440 = vadd.xlane.f32.xlu0 %v2439
      %v2441 = vpop.xlane.xlu0 %2440
      %v2442 = vsel %vm403, %v2430, 0.0
      %2443 = vadd.xlane.f32.xlu0 %v2442
      %v2444 = vpop.xlane.xlu0 %2443
      %v2445 = vsel %vm403, %v2431, 0.0
      %2446 = vadd.xlane.f32.xlu0 %v2445
      %v2447 = vpop.xlane.xlu0 %2446
      %v2448 = vsel %vm403, %v2432, 0.0
      %2449 = vadd.xlane.f32.xlu0 %v2448
      %v2450 = vpop.xlane.xlu0 %2449
      %v2451 = vsel %vm403, %v2433, 0.0
      %2452 = vadd.xlane.f32.xlu0 %v2451
      %v2453 = vpop.xlane.xlu0 %2452
      %v2454 = vsel %vm403, %v2434, 0.0
      %2455 = vadd.xlane.f32.xlu0 %v2454
      %v2456 = vpop.xlane.xlu0 %2455
      %v2457 = vsel %vm403, %v2435, 0.0
      %2458 = vadd.xlane.f32.xlu0 %v2457
      %v2459 = vpop.xlane.xlu0 %2458
      %v2460 = vmul.f32 %v1427, %v2420
      %v2461 = vmul.f32 %v1427, %v2421
      %v2462 = vmul.f32 %v1427, %v2422
      %v2463 = vmul.f32 %v1427, %v2423
      %v2464 = vmul.f32 %v1427, %v2424
      %v2465 = vmul.f32 %v1427, %v2425
      %v2466 = vmul.f32 %v1427, %v2426
      %v2467 = vmul.f32 %v1427, %v2427
      %v2468 = vsel %vm403, %v2460, 0.0
      %2469 = vadd.xlane.f32.xlu0 %v2468
      %v2470 = vpop.xlane.xlu0 %2469
      %v2471 = vsel %vm403, %v2461, 0.0
      %2472 = vadd.xlane.f32.xlu0 %v2471
      %v2473 = vpop.xlane.xlu0 %2472
      %v2474 = vsel %vm403, %v2462, 0.0
      %2475 = vadd.xlane.f32.xlu0 %v2474
      %v2476 = vpop.xlane.xlu0 %2475
      %v2477 = vsel %vm403, %v2463, 0.0
      %2478 = vadd.xlane.f32.xlu0 %v2477
      %v2479 = vpop.xlane.xlu0 %2478
      %v2480 = vsel %vm403, %v2464, 0.0
      %2481 = vadd.xlane.f32.xlu0 %v2480
      %v2482 = vpop.xlane.xlu0 %2481
      %v2483 = vsel %vm403, %v2465, 0.0
      %2484 = vadd.xlane.f32.xlu0 %v2483
      %v2485 = vpop.xlane.xlu0 %2484
      %v2486 = vsel %vm403, %v2466, 0.0
      %2487 = vadd.xlane.f32.xlu0 %v2486
      %v2488 = vpop.xlane.xlu0 %2487
      %v2489 = vsel %vm403, %v2467, 0.0
      %2490 = vadd.xlane.f32.xlu0 %v2489
      %v2491 = vpop.xlane.xlu0 %2490
      %v2492 = vmul.f32 %v1425, %v2420
      %v2493 = vmul.f32 %v1425, %v2421
      %v2494 = vmul.f32 %v1425, %v2422
      %v2495 = vmul.f32 %v1425, %v2423
      %v2496 = vmul.f32 %v1425, %v2424
      %v2497 = vmul.f32 %v1425, %v2425
      %v2498 = vmul.f32 %v1425, %v2426
      %v2499 = vmul.f32 %v1425, %v2427
      %v2500 = vsel %vm403, %v2492, 0.0
      %2501 = vadd.xlane.f32.xlu0 %v2500
      %v2502 = vpop.xlane.xlu0 %2501
      %v2503 = vsel %vm403, %v2493, 0.0
      %2504 = vadd.xlane.f32.xlu0 %v2503
      %v2505 = vpop.xlane.xlu0 %2504
      %v2506 = vsel %vm403, %v2494, 0.0
      %2507 = vadd.xlane.f32.xlu0 %v2506
      %v2508 = vpop.xlane.xlu0 %2507
      %v2509 = vsel %vm403, %v2495, 0.0
      %2510 = vadd.xlane.f32.xlu0 %v2509
      %v2511 = vpop.xlane.xlu0 %2510
      %v2512 = vsel %vm403, %v2496, 0.0
      %2513 = vadd.xlane.f32.xlu0 %v2512
      %v2514 = vpop.xlane.xlu0 %2513
      %v2515 = vsel %vm403, %v2497, 0.0
      %2516 = vadd.xlane.f32.xlu0 %v2515
      %v2517 = vpop.xlane.xlu0 %2516
      %v2518 = vsel %vm403, %v2498, 0.0
      %2519 = vadd.xlane.f32.xlu0 %v2518
      %v2520 = vpop.xlane.xlu0 %2519
      %v2521 = vsel %vm403, %v2499, 0.0
      %2522 = vadd.xlane.f32.xlu0 %v2521
      %v2523 = vpop.xlane.xlu0 %2522
      %v2524 = vmul.f32 %v1429, %v2420
      %v2525 = vmul.f32 %v1429, %v2421
      %v2526 = vmul.f32 %v1429, %v2422
      %v2527 = vmul.f32 %v1429, %v2423
      %v2528 = vmul.f32 %v1429, %v2424
      %v2529 = vmul.f32 %v1429, %v2425
      %v2530 = vmul.f32 %v1429, %v2426
      %v2531 = vmul.f32 %v1429, %v2427
      %v2532 = vsel %vm403, %v2524, 0.0
      %2533 = vadd.xlane.f32.xlu0 %v2532
      %v2534 = vpop.xlane.xlu0 %2533
      %v2535 = vsel %vm403, %v2525, 0.0
      %2536 = vadd.xlane.f32.xlu0 %v2535
      %v2537 = vpop.xlane.xlu0 %2536
      %v2538 = vsel %vm403, %v2526, 0.0
      %2539 = vadd.xlane.f32.xlu0 %v2538
      %v2540 = vpop.xlane.xlu0 %2539
      %v2541 = vsel %vm403, %v2527, 0.0
      %2542 = vadd.xlane.f32.xlu0 %v2541
      %v2543 = vpop.xlane.xlu0 %2542
      %v2544 = vsel %vm403, %v2528, 0.0
      %2545 = vadd.xlane.f32.xlu0 %v2544
      %v2546 = vpop.xlane.xlu0 %2545
      %v2547 = vsel %vm403, %v2529, 0.0
      %2548 = vadd.xlane.f32.xlu0 %v2547
      %v2549 = vpop.xlane.xlu0 %2548
      %v2550 = vsel %vm403, %v2530, 0.0
      %2551 = vadd.xlane.f32.xlu0 %v2550
      %v2552 = vpop.xlane.xlu0 %2551
      %v2553 = vsel %vm403, %v2531, 0.0
      %2554 = vadd.xlane.f32.xlu0 %v2553
      %v2555 = vpop.xlane.xlu0 %2554
      %v2556 = vmul.f32 %v1556, %v2438
      %v2557 = vmul.f32 %v1557, %v2441
      %v2558 = vmul.f32 %v1558, %v2444
      %v2559 = vmul.f32 %v1559, %v2447
      %v2560 = vmul.f32 %v1560, %v2450
      %v2561 = vmul.f32 %v1561, %v2453
      %v2562 = vmul.f32 %v1562, %v2456
      %v2563 = vmul.f32 %v1563, %v2459
      %v2564 = vadd.f32 %v2556, 0.0
      %v2565 = vadd.f32 %v2557, 0.0
      %v2566 = vadd.f32 %v2558, 0.0
      %v2567 = vadd.f32 %v2559, 0.0
      %v2568 = vadd.f32 %v2560, 0.0
      %v2569 = vadd.f32 %v2561, 0.0
      %v2570 = vadd.f32 %v2562, 0.0
      %v2571 = vadd.f32 %v2563, 0.0
      %v2572 = vmul.f32 %v1556, %v2470
      %v2573 = vmul.f32 %v1557, %v2473
      %v2574 = vmul.f32 %v1558, %v2476
      %v2575 = vmul.f32 %v1559, %v2479
      %v2576 = vmul.f32 %v1560, %v2482
      %v2577 = vmul.f32 %v1561, %v2485
      %v2578 = vmul.f32 %v1562, %v2488
      %v2579 = vmul.f32 %v1563, %v2491
      %v2580 = vadd.f32 %v2572, 0.0
      %v2581 = vadd.f32 %v2573, 0.0
      %v2582 = vadd.f32 %v2574, 0.0
      %v2583 = vadd.f32 %v2575, 0.0
      %v2584 = vadd.f32 %v2576, 0.0
      %v2585 = vadd.f32 %v2577, 0.0
      %v2586 = vadd.f32 %v2578, 0.0
      %v2587 = vadd.f32 %v2579, 0.0
      %v2588 = vmul.f32 %v1556, %v2502
      %v2589 = vmul.f32 %v1557, %v2505
      %v2590 = vmul.f32 %v1558, %v2508
      %v2591 = vmul.f32 %v1559, %v2511
      %v2592 = vmul.f32 %v1560, %v2514
      %v2593 = vmul.f32 %v1561, %v2517
      %v2594 = vmul.f32 %v1562, %v2520
      %v2595 = vmul.f32 %v1563, %v2523
      %v2596 = vadd.f32 %v2588, 0.0
      %v2597 = vadd.f32 %v2589, 0.0
      %v2598 = vadd.f32 %v2590, 0.0
      %v2599 = vadd.f32 %v2591, 0.0
      %v2600 = vadd.f32 %v2592, 0.0
      %v2601 = vadd.f32 %v2593, 0.0
      %v2602 = vadd.f32 %v2594, 0.0
      %v2603 = vadd.f32 %v2595, 0.0
      %v2604 = vmul.f32 %v1556, %v2534
      %v2605 = vmul.f32 %v1557, %v2537
      %v2606 = vmul.f32 %v1558, %v2540
      %v2607 = vmul.f32 %v1559, %v2543
      %v2608 = vmul.f32 %v1560, %v2546
      %v2609 = vmul.f32 %v1561, %v2549
      %v2610 = vmul.f32 %v1562, %v2552
      %v2611 = vmul.f32 %v1563, %v2555
      %v2612 = vadd.f32 %v2604, 0.0
      %v2613 = vadd.f32 %v2605, 0.0
      %v2614 = vadd.f32 %v2606, 0.0
      %v2615 = vadd.f32 %v2607, 0.0
      %v2616 = vadd.f32 %v2608, 0.0
      %v2617 = vadd.f32 %v2609, 0.0
      %v2618 = vadd.f32 %v2610, 0.0
      %v2619 = vadd.f32 %v2611, 0.0
      %v2620 = vadd.f32 %v1471, %v2420
      %v2621 = vadd.f32 %v1489, %v2421
      %v2622 = vadd.f32 %v1475, %v2422
      %v2623 = vadd.f32 %v1491, %v2423
      %v2624 = vadd.f32 %v1483, %v2424
      %v2625 = vadd.f32 %v1493, %v2425
      %v2626 = vadd.f32 %v1487, %v2426
      %v2627 = vadd.f32 %v1495, %v2427
      %v2628 = vmul.f32 %v2620, 0.5
      %v2629 = vmul.f32 %v2621, 0.5
      %v2630 = vmul.f32 %v2622, 0.5
      %v2631 = vmul.f32 %v2623, 0.5
      %v2632 = vmul.f32 %v2624, 0.5
      %v2633 = vmul.f32 %v2625, 0.5
      %v2634 = vmul.f32 %v2626, 0.5
      %v2635 = vmul.f32 %v2627, 0.5
      %v2636 = vsel %vm403, %v2628, 0.0
      %2637 = vadd.xlane.f32.xlu0 %v2636
      %v2638 = vpop.xlane.xlu0 %2637
      %v2639 = vsel %vm403, %v2629, 0.0
      %2640 = vadd.xlane.f32.xlu0 %v2639
      %v2641 = vpop.xlane.xlu0 %2640
      %v2642 = vsel %vm403, %v2630, 0.0
      %2643 = vadd.xlane.f32.xlu0 %v2642
      %v2644 = vpop.xlane.xlu0 %2643
      %v2645 = vsel %vm403, %v2631, 0.0
      %2646 = vadd.xlane.f32.xlu0 %v2645
      %v2647 = vpop.xlane.xlu0 %2646
      %v2648 = vsel %vm403, %v2632, 0.0
      %2649 = vadd.xlane.f32.xlu0 %v2648
      %v2650 = vpop.xlane.xlu0 %2649
      %v2651 = vsel %vm403, %v2633, 0.0
      %2652 = vadd.xlane.f32.xlu0 %v2651
      %v2653 = vpop.xlane.xlu0 %2652
      %v2654 = vsel %vm403, %v2634, 0.0
      %2655 = vadd.xlane.f32.xlu0 %v2654
      %v2656 = vpop.xlane.xlu0 %2655
      %v2657 = vsel %vm403, %v2635, 0.0
      %2658 = vadd.xlane.f32.xlu0 %v2657
      %v2659 = vpop.xlane.xlu0 %2658
      %v2660 = vmul.f32 %v2638, %v413
      %v2661 = vmul.f32 %v2641, %v413
      %v2662 = vmul.f32 %v2644, %v413
      %v2663 = vmul.f32 %v2647, %v413
      %v2664 = vmul.f32 %v2650, %v413
      %v2665 = vmul.f32 %v2653, %v413
      %v2666 = vmul.f32 %v2656, %v413
      %v2667 = vmul.f32 %v2659, %v413
      %v2668 = vsub.f32 %v2628, %v2660
      %v2669 = vsub.f32 %v2629, %v2661
      %v2670 = vsub.f32 %v2630, %v2662
      %v2671 = vsub.f32 %v2631, %v2663
      %v2672 = vsub.f32 %v2632, %v2664
      %v2673 = vsub.f32 %v2633, %v2665
      %v2674 = vsub.f32 %v2634, %v2666
      %v2675 = vsub.f32 %v2635, %v2667
      %v2676 = vmul.f32 %v2668, %v2668
      %v2677 = vmul.f32 %v2669, %v2669
      %v2678 = vmul.f32 %v2670, %v2670
      %v2679 = vmul.f32 %v2671, %v2671
      %v2680 = vmul.f32 %v2672, %v2672
      %v2681 = vmul.f32 %v2673, %v2673
      %v2682 = vmul.f32 %v2674, %v2674
      %v2683 = vmul.f32 %v2675, %v2675
      %v2684 = vsel %vm403, %v2676, 0.0
      %2685 = vadd.xlane.f32.xlu0 %v2684
      %v2686 = vpop.xlane.xlu0 %2685
      %v2687 = vsel %vm403, %v2677, 0.0
      %2688 = vadd.xlane.f32.xlu0 %v2687
      %v2689 = vpop.xlane.xlu0 %2688
      %v2690 = vsel %vm403, %v2678, 0.0
      %2691 = vadd.xlane.f32.xlu0 %v2690
      %v2692 = vpop.xlane.xlu0 %2691
      %v2693 = vsel %vm403, %v2679, 0.0
      %2694 = vadd.xlane.f32.xlu0 %v2693
      %v2695 = vpop.xlane.xlu0 %2694
      %v2696 = vsel %vm403, %v2680, 0.0
      %2697 = vadd.xlane.f32.xlu0 %v2696
      %v2698 = vpop.xlane.xlu0 %2697
      %v2699 = vsel %vm403, %v2681, 0.0
      %2700 = vadd.xlane.f32.xlu0 %v2699
      %v2701 = vpop.xlane.xlu0 %2700
      %v2702 = vsel %vm403, %v2682, 0.0
      %2703 = vadd.xlane.f32.xlu0 %v2702
      %v2704 = vpop.xlane.xlu0 %2703
      %v2705 = vsel %vm403, %v2683, 0.0
      %2706 = vadd.xlane.f32.xlu0 %v2705
      %v2707 = vpop.xlane.xlu0 %2706
      %v2708 = vmul.f32 %v1512, %v2668
      %v2709 = vmul.f32 %v1512, %v2669
      %v2710 = vmul.f32 %v1512, %v2670
      %v2711 = vmul.f32 %v1512, %v2671
      %v2712 = vmul.f32 %v1512, %v2672
      %v2713 = vmul.f32 %v1512, %v2673
      %v2714 = vmul.f32 %v1512, %v2674
      %v2715 = vmul.f32 %v1512, %v2675
      %v2716 = vsel %vm403, %v2708, 0.0
      %2717 = vadd.xlane.f32.xlu0 %v2716
      %v2718 = vpop.xlane.xlu0 %2717
      %v2719 = vsel %vm403, %v2709, 0.0
      %2720 = vadd.xlane.f32.xlu0 %v2719
      %v2721 = vpop.xlane.xlu0 %2720
      %v2722 = vsel %vm403, %v2710, 0.0
      %2723 = vadd.xlane.f32.xlu0 %v2722
      %v2724 = vpop.xlane.xlu0 %2723
      %v2725 = vsel %vm403, %v2711, 0.0
      %2726 = vadd.xlane.f32.xlu0 %v2725
      %v2727 = vpop.xlane.xlu0 %2726
      %v2728 = vsel %vm403, %v2712, 0.0
      %2729 = vadd.xlane.f32.xlu0 %v2728
      %v2730 = vpop.xlane.xlu0 %2729
      %v2731 = vsel %vm403, %v2713, 0.0
      %2732 = vadd.xlane.f32.xlu0 %v2731
      %v2733 = vpop.xlane.xlu0 %2732
      %v2734 = vsel %vm403, %v2714, 0.0
      %2735 = vadd.xlane.f32.xlu0 %v2734
      %v2736 = vpop.xlane.xlu0 %2735
      %v2737 = vsel %vm403, %v2715, 0.0
      %2738 = vadd.xlane.f32.xlu0 %v2737
      %v2739 = vpop.xlane.xlu0 %2738
      %v2740 = vmul.f32 %v1522, %v2686
      %v2741 = vmul.f32 %v1522, %v2689
      %v2742 = vmul.f32 %v1522, %v2692
      %v2743 = vmul.f32 %v1522, %v2695
      %v2744 = vmul.f32 %v1522, %v2698
      %v2745 = vmul.f32 %v1522, %v2701
      %v2746 = vmul.f32 %v1522, %v2704
      %v2747 = vmul.f32 %v1522, %v2707
      %v2748 = vadd.f32 %v2740, 1e-12
      %v2749 = vadd.f32 %v2741, 1e-12
      %v2750 = vadd.f32 %v2742, 1e-12
      %v2751 = vadd.f32 %v2743, 1e-12
      %v2752 = vadd.f32 %v2744, 1e-12
      %v2753 = vadd.f32 %v2745, 1e-12
      %v2754 = vadd.f32 %v2746, 1e-12
      %v2755 = vadd.f32 %v2747, 1e-12
      %v2756 = vrsqrt.pop %v2748
      %v2757 = vmul.f32 %v2756, %v2748
      %v2758 = vmul.f32 %v2757, %v2756
      %v2759 = vmul.f32 0.5, %v2758
      %v2760 = vsub.f32 1.5, %v2759
      %v2761 = vmul.f32 %v2756, %v2760
      %vm2762 = vweird.f32 %v2748
      %vm2763 = vweird.f32 %v2756
      %vm2764 = vmor %vm2762, %vm2763
      %v2765 = vsel %vm2764, %v2756, %v2761
      %v2766 = vrsqrt.pop %v2749
      %v2767 = vmul.f32 %v2766, %v2749
      %v2768 = vmul.f32 %v2767, %v2766
      %v2769 = vmul.f32 0.5, %v2768
      %v2770 = vsub.f32 1.5, %v2769
      %v2771 = vmul.f32 %v2766, %v2770
      %vm2772 = vweird.f32 %v2749
      %vm2773 = vweird.f32 %v2766
      %vm2774 = vmor %vm2772, %vm2773
      %v2775 = vsel %vm2774, %v2766, %v2771
      %v2776 = vrsqrt.pop %v2750
      %v2777 = vmul.f32 %v2776, %v2750
      %v2778 = vmul.f32 %v2777, %v2776
      %v2779 = vmul.f32 0.5, %v2778
      %v2780 = vsub.f32 1.5, %v2779
      %v2781 = vmul.f32 %v2776, %v2780
      %vm2782 = vweird.f32 %v2750
      %vm2783 = vweird.f32 %v2776
      %vm2784 = vmor %vm2782, %vm2783
      %v2785 = vsel %vm2784, %v2776, %v2781
      %v2786 = vrsqrt.pop %v2751
      %v2787 = vmul.f32 %v2786, %v2751
      %v2788 = vmul.f32 %v2787, %v2786
      %v2789 = vmul.f32 0.5, %v2788
      %v2790 = vsub.f32 1.5, %v2789
      %v2791 = vmul.f32 %v2786, %v2790
      %vm2792 = vweird.f32 %v2751
      %vm2793 = vweird.f32 %v2786
      %vm2794 = vmor %vm2792, %vm2793
      %v2795 = vsel %vm2794, %v2786, %v2791
      %v2796 = vrsqrt.pop %v2752
      %v2797 = vmul.f32 %v2796, %v2752
      %v2798 = vmul.f32 %v2797, %v2796
      %v2799 = vmul.f32 0.5, %v2798
      %v2800 = vsub.f32 1.5, %v2799
      %v2801 = vmul.f32 %v2796, %v2800
      %vm2802 = vweird.f32 %v2752
      %vm2803 = vweird.f32 %v2796
      %vm2804 = vmor %vm2802, %vm2803
      %v2805 = vsel %vm2804, %v2796, %v2801
      %v2806 = vrsqrt.pop %v2753
      %v2807 = vmul.f32 %v2806, %v2753
      %v2808 = vmul.f32 %v2807, %v2806
      %v2809 = vmul.f32 0.5, %v2808
      %v2810 = vsub.f32 1.5, %v2809
      %v2811 = vmul.f32 %v2806, %v2810
      %vm2812 = vweird.f32 %v2753
      %vm2813 = vweird.f32 %v2806
      %vm2814 = vmor %vm2812, %vm2813
      %v2815 = vsel %vm2814, %v2806, %v2811
      %v2816 = vrsqrt.pop %v2754
      %v2817 = vmul.f32 %v2816, %v2754
      %v2818 = vmul.f32 %v2817, %v2816
      %v2819 = vmul.f32 0.5, %v2818
      %v2820 = vsub.f32 1.5, %v2819
      %v2821 = vmul.f32 %v2816, %v2820
      %vm2822 = vweird.f32 %v2754
      %vm2823 = vweird.f32 %v2816
      %vm2824 = vmor %vm2822, %vm2823
      %v2825 = vsel %vm2824, %v2816, %v2821
      %v2826 = vrsqrt.pop %v2755
      %v2827 = vmul.f32 %v2826, %v2755
      %v2828 = vmul.f32 %v2827, %v2826
      %v2829 = vmul.f32 0.5, %v2828
      %v2830 = vsub.f32 1.5, %v2829
      %v2831 = vmul.f32 %v2826, %v2830
      %vm2832 = vweird.f32 %v2755
      %vm2833 = vweird.f32 %v2826
      %vm2834 = vmor %vm2832, %vm2833
      %v2835 = vsel %vm2834, %v2826, %v2831
      %v2836 = vmul.f32 %v2718, %v2765
      %v2837 = vmul.f32 %v2721, %v2775
      %v2838 = vmul.f32 %v2724, %v2785
      %v2839 = vmul.f32 %v2727, %v2795
      %v2840 = vmul.f32 %v2730, %v2805
      %v2841 = vmul.f32 %v2733, %v2815
      %v2842 = vmul.f32 %v2736, %v2825
      %v2843 = vmul.f32 %v2739, %v2835
      %v2844 = vtanh.pop %v2836
      %v2845 = vtanh.pop %v2837
      %v2846 = vtanh.pop %v2838
      %v2847 = vtanh.pop %v2839
      %v2848 = vtanh.pop %v2840
      %v2849 = vtanh.pop %v2841
      %v2850 = vtanh.pop %v2842
      %v2851 = vtanh.pop %v2843
      %v2852 = vmul.f32 %v1513, %v2668
      %v2853 = vmul.f32 %v1513, %v2669
      %v2854 = vmul.f32 %v1513, %v2670
      %v2855 = vmul.f32 %v1513, %v2671
      %v2856 = vmul.f32 %v1513, %v2672
      %v2857 = vmul.f32 %v1513, %v2673
      %v2858 = vmul.f32 %v1513, %v2674
      %v2859 = vmul.f32 %v1513, %v2675
      %v2860 = vsel %vm403, %v2852, 0.0
      %2861 = vadd.xlane.f32.xlu0 %v2860
      %v2862 = vpop.xlane.xlu0 %2861
      %v2863 = vsel %vm403, %v2853, 0.0
      %2864 = vadd.xlane.f32.xlu0 %v2863
      %v2865 = vpop.xlane.xlu0 %2864
      %v2866 = vsel %vm403, %v2854, 0.0
      %2867 = vadd.xlane.f32.xlu0 %v2866
      %v2868 = vpop.xlane.xlu0 %2867
      %v2869 = vsel %vm403, %v2855, 0.0
      %2870 = vadd.xlane.f32.xlu0 %v2869
      %v2871 = vpop.xlane.xlu0 %2870
      %v2872 = vsel %vm403, %v2856, 0.0
      %2873 = vadd.xlane.f32.xlu0 %v2872
      %v2874 = vpop.xlane.xlu0 %2873
      %v2875 = vsel %vm403, %v2857, 0.0
      %2876 = vadd.xlane.f32.xlu0 %v2875
      %v2877 = vpop.xlane.xlu0 %2876
      %v2878 = vsel %vm403, %v2858, 0.0
      %2879 = vadd.xlane.f32.xlu0 %v2878
      %v2880 = vpop.xlane.xlu0 %2879
      %v2881 = vsel %vm403, %v2859, 0.0
      %2882 = vadd.xlane.f32.xlu0 %v2881
      %v2883 = vpop.xlane.xlu0 %2882
      %v2884 = vmul.f32 %v1525, %v2686
      %v2885 = vmul.f32 %v1525, %v2689
      %v2886 = vmul.f32 %v1525, %v2692
      %v2887 = vmul.f32 %v1525, %v2695
      %v2888 = vmul.f32 %v1525, %v2698
      %v2889 = vmul.f32 %v1525, %v2701
      %v2890 = vmul.f32 %v1525, %v2704
      %v2891 = vmul.f32 %v1525, %v2707
      %v2892 = vadd.f32 %v2884, 1e-12
      %v2893 = vadd.f32 %v2885, 1e-12
      %v2894 = vadd.f32 %v2886, 1e-12
      %v2895 = vadd.f32 %v2887, 1e-12
      %v2896 = vadd.f32 %v2888, 1e-12
      %v2897 = vadd.f32 %v2889, 1e-12
      %v2898 = vadd.f32 %v2890, 1e-12
      %v2899 = vadd.f32 %v2891, 1e-12
      %v2900 = vrsqrt.pop %v2892
      %v2901 = vmul.f32 %v2900, %v2892
      %v2902 = vmul.f32 %v2901, %v2900
      %v2903 = vmul.f32 0.5, %v2902
      %v2904 = vsub.f32 1.5, %v2903
      %v2905 = vmul.f32 %v2900, %v2904
      %vm2906 = vweird.f32 %v2892
      %vm2907 = vweird.f32 %v2900
      %vm2908 = vmor %vm2906, %vm2907
      %v2909 = vsel %vm2908, %v2900, %v2905
      %v2910 = vrsqrt.pop %v2893
      %v2911 = vmul.f32 %v2910, %v2893
      %v2912 = vmul.f32 %v2911, %v2910
      %v2913 = vmul.f32 0.5, %v2912
      %v2914 = vsub.f32 1.5, %v2913
      %v2915 = vmul.f32 %v2910, %v2914
      %vm2916 = vweird.f32 %v2893
      %vm2917 = vweird.f32 %v2910
      %vm2918 = vmor %vm2916, %vm2917
      %v2919 = vsel %vm2918, %v2910, %v2915
      %v2920 = vrsqrt.pop %v2894
      %v2921 = vmul.f32 %v2920, %v2894
      %v2922 = vmul.f32 %v2921, %v2920
      %v2923 = vmul.f32 0.5, %v2922
      %v2924 = vsub.f32 1.5, %v2923
      %v2925 = vmul.f32 %v2920, %v2924
      %vm2926 = vweird.f32 %v2894
      %vm2927 = vweird.f32 %v2920
      %vm2928 = vmor %vm2926, %vm2927
      %v2929 = vsel %vm2928, %v2920, %v2925
      %v2930 = vrsqrt.pop %v2895
      %v2931 = vmul.f32 %v2930, %v2895
      %v2932 = vmul.f32 %v2931, %v2930
      %v2933 = vmul.f32 0.5, %v2932
      %v2934 = vsub.f32 1.5, %v2933
      %v2935 = vmul.f32 %v2930, %v2934
      %vm2936 = vweird.f32 %v2895
      %vm2937 = vweird.f32 %v2930
      %vm2938 = vmor %vm2936, %vm2937
      %v2939 = vsel %vm2938, %v2930, %v2935
      %v2940 = vrsqrt.pop %v2896
      %v2941 = vmul.f32 %v2940, %v2896
      %v2942 = vmul.f32 %v2941, %v2940
      %v2943 = vmul.f32 0.5, %v2942
      %v2944 = vsub.f32 1.5, %v2943
      %v2945 = vmul.f32 %v2940, %v2944
      %vm2946 = vweird.f32 %v2896
      %vm2947 = vweird.f32 %v2940
      %vm2948 = vmor %vm2946, %vm2947
      %v2949 = vsel %vm2948, %v2940, %v2945
      %v2950 = vrsqrt.pop %v2897
      %v2951 = vmul.f32 %v2950, %v2897
      %v2952 = vmul.f32 %v2951, %v2950
      %v2953 = vmul.f32 0.5, %v2952
      %v2954 = vsub.f32 1.5, %v2953
      %v2955 = vmul.f32 %v2950, %v2954
      %vm2956 = vweird.f32 %v2897
      %vm2957 = vweird.f32 %v2950
      %vm2958 = vmor %vm2956, %vm2957
      %v2959 = vsel %vm2958, %v2950, %v2955
      %v2960 = vrsqrt.pop %v2898
      %v2961 = vmul.f32 %v2960, %v2898
      %v2962 = vmul.f32 %v2961, %v2960
      %v2963 = vmul.f32 0.5, %v2962
      %v2964 = vsub.f32 1.5, %v2963
      %v2965 = vmul.f32 %v2960, %v2964
      %vm2966 = vweird.f32 %v2898
      %vm2967 = vweird.f32 %v2960
      %vm2968 = vmor %vm2966, %vm2967
      %v2969 = vsel %vm2968, %v2960, %v2965
      %v2970 = vrsqrt.pop %v2899
      %v2971 = vmul.f32 %v2970, %v2899
      %v2972 = vmul.f32 %v2971, %v2970
      %v2973 = vmul.f32 0.5, %v2972
      %v2974 = vsub.f32 1.5, %v2973
      %v2975 = vmul.f32 %v2970, %v2974
      %vm2976 = vweird.f32 %v2899
      %vm2977 = vweird.f32 %v2970
      %vm2978 = vmor %vm2976, %vm2977
      %v2979 = vsel %vm2978, %v2970, %v2975
      %v2980 = vmul.f32 %v2862, %v2909
      %v2981 = vmul.f32 %v2865, %v2919
      %v2982 = vmul.f32 %v2868, %v2929
      %v2983 = vmul.f32 %v2871, %v2939
      %v2984 = vmul.f32 %v2874, %v2949
      %v2985 = vmul.f32 %v2877, %v2959
      %v2986 = vmul.f32 %v2880, %v2969
      %v2987 = vmul.f32 %v2883, %v2979
      %v2988 = vtanh.pop %v2980
      %v2989 = vtanh.pop %v2981
      %v2990 = vtanh.pop %v2982
      %v2991 = vtanh.pop %v2983
      %v2992 = vtanh.pop %v2984
      %v2993 = vtanh.pop %v2985
      %v2994 = vtanh.pop %v2986
      %v2995 = vtanh.pop %v2987
      %v2996 = vmul.f32 %v1514, %v2668
      %v2997 = vmul.f32 %v1514, %v2669
      %v2998 = vmul.f32 %v1514, %v2670
      %v2999 = vmul.f32 %v1514, %v2671
      %v3000 = vmul.f32 %v1514, %v2672
      %v3001 = vmul.f32 %v1514, %v2673
      %v3002 = vmul.f32 %v1514, %v2674
      %v3003 = vmul.f32 %v1514, %v2675
      %v3004 = vsel %vm403, %v2996, 0.0
      %3005 = vadd.xlane.f32.xlu0 %v3004
      %v3006 = vpop.xlane.xlu0 %3005
      %v3007 = vsel %vm403, %v2997, 0.0
      %3008 = vadd.xlane.f32.xlu0 %v3007
      %v3009 = vpop.xlane.xlu0 %3008
      %v3010 = vsel %vm403, %v2998, 0.0
      %3011 = vadd.xlane.f32.xlu0 %v3010
      %v3012 = vpop.xlane.xlu0 %3011
      %v3013 = vsel %vm403, %v2999, 0.0
      %3014 = vadd.xlane.f32.xlu0 %v3013
      %v3015 = vpop.xlane.xlu0 %3014
      %v3016 = vsel %vm403, %v3000, 0.0
      %3017 = vadd.xlane.f32.xlu0 %v3016
      %v3018 = vpop.xlane.xlu0 %3017
      %v3019 = vsel %vm403, %v3001, 0.0
      %3020 = vadd.xlane.f32.xlu0 %v3019
      %v3021 = vpop.xlane.xlu0 %3020
      %v3022 = vsel %vm403, %v3002, 0.0
      %3023 = vadd.xlane.f32.xlu0 %v3022
      %v3024 = vpop.xlane.xlu0 %3023
      %v3025 = vsel %vm403, %v3003, 0.0
      %3026 = vadd.xlane.f32.xlu0 %v3025
      %v3027 = vpop.xlane.xlu0 %3026
      %v3028 = vmul.f32 %v1528, %v2686
      %v3029 = vmul.f32 %v1528, %v2689
      %v3030 = vmul.f32 %v1528, %v2692
      %v3031 = vmul.f32 %v1528, %v2695
      %v3032 = vmul.f32 %v1528, %v2698
      %v3033 = vmul.f32 %v1528, %v2701
      %v3034 = vmul.f32 %v1528, %v2704
      %v3035 = vmul.f32 %v1528, %v2707
      %v3036 = vadd.f32 %v3028, 1e-12
      %v3037 = vadd.f32 %v3029, 1e-12
      %v3038 = vadd.f32 %v3030, 1e-12
      %v3039 = vadd.f32 %v3031, 1e-12
      %v3040 = vadd.f32 %v3032, 1e-12
      %v3041 = vadd.f32 %v3033, 1e-12
      %v3042 = vadd.f32 %v3034, 1e-12
      %v3043 = vadd.f32 %v3035, 1e-12
      %v3044 = vrsqrt.pop %v3036
      %v3045 = vmul.f32 %v3044, %v3036
      %v3046 = vmul.f32 %v3045, %v3044
      %v3047 = vmul.f32 0.5, %v3046
      %v3048 = vsub.f32 1.5, %v3047
      %v3049 = vmul.f32 %v3044, %v3048
      %vm3050 = vweird.f32 %v3036
      %vm3051 = vweird.f32 %v3044
      %vm3052 = vmor %vm3050, %vm3051
      %v3053 = vsel %vm3052, %v3044, %v3049
      %v3054 = vrsqrt.pop %v3037
      %v3055 = vmul.f32 %v3054, %v3037
      %v3056 = vmul.f32 %v3055, %v3054
      %v3057 = vmul.f32 0.5, %v3056
      %v3058 = vsub.f32 1.5, %v3057
      %v3059 = vmul.f32 %v3054, %v3058
      %vm3060 = vweird.f32 %v3037
      %vm3061 = vweird.f32 %v3054
      %vm3062 = vmor %vm3060, %vm3061
      %v3063 = vsel %vm3062, %v3054, %v3059
      %v3064 = vrsqrt.pop %v3038
      %v3065 = vmul.f32 %v3064, %v3038
      %v3066 = vmul.f32 %v3065, %v3064
      %v3067 = vmul.f32 0.5, %v3066
      %v3068 = vsub.f32 1.5, %v3067
      %v3069 = vmul.f32 %v3064, %v3068
      %vm3070 = vweird.f32 %v3038
      %vm3071 = vweird.f32 %v3064
      %vm3072 = vmor %vm3070, %vm3071
      %v3073 = vsel %vm3072, %v3064, %v3069
      %v3074 = vrsqrt.pop %v3039
      %v3075 = vmul.f32 %v3074, %v3039
      %v3076 = vmul.f32 %v3075, %v3074
      %v3077 = vmul.f32 0.5, %v3076
      %v3078 = vsub.f32 1.5, %v3077
      %v3079 = vmul.f32 %v3074, %v3078
      %vm3080 = vweird.f32 %v3039
      %vm3081 = vweird.f32 %v3074
      %vm3082 = vmor %vm3080, %vm3081
      %v3083 = vsel %vm3082, %v3074, %v3079
      %v3084 = vrsqrt.pop %v3040
      %v3085 = vmul.f32 %v3084, %v3040
      %v3086 = vmul.f32 %v3085, %v3084
      %v3087 = vmul.f32 0.5, %v3086
      %v3088 = vsub.f32 1.5, %v3087
      %v3089 = vmul.f32 %v3084, %v3088
      %vm3090 = vweird.f32 %v3040
      %vm3091 = vweird.f32 %v3084
      %vm3092 = vmor %vm3090, %vm3091
      %v3093 = vsel %vm3092, %v3084, %v3089
      %v3094 = vrsqrt.pop %v3041
      %v3095 = vmul.f32 %v3094, %v3041
      %v3096 = vmul.f32 %v3095, %v3094
      %v3097 = vmul.f32 0.5, %v3096
      %v3098 = vsub.f32 1.5, %v3097
      %v3099 = vmul.f32 %v3094, %v3098
      %vm3100 = vweird.f32 %v3041
      %vm3101 = vweird.f32 %v3094
      %vm3102 = vmor %vm3100, %vm3101
      %v3103 = vsel %vm3102, %v3094, %v3099
      %v3104 = vrsqrt.pop %v3042
      %v3105 = vmul.f32 %v3104, %v3042
      %v3106 = vmul.f32 %v3105, %v3104
      %v3107 = vmul.f32 0.5, %v3106
      %v3108 = vsub.f32 1.5, %v3107
      %v3109 = vmul.f32 %v3104, %v3108
      %vm3110 = vweird.f32 %v3042
      %vm3111 = vweird.f32 %v3104
      %vm3112 = vmor %vm3110, %vm3111
      %v3113 = vsel %vm3112, %v3104, %v3109
      %v3114 = vrsqrt.pop %v3043
      %v3115 = vmul.f32 %v3114, %v3043
      %v3116 = vmul.f32 %v3115, %v3114
      %v3117 = vmul.f32 0.5, %v3116
      %v3118 = vsub.f32 1.5, %v3117
      %v3119 = vmul.f32 %v3114, %v3118
      %vm3120 = vweird.f32 %v3043
      %vm3121 = vweird.f32 %v3114
      %vm3122 = vmor %vm3120, %vm3121
      %v3123 = vsel %vm3122, %v3114, %v3119
      %v3124 = vmul.f32 %v3006, %v3053
      %v3125 = vmul.f32 %v3009, %v3063
      %v3126 = vmul.f32 %v3012, %v3073
      %v3127 = vmul.f32 %v3015, %v3083
      %v3128 = vmul.f32 %v3018, %v3093
      %v3129 = vmul.f32 %v3021, %v3103
      %v3130 = vmul.f32 %v3024, %v3113
      %v3131 = vmul.f32 %v3027, %v3123
      %v3132 = vtanh.pop %v3124
      %v3133 = vtanh.pop %v3125
      %v3134 = vtanh.pop %v3126
      %v3135 = vtanh.pop %v3127
      %v3136 = vtanh.pop %v3128
      %v3137 = vtanh.pop %v3129
      %v3138 = vtanh.pop %v3130
      %v3139 = vtanh.pop %v3131
      %v3140 = vmul.f32 %v1515, %v2668
      %v3141 = vmul.f32 %v1515, %v2669
      %v3142 = vmul.f32 %v1515, %v2670
      %v3143 = vmul.f32 %v1515, %v2671
      %v3144 = vmul.f32 %v1515, %v2672
      %v3145 = vmul.f32 %v1515, %v2673
      %v3146 = vmul.f32 %v1515, %v2674
      %v3147 = vmul.f32 %v1515, %v2675
      %v3148 = vsel %vm403, %v3140, 0.0
      %3149 = vadd.xlane.f32.xlu0 %v3148
      %v3150 = vpop.xlane.xlu0 %3149
      %v3151 = vsel %vm403, %v3141, 0.0
      %3152 = vadd.xlane.f32.xlu0 %v3151
      %v3153 = vpop.xlane.xlu0 %3152
      %v3154 = vsel %vm403, %v3142, 0.0
      %3155 = vadd.xlane.f32.xlu0 %v3154
      %v3156 = vpop.xlane.xlu0 %3155
      %v3157 = vsel %vm403, %v3143, 0.0
      %3158 = vadd.xlane.f32.xlu0 %v3157
      %v3159 = vpop.xlane.xlu0 %3158
      %v3160 = vsel %vm403, %v3144, 0.0
      %3161 = vadd.xlane.f32.xlu0 %v3160
      %v3162 = vpop.xlane.xlu0 %3161
      %v3163 = vsel %vm403, %v3145, 0.0
      %3164 = vadd.xlane.f32.xlu0 %v3163
      %v3165 = vpop.xlane.xlu0 %3164
      %v3166 = vsel %vm403, %v3146, 0.0
      %3167 = vadd.xlane.f32.xlu0 %v3166
      %v3168 = vpop.xlane.xlu0 %3167
      %v3169 = vsel %vm403, %v3147, 0.0
      %3170 = vadd.xlane.f32.xlu0 %v3169
      %v3171 = vpop.xlane.xlu0 %3170
      %v3172 = vmul.f32 %v1531, %v2686
      %v3173 = vmul.f32 %v1531, %v2689
      %v3174 = vmul.f32 %v1531, %v2692
      %v3175 = vmul.f32 %v1531, %v2695
      %v3176 = vmul.f32 %v1531, %v2698
      %v3177 = vmul.f32 %v1531, %v2701
      %v3178 = vmul.f32 %v1531, %v2704
      %v3179 = vmul.f32 %v1531, %v2707
      %v3180 = vadd.f32 %v3172, 1e-12
      %v3181 = vadd.f32 %v3173, 1e-12
      %v3182 = vadd.f32 %v3174, 1e-12
      %v3183 = vadd.f32 %v3175, 1e-12
      %v3184 = vadd.f32 %v3176, 1e-12
      %v3185 = vadd.f32 %v3177, 1e-12
      %v3186 = vadd.f32 %v3178, 1e-12
      %v3187 = vadd.f32 %v3179, 1e-12
      %v3188 = vrsqrt.pop %v3180
      %v3189 = vmul.f32 %v3188, %v3180
      %v3190 = vmul.f32 %v3189, %v3188
      %v3191 = vmul.f32 0.5, %v3190
      %v3192 = vsub.f32 1.5, %v3191
      %v3193 = vmul.f32 %v3188, %v3192
      %vm3194 = vweird.f32 %v3180
      %vm3195 = vweird.f32 %v3188
      %vm3196 = vmor %vm3194, %vm3195
      %v3197 = vsel %vm3196, %v3188, %v3193
      %v3198 = vrsqrt.pop %v3181
      %v3199 = vmul.f32 %v3198, %v3181
      %v3200 = vmul.f32 %v3199, %v3198
      %v3201 = vmul.f32 0.5, %v3200
      %v3202 = vsub.f32 1.5, %v3201
      %v3203 = vmul.f32 %v3198, %v3202
      %vm3204 = vweird.f32 %v3181
      %vm3205 = vweird.f32 %v3198
      %vm3206 = vmor %vm3204, %vm3205
      %v3207 = vsel %vm3206, %v3198, %v3203
      %v3208 = vrsqrt.pop %v3182
      %v3209 = vmul.f32 %v3208, %v3182
      %v3210 = vmul.f32 %v3209, %v3208
      %v3211 = vmul.f32 0.5, %v3210
      %v3212 = vsub.f32 1.5, %v3211
      %v3213 = vmul.f32 %v3208, %v3212
      %vm3214 = vweird.f32 %v3182
      %vm3215 = vweird.f32 %v3208
      %vm3216 = vmor %vm3214, %vm3215
      %v3217 = vsel %vm3216, %v3208, %v3213
      %v3218 = vrsqrt.pop %v3183
      %v3219 = vmul.f32 %v3218, %v3183
      %v3220 = vmul.f32 %v3219, %v3218
      %v3221 = vmul.f32 0.5, %v3220
      %v3222 = vsub.f32 1.5, %v3221
      %v3223 = vmul.f32 %v3218, %v3222
      %vm3224 = vweird.f32 %v3183
      %vm3225 = vweird.f32 %v3218
      %vm3226 = vmor %vm3224, %vm3225
      %v3227 = vsel %vm3226, %v3218, %v3223
      %v3228 = vrsqrt.pop %v3184
      %v3229 = vmul.f32 %v3228, %v3184
      %v3230 = vmul.f32 %v3229, %v3228
      %v3231 = vmul.f32 0.5, %v3230
      %v3232 = vsub.f32 1.5, %v3231
      %v3233 = vmul.f32 %v3228, %v3232
      %vm3234 = vweird.f32 %v3184
      %vm3235 = vweird.f32 %v3228
      %vm3236 = vmor %vm3234, %vm3235
      %v3237 = vsel %vm3236, %v3228, %v3233
      %v3238 = vrsqrt.pop %v3185
      %v3239 = vmul.f32 %v3238, %v3185
      %v3240 = vmul.f32 %v3239, %v3238
      %v3241 = vmul.f32 0.5, %v3240
      %v3242 = vsub.f32 1.5, %v3241
      %v3243 = vmul.f32 %v3238, %v3242
      %vm3244 = vweird.f32 %v3185
      %vm3245 = vweird.f32 %v3238
      %vm3246 = vmor %vm3244, %vm3245
      %v3247 = vsel %vm3246, %v3238, %v3243
      %v3248 = vrsqrt.pop %v3186
      %v3249 = vmul.f32 %v3248, %v3186
      %v3250 = vmul.f32 %v3249, %v3248
      %v3251 = vmul.f32 0.5, %v3250
      %v3252 = vsub.f32 1.5, %v3251
      %v3253 = vmul.f32 %v3248, %v3252
      %vm3254 = vweird.f32 %v3186
      %vm3255 = vweird.f32 %v3248
      %vm3256 = vmor %vm3254, %vm3255
      %v3257 = vsel %vm3256, %v3248, %v3253
      %v3258 = vrsqrt.pop %v3187
      %v3259 = vmul.f32 %v3258, %v3187
      %v3260 = vmul.f32 %v3259, %v3258
      %v3261 = vmul.f32 0.5, %v3260
      %v3262 = vsub.f32 1.5, %v3261
      %v3263 = vmul.f32 %v3258, %v3262
      %vm3264 = vweird.f32 %v3187
      %vm3265 = vweird.f32 %v3258
      %vm3266 = vmor %vm3264, %vm3265
      %v3267 = vsel %vm3266, %v3258, %v3263
      %v3268 = vmul.f32 %v3150, %v3197
      %v3269 = vmul.f32 %v3153, %v3207
      %v3270 = vmul.f32 %v3156, %v3217
      %v3271 = vmul.f32 %v3159, %v3227
      %v3272 = vmul.f32 %v3162, %v3237
      %v3273 = vmul.f32 %v3165, %v3247
      %v3274 = vmul.f32 %v3168, %v3257
      %v3275 = vmul.f32 %v3171, %v3267
      %v3276 = vtanh.pop %v3268
      %v3277 = vtanh.pop %v3269
      %v3278 = vtanh.pop %v3270
      %v3279 = vtanh.pop %v3271
      %v3280 = vtanh.pop %v3272
      %v3281 = vtanh.pop %v3273
      %v3282 = vtanh.pop %v3274
      %v3283 = vtanh.pop %v3275
      %v3292 = vperm.slane %v2564, %v774
      %v3293 = vperm.slane %v2565, %v774
      %v3294 = vperm.slane %v2566, %v774
      %v3295 = vperm.slane %v2567, %v774
      %v3296 = vperm.slane %v2568, %v774
      %v3297 = vperm.slane %v2569, %v774
      %v3298 = vperm.slane %v2570, %v774
      %v3299 = vperm.slane %v2571, %v774
      %v3300 = vsel %vm779, %v3293, %v3292
      %v3301 = vsel %vm781, %v3294, %v3300
      %v3302 = vsel %vm783, %v3295, %v3301
      %vm3303 = vcmask 1044484
      %v3304 = vsel %vm3303, %v3296, %v3302
      %vm3305 = vcmask 1045509
      %v3306 = vsel %vm3305, %v3297, %v3304
      %vm3307 = vcmask 1046534
      %v3308 = vsel %vm3307, %v3298, %v3306
      %vm3309 = vcmask 1047559
      %v3310 = vsel %vm3309, %v3299, %v3308
      %v3312 = vsel %vm532, %v3310, -inf
      %3313 = vmax.xlane.f32.xlu0 %v3312
      %v3314 = vpop.xlane.xlu0 %3313
      %v3316 = vperm.slane %v3314, 0
      %v3317 = vperm.slane %v3314, 1
      %v3318 = vperm.slane %v3314, 2
      %v3319 = vperm.slane %v3314, 3
      %v3320 = vperm.slane %v3314, 4
      %v3321 = vperm.slane %v3314, 5
      %v3322 = vperm.slane %v3314, 6
      %v3323 = vperm.slane %v3314, 7
      %v3332 = vsub.f32 %v2564, %v3316
      %v3333 = vsub.f32 %v2565, %v3317
      %v3334 = vsub.f32 %v2566, %v3318
      %v3335 = vsub.f32 %v2567, %v3319
      %v3336 = vsub.f32 %v2568, %v3320
      %v3337 = vsub.f32 %v2569, %v3321
      %v3338 = vsub.f32 %v2570, %v3322
      %v3339 = vsub.f32 %v2571, %v3323
      %v3340 = vmul.f32 %v3332, 1.442695
      %v3341 = vpow.pop %v3340
      %v3342 = vmul.f32 %v3333, 1.442695
      %v3343 = vpow.pop %v3342
      %v3344 = vmul.f32 %v3334, 1.442695
      %v3345 = vpow.pop %v3344
      %v3346 = vmul.f32 %v3335, 1.442695
      %v3347 = vpow.pop %v3346
      %v3348 = vmul.f32 %v3336, 1.442695
      %v3349 = vpow.pop %v3348
      %v3350 = vmul.f32 %v3337, 1.442695
      %v3351 = vpow.pop %v3350
      %v3352 = vmul.f32 %v3338, 1.442695
      %v3353 = vpow.pop %v3352
      %v3354 = vmul.f32 %v3339, 1.442695
      %v3355 = vpow.pop %v3354
      %3364 = vset.pattern.permute.xlu0 0
      %3365 = vperm.xlu0 %3364, %v3341
      %v3366 = vpop.permute.xlu0 %3365
      %3367 = vset.pattern.permute.xlu0 0
      %3368 = vperm.xlu0 %3367, %v3343
      %v3369 = vpop.permute.xlu0 %3368
      %3370 = vset.pattern.permute.xlu0 0
      %3371 = vperm.xlu0 %3370, %v3345
      %v3372 = vpop.permute.xlu0 %3371
      %3373 = vset.pattern.permute.xlu0 0
      %3374 = vperm.xlu0 %3373, %v3347
      %v3375 = vpop.permute.xlu0 %3374
      %3376 = vset.pattern.permute.xlu0 0
      %3377 = vperm.xlu0 %3376, %v3349
      %v3378 = vpop.permute.xlu0 %3377
      %3379 = vset.pattern.permute.xlu0 0
      %3380 = vperm.xlu0 %3379, %v3351
      %v3381 = vpop.permute.xlu0 %3380
      %3382 = vset.pattern.permute.xlu0 0
      %3383 = vperm.xlu0 %3382, %v3353
      %v3384 = vpop.permute.xlu0 %3383
      %3385 = vset.pattern.permute.xlu0 0
      %3386 = vperm.xlu0 %3385, %v3355
      %v3387 = vpop.permute.xlu0 %3386
      %v3388 = vperm.slane %v3366, %v774
      %v3389 = vperm.slane %v3369, %v774
      %v3390 = vperm.slane %v3372, %v774
      %v3391 = vperm.slane %v3375, %v774
      %v3392 = vperm.slane %v3378, %v774
      %v3393 = vperm.slane %v3381, %v774
      %v3394 = vperm.slane %v3384, %v774
      %v3395 = vperm.slane %v3387, %v774
      %v3396 = vsel %vm779, %v3389, %v3388
      %v3397 = vsel %vm781, %v3390, %v3396
      %v3398 = vsel %vm783, %v3391, %v3397
      %v3399 = vsel %vm3303, %v3392, %v3398
      %v3400 = vsel %vm3305, %v3393, %v3399
      %v3401 = vsel %vm3307, %v3394, %v3400
      %v3402 = vsel %vm3309, %v3395, %v3401
      %v3404 = vsel %vm532, %v3402, 0.0
      %3405 = vadd.xlane.f32.xlu0 %v3404
      %v3406 = vpop.xlane.xlu0 %3405
      %v3407 = vrcp.pop %v3406
      %v3409 = vperm.slane %v3407, 0
      %v3410 = vperm.slane %v3407, 1
      %v3411 = vperm.slane %v3407, 2
      %v3412 = vperm.slane %v3407, 3
      %v3413 = vperm.slane %v3407, 4
      %v3414 = vperm.slane %v3407, 5
      %v3415 = vperm.slane %v3407, 6
      %v3416 = vperm.slane %v3407, 7
      %v3425 = vmul.f32 %v3341, %v3409
      %v3426 = vmul.f32 %v3343, %v3410
      %v3427 = vmul.f32 %v3345, %v3411
      %v3428 = vmul.f32 %v3347, %v3412
      %v3429 = vmul.f32 %v3349, %v3413
      %v3430 = vmul.f32 %v3351, %v3414
      %v3431 = vmul.f32 %v3353, %v3415
      %v3432 = vmul.f32 %v3355, %v3416
      %v3441 = vperm.slane %v2580, %v774
      %v3442 = vperm.slane %v2581, %v774
      %v3443 = vperm.slane %v2582, %v774
      %v3444 = vperm.slane %v2583, %v774
      %v3445 = vperm.slane %v2584, %v774
      %v3446 = vperm.slane %v2585, %v774
      %v3447 = vperm.slane %v2586, %v774
      %v3448 = vperm.slane %v2587, %v774
      %v3449 = vsel %vm779, %v3442, %v3441
      %v3450 = vsel %vm781, %v3443, %v3449
      %v3451 = vsel %vm783, %v3444, %v3450
      %v3452 = vsel %vm3303, %v3445, %v3451
      %v3453 = vsel %vm3305, %v3446, %v3452
      %v3454 = vsel %vm3307, %v3447, %v3453
      %v3455 = vsel %vm3309, %v3448, %v3454
      %v3457 = vsel %vm532, %v3455, -inf
      %3458 = vmax.xlane.f32.xlu0 %v3457
      %v3459 = vpop.xlane.xlu0 %3458
      %v3461 = vperm.slane %v3459, 0
      %v3462 = vperm.slane %v3459, 1
      %v3463 = vperm.slane %v3459, 2
      %v3464 = vperm.slane %v3459, 3
      %v3465 = vperm.slane %v3459, 4
      %v3466 = vperm.slane %v3459, 5
      %v3467 = vperm.slane %v3459, 6
      %v3468 = vperm.slane %v3459, 7
      %v3477 = vsub.f32 %v2580, %v3461
      %v3478 = vsub.f32 %v2581, %v3462
      %v3479 = vsub.f32 %v2582, %v3463
      %v3480 = vsub.f32 %v2583, %v3464
      %v3481 = vsub.f32 %v2584, %v3465
      %v3482 = vsub.f32 %v2585, %v3466
      %v3483 = vsub.f32 %v2586, %v3467
      %v3484 = vsub.f32 %v2587, %v3468
      %v3485 = vmul.f32 %v3477, 1.442695
      %v3486 = vpow.pop %v3485
      %v3487 = vmul.f32 %v3478, 1.442695
      %v3488 = vpow.pop %v3487
      %v3489 = vmul.f32 %v3479, 1.442695
      %v3490 = vpow.pop %v3489
      %v3491 = vmul.f32 %v3480, 1.442695
      %v3492 = vpow.pop %v3491
      %v3493 = vmul.f32 %v3481, 1.442695
      %v3494 = vpow.pop %v3493
      %v3495 = vmul.f32 %v3482, 1.442695
      %v3496 = vpow.pop %v3495
      %v3497 = vmul.f32 %v3483, 1.442695
      %v3498 = vpow.pop %v3497
      %v3499 = vmul.f32 %v3484, 1.442695
      %v3500 = vpow.pop %v3499
      %3509 = vset.pattern.permute.xlu0 0
      %3510 = vperm.xlu0 %3509, %v3486
      %v3511 = vpop.permute.xlu0 %3510
      %3512 = vset.pattern.permute.xlu0 0
      %3513 = vperm.xlu0 %3512, %v3488
      %v3514 = vpop.permute.xlu0 %3513
      %3515 = vset.pattern.permute.xlu0 0
      %3516 = vperm.xlu0 %3515, %v3490
      %v3517 = vpop.permute.xlu0 %3516
      %3518 = vset.pattern.permute.xlu0 0
      %3519 = vperm.xlu0 %3518, %v3492
      %v3520 = vpop.permute.xlu0 %3519
      %3521 = vset.pattern.permute.xlu0 0
      %3522 = vperm.xlu0 %3521, %v3494
      %v3523 = vpop.permute.xlu0 %3522
      %3524 = vset.pattern.permute.xlu0 0
      %3525 = vperm.xlu0 %3524, %v3496
      %v3526 = vpop.permute.xlu0 %3525
      %3527 = vset.pattern.permute.xlu0 0
      %3528 = vperm.xlu0 %3527, %v3498
      %v3529 = vpop.permute.xlu0 %3528
      %3530 = vset.pattern.permute.xlu0 0
      %3531 = vperm.xlu0 %3530, %v3500
      %v3532 = vpop.permute.xlu0 %3531
      %v3533 = vperm.slane %v3511, %v774
      %v3534 = vperm.slane %v3514, %v774
      %v3535 = vperm.slane %v3517, %v774
      %v3536 = vperm.slane %v3520, %v774
      %v3537 = vperm.slane %v3523, %v774
      %v3538 = vperm.slane %v3526, %v774
      %v3539 = vperm.slane %v3529, %v774
      %v3540 = vperm.slane %v3532, %v774
      %v3541 = vsel %vm779, %v3534, %v3533
      %v3542 = vsel %vm781, %v3535, %v3541
      %v3543 = vsel %vm783, %v3536, %v3542
      %v3544 = vsel %vm3303, %v3537, %v3543
      %v3545 = vsel %vm3305, %v3538, %v3544
      %v3546 = vsel %vm3307, %v3539, %v3545
      %v3547 = vsel %vm3309, %v3540, %v3546
      %v3549 = vsel %vm532, %v3547, 0.0
      %3550 = vadd.xlane.f32.xlu0 %v3549
      %v3551 = vpop.xlane.xlu0 %3550
      %v3552 = vrcp.pop %v3551
      %v3554 = vperm.slane %v3552, 0
      %v3555 = vperm.slane %v3552, 1
      %v3556 = vperm.slane %v3552, 2
      %v3557 = vperm.slane %v3552, 3
      %v3558 = vperm.slane %v3552, 4
      %v3559 = vperm.slane %v3552, 5
      %v3560 = vperm.slane %v3552, 6
      %v3561 = vperm.slane %v3552, 7
      %v3570 = vmul.f32 %v3486, %v3554
      %v3571 = vmul.f32 %v3488, %v3555
      %v3572 = vmul.f32 %v3490, %v3556
      %v3573 = vmul.f32 %v3492, %v3557
      %v3574 = vmul.f32 %v3494, %v3558
      %v3575 = vmul.f32 %v3496, %v3559
      %v3576 = vmul.f32 %v3498, %v3560
      %v3577 = vmul.f32 %v3500, %v3561
      %v3586 = vperm.slane %v2596, %v774
      %v3587 = vperm.slane %v2597, %v774
      %v3588 = vperm.slane %v2598, %v774
      %v3589 = vperm.slane %v2599, %v774
      %v3590 = vperm.slane %v2600, %v774
      %v3591 = vperm.slane %v2601, %v774
      %v3592 = vperm.slane %v2602, %v774
      %v3593 = vperm.slane %v2603, %v774
      %v3594 = vsel %vm779, %v3587, %v3586
      %v3595 = vsel %vm781, %v3588, %v3594
      %v3596 = vsel %vm783, %v3589, %v3595
      %v3597 = vsel %vm3303, %v3590, %v3596
      %v3598 = vsel %vm3305, %v3591, %v3597
      %v3599 = vsel %vm3307, %v3592, %v3598
      %v3600 = vsel %vm3309, %v3593, %v3599
      %v3602 = vsel %vm532, %v3600, -inf
      %3603 = vmax.xlane.f32.xlu0 %v3602
      %v3604 = vpop.xlane.xlu0 %3603
      %v3606 = vperm.slane %v3604, 0
      %v3607 = vperm.slane %v3604, 1
      %v3608 = vperm.slane %v3604, 2
      %v3609 = vperm.slane %v3604, 3
      %v3610 = vperm.slane %v3604, 4
      %v3611 = vperm.slane %v3604, 5
      %v3612 = vperm.slane %v3604, 6
      %v3613 = vperm.slane %v3604, 7
      %v3622 = vsub.f32 %v2596, %v3606
      %v3623 = vsub.f32 %v2597, %v3607
      %v3624 = vsub.f32 %v2598, %v3608
      %v3625 = vsub.f32 %v2599, %v3609
      %v3626 = vsub.f32 %v2600, %v3610
      %v3627 = vsub.f32 %v2601, %v3611
      %v3628 = vsub.f32 %v2602, %v3612
      %v3629 = vsub.f32 %v2603, %v3613
      %v3630 = vmul.f32 %v3622, 1.442695
      %v3631 = vpow.pop %v3630
      %v3632 = vmul.f32 %v3623, 1.442695
      %v3633 = vpow.pop %v3632
      %v3634 = vmul.f32 %v3624, 1.442695
      %v3635 = vpow.pop %v3634
      %v3636 = vmul.f32 %v3625, 1.442695
      %v3637 = vpow.pop %v3636
      %v3638 = vmul.f32 %v3626, 1.442695
      %v3639 = vpow.pop %v3638
      %v3640 = vmul.f32 %v3627, 1.442695
      %v3641 = vpow.pop %v3640
      %v3642 = vmul.f32 %v3628, 1.442695
      %v3643 = vpow.pop %v3642
      %v3644 = vmul.f32 %v3629, 1.442695
      %v3645 = vpow.pop %v3644
      %3654 = vset.pattern.permute.xlu0 0
      %3655 = vperm.xlu0 %3654, %v3631
      %v3656 = vpop.permute.xlu0 %3655
      %3657 = vset.pattern.permute.xlu0 0
      %3658 = vperm.xlu0 %3657, %v3633
      %v3659 = vpop.permute.xlu0 %3658
      %3660 = vset.pattern.permute.xlu0 0
      %3661 = vperm.xlu0 %3660, %v3635
      %v3662 = vpop.permute.xlu0 %3661
      %3663 = vset.pattern.permute.xlu0 0
      %3664 = vperm.xlu0 %3663, %v3637
      %v3665 = vpop.permute.xlu0 %3664
      %3666 = vset.pattern.permute.xlu0 0
      %3667 = vperm.xlu0 %3666, %v3639
      %v3668 = vpop.permute.xlu0 %3667
      %3669 = vset.pattern.permute.xlu0 0
      %3670 = vperm.xlu0 %3669, %v3641
      %v3671 = vpop.permute.xlu0 %3670
      %3672 = vset.pattern.permute.xlu0 0
      %3673 = vperm.xlu0 %3672, %v3643
      %v3674 = vpop.permute.xlu0 %3673
      %3675 = vset.pattern.permute.xlu0 0
      %3676 = vperm.xlu0 %3675, %v3645
      %v3677 = vpop.permute.xlu0 %3676
      %v3678 = vperm.slane %v3656, %v774
      %v3679 = vperm.slane %v3659, %v774
      %v3680 = vperm.slane %v3662, %v774
      %v3681 = vperm.slane %v3665, %v774
      %v3682 = vperm.slane %v3668, %v774
      %v3683 = vperm.slane %v3671, %v774
      %v3684 = vperm.slane %v3674, %v774
      %v3685 = vperm.slane %v3677, %v774
      %v3686 = vsel %vm779, %v3679, %v3678
      %v3687 = vsel %vm781, %v3680, %v3686
      %v3688 = vsel %vm783, %v3681, %v3687
      %v3689 = vsel %vm3303, %v3682, %v3688
      %v3690 = vsel %vm3305, %v3683, %v3689
      %v3691 = vsel %vm3307, %v3684, %v3690
      %v3692 = vsel %vm3309, %v3685, %v3691
      %v3694 = vsel %vm532, %v3692, 0.0
      %3695 = vadd.xlane.f32.xlu0 %v3694
      %v3696 = vpop.xlane.xlu0 %3695
      %v3697 = vrcp.pop %v3696
      %v3699 = vperm.slane %v3697, 0
      %v3700 = vperm.slane %v3697, 1
      %v3701 = vperm.slane %v3697, 2
      %v3702 = vperm.slane %v3697, 3
      %v3703 = vperm.slane %v3697, 4
      %v3704 = vperm.slane %v3697, 5
      %v3705 = vperm.slane %v3697, 6
      %v3706 = vperm.slane %v3697, 7
      %v3715 = vmul.f32 %v3631, %v3699
      %v3716 = vmul.f32 %v3633, %v3700
      %v3717 = vmul.f32 %v3635, %v3701
      %v3718 = vmul.f32 %v3637, %v3702
      %v3719 = vmul.f32 %v3639, %v3703
      %v3720 = vmul.f32 %v3641, %v3704
      %v3721 = vmul.f32 %v3643, %v3705
      %v3722 = vmul.f32 %v3645, %v3706
      %v3731 = vperm.slane %v2612, %v774
      %v3732 = vperm.slane %v2613, %v774
      %v3733 = vperm.slane %v2614, %v774
      %v3734 = vperm.slane %v2615, %v774
      %v3735 = vperm.slane %v2616, %v774
      %v3736 = vperm.slane %v2617, %v774
      %v3737 = vperm.slane %v2618, %v774
      %v3738 = vperm.slane %v2619, %v774
      %v3739 = vsel %vm779, %v3732, %v3731
      %v3740 = vsel %vm781, %v3733, %v3739
      %v3741 = vsel %vm783, %v3734, %v3740
      %v3742 = vsel %vm3303, %v3735, %v3741
      %v3743 = vsel %vm3305, %v3736, %v3742
      %v3744 = vsel %vm3307, %v3737, %v3743
      %v3745 = vsel %vm3309, %v3738, %v3744
      %v3747 = vsel %vm532, %v3745, -inf
      %3748 = vmax.xlane.f32.xlu0 %v3747
      %v3749 = vpop.xlane.xlu0 %3748
      %v3751 = vperm.slane %v3749, 0
      %v3752 = vperm.slane %v3749, 1
      %v3753 = vperm.slane %v3749, 2
      %v3754 = vperm.slane %v3749, 3
      %v3755 = vperm.slane %v3749, 4
      %v3756 = vperm.slane %v3749, 5
      %v3757 = vperm.slane %v3749, 6
      %v3758 = vperm.slane %v3749, 7
      %v3767 = vsub.f32 %v2612, %v3751
      %v3768 = vsub.f32 %v2613, %v3752
      %v3769 = vsub.f32 %v2614, %v3753
      %v3770 = vsub.f32 %v2615, %v3754
      %v3771 = vsub.f32 %v2616, %v3755
      %v3772 = vsub.f32 %v2617, %v3756
      %v3773 = vsub.f32 %v2618, %v3757
      %v3774 = vsub.f32 %v2619, %v3758
      %v3775 = vmul.f32 %v3767, 1.442695
      %v3776 = vpow.pop %v3775
      %v3777 = vmul.f32 %v3768, 1.442695
      %v3778 = vpow.pop %v3777
      %v3779 = vmul.f32 %v3769, 1.442695
      %v3780 = vpow.pop %v3779
      %v3781 = vmul.f32 %v3770, 1.442695
      %v3782 = vpow.pop %v3781
      %v3783 = vmul.f32 %v3771, 1.442695
      %v3784 = vpow.pop %v3783
      %v3785 = vmul.f32 %v3772, 1.442695
      %v3786 = vpow.pop %v3785
      %v3787 = vmul.f32 %v3773, 1.442695
      %v3788 = vpow.pop %v3787
      %v3789 = vmul.f32 %v3774, 1.442695
      %v3790 = vpow.pop %v3789
      %3799 = vset.pattern.permute.xlu0 0
      %3800 = vperm.xlu0 %3799, %v3776
      %v3801 = vpop.permute.xlu0 %3800
      %3802 = vset.pattern.permute.xlu0 0
      %3803 = vperm.xlu0 %3802, %v3778
      %v3804 = vpop.permute.xlu0 %3803
      %3805 = vset.pattern.permute.xlu0 0
      %3806 = vperm.xlu0 %3805, %v3780
      %v3807 = vpop.permute.xlu0 %3806
      %3808 = vset.pattern.permute.xlu0 0
      %3809 = vperm.xlu0 %3808, %v3782
      %v3810 = vpop.permute.xlu0 %3809
      %3811 = vset.pattern.permute.xlu0 0
      %3812 = vperm.xlu0 %3811, %v3784
      %v3813 = vpop.permute.xlu0 %3812
      %3814 = vset.pattern.permute.xlu0 0
      %3815 = vperm.xlu0 %3814, %v3786
      %v3816 = vpop.permute.xlu0 %3815
      %3817 = vset.pattern.permute.xlu0 0
      %3818 = vperm.xlu0 %3817, %v3788
      %v3819 = vpop.permute.xlu0 %3818
      %3820 = vset.pattern.permute.xlu0 0
      %3821 = vperm.xlu0 %3820, %v3790
      %v3822 = vpop.permute.xlu0 %3821
      %v3823 = vperm.slane %v3801, %v774
      %v3824 = vperm.slane %v3804, %v774
      %v3825 = vperm.slane %v3807, %v774
      %v3826 = vperm.slane %v3810, %v774
      %v3827 = vperm.slane %v3813, %v774
      %v3828 = vperm.slane %v3816, %v774
      %v3829 = vperm.slane %v3819, %v774
      %v3830 = vperm.slane %v3822, %v774
      %v3831 = vsel %vm779, %v3824, %v3823
      %v3832 = vsel %vm781, %v3825, %v3831
      %v3833 = vsel %vm783, %v3826, %v3832
      %v3834 = vsel %vm3303, %v3827, %v3833
      %v3835 = vsel %vm3305, %v3828, %v3834
      %v3836 = vsel %vm3307, %v3829, %v3835
      %v3837 = vsel %vm3309, %v3830, %v3836
      %v3839 = vsel %vm532, %v3837, 0.0
      %3840 = vadd.xlane.f32.xlu0 %v3839
      %v3841 = vpop.xlane.xlu0 %3840
      %v3842 = vrcp.pop %v3841
      %v3844 = vperm.slane %v3842, 0
      %v3845 = vperm.slane %v3842, 1
      %v3846 = vperm.slane %v3842, 2
      %v3847 = vperm.slane %v3842, 3
      %v3848 = vperm.slane %v3842, 4
      %v3849 = vperm.slane %v3842, 5
      %v3850 = vperm.slane %v3842, 6
      %v3851 = vperm.slane %v3842, 7
      %v3860 = vmul.f32 %v3776, %v3844
      %v3861 = vmul.f32 %v3778, %v3845
      %v3862 = vmul.f32 %v3780, %v3846
      %v3863 = vmul.f32 %v3782, %v3847
      %v3864 = vmul.f32 %v3784, %v3848
      %v3865 = vmul.f32 %v3786, %v3849
      %v3866 = vmul.f32 %v3788, %v3850
      %v3867 = vmul.f32 %v3790, %v3851
      %v3868 = vadd.f32 %v3425, %v2844
      %v3869 = vadd.f32 %v3426, %v2845
      %v3870 = vadd.f32 %v3427, %v2846
      %v3871 = vadd.f32 %v3428, %v2847
      %v3872 = vadd.f32 %v3429, %v2848
      %v3873 = vadd.f32 %v3430, %v2849
      %v3874 = vadd.f32 %v3431, %v2850
      %v3875 = vadd.f32 %v3432, %v2851
      %v3876 = vadd.f32 %v3570, %v2988
      %v3877 = vadd.f32 %v3571, %v2989
      %v3878 = vadd.f32 %v3572, %v2990
      %v3879 = vadd.f32 %v3573, %v2991
      %v3880 = vadd.f32 %v3574, %v2992
      %v3881 = vadd.f32 %v3575, %v2993
      %v3882 = vadd.f32 %v3576, %v2994
      %v3883 = vadd.f32 %v3577, %v2995
      %v3884 = vadd.f32 %v3715, %v3132
      %v3885 = vadd.f32 %v3716, %v3133
      %v3886 = vadd.f32 %v3717, %v3134
      %v3887 = vadd.f32 %v3718, %v3135
      %v3888 = vadd.f32 %v3719, %v3136
      %v3889 = vadd.f32 %v3720, %v3137
      %v3890 = vadd.f32 %v3721, %v3138
      %v3891 = vadd.f32 %v3722, %v3139
      %v3892 = vadd.f32 %v3860, %v3276
      %v3893 = vadd.f32 %v3861, %v3277
      %v3894 = vadd.f32 %v3862, %v3278
      %v3895 = vadd.f32 %v3863, %v3279
      %v3896 = vadd.f32 %v3864, %v3280
      %v3897 = vadd.f32 %v3865, %v3281
      %v3898 = vadd.f32 %v3866, %v3282
      %v3899 = vadd.f32 %v3867, %v3283
      %3901 = vset.pattern.permute.xlu0 0
      %3902 = vperm.xlu0 %3901, %v3868
      %v3903 = vpop.permute.xlu0 %3902
      %3906 = vset.pattern.permute.xlu0 0
      %3907 = vperm.xlu0 %3906, %v3869
      %v3908 = vpop.permute.xlu0 %3907
      %3911 = vset.pattern.permute.xlu0 0
      %3912 = vperm.xlu0 %3911, %v3870
      %v3913 = vpop.permute.xlu0 %3912
      %3916 = vset.pattern.permute.xlu0 0
      %3917 = vperm.xlu0 %3916, %v3871
      %v3918 = vpop.permute.xlu0 %3917
      %3921 = vset.pattern.permute.xlu0 0
      %3922 = vperm.xlu0 %3921, %v3872
      %v3923 = vpop.permute.xlu0 %3922
      %3926 = vset.pattern.permute.xlu0 0
      %3927 = vperm.xlu0 %3926, %v3873
      %v3928 = vpop.permute.xlu0 %3927
      %3931 = vset.pattern.permute.xlu0 0
      %3932 = vperm.xlu0 %3931, %v3874
      %v3933 = vpop.permute.xlu0 %3932
      %3936 = vset.pattern.permute.xlu0 0
      %3937 = vperm.xlu0 %3936, %v3875
      %v3938 = vpop.permute.xlu0 %3937
      %v3940 = vmul.f32 %v3903, %v1421
      %v3941 = vmul.f32 %v3908, %v1421
      %v3942 = vmul.f32 %v3913, %v1421
      %v3943 = vmul.f32 %v3918, %v1421
      %v3944 = vmul.f32 %v3923, %v1421
      %v3945 = vmul.f32 %v3928, %v1421
      %v3946 = vmul.f32 %v3933, %v1421
      %v3947 = vmul.f32 %v3938, %v1421
      %3949 = vset.pattern.permute.xlu0 0
      %3950 = vperm.xlu0 %3949, %v3876
      %v3951 = vpop.permute.xlu0 %3950
      %3954 = vset.pattern.permute.xlu0 0
      %3955 = vperm.xlu0 %3954, %v3877
      %v3956 = vpop.permute.xlu0 %3955
      %3959 = vset.pattern.permute.xlu0 0
      %3960 = vperm.xlu0 %3959, %v3878
      %v3961 = vpop.permute.xlu0 %3960
      %3964 = vset.pattern.permute.xlu0 0
      %3965 = vperm.xlu0 %3964, %v3879
      %v3966 = vpop.permute.xlu0 %3965
      %3969 = vset.pattern.permute.xlu0 0
      %3970 = vperm.xlu0 %3969, %v3880
      %v3971 = vpop.permute.xlu0 %3970
      %3974 = vset.pattern.permute.xlu0 0
      %3975 = vperm.xlu0 %3974, %v3881
      %v3976 = vpop.permute.xlu0 %3975
      %3979 = vset.pattern.permute.xlu0 0
      %3980 = vperm.xlu0 %3979, %v3882
      %v3981 = vpop.permute.xlu0 %3980
      %3984 = vset.pattern.permute.xlu0 0
      %3985 = vperm.xlu0 %3984, %v3883
      %v3986 = vpop.permute.xlu0 %3985
      %v3988 = vmul.f32 %v3951, %v1427
      %v3989 = vmul.f32 %v3956, %v1427
      %v3990 = vmul.f32 %v3961, %v1427
      %v3991 = vmul.f32 %v3966, %v1427
      %v3992 = vmul.f32 %v3971, %v1427
      %v3993 = vmul.f32 %v3976, %v1427
      %v3994 = vmul.f32 %v3981, %v1427
      %v3995 = vmul.f32 %v3986, %v1427
      %v3996 = vadd.f32 %v3940, %v3988
      %v3997 = vadd.f32 %v3941, %v3989
      %v3998 = vadd.f32 %v3942, %v3990
      %v3999 = vadd.f32 %v3943, %v3991
      %v4000 = vadd.f32 %v3944, %v3992
      %v4001 = vadd.f32 %v3945, %v3993
      %v4002 = vadd.f32 %v3946, %v3994
      %v4003 = vadd.f32 %v3947, %v3995
      %4005 = vset.pattern.permute.xlu0 0
      %4006 = vperm.xlu0 %4005, %v3884
      %v4007 = vpop.permute.xlu0 %4006
      %4010 = vset.pattern.permute.xlu0 0
      %4011 = vperm.xlu0 %4010, %v3885
      %v4012 = vpop.permute.xlu0 %4011
      %4015 = vset.pattern.permute.xlu0 0
      %4016 = vperm.xlu0 %4015, %v3886
      %v4017 = vpop.permute.xlu0 %4016
      %4020 = vset.pattern.permute.xlu0 0
      %4021 = vperm.xlu0 %4020, %v3887
      %v4022 = vpop.permute.xlu0 %4021
      %4025 = vset.pattern.permute.xlu0 0
      %4026 = vperm.xlu0 %4025, %v3888
      %v4027 = vpop.permute.xlu0 %4026
      %4030 = vset.pattern.permute.xlu0 0
      %4031 = vperm.xlu0 %4030, %v3889
      %v4032 = vpop.permute.xlu0 %4031
      %4035 = vset.pattern.permute.xlu0 0
      %4036 = vperm.xlu0 %4035, %v3890
      %v4037 = vpop.permute.xlu0 %4036
      %4040 = vset.pattern.permute.xlu0 0
      %4041 = vperm.xlu0 %4040, %v3891
      %v4042 = vpop.permute.xlu0 %4041
      %v4044 = vmul.f32 %v4007, %v1425
      %v4045 = vmul.f32 %v4012, %v1425
      %v4046 = vmul.f32 %v4017, %v1425
      %v4047 = vmul.f32 %v4022, %v1425
      %v4048 = vmul.f32 %v4027, %v1425
      %v4049 = vmul.f32 %v4032, %v1425
      %v4050 = vmul.f32 %v4037, %v1425
      %v4051 = vmul.f32 %v4042, %v1425
      %v4052 = vadd.f32 %v3996, %v4044
      %v4053 = vadd.f32 %v3997, %v4045
      %v4054 = vadd.f32 %v3998, %v4046
      %v4055 = vadd.f32 %v3999, %v4047
      %v4056 = vadd.f32 %v4000, %v4048
      %v4057 = vadd.f32 %v4001, %v4049
      %v4058 = vadd.f32 %v4002, %v4050
      %v4059 = vadd.f32 %v4003, %v4051
      %4061 = vset.pattern.permute.xlu0 0
      %4062 = vperm.xlu0 %4061, %v3892
      %v4063 = vpop.permute.xlu0 %4062
      %4066 = vset.pattern.permute.xlu0 0
      %4067 = vperm.xlu0 %4066, %v3893
      %v4068 = vpop.permute.xlu0 %4067
      %4071 = vset.pattern.permute.xlu0 0
      %4072 = vperm.xlu0 %4071, %v3894
      %v4073 = vpop.permute.xlu0 %4072
      %4076 = vset.pattern.permute.xlu0 0
      %4077 = vperm.xlu0 %4076, %v3895
      %v4078 = vpop.permute.xlu0 %4077
      %4081 = vset.pattern.permute.xlu0 0
      %4082 = vperm.xlu0 %4081, %v3896
      %v4083 = vpop.permute.xlu0 %4082
      %4086 = vset.pattern.permute.xlu0 0
      %4087 = vperm.xlu0 %4086, %v3897
      %v4088 = vpop.permute.xlu0 %4087
      %4091 = vset.pattern.permute.xlu0 0
      %4092 = vperm.xlu0 %4091, %v3898
      %v4093 = vpop.permute.xlu0 %4092
      %4096 = vset.pattern.permute.xlu0 0
      %4097 = vperm.xlu0 %4096, %v3899
      %v4098 = vpop.permute.xlu0 %4097
      %v4100 = vmul.f32 %v4063, %v1429
      %v4101 = vmul.f32 %v4068, %v1429
      %v4102 = vmul.f32 %v4073, %v1429
      %v4103 = vmul.f32 %v4078, %v1429
      %v4104 = vmul.f32 %v4083, %v1429
      %v4105 = vmul.f32 %v4088, %v1429
      %v4106 = vmul.f32 %v4093, %v1429
      %v4107 = vmul.f32 %v4098, %v1429
      %v4108 = vadd.f32 %v4052, %v4100
      %v4109 = vadd.f32 %v4053, %v4101
      %v4110 = vadd.f32 %v4054, %v4102
      %v4111 = vadd.f32 %v4055, %v4103
      %v4112 = vadd.f32 %v4056, %v4104
      %v4113 = vadd.f32 %v4057, %v4105
      %v4114 = vadd.f32 %v4058, %v4106
      %v4115 = vadd.f32 %v4059, %v4107
      %v4116 = vmul.f32 %v4108, %v4108
      %v4117 = vmul.f32 %v4109, %v4109
      %v4118 = vmul.f32 %v4110, %v4110
      %v4119 = vmul.f32 %v4111, %v4111
      %v4120 = vmul.f32 %v4112, %v4112
      %v4121 = vmul.f32 %v4113, %v4113
      %v4122 = vmul.f32 %v4114, %v4114
      %v4123 = vmul.f32 %v4115, %v4115
      %v4124 = vsel %vm403, %v4116, 0.0
      %4125 = vadd.xlane.f32.xlu0 %v4124
      %v4126 = vpop.xlane.xlu0 %4125
      %v4127 = vsel %vm403, %v4117, 0.0
      %4128 = vadd.xlane.f32.xlu0 %v4127
      %v4129 = vpop.xlane.xlu0 %4128
      %v4130 = vsel %vm403, %v4118, 0.0
      %4131 = vadd.xlane.f32.xlu0 %v4130
      %v4132 = vpop.xlane.xlu0 %4131
      %v4133 = vsel %vm403, %v4119, 0.0
      %4134 = vadd.xlane.f32.xlu0 %v4133
      %v4135 = vpop.xlane.xlu0 %4134
      %v4136 = vsel %vm403, %v4120, 0.0
      %4137 = vadd.xlane.f32.xlu0 %v4136
      %v4138 = vpop.xlane.xlu0 %4137
      %v4139 = vsel %vm403, %v4121, 0.0
      %4140 = vadd.xlane.f32.xlu0 %v4139
      %v4141 = vpop.xlane.xlu0 %4140
      %v4142 = vsel %vm403, %v4122, 0.0
      %4143 = vadd.xlane.f32.xlu0 %v4142
      %v4144 = vpop.xlane.xlu0 %4143
      %v4145 = vsel %vm403, %v4123, 0.0
      %4146 = vadd.xlane.f32.xlu0 %v4145
      %v4147 = vpop.xlane.xlu0 %4146
      %v4148 = vadd.f32 %v4126, 1.0
      %v4149 = vadd.f32 %v4129, 1.0
      %v4150 = vadd.f32 %v4132, 1.0
      %v4151 = vadd.f32 %v4135, 1.0
      %v4152 = vadd.f32 %v4138, 1.0
      %v4153 = vadd.f32 %v4141, 1.0
      %v4154 = vadd.f32 %v4144, 1.0
      %v4155 = vadd.f32 %v4147, 1.0
      %v4156 = vrcp.pop %v4148
      %v4157 = vrcp.pop %v4149
      %v4158 = vrcp.pop %v4150
      %v4159 = vrcp.pop %v4151
      %v4160 = vrcp.pop %v4152
      %v4161 = vrcp.pop %v4153
      %v4162 = vrcp.pop %v4154
      %v4163 = vrcp.pop %v4155
      %v4164 = vmul.f32 %v4126, %v4156
      %v4165 = vmul.f32 %v4129, %v4157
      %v4166 = vmul.f32 %v4132, %v4158
      %v4167 = vmul.f32 %v4135, %v4159
      %v4168 = vmul.f32 %v4138, %v4160
      %v4169 = vmul.f32 %v4141, %v4161
      %v4170 = vmul.f32 %v4144, %v4162
      %v4171 = vmul.f32 %v4147, %v4163
      %v4172 = vadd.f32 %v4126, 1e-08
      %v4173 = vadd.f32 %v4129, 1e-08
      %v4174 = vadd.f32 %v4132, 1e-08
      %v4175 = vadd.f32 %v4135, 1e-08
      %v4176 = vadd.f32 %v4138, 1e-08
      %v4177 = vadd.f32 %v4141, 1e-08
      %v4178 = vadd.f32 %v4144, 1e-08
      %v4179 = vadd.f32 %v4147, 1e-08
      %v4180 = vrsqrt.pop %v4172
      %v4181 = vmul.f32 %v4180, %v4172
      %v4182 = vmul.f32 %v4181, %v4180
      %v4183 = vmul.f32 0.5, %v4182
      %v4184 = vsub.f32 1.5, %v4183
      %v4185 = vmul.f32 %v4180, %v4184
      %vm4186 = vweird.f32 %v4172
      %vm4187 = vweird.f32 %v4180
      %vm4188 = vmor %vm4186, %vm4187
      %v4189 = vsel %vm4188, %v4180, %v4185
      %v4190 = vrsqrt.pop %v4173
      %v4191 = vmul.f32 %v4190, %v4173
      %v4192 = vmul.f32 %v4191, %v4190
      %v4193 = vmul.f32 0.5, %v4192
      %v4194 = vsub.f32 1.5, %v4193
      %v4195 = vmul.f32 %v4190, %v4194
      %vm4196 = vweird.f32 %v4173
      %vm4197 = vweird.f32 %v4190
      %vm4198 = vmor %vm4196, %vm4197
      %v4199 = vsel %vm4198, %v4190, %v4195
      %v4200 = vrsqrt.pop %v4174
      %v4201 = vmul.f32 %v4200, %v4174
      %v4202 = vmul.f32 %v4201, %v4200
      %v4203 = vmul.f32 0.5, %v4202
      %v4204 = vsub.f32 1.5, %v4203
      %v4205 = vmul.f32 %v4200, %v4204
      %vm4206 = vweird.f32 %v4174
      %vm4207 = vweird.f32 %v4200
      %vm4208 = vmor %vm4206, %vm4207
      %v4209 = vsel %vm4208, %v4200, %v4205
      %v4210 = vrsqrt.pop %v4175
      %v4211 = vmul.f32 %v4210, %v4175
      %v4212 = vmul.f32 %v4211, %v4210
      %v4213 = vmul.f32 0.5, %v4212
      %v4214 = vsub.f32 1.5, %v4213
      %v4215 = vmul.f32 %v4210, %v4214
      %vm4216 = vweird.f32 %v4175
      %vm4217 = vweird.f32 %v4210
      %vm4218 = vmor %vm4216, %vm4217
      %v4219 = vsel %vm4218, %v4210, %v4215
      %v4220 = vrsqrt.pop %v4176
      %v4221 = vmul.f32 %v4220, %v4176
      %v4222 = vmul.f32 %v4221, %v4220
      %v4223 = vmul.f32 0.5, %v4222
      %v4224 = vsub.f32 1.5, %v4223
      %v4225 = vmul.f32 %v4220, %v4224
      %vm4226 = vweird.f32 %v4176
      %vm4227 = vweird.f32 %v4220
      %vm4228 = vmor %vm4226, %vm4227
      %v4229 = vsel %vm4228, %v4220, %v4225
      %v4230 = vrsqrt.pop %v4177
      %v4231 = vmul.f32 %v4230, %v4177
      %v4232 = vmul.f32 %v4231, %v4230
      %v4233 = vmul.f32 0.5, %v4232
      %v4234 = vsub.f32 1.5, %v4233
      %v4235 = vmul.f32 %v4230, %v4234
      %vm4236 = vweird.f32 %v4177
      %vm4237 = vweird.f32 %v4230
      %vm4238 = vmor %vm4236, %vm4237
      %v4239 = vsel %vm4238, %v4230, %v4235
      %v4240 = vrsqrt.pop %v4178
      %v4241 = vmul.f32 %v4240, %v4178
      %v4242 = vmul.f32 %v4241, %v4240
      %v4243 = vmul.f32 0.5, %v4242
      %v4244 = vsub.f32 1.5, %v4243
      %v4245 = vmul.f32 %v4240, %v4244
      %vm4246 = vweird.f32 %v4178
      %vm4247 = vweird.f32 %v4240
      %vm4248 = vmor %vm4246, %vm4247
      %v4249 = vsel %vm4248, %v4240, %v4245
      %v4250 = vrsqrt.pop %v4179
      %v4251 = vmul.f32 %v4250, %v4179
      %v4252 = vmul.f32 %v4251, %v4250
      %v4253 = vmul.f32 0.5, %v4252
      %v4254 = vsub.f32 1.5, %v4253
      %v4255 = vmul.f32 %v4250, %v4254
      %vm4256 = vweird.f32 %v4179
      %vm4257 = vweird.f32 %v4250
      %vm4258 = vmor %vm4256, %vm4257
      %v4259 = vsel %vm4258, %v4250, %v4255
      %v4260 = vmul.f32 %v4164, %v4189
      %v4261 = vmul.f32 %v4165, %v4199
      %v4262 = vmul.f32 %v4166, %v4209
      %v4263 = vmul.f32 %v4167, %v4219
      %v4264 = vmul.f32 %v4168, %v4229
      %v4265 = vmul.f32 %v4169, %v4239
      %v4266 = vmul.f32 %v4170, %v4249
      %v4267 = vmul.f32 %v4171, %v4259
      %v4268 = vmul.f32 %v4260, %v4108
      %v4269 = vmul.f32 %v4261, %v4109
      %v4270 = vmul.f32 %v4262, %v4110
      %v4271 = vmul.f32 %v4263, %v4111
      %v4272 = vmul.f32 %v4264, %v4112
      %v4273 = vmul.f32 %v4265, %v4113
      %v4274 = vmul.f32 %v4266, %v4114
      %v4275 = vmul.f32 %v4267, %v4115
      %v4276 = vmul.f32 %v1421, %v4268
      %v4277 = vmul.f32 %v1421, %v4269
      %v4278 = vmul.f32 %v1421, %v4270
      %v4279 = vmul.f32 %v1421, %v4271
      %v4280 = vmul.f32 %v1421, %v4272
      %v4281 = vmul.f32 %v1421, %v4273
      %v4282 = vmul.f32 %v1421, %v4274
      %v4283 = vmul.f32 %v1421, %v4275
      %v4284 = vsel %vm403, %v4276, 0.0
      %4285 = vadd.xlane.f32.xlu0 %v4284
      %v4286 = vpop.xlane.xlu0 %4285
      %v4287 = vsel %vm403, %v4277, 0.0
      %4288 = vadd.xlane.f32.xlu0 %v4287
      %v4289 = vpop.xlane.xlu0 %4288
      %v4290 = vsel %vm403, %v4278, 0.0
      %4291 = vadd.xlane.f32.xlu0 %v4290
      %v4292 = vpop.xlane.xlu0 %4291
      %v4293 = vsel %vm403, %v4279, 0.0
      %4294 = vadd.xlane.f32.xlu0 %v4293
      %v4295 = vpop.xlane.xlu0 %4294
      %v4296 = vsel %vm403, %v4280, 0.0
      %4297 = vadd.xlane.f32.xlu0 %v4296
      %v4298 = vpop.xlane.xlu0 %4297
      %v4299 = vsel %vm403, %v4281, 0.0
      %4300 = vadd.xlane.f32.xlu0 %v4299
      %v4301 = vpop.xlane.xlu0 %4300
      %v4302 = vsel %vm403, %v4282, 0.0
      %4303 = vadd.xlane.f32.xlu0 %v4302
      %v4304 = vpop.xlane.xlu0 %4303
      %v4305 = vsel %vm403, %v4283, 0.0
      %4306 = vadd.xlane.f32.xlu0 %v4305
      %v4307 = vpop.xlane.xlu0 %4306
      %v4308 = vmul.f32 %v1427, %v4268
      %v4309 = vmul.f32 %v1427, %v4269
      %v4310 = vmul.f32 %v1427, %v4270
      %v4311 = vmul.f32 %v1427, %v4271
      %v4312 = vmul.f32 %v1427, %v4272
      %v4313 = vmul.f32 %v1427, %v4273
      %v4314 = vmul.f32 %v1427, %v4274
      %v4315 = vmul.f32 %v1427, %v4275
      %v4316 = vsel %vm403, %v4308, 0.0
      %4317 = vadd.xlane.f32.xlu0 %v4316
      %v4318 = vpop.xlane.xlu0 %4317
      %v4319 = vsel %vm403, %v4309, 0.0
      %4320 = vadd.xlane.f32.xlu0 %v4319
      %v4321 = vpop.xlane.xlu0 %4320
      %v4322 = vsel %vm403, %v4310, 0.0
      %4323 = vadd.xlane.f32.xlu0 %v4322
      %v4324 = vpop.xlane.xlu0 %4323
      %v4325 = vsel %vm403, %v4311, 0.0
      %4326 = vadd.xlane.f32.xlu0 %v4325
      %v4327 = vpop.xlane.xlu0 %4326
      %v4328 = vsel %vm403, %v4312, 0.0
      %4329 = vadd.xlane.f32.xlu0 %v4328
      %v4330 = vpop.xlane.xlu0 %4329
      %v4331 = vsel %vm403, %v4313, 0.0
      %4332 = vadd.xlane.f32.xlu0 %v4331
      %v4333 = vpop.xlane.xlu0 %4332
      %v4334 = vsel %vm403, %v4314, 0.0
      %4335 = vadd.xlane.f32.xlu0 %v4334
      %v4336 = vpop.xlane.xlu0 %4335
      %v4337 = vsel %vm403, %v4315, 0.0
      %4338 = vadd.xlane.f32.xlu0 %v4337
      %v4339 = vpop.xlane.xlu0 %4338
      %v4340 = vmul.f32 %v1425, %v4268
      %v4341 = vmul.f32 %v1425, %v4269
      %v4342 = vmul.f32 %v1425, %v4270
      %v4343 = vmul.f32 %v1425, %v4271
      %v4344 = vmul.f32 %v1425, %v4272
      %v4345 = vmul.f32 %v1425, %v4273
      %v4346 = vmul.f32 %v1425, %v4274
      %v4347 = vmul.f32 %v1425, %v4275
      %v4348 = vsel %vm403, %v4340, 0.0
      %4349 = vadd.xlane.f32.xlu0 %v4348
      %v4350 = vpop.xlane.xlu0 %4349
      %v4351 = vsel %vm403, %v4341, 0.0
      %4352 = vadd.xlane.f32.xlu0 %v4351
      %v4353 = vpop.xlane.xlu0 %4352
      %v4354 = vsel %vm403, %v4342, 0.0
      %4355 = vadd.xlane.f32.xlu0 %v4354
      %v4356 = vpop.xlane.xlu0 %4355
      %v4357 = vsel %vm403, %v4343, 0.0
      %4358 = vadd.xlane.f32.xlu0 %v4357
      %v4359 = vpop.xlane.xlu0 %4358
      %v4360 = vsel %vm403, %v4344, 0.0
      %4361 = vadd.xlane.f32.xlu0 %v4360
      %v4362 = vpop.xlane.xlu0 %4361
      %v4363 = vsel %vm403, %v4345, 0.0
      %4364 = vadd.xlane.f32.xlu0 %v4363
      %v4365 = vpop.xlane.xlu0 %4364
      %v4366 = vsel %vm403, %v4346, 0.0
      %4367 = vadd.xlane.f32.xlu0 %v4366
      %v4368 = vpop.xlane.xlu0 %4367
      %v4369 = vsel %vm403, %v4347, 0.0
      %4370 = vadd.xlane.f32.xlu0 %v4369
      %v4371 = vpop.xlane.xlu0 %4370
      %v4372 = vmul.f32 %v1429, %v4268
      %v4373 = vmul.f32 %v1429, %v4269
      %v4374 = vmul.f32 %v1429, %v4270
      %v4375 = vmul.f32 %v1429, %v4271
      %v4376 = vmul.f32 %v1429, %v4272
      %v4377 = vmul.f32 %v1429, %v4273
      %v4378 = vmul.f32 %v1429, %v4274
      %v4379 = vmul.f32 %v1429, %v4275
      %v4380 = vsel %vm403, %v4372, 0.0
      %4381 = vadd.xlane.f32.xlu0 %v4380
      %v4382 = vpop.xlane.xlu0 %4381
      %v4383 = vsel %vm403, %v4373, 0.0
      %4384 = vadd.xlane.f32.xlu0 %v4383
      %v4385 = vpop.xlane.xlu0 %4384
      %v4386 = vsel %vm403, %v4374, 0.0
      %4387 = vadd.xlane.f32.xlu0 %v4386
      %v4388 = vpop.xlane.xlu0 %4387
      %v4389 = vsel %vm403, %v4375, 0.0
      %4390 = vadd.xlane.f32.xlu0 %v4389
      %v4391 = vpop.xlane.xlu0 %4390
      %v4392 = vsel %vm403, %v4376, 0.0
      %4393 = vadd.xlane.f32.xlu0 %v4392
      %v4394 = vpop.xlane.xlu0 %4393
      %v4395 = vsel %vm403, %v4377, 0.0
      %4396 = vadd.xlane.f32.xlu0 %v4395
      %v4397 = vpop.xlane.xlu0 %4396
      %v4398 = vsel %vm403, %v4378, 0.0
      %4399 = vadd.xlane.f32.xlu0 %v4398
      %v4400 = vpop.xlane.xlu0 %4399
      %v4401 = vsel %vm403, %v4379, 0.0
      %4402 = vadd.xlane.f32.xlu0 %v4401
      %v4403 = vpop.xlane.xlu0 %4402
      %v4404 = vmul.f32 %v2660, %v4286
      %v4405 = vmul.f32 %v2661, %v4289
      %v4406 = vmul.f32 %v2662, %v4292
      %v4407 = vmul.f32 %v2663, %v4295
      %v4408 = vmul.f32 %v2664, %v4298
      %v4409 = vmul.f32 %v2665, %v4301
      %v4410 = vmul.f32 %v2666, %v4304
      %v4411 = vmul.f32 %v2667, %v4307
      %v4412 = vadd.f32 %v2564, %v4404
      %v4413 = vadd.f32 %v2565, %v4405
      %v4414 = vadd.f32 %v2566, %v4406
      %v4415 = vadd.f32 %v2567, %v4407
      %v4416 = vadd.f32 %v2568, %v4408
      %v4417 = vadd.f32 %v2569, %v4409
      %v4418 = vadd.f32 %v2570, %v4410
      %v4419 = vadd.f32 %v2571, %v4411
      %v4420 = vmul.f32 %v2660, %v4318
      %v4421 = vmul.f32 %v2661, %v4321
      %v4422 = vmul.f32 %v2662, %v4324
      %v4423 = vmul.f32 %v2663, %v4327
      %v4424 = vmul.f32 %v2664, %v4330
      %v4425 = vmul.f32 %v2665, %v4333
      %v4426 = vmul.f32 %v2666, %v4336
      %v4427 = vmul.f32 %v2667, %v4339
      %v4428 = vadd.f32 %v2580, %v4420
      %v4429 = vadd.f32 %v2581, %v4421
      %v4430 = vadd.f32 %v2582, %v4422
      %v4431 = vadd.f32 %v2583, %v4423
      %v4432 = vadd.f32 %v2584, %v4424
      %v4433 = vadd.f32 %v2585, %v4425
      %v4434 = vadd.f32 %v2586, %v4426
      %v4435 = vadd.f32 %v2587, %v4427
      %v4436 = vmul.f32 %v2660, %v4350
      %v4437 = vmul.f32 %v2661, %v4353
      %v4438 = vmul.f32 %v2662, %v4356
      %v4439 = vmul.f32 %v2663, %v4359
      %v4440 = vmul.f32 %v2664, %v4362
      %v4441 = vmul.f32 %v2665, %v4365
      %v4442 = vmul.f32 %v2666, %v4368
      %v4443 = vmul.f32 %v2667, %v4371
      %v4444 = vadd.f32 %v2596, %v4436
      %v4445 = vadd.f32 %v2597, %v4437
      %v4446 = vadd.f32 %v2598, %v4438
      %v4447 = vadd.f32 %v2599, %v4439
      %v4448 = vadd.f32 %v2600, %v4440
      %v4449 = vadd.f32 %v2601, %v4441
      %v4450 = vadd.f32 %v2602, %v4442
      %v4451 = vadd.f32 %v2603, %v4443
      %v4452 = vmul.f32 %v2660, %v4382
      %v4453 = vmul.f32 %v2661, %v4385
      %v4454 = vmul.f32 %v2662, %v4388
      %v4455 = vmul.f32 %v2663, %v4391
      %v4456 = vmul.f32 %v2664, %v4394
      %v4457 = vmul.f32 %v2665, %v4397
      %v4458 = vmul.f32 %v2666, %v4400
      %v4459 = vmul.f32 %v2667, %v4403
      %v4460 = vadd.f32 %v2612, %v4452
      %v4461 = vadd.f32 %v2613, %v4453
      %v4462 = vadd.f32 %v2614, %v4454
      %v4463 = vadd.f32 %v2615, %v4455
      %v4464 = vadd.f32 %v2616, %v4456
      %v4465 = vadd.f32 %v2617, %v4457
      %v4466 = vadd.f32 %v2618, %v4458
      %v4467 = vadd.f32 %v2619, %v4459
      %v4468 = vadd.f32 %v2628, %v4268
      %v4469 = vadd.f32 %v2629, %v4269
      %v4470 = vadd.f32 %v2630, %v4270
      %v4471 = vadd.f32 %v2631, %v4271
      %v4472 = vadd.f32 %v2632, %v4272
      %v4473 = vadd.f32 %v2633, %v4273
      %v4474 = vadd.f32 %v2634, %v4274
      %v4475 = vadd.f32 %v2635, %v4275
      %v4476 = vmul.f32 %v4468, 0.5
      %v4477 = vmul.f32 %v4469, 0.5
      %v4478 = vmul.f32 %v4470, 0.5
      %v4479 = vmul.f32 %v4471, 0.5
      %v4480 = vmul.f32 %v4472, 0.5
      %v4481 = vmul.f32 %v4473, 0.5
      %v4482 = vmul.f32 %v4474, 0.5
      %v4483 = vmul.f32 %v4475, 0.5
      %v4484 = vsel %vm403, %v4476, 0.0
      %4485 = vadd.xlane.f32.xlu0 %v4484
      %v4486 = vpop.xlane.xlu0 %4485
      %v4487 = vsel %vm403, %v4477, 0.0
      %4488 = vadd.xlane.f32.xlu0 %v4487
      %v4489 = vpop.xlane.xlu0 %4488
      %v4490 = vsel %vm403, %v4478, 0.0
      %4491 = vadd.xlane.f32.xlu0 %v4490
      %v4492 = vpop.xlane.xlu0 %4491
      %v4493 = vsel %vm403, %v4479, 0.0
      %4494 = vadd.xlane.f32.xlu0 %v4493
      %v4495 = vpop.xlane.xlu0 %4494
      %v4496 = vsel %vm403, %v4480, 0.0
      %4497 = vadd.xlane.f32.xlu0 %v4496
      %v4498 = vpop.xlane.xlu0 %4497
      %v4499 = vsel %vm403, %v4481, 0.0
      %4500 = vadd.xlane.f32.xlu0 %v4499
      %v4501 = vpop.xlane.xlu0 %4500
      %v4502 = vsel %vm403, %v4482, 0.0
      %4503 = vadd.xlane.f32.xlu0 %v4502
      %v4504 = vpop.xlane.xlu0 %4503
      %v4505 = vsel %vm403, %v4483, 0.0
      %4506 = vadd.xlane.f32.xlu0 %v4505
      %v4507 = vpop.xlane.xlu0 %4506
      %v4508 = vmul.f32 %v4486, %v413
      %v4509 = vmul.f32 %v4489, %v413
      %v4510 = vmul.f32 %v4492, %v413
      %v4511 = vmul.f32 %v4495, %v413
      %v4512 = vmul.f32 %v4498, %v413
      %v4513 = vmul.f32 %v4501, %v413
      %v4514 = vmul.f32 %v4504, %v413
      %v4515 = vmul.f32 %v4507, %v413
      %v4516 = vsub.f32 %v4476, %v4508
      %v4517 = vsub.f32 %v4477, %v4509
      %v4518 = vsub.f32 %v4478, %v4510
      %v4519 = vsub.f32 %v4479, %v4511
      %v4520 = vsub.f32 %v4480, %v4512
      %v4521 = vsub.f32 %v4481, %v4513
      %v4522 = vsub.f32 %v4482, %v4514
      %v4523 = vsub.f32 %v4483, %v4515
      %v4524 = vmul.f32 %v4516, %v4516
      %v4525 = vmul.f32 %v4517, %v4517
      %v4526 = vmul.f32 %v4518, %v4518
      %v4527 = vmul.f32 %v4519, %v4519
      %v4528 = vmul.f32 %v4520, %v4520
      %v4529 = vmul.f32 %v4521, %v4521
      %v4530 = vmul.f32 %v4522, %v4522
      %v4531 = vmul.f32 %v4523, %v4523
      %v4532 = vsel %vm403, %v4524, 0.0
      %4533 = vadd.xlane.f32.xlu0 %v4532
      %v4534 = vpop.xlane.xlu0 %4533
      %v4535 = vsel %vm403, %v4525, 0.0
      %4536 = vadd.xlane.f32.xlu0 %v4535
      %v4537 = vpop.xlane.xlu0 %4536
      %v4538 = vsel %vm403, %v4526, 0.0
      %4539 = vadd.xlane.f32.xlu0 %v4538
      %v4540 = vpop.xlane.xlu0 %4539
      %v4541 = vsel %vm403, %v4527, 0.0
      %4542 = vadd.xlane.f32.xlu0 %v4541
      %v4543 = vpop.xlane.xlu0 %4542
      %v4544 = vsel %vm403, %v4528, 0.0
      %4545 = vadd.xlane.f32.xlu0 %v4544
      %v4546 = vpop.xlane.xlu0 %4545
      %v4547 = vsel %vm403, %v4529, 0.0
      %4548 = vadd.xlane.f32.xlu0 %v4547
      %v4549 = vpop.xlane.xlu0 %4548
      %v4550 = vsel %vm403, %v4530, 0.0
      %4551 = vadd.xlane.f32.xlu0 %v4550
      %v4552 = vpop.xlane.xlu0 %4551
      %v4553 = vsel %vm403, %v4531, 0.0
      %4554 = vadd.xlane.f32.xlu0 %v4553
      %v4555 = vpop.xlane.xlu0 %4554
      %v4556 = vmul.f32 %v1512, %v4516
      %v4557 = vmul.f32 %v1512, %v4517
      %v4558 = vmul.f32 %v1512, %v4518
      %v4559 = vmul.f32 %v1512, %v4519
      %v4560 = vmul.f32 %v1512, %v4520
      %v4561 = vmul.f32 %v1512, %v4521
      %v4562 = vmul.f32 %v1512, %v4522
      %v4563 = vmul.f32 %v1512, %v4523
      %v4564 = vsel %vm403, %v4556, 0.0
      %4565 = vadd.xlane.f32.xlu0 %v4564
      %v4566 = vpop.xlane.xlu0 %4565
      %v4567 = vsel %vm403, %v4557, 0.0
      %4568 = vadd.xlane.f32.xlu0 %v4567
      %v4569 = vpop.xlane.xlu0 %4568
      %v4570 = vsel %vm403, %v4558, 0.0
      %4571 = vadd.xlane.f32.xlu0 %v4570
      %v4572 = vpop.xlane.xlu0 %4571
      %v4573 = vsel %vm403, %v4559, 0.0
      %4574 = vadd.xlane.f32.xlu0 %v4573
      %v4575 = vpop.xlane.xlu0 %4574
      %v4576 = vsel %vm403, %v4560, 0.0
      %4577 = vadd.xlane.f32.xlu0 %v4576
      %v4578 = vpop.xlane.xlu0 %4577
      %v4579 = vsel %vm403, %v4561, 0.0
      %4580 = vadd.xlane.f32.xlu0 %v4579
      %v4581 = vpop.xlane.xlu0 %4580
      %v4582 = vsel %vm403, %v4562, 0.0
      %4583 = vadd.xlane.f32.xlu0 %v4582
      %v4584 = vpop.xlane.xlu0 %4583
      %v4585 = vsel %vm403, %v4563, 0.0
      %4586 = vadd.xlane.f32.xlu0 %v4585
      %v4587 = vpop.xlane.xlu0 %4586
      %v4588 = vmul.f32 %v1522, %v4534
      %v4589 = vmul.f32 %v1522, %v4537
      %v4590 = vmul.f32 %v1522, %v4540
      %v4591 = vmul.f32 %v1522, %v4543
      %v4592 = vmul.f32 %v1522, %v4546
      %v4593 = vmul.f32 %v1522, %v4549
      %v4594 = vmul.f32 %v1522, %v4552
      %v4595 = vmul.f32 %v1522, %v4555
      %v4596 = vadd.f32 %v4588, 1e-12
      %v4597 = vadd.f32 %v4589, 1e-12
      %v4598 = vadd.f32 %v4590, 1e-12
      %v4599 = vadd.f32 %v4591, 1e-12
      %v4600 = vadd.f32 %v4592, 1e-12
      %v4601 = vadd.f32 %v4593, 1e-12
      %v4602 = vadd.f32 %v4594, 1e-12
      %v4603 = vadd.f32 %v4595, 1e-12
      %v4604 = vrsqrt.pop %v4596
      %v4605 = vmul.f32 %v4604, %v4596
      %v4606 = vmul.f32 %v4605, %v4604
      %v4607 = vmul.f32 0.5, %v4606
      %v4608 = vsub.f32 1.5, %v4607
      %v4609 = vmul.f32 %v4604, %v4608
      %vm4610 = vweird.f32 %v4596
      %vm4611 = vweird.f32 %v4604
      %vm4612 = vmor %vm4610, %vm4611
      %v4613 = vsel %vm4612, %v4604, %v4609
      %v4614 = vrsqrt.pop %v4597
      %v4615 = vmul.f32 %v4614, %v4597
      %v4616 = vmul.f32 %v4615, %v4614
      %v4617 = vmul.f32 0.5, %v4616
      %v4618 = vsub.f32 1.5, %v4617
      %v4619 = vmul.f32 %v4614, %v4618
      %vm4620 = vweird.f32 %v4597
      %vm4621 = vweird.f32 %v4614
      %vm4622 = vmor %vm4620, %vm4621
      %v4623 = vsel %vm4622, %v4614, %v4619
      %v4624 = vrsqrt.pop %v4598
      %v4625 = vmul.f32 %v4624, %v4598
      %v4626 = vmul.f32 %v4625, %v4624
      %v4627 = vmul.f32 0.5, %v4626
      %v4628 = vsub.f32 1.5, %v4627
      %v4629 = vmul.f32 %v4624, %v4628
      %vm4630 = vweird.f32 %v4598
      %vm4631 = vweird.f32 %v4624
      %vm4632 = vmor %vm4630, %vm4631
      %v4633 = vsel %vm4632, %v4624, %v4629
      %v4634 = vrsqrt.pop %v4599
      %v4635 = vmul.f32 %v4634, %v4599
      %v4636 = vmul.f32 %v4635, %v4634
      %v4637 = vmul.f32 0.5, %v4636
      %v4638 = vsub.f32 1.5, %v4637
      %v4639 = vmul.f32 %v4634, %v4638
      %vm4640 = vweird.f32 %v4599
      %vm4641 = vweird.f32 %v4634
      %vm4642 = vmor %vm4640, %vm4641
      %v4643 = vsel %vm4642, %v4634, %v4639
      %v4644 = vrsqrt.pop %v4600
      %v4645 = vmul.f32 %v4644, %v4600
      %v4646 = vmul.f32 %v4645, %v4644
      %v4647 = vmul.f32 0.5, %v4646
      %v4648 = vsub.f32 1.5, %v4647
      %v4649 = vmul.f32 %v4644, %v4648
      %vm4650 = vweird.f32 %v4600
      %vm4651 = vweird.f32 %v4644
      %vm4652 = vmor %vm4650, %vm4651
      %v4653 = vsel %vm4652, %v4644, %v4649
      %v4654 = vrsqrt.pop %v4601
      %v4655 = vmul.f32 %v4654, %v4601
      %v4656 = vmul.f32 %v4655, %v4654
      %v4657 = vmul.f32 0.5, %v4656
      %v4658 = vsub.f32 1.5, %v4657
      %v4659 = vmul.f32 %v4654, %v4658
      %vm4660 = vweird.f32 %v4601
      %vm4661 = vweird.f32 %v4654
      %vm4662 = vmor %vm4660, %vm4661
      %v4663 = vsel %vm4662, %v4654, %v4659
      %v4664 = vrsqrt.pop %v4602
      %v4665 = vmul.f32 %v4664, %v4602
      %v4666 = vmul.f32 %v4665, %v4664
      %v4667 = vmul.f32 0.5, %v4666
      %v4668 = vsub.f32 1.5, %v4667
      %v4669 = vmul.f32 %v4664, %v4668
      %vm4670 = vweird.f32 %v4602
      %vm4671 = vweird.f32 %v4664
      %vm4672 = vmor %vm4670, %vm4671
      %v4673 = vsel %vm4672, %v4664, %v4669
      %v4674 = vrsqrt.pop %v4603
      %v4675 = vmul.f32 %v4674, %v4603
      %v4676 = vmul.f32 %v4675, %v4674
      %v4677 = vmul.f32 0.5, %v4676
      %v4678 = vsub.f32 1.5, %v4677
      %v4679 = vmul.f32 %v4674, %v4678
      %vm4680 = vweird.f32 %v4603
      %vm4681 = vweird.f32 %v4674
      %vm4682 = vmor %vm4680, %vm4681
      %v4683 = vsel %vm4682, %v4674, %v4679
      %v4684 = vmul.f32 %v4566, %v4613
      %v4685 = vmul.f32 %v4569, %v4623
      %v4686 = vmul.f32 %v4572, %v4633
      %v4687 = vmul.f32 %v4575, %v4643
      %v4688 = vmul.f32 %v4578, %v4653
      %v4689 = vmul.f32 %v4581, %v4663
      %v4690 = vmul.f32 %v4584, %v4673
      %v4691 = vmul.f32 %v4587, %v4683
      %v4692 = vtanh.pop %v4684
      %v4693 = vtanh.pop %v4685
      %v4694 = vtanh.pop %v4686
      %v4695 = vtanh.pop %v4687
      %v4696 = vtanh.pop %v4688
      %v4697 = vtanh.pop %v4689
      %v4698 = vtanh.pop %v4690
      %v4699 = vtanh.pop %v4691
      %v4700 = vmul.f32 %v1513, %v4516
      %v4701 = vmul.f32 %v1513, %v4517
      %v4702 = vmul.f32 %v1513, %v4518
      %v4703 = vmul.f32 %v1513, %v4519
      %v4704 = vmul.f32 %v1513, %v4520
      %v4705 = vmul.f32 %v1513, %v4521
      %v4706 = vmul.f32 %v1513, %v4522
      %v4707 = vmul.f32 %v1513, %v4523
      %v4708 = vsel %vm403, %v4700, 0.0
      %4709 = vadd.xlane.f32.xlu0 %v4708
      %v4710 = vpop.xlane.xlu0 %4709
      %v4711 = vsel %vm403, %v4701, 0.0
      %4712 = vadd.xlane.f32.xlu0 %v4711
      %v4713 = vpop.xlane.xlu0 %4712
      %v4714 = vsel %vm403, %v4702, 0.0
      %4715 = vadd.xlane.f32.xlu0 %v4714
      %v4716 = vpop.xlane.xlu0 %4715
      %v4717 = vsel %vm403, %v4703, 0.0
      %4718 = vadd.xlane.f32.xlu0 %v4717
      %v4719 = vpop.xlane.xlu0 %4718
      %v4720 = vsel %vm403, %v4704, 0.0
      %4721 = vadd.xlane.f32.xlu0 %v4720
      %v4722 = vpop.xlane.xlu0 %4721
      %v4723 = vsel %vm403, %v4705, 0.0
      %4724 = vadd.xlane.f32.xlu0 %v4723
      %v4725 = vpop.xlane.xlu0 %4724
      %v4726 = vsel %vm403, %v4706, 0.0
      %4727 = vadd.xlane.f32.xlu0 %v4726
      %v4728 = vpop.xlane.xlu0 %4727
      %v4729 = vsel %vm403, %v4707, 0.0
      %4730 = vadd.xlane.f32.xlu0 %v4729
      %v4731 = vpop.xlane.xlu0 %4730
      %v4732 = vmul.f32 %v1525, %v4534
      %v4733 = vmul.f32 %v1525, %v4537
      %v4734 = vmul.f32 %v1525, %v4540
      %v4735 = vmul.f32 %v1525, %v4543
      %v4736 = vmul.f32 %v1525, %v4546
      %v4737 = vmul.f32 %v1525, %v4549
      %v4738 = vmul.f32 %v1525, %v4552
      %v4739 = vmul.f32 %v1525, %v4555
      %v4740 = vadd.f32 %v4732, 1e-12
      %v4741 = vadd.f32 %v4733, 1e-12
      %v4742 = vadd.f32 %v4734, 1e-12
      %v4743 = vadd.f32 %v4735, 1e-12
      %v4744 = vadd.f32 %v4736, 1e-12
      %v4745 = vadd.f32 %v4737, 1e-12
      %v4746 = vadd.f32 %v4738, 1e-12
      %v4747 = vadd.f32 %v4739, 1e-12
      %v4748 = vrsqrt.pop %v4740
      %v4749 = vmul.f32 %v4748, %v4740
      %v4750 = vmul.f32 %v4749, %v4748
      %v4751 = vmul.f32 0.5, %v4750
      %v4752 = vsub.f32 1.5, %v4751
      %v4753 = vmul.f32 %v4748, %v4752
      %vm4754 = vweird.f32 %v4740
      %vm4755 = vweird.f32 %v4748
      %vm4756 = vmor %vm4754, %vm4755
      %v4757 = vsel %vm4756, %v4748, %v4753
      %v4758 = vrsqrt.pop %v4741
      %v4759 = vmul.f32 %v4758, %v4741
      %v4760 = vmul.f32 %v4759, %v4758
      %v4761 = vmul.f32 0.5, %v4760
      %v4762 = vsub.f32 1.5, %v4761
      %v4763 = vmul.f32 %v4758, %v4762
      %vm4764 = vweird.f32 %v4741
      %vm4765 = vweird.f32 %v4758
      %vm4766 = vmor %vm4764, %vm4765
      %v4767 = vsel %vm4766, %v4758, %v4763
      %v4768 = vrsqrt.pop %v4742
      %v4769 = vmul.f32 %v4768, %v4742
      %v4770 = vmul.f32 %v4769, %v4768
      %v4771 = vmul.f32 0.5, %v4770
      %v4772 = vsub.f32 1.5, %v4771
      %v4773 = vmul.f32 %v4768, %v4772
      %vm4774 = vweird.f32 %v4742
      %vm4775 = vweird.f32 %v4768
      %vm4776 = vmor %vm4774, %vm4775
      %v4777 = vsel %vm4776, %v4768, %v4773
      %v4778 = vrsqrt.pop %v4743
      %v4779 = vmul.f32 %v4778, %v4743
      %v4780 = vmul.f32 %v4779, %v4778
      %v4781 = vmul.f32 0.5, %v4780
      %v4782 = vsub.f32 1.5, %v4781
      %v4783 = vmul.f32 %v4778, %v4782
      %vm4784 = vweird.f32 %v4743
      %vm4785 = vweird.f32 %v4778
      %vm4786 = vmor %vm4784, %vm4785
      %v4787 = vsel %vm4786, %v4778, %v4783
      %v4788 = vrsqrt.pop %v4744
      %v4789 = vmul.f32 %v4788, %v4744
      %v4790 = vmul.f32 %v4789, %v4788
      %v4791 = vmul.f32 0.5, %v4790
      %v4792 = vsub.f32 1.5, %v4791
      %v4793 = vmul.f32 %v4788, %v4792
      %vm4794 = vweird.f32 %v4744
      %vm4795 = vweird.f32 %v4788
      %vm4796 = vmor %vm4794, %vm4795
      %v4797 = vsel %vm4796, %v4788, %v4793
      %v4798 = vrsqrt.pop %v4745
      %v4799 = vmul.f32 %v4798, %v4745
      %v4800 = vmul.f32 %v4799, %v4798
      %v4801 = vmul.f32 0.5, %v4800
      %v4802 = vsub.f32 1.5, %v4801
      %v4803 = vmul.f32 %v4798, %v4802
      %vm4804 = vweird.f32 %v4745
      %vm4805 = vweird.f32 %v4798
      %vm4806 = vmor %vm4804, %vm4805
      %v4807 = vsel %vm4806, %v4798, %v4803
      %v4808 = vrsqrt.pop %v4746
      %v4809 = vmul.f32 %v4808, %v4746
      %v4810 = vmul.f32 %v4809, %v4808
      %v4811 = vmul.f32 0.5, %v4810
      %v4812 = vsub.f32 1.5, %v4811
      %v4813 = vmul.f32 %v4808, %v4812
      %vm4814 = vweird.f32 %v4746
      %vm4815 = vweird.f32 %v4808
      %vm4816 = vmor %vm4814, %vm4815
      %v4817 = vsel %vm4816, %v4808, %v4813
      %v4818 = vrsqrt.pop %v4747
      %v4819 = vmul.f32 %v4818, %v4747
      %v4820 = vmul.f32 %v4819, %v4818
      %v4821 = vmul.f32 0.5, %v4820
      %v4822 = vsub.f32 1.5, %v4821
      %v4823 = vmul.f32 %v4818, %v4822
      %vm4824 = vweird.f32 %v4747
      %vm4825 = vweird.f32 %v4818
      %vm4826 = vmor %vm4824, %vm4825
      %v4827 = vsel %vm4826, %v4818, %v4823
      %v4828 = vmul.f32 %v4710, %v4757
      %v4829 = vmul.f32 %v4713, %v4767
      %v4830 = vmul.f32 %v4716, %v4777
      %v4831 = vmul.f32 %v4719, %v4787
      %v4832 = vmul.f32 %v4722, %v4797
      %v4833 = vmul.f32 %v4725, %v4807
      %v4834 = vmul.f32 %v4728, %v4817
      %v4835 = vmul.f32 %v4731, %v4827
      %v4836 = vtanh.pop %v4828
      %v4837 = vtanh.pop %v4829
      %v4838 = vtanh.pop %v4830
      %v4839 = vtanh.pop %v4831
      %v4840 = vtanh.pop %v4832
      %v4841 = vtanh.pop %v4833
      %v4842 = vtanh.pop %v4834
      %v4843 = vtanh.pop %v4835
      %v4844 = vmul.f32 %v1514, %v4516
      %v4845 = vmul.f32 %v1514, %v4517
      %v4846 = vmul.f32 %v1514, %v4518
      %v4847 = vmul.f32 %v1514, %v4519
      %v4848 = vmul.f32 %v1514, %v4520
      %v4849 = vmul.f32 %v1514, %v4521
      %v4850 = vmul.f32 %v1514, %v4522
      %v4851 = vmul.f32 %v1514, %v4523
      %v4852 = vsel %vm403, %v4844, 0.0
      %4853 = vadd.xlane.f32.xlu0 %v4852
      %v4854 = vpop.xlane.xlu0 %4853
      %v4855 = vsel %vm403, %v4845, 0.0
      %4856 = vadd.xlane.f32.xlu0 %v4855
      %v4857 = vpop.xlane.xlu0 %4856
      %v4858 = vsel %vm403, %v4846, 0.0
      %4859 = vadd.xlane.f32.xlu0 %v4858
      %v4860 = vpop.xlane.xlu0 %4859
      %v4861 = vsel %vm403, %v4847, 0.0
      %4862 = vadd.xlane.f32.xlu0 %v4861
      %v4863 = vpop.xlane.xlu0 %4862
      %v4864 = vsel %vm403, %v4848, 0.0
      %4865 = vadd.xlane.f32.xlu0 %v4864
      %v4866 = vpop.xlane.xlu0 %4865
      %v4867 = vsel %vm403, %v4849, 0.0
      %4868 = vadd.xlane.f32.xlu0 %v4867
      %v4869 = vpop.xlane.xlu0 %4868
      %v4870 = vsel %vm403, %v4850, 0.0
      %4871 = vadd.xlane.f32.xlu0 %v4870
      %v4872 = vpop.xlane.xlu0 %4871
      %v4873 = vsel %vm403, %v4851, 0.0
      %4874 = vadd.xlane.f32.xlu0 %v4873
      %v4875 = vpop.xlane.xlu0 %4874
      %v4876 = vmul.f32 %v1528, %v4534
      %v4877 = vmul.f32 %v1528, %v4537
      %v4878 = vmul.f32 %v1528, %v4540
      %v4879 = vmul.f32 %v1528, %v4543
      %v4880 = vmul.f32 %v1528, %v4546
      %v4881 = vmul.f32 %v1528, %v4549
      %v4882 = vmul.f32 %v1528, %v4552
      %v4883 = vmul.f32 %v1528, %v4555
      %v4884 = vadd.f32 %v4876, 1e-12
      %v4885 = vadd.f32 %v4877, 1e-12
      %v4886 = vadd.f32 %v4878, 1e-12
      %v4887 = vadd.f32 %v4879, 1e-12
      %v4888 = vadd.f32 %v4880, 1e-12
      %v4889 = vadd.f32 %v4881, 1e-12
      %v4890 = vadd.f32 %v4882, 1e-12
      %v4891 = vadd.f32 %v4883, 1e-12
      %v4892 = vrsqrt.pop %v4884
      %v4893 = vmul.f32 %v4892, %v4884
      %v4894 = vmul.f32 %v4893, %v4892
      %v4895 = vmul.f32 0.5, %v4894
      %v4896 = vsub.f32 1.5, %v4895
      %v4897 = vmul.f32 %v4892, %v4896
      %vm4898 = vweird.f32 %v4884
      %vm4899 = vweird.f32 %v4892
      %vm4900 = vmor %vm4898, %vm4899
      %v4901 = vsel %vm4900, %v4892, %v4897
      %v4902 = vrsqrt.pop %v4885
      %v4903 = vmul.f32 %v4902, %v4885
      %v4904 = vmul.f32 %v4903, %v4902
      %v4905 = vmul.f32 0.5, %v4904
      %v4906 = vsub.f32 1.5, %v4905
      %v4907 = vmul.f32 %v4902, %v4906
      %vm4908 = vweird.f32 %v4885
      %vm4909 = vweird.f32 %v4902
      %vm4910 = vmor %vm4908, %vm4909
      %v4911 = vsel %vm4910, %v4902, %v4907
      %v4912 = vrsqrt.pop %v4886
      %v4913 = vmul.f32 %v4912, %v4886
      %v4914 = vmul.f32 %v4913, %v4912
      %v4915 = vmul.f32 0.5, %v4914
      %v4916 = vsub.f32 1.5, %v4915
      %v4917 = vmul.f32 %v4912, %v4916
      %vm4918 = vweird.f32 %v4886
      %vm4919 = vweird.f32 %v4912
      %vm4920 = vmor %vm4918, %vm4919
      %v4921 = vsel %vm4920, %v4912, %v4917
      %v4922 = vrsqrt.pop %v4887
      %v4923 = vmul.f32 %v4922, %v4887
      %v4924 = vmul.f32 %v4923, %v4922
      %v4925 = vmul.f32 0.5, %v4924
      %v4926 = vsub.f32 1.5, %v4925
      %v4927 = vmul.f32 %v4922, %v4926
      %vm4928 = vweird.f32 %v4887
      %vm4929 = vweird.f32 %v4922
      %vm4930 = vmor %vm4928, %vm4929
      %v4931 = vsel %vm4930, %v4922, %v4927
      %v4932 = vrsqrt.pop %v4888
      %v4933 = vmul.f32 %v4932, %v4888
      %v4934 = vmul.f32 %v4933, %v4932
      %v4935 = vmul.f32 0.5, %v4934
      %v4936 = vsub.f32 1.5, %v4935
      %v4937 = vmul.f32 %v4932, %v4936
      %vm4938 = vweird.f32 %v4888
      %vm4939 = vweird.f32 %v4932
      %vm4940 = vmor %vm4938, %vm4939
      %v4941 = vsel %vm4940, %v4932, %v4937
      %v4942 = vrsqrt.pop %v4889
      %v4943 = vmul.f32 %v4942, %v4889
      %v4944 = vmul.f32 %v4943, %v4942
      %v4945 = vmul.f32 0.5, %v4944
      %v4946 = vsub.f32 1.5, %v4945
      %v4947 = vmul.f32 %v4942, %v4946
      %vm4948 = vweird.f32 %v4889
      %vm4949 = vweird.f32 %v4942
      %vm4950 = vmor %vm4948, %vm4949
      %v4951 = vsel %vm4950, %v4942, %v4947
      %v4952 = vrsqrt.pop %v4890
      %v4953 = vmul.f32 %v4952, %v4890
      %v4954 = vmul.f32 %v4953, %v4952
      %v4955 = vmul.f32 0.5, %v4954
      %v4956 = vsub.f32 1.5, %v4955
      %v4957 = vmul.f32 %v4952, %v4956
      %vm4958 = vweird.f32 %v4890
      %vm4959 = vweird.f32 %v4952
      %vm4960 = vmor %vm4958, %vm4959
      %v4961 = vsel %vm4960, %v4952, %v4957
      %v4962 = vrsqrt.pop %v4891
      %v4963 = vmul.f32 %v4962, %v4891
      %v4964 = vmul.f32 %v4963, %v4962
      %v4965 = vmul.f32 0.5, %v4964
      %v4966 = vsub.f32 1.5, %v4965
      %v4967 = vmul.f32 %v4962, %v4966
      %vm4968 = vweird.f32 %v4891
      %vm4969 = vweird.f32 %v4962
      %vm4970 = vmor %vm4968, %vm4969
      %v4971 = vsel %vm4970, %v4962, %v4967
      %v4972 = vmul.f32 %v4854, %v4901
      %v4973 = vmul.f32 %v4857, %v4911
      %v4974 = vmul.f32 %v4860, %v4921
      %v4975 = vmul.f32 %v4863, %v4931
      %v4976 = vmul.f32 %v4866, %v4941
      %v4977 = vmul.f32 %v4869, %v4951
      %v4978 = vmul.f32 %v4872, %v4961
      %v4979 = vmul.f32 %v4875, %v4971
      %v4980 = vtanh.pop %v4972
      %v4981 = vtanh.pop %v4973
      %v4982 = vtanh.pop %v4974
      %v4983 = vtanh.pop %v4975
      %v4984 = vtanh.pop %v4976
      %v4985 = vtanh.pop %v4977
      %v4986 = vtanh.pop %v4978
      %v4987 = vtanh.pop %v4979
      %v4988 = vmul.f32 %v1515, %v4516
      %v4989 = vmul.f32 %v1515, %v4517
      %v4990 = vmul.f32 %v1515, %v4518
      %v4991 = vmul.f32 %v1515, %v4519
      %v4992 = vmul.f32 %v1515, %v4520
      %v4993 = vmul.f32 %v1515, %v4521
      %v4994 = vmul.f32 %v1515, %v4522
      %v4995 = vmul.f32 %v1515, %v4523
      %v4996 = vsel %vm403, %v4988, 0.0
      %4997 = vadd.xlane.f32.xlu0 %v4996
      %v4998 = vpop.xlane.xlu0 %4997
      %v4999 = vsel %vm403, %v4989, 0.0
      %5000 = vadd.xlane.f32.xlu0 %v4999
      %v5001 = vpop.xlane.xlu0 %5000
      %v5002 = vsel %vm403, %v4990, 0.0
      %5003 = vadd.xlane.f32.xlu0 %v5002
      %v5004 = vpop.xlane.xlu0 %5003
      %v5005 = vsel %vm403, %v4991, 0.0
      %5006 = vadd.xlane.f32.xlu0 %v5005
      %v5007 = vpop.xlane.xlu0 %5006
      %v5008 = vsel %vm403, %v4992, 0.0
      %5009 = vadd.xlane.f32.xlu0 %v5008
      %v5010 = vpop.xlane.xlu0 %5009
      %v5011 = vsel %vm403, %v4993, 0.0
      %5012 = vadd.xlane.f32.xlu0 %v5011
      %v5013 = vpop.xlane.xlu0 %5012
      %v5014 = vsel %vm403, %v4994, 0.0
      %5015 = vadd.xlane.f32.xlu0 %v5014
      %v5016 = vpop.xlane.xlu0 %5015
      %v5017 = vsel %vm403, %v4995, 0.0
      %5018 = vadd.xlane.f32.xlu0 %v5017
      %v5019 = vpop.xlane.xlu0 %5018
      %v5020 = vmul.f32 %v1531, %v4534
      %v5021 = vmul.f32 %v1531, %v4537
      %v5022 = vmul.f32 %v1531, %v4540
      %v5023 = vmul.f32 %v1531, %v4543
      %v5024 = vmul.f32 %v1531, %v4546
      %v5025 = vmul.f32 %v1531, %v4549
      %v5026 = vmul.f32 %v1531, %v4552
      %v5027 = vmul.f32 %v1531, %v4555
      %v5028 = vadd.f32 %v5020, 1e-12
      %v5029 = vadd.f32 %v5021, 1e-12
      %v5030 = vadd.f32 %v5022, 1e-12
      %v5031 = vadd.f32 %v5023, 1e-12
      %v5032 = vadd.f32 %v5024, 1e-12
      %v5033 = vadd.f32 %v5025, 1e-12
      %v5034 = vadd.f32 %v5026, 1e-12
      %v5035 = vadd.f32 %v5027, 1e-12
      %v5036 = vrsqrt.pop %v5028
      %v5037 = vmul.f32 %v5036, %v5028
      %v5038 = vmul.f32 %v5037, %v5036
      %v5039 = vmul.f32 0.5, %v5038
      %v5040 = vsub.f32 1.5, %v5039
      %v5041 = vmul.f32 %v5036, %v5040
      %vm5042 = vweird.f32 %v5028
      %vm5043 = vweird.f32 %v5036
      %vm5044 = vmor %vm5042, %vm5043
      %v5045 = vsel %vm5044, %v5036, %v5041
      %v5046 = vrsqrt.pop %v5029
      %v5047 = vmul.f32 %v5046, %v5029
      %v5048 = vmul.f32 %v5047, %v5046
      %v5049 = vmul.f32 0.5, %v5048
      %v5050 = vsub.f32 1.5, %v5049
      %v5051 = vmul.f32 %v5046, %v5050
      %vm5052 = vweird.f32 %v5029
      %vm5053 = vweird.f32 %v5046
      %vm5054 = vmor %vm5052, %vm5053
      %v5055 = vsel %vm5054, %v5046, %v5051
      %v5056 = vrsqrt.pop %v5030
      %v5057 = vmul.f32 %v5056, %v5030
      %v5058 = vmul.f32 %v5057, %v5056
      %v5059 = vmul.f32 0.5, %v5058
      %v5060 = vsub.f32 1.5, %v5059
      %v5061 = vmul.f32 %v5056, %v5060
      %vm5062 = vweird.f32 %v5030
      %vm5063 = vweird.f32 %v5056
      %vm5064 = vmor %vm5062, %vm5063
      %v5065 = vsel %vm5064, %v5056, %v5061
      %v5066 = vrsqrt.pop %v5031
      %v5067 = vmul.f32 %v5066, %v5031
      %v5068 = vmul.f32 %v5067, %v5066
      %v5069 = vmul.f32 0.5, %v5068
      %v5070 = vsub.f32 1.5, %v5069
      %v5071 = vmul.f32 %v5066, %v5070
      %vm5072 = vweird.f32 %v5031
      %vm5073 = vweird.f32 %v5066
      %vm5074 = vmor %vm5072, %vm5073
      %v5075 = vsel %vm5074, %v5066, %v5071
      %v5076 = vrsqrt.pop %v5032
      %v5077 = vmul.f32 %v5076, %v5032
      %v5078 = vmul.f32 %v5077, %v5076
      %v5079 = vmul.f32 0.5, %v5078
      %v5080 = vsub.f32 1.5, %v5079
      %v5081 = vmul.f32 %v5076, %v5080
      %vm5082 = vweird.f32 %v5032
      %vm5083 = vweird.f32 %v5076
      %vm5084 = vmor %vm5082, %vm5083
      %v5085 = vsel %vm5084, %v5076, %v5081
      %v5086 = vrsqrt.pop %v5033
      %v5087 = vmul.f32 %v5086, %v5033
      %v5088 = vmul.f32 %v5087, %v5086
      %v5089 = vmul.f32 0.5, %v5088
      %v5090 = vsub.f32 1.5, %v5089
      %v5091 = vmul.f32 %v5086, %v5090
      %vm5092 = vweird.f32 %v5033
      %vm5093 = vweird.f32 %v5086
      %vm5094 = vmor %vm5092, %vm5093
      %v5095 = vsel %vm5094, %v5086, %v5091
      %v5096 = vrsqrt.pop %v5034
      %v5097 = vmul.f32 %v5096, %v5034
      %v5098 = vmul.f32 %v5097, %v5096
      %v5099 = vmul.f32 0.5, %v5098
      %v5100 = vsub.f32 1.5, %v5099
      %v5101 = vmul.f32 %v5096, %v5100
      %vm5102 = vweird.f32 %v5034
      %vm5103 = vweird.f32 %v5096
      %vm5104 = vmor %vm5102, %vm5103
      %v5105 = vsel %vm5104, %v5096, %v5101
      %v5106 = vrsqrt.pop %v5035
      %v5107 = vmul.f32 %v5106, %v5035
      %v5108 = vmul.f32 %v5107, %v5106
      %v5109 = vmul.f32 0.5, %v5108
      %v5110 = vsub.f32 1.5, %v5109
      %v5111 = vmul.f32 %v5106, %v5110
      %vm5112 = vweird.f32 %v5035
      %vm5113 = vweird.f32 %v5106
      %vm5114 = vmor %vm5112, %vm5113
      %v5115 = vsel %vm5114, %v5106, %v5111
      %v5116 = vmul.f32 %v4998, %v5045
      %v5117 = vmul.f32 %v5001, %v5055
      %v5118 = vmul.f32 %v5004, %v5065
      %v5119 = vmul.f32 %v5007, %v5075
      %v5120 = vmul.f32 %v5010, %v5085
      %v5121 = vmul.f32 %v5013, %v5095
      %v5122 = vmul.f32 %v5016, %v5105
      %v5123 = vmul.f32 %v5019, %v5115
      %v5124 = vtanh.pop %v5116
      %v5125 = vtanh.pop %v5117
      %v5126 = vtanh.pop %v5118
      %v5127 = vtanh.pop %v5119
      %v5128 = vtanh.pop %v5120
      %v5129 = vtanh.pop %v5121
      %v5130 = vtanh.pop %v5122
      %v5131 = vtanh.pop %v5123
      %v5140 = vperm.slane %v4412, %v774
      %v5141 = vperm.slane %v4413, %v774
      %v5142 = vperm.slane %v4414, %v774
      %v5143 = vperm.slane %v4415, %v774
      %v5144 = vperm.slane %v4416, %v774
      %v5145 = vperm.slane %v4417, %v774
      %v5146 = vperm.slane %v4418, %v774
      %v5147 = vperm.slane %v4419, %v774
      %v5148 = vsel %vm779, %v5141, %v5140
      %v5149 = vsel %vm781, %v5142, %v5148
      %v5150 = vsel %vm783, %v5143, %v5149
      %v5151 = vsel %vm3303, %v5144, %v5150
      %v5152 = vsel %vm3305, %v5145, %v5151
      %v5153 = vsel %vm3307, %v5146, %v5152
      %v5154 = vsel %vm3309, %v5147, %v5153
      %v5156 = vsel %vm532, %v5154, -inf
      %5157 = vmax.xlane.f32.xlu0 %v5156
      %v5158 = vpop.xlane.xlu0 %5157
      %v5160 = vperm.slane %v5158, 0
      %v5161 = vperm.slane %v5158, 1
      %v5162 = vperm.slane %v5158, 2
      %v5163 = vperm.slane %v5158, 3
      %v5164 = vperm.slane %v5158, 4
      %v5165 = vperm.slane %v5158, 5
      %v5166 = vperm.slane %v5158, 6
      %v5167 = vperm.slane %v5158, 7
      %v5176 = vsub.f32 %v4412, %v5160
      %v5177 = vsub.f32 %v4413, %v5161
      %v5178 = vsub.f32 %v4414, %v5162
      %v5179 = vsub.f32 %v4415, %v5163
      %v5180 = vsub.f32 %v4416, %v5164
      %v5181 = vsub.f32 %v4417, %v5165
      %v5182 = vsub.f32 %v4418, %v5166
      %v5183 = vsub.f32 %v4419, %v5167
      %v5184 = vmul.f32 %v5176, 1.442695
      %v5185 = vpow.pop %v5184
      %v5186 = vmul.f32 %v5177, 1.442695
      %v5187 = vpow.pop %v5186
      %v5188 = vmul.f32 %v5178, 1.442695
      %v5189 = vpow.pop %v5188
      %v5190 = vmul.f32 %v5179, 1.442695
      %v5191 = vpow.pop %v5190
      %v5192 = vmul.f32 %v5180, 1.442695
      %v5193 = vpow.pop %v5192
      %v5194 = vmul.f32 %v5181, 1.442695
      %v5195 = vpow.pop %v5194
      %v5196 = vmul.f32 %v5182, 1.442695
      %v5197 = vpow.pop %v5196
      %v5198 = vmul.f32 %v5183, 1.442695
      %v5199 = vpow.pop %v5198
      %5208 = vset.pattern.permute.xlu0 0
      %5209 = vperm.xlu0 %5208, %v5185
      %v5210 = vpop.permute.xlu0 %5209
      %5211 = vset.pattern.permute.xlu0 0
      %5212 = vperm.xlu0 %5211, %v5187
      %v5213 = vpop.permute.xlu0 %5212
      %5214 = vset.pattern.permute.xlu0 0
      %5215 = vperm.xlu0 %5214, %v5189
      %v5216 = vpop.permute.xlu0 %5215
      %5217 = vset.pattern.permute.xlu0 0
      %5218 = vperm.xlu0 %5217, %v5191
      %v5219 = vpop.permute.xlu0 %5218
      %5220 = vset.pattern.permute.xlu0 0
      %5221 = vperm.xlu0 %5220, %v5193
      %v5222 = vpop.permute.xlu0 %5221
      %5223 = vset.pattern.permute.xlu0 0
      %5224 = vperm.xlu0 %5223, %v5195
      %v5225 = vpop.permute.xlu0 %5224
      %5226 = vset.pattern.permute.xlu0 0
      %5227 = vperm.xlu0 %5226, %v5197
      %v5228 = vpop.permute.xlu0 %5227
      %5229 = vset.pattern.permute.xlu0 0
      %5230 = vperm.xlu0 %5229, %v5199
      %v5231 = vpop.permute.xlu0 %5230
      %v5232 = vperm.slane %v5210, %v774
      %v5233 = vperm.slane %v5213, %v774
      %v5234 = vperm.slane %v5216, %v774
      %v5235 = vperm.slane %v5219, %v774
      %v5236 = vperm.slane %v5222, %v774
      %v5237 = vperm.slane %v5225, %v774
      %v5238 = vperm.slane %v5228, %v774
      %v5239 = vperm.slane %v5231, %v774
      %v5240 = vsel %vm779, %v5233, %v5232
      %v5241 = vsel %vm781, %v5234, %v5240
      %v5242 = vsel %vm783, %v5235, %v5241
      %v5243 = vsel %vm3303, %v5236, %v5242
      %v5244 = vsel %vm3305, %v5237, %v5243
      %v5245 = vsel %vm3307, %v5238, %v5244
      %v5246 = vsel %vm3309, %v5239, %v5245
      %v5248 = vsel %vm532, %v5246, 0.0
      %5249 = vadd.xlane.f32.xlu0 %v5248
      %v5250 = vpop.xlane.xlu0 %5249
      %v5251 = vrcp.pop %v5250
      %v5253 = vperm.slane %v5251, 0
      %v5254 = vperm.slane %v5251, 1
      %v5255 = vperm.slane %v5251, 2
      %v5256 = vperm.slane %v5251, 3
      %v5257 = vperm.slane %v5251, 4
      %v5258 = vperm.slane %v5251, 5
      %v5259 = vperm.slane %v5251, 6
      %v5260 = vperm.slane %v5251, 7
      %v5269 = vmul.f32 %v5185, %v5253
      %v5270 = vmul.f32 %v5187, %v5254
      %v5271 = vmul.f32 %v5189, %v5255
      %v5272 = vmul.f32 %v5191, %v5256
      %v5273 = vmul.f32 %v5193, %v5257
      %v5274 = vmul.f32 %v5195, %v5258
      %v5275 = vmul.f32 %v5197, %v5259
      %v5276 = vmul.f32 %v5199, %v5260
      %v5285 = vperm.slane %v4428, %v774
      %v5286 = vperm.slane %v4429, %v774
      %v5287 = vperm.slane %v4430, %v774
      %v5288 = vperm.slane %v4431, %v774
      %v5289 = vperm.slane %v4432, %v774
      %v5290 = vperm.slane %v4433, %v774
      %v5291 = vperm.slane %v4434, %v774
      %v5292 = vperm.slane %v4435, %v774
      %v5293 = vsel %vm779, %v5286, %v5285
      %v5294 = vsel %vm781, %v5287, %v5293
      %v5295 = vsel %vm783, %v5288, %v5294
      %v5296 = vsel %vm3303, %v5289, %v5295
      %v5297 = vsel %vm3305, %v5290, %v5296
      %v5298 = vsel %vm3307, %v5291, %v5297
      %v5299 = vsel %vm3309, %v5292, %v5298
      %v5301 = vsel %vm532, %v5299, -inf
      %5302 = vmax.xlane.f32.xlu0 %v5301
      %v5303 = vpop.xlane.xlu0 %5302
      %v5305 = vperm.slane %v5303, 0
      %v5306 = vperm.slane %v5303, 1
      %v5307 = vperm.slane %v5303, 2
      %v5308 = vperm.slane %v5303, 3
      %v5309 = vperm.slane %v5303, 4
      %v5310 = vperm.slane %v5303, 5
      %v5311 = vperm.slane %v5303, 6
      %v5312 = vperm.slane %v5303, 7
      %v5321 = vsub.f32 %v4428, %v5305
      %v5322 = vsub.f32 %v4429, %v5306
      %v5323 = vsub.f32 %v4430, %v5307
      %v5324 = vsub.f32 %v4431, %v5308
      %v5325 = vsub.f32 %v4432, %v5309
      %v5326 = vsub.f32 %v4433, %v5310
      %v5327 = vsub.f32 %v4434, %v5311
      %v5328 = vsub.f32 %v4435, %v5312
      %v5329 = vmul.f32 %v5321, 1.442695
      %v5330 = vpow.pop %v5329
      %v5331 = vmul.f32 %v5322, 1.442695
      %v5332 = vpow.pop %v5331
      %v5333 = vmul.f32 %v5323, 1.442695
      %v5334 = vpow.pop %v5333
      %v5335 = vmul.f32 %v5324, 1.442695
      %v5336 = vpow.pop %v5335
      %v5337 = vmul.f32 %v5325, 1.442695
      %v5338 = vpow.pop %v5337
      %v5339 = vmul.f32 %v5326, 1.442695
      %v5340 = vpow.pop %v5339
      %v5341 = vmul.f32 %v5327, 1.442695
      %v5342 = vpow.pop %v5341
      %v5343 = vmul.f32 %v5328, 1.442695
      %v5344 = vpow.pop %v5343
      %5353 = vset.pattern.permute.xlu0 0
      %5354 = vperm.xlu0 %5353, %v5330
      %v5355 = vpop.permute.xlu0 %5354
      %5356 = vset.pattern.permute.xlu0 0
      %5357 = vperm.xlu0 %5356, %v5332
      %v5358 = vpop.permute.xlu0 %5357
      %5359 = vset.pattern.permute.xlu0 0
      %5360 = vperm.xlu0 %5359, %v5334
      %v5361 = vpop.permute.xlu0 %5360
      %5362 = vset.pattern.permute.xlu0 0
      %5363 = vperm.xlu0 %5362, %v5336
      %v5364 = vpop.permute.xlu0 %5363
      %5365 = vset.pattern.permute.xlu0 0
      %5366 = vperm.xlu0 %5365, %v5338
      %v5367 = vpop.permute.xlu0 %5366
      %5368 = vset.pattern.permute.xlu0 0
      %5369 = vperm.xlu0 %5368, %v5340
      %v5370 = vpop.permute.xlu0 %5369
      %5371 = vset.pattern.permute.xlu0 0
      %5372 = vperm.xlu0 %5371, %v5342
      %v5373 = vpop.permute.xlu0 %5372
      %5374 = vset.pattern.permute.xlu0 0
      %5375 = vperm.xlu0 %5374, %v5344
      %v5376 = vpop.permute.xlu0 %5375
      %v5377 = vperm.slane %v5355, %v774
      %v5378 = vperm.slane %v5358, %v774
      %v5379 = vperm.slane %v5361, %v774
      %v5380 = vperm.slane %v5364, %v774
      %v5381 = vperm.slane %v5367, %v774
      %v5382 = vperm.slane %v5370, %v774
      %v5383 = vperm.slane %v5373, %v774
      %v5384 = vperm.slane %v5376, %v774
      %v5385 = vsel %vm779, %v5378, %v5377
      %v5386 = vsel %vm781, %v5379, %v5385
      %v5387 = vsel %vm783, %v5380, %v5386
      %v5388 = vsel %vm3303, %v5381, %v5387
      %v5389 = vsel %vm3305, %v5382, %v5388
      %v5390 = vsel %vm3307, %v5383, %v5389
      %v5391 = vsel %vm3309, %v5384, %v5390
      %v5393 = vsel %vm532, %v5391, 0.0
      %5394 = vadd.xlane.f32.xlu0 %v5393
      %v5395 = vpop.xlane.xlu0 %5394
      %v5396 = vrcp.pop %v5395
      %v5398 = vperm.slane %v5396, 0
      %v5399 = vperm.slane %v5396, 1
      %v5400 = vperm.slane %v5396, 2
      %v5401 = vperm.slane %v5396, 3
      %v5402 = vperm.slane %v5396, 4
      %v5403 = vperm.slane %v5396, 5
      %v5404 = vperm.slane %v5396, 6
      %v5405 = vperm.slane %v5396, 7
      %v5414 = vmul.f32 %v5330, %v5398
      %v5415 = vmul.f32 %v5332, %v5399
      %v5416 = vmul.f32 %v5334, %v5400
      %v5417 = vmul.f32 %v5336, %v5401
      %v5418 = vmul.f32 %v5338, %v5402
      %v5419 = vmul.f32 %v5340, %v5403
      %v5420 = vmul.f32 %v5342, %v5404
      %v5421 = vmul.f32 %v5344, %v5405
      %v5430 = vperm.slane %v4444, %v774
      %v5431 = vperm.slane %v4445, %v774
      %v5432 = vperm.slane %v4446, %v774
      %v5433 = vperm.slane %v4447, %v774
      %v5434 = vperm.slane %v4448, %v774
      %v5435 = vperm.slane %v4449, %v774
      %v5436 = vperm.slane %v4450, %v774
      %v5437 = vperm.slane %v4451, %v774
      %v5438 = vsel %vm779, %v5431, %v5430
      %v5439 = vsel %vm781, %v5432, %v5438
      %v5440 = vsel %vm783, %v5433, %v5439
      %v5441 = vsel %vm3303, %v5434, %v5440
      %v5442 = vsel %vm3305, %v5435, %v5441
      %v5443 = vsel %vm3307, %v5436, %v5442
      %v5444 = vsel %vm3309, %v5437, %v5443
      %v5446 = vsel %vm532, %v5444, -inf
      %5447 = vmax.xlane.f32.xlu0 %v5446
      %v5448 = vpop.xlane.xlu0 %5447
      %v5450 = vperm.slane %v5448, 0
      %v5451 = vperm.slane %v5448, 1
      %v5452 = vperm.slane %v5448, 2
      %v5453 = vperm.slane %v5448, 3
      %v5454 = vperm.slane %v5448, 4
      %v5455 = vperm.slane %v5448, 5
      %v5456 = vperm.slane %v5448, 6
      %v5457 = vperm.slane %v5448, 7
      %v5466 = vsub.f32 %v4444, %v5450
      %v5467 = vsub.f32 %v4445, %v5451
      %v5468 = vsub.f32 %v4446, %v5452
      %v5469 = vsub.f32 %v4447, %v5453
      %v5470 = vsub.f32 %v4448, %v5454
      %v5471 = vsub.f32 %v4449, %v5455
      %v5472 = vsub.f32 %v4450, %v5456
      %v5473 = vsub.f32 %v4451, %v5457
      %v5474 = vmul.f32 %v5466, 1.442695
      %v5475 = vpow.pop %v5474
      %v5476 = vmul.f32 %v5467, 1.442695
      %v5477 = vpow.pop %v5476
      %v5478 = vmul.f32 %v5468, 1.442695
      %v5479 = vpow.pop %v5478
      %v5480 = vmul.f32 %v5469, 1.442695
      %v5481 = vpow.pop %v5480
      %v5482 = vmul.f32 %v5470, 1.442695
      %v5483 = vpow.pop %v5482
      %v5484 = vmul.f32 %v5471, 1.442695
      %v5485 = vpow.pop %v5484
      %v5486 = vmul.f32 %v5472, 1.442695
      %v5487 = vpow.pop %v5486
      %v5488 = vmul.f32 %v5473, 1.442695
      %v5489 = vpow.pop %v5488
      %5498 = vset.pattern.permute.xlu0 0
      %5499 = vperm.xlu0 %5498, %v5475
      %v5500 = vpop.permute.xlu0 %5499
      %5501 = vset.pattern.permute.xlu0 0
      %5502 = vperm.xlu0 %5501, %v5477
      %v5503 = vpop.permute.xlu0 %5502
      %5504 = vset.pattern.permute.xlu0 0
      %5505 = vperm.xlu0 %5504, %v5479
      %v5506 = vpop.permute.xlu0 %5505
      %5507 = vset.pattern.permute.xlu0 0
      %5508 = vperm.xlu0 %5507, %v5481
      %v5509 = vpop.permute.xlu0 %5508
      %5510 = vset.pattern.permute.xlu0 0
      %5511 = vperm.xlu0 %5510, %v5483
      %v5512 = vpop.permute.xlu0 %5511
      %5513 = vset.pattern.permute.xlu0 0
      %5514 = vperm.xlu0 %5513, %v5485
      %v5515 = vpop.permute.xlu0 %5514
      %5516 = vset.pattern.permute.xlu0 0
      %5517 = vperm.xlu0 %5516, %v5487
      %v5518 = vpop.permute.xlu0 %5517
      %5519 = vset.pattern.permute.xlu0 0
      %5520 = vperm.xlu0 %5519, %v5489
      %v5521 = vpop.permute.xlu0 %5520
      %v5522 = vperm.slane %v5500, %v774
      %v5523 = vperm.slane %v5503, %v774
      %v5524 = vperm.slane %v5506, %v774
      %v5525 = vperm.slane %v5509, %v774
      %v5526 = vperm.slane %v5512, %v774
      %v5527 = vperm.slane %v5515, %v774
      %v5528 = vperm.slane %v5518, %v774
      %v5529 = vperm.slane %v5521, %v774
      %v5530 = vsel %vm779, %v5523, %v5522
      %v5531 = vsel %vm781, %v5524, %v5530
      %v5532 = vsel %vm783, %v5525, %v5531
      %v5533 = vsel %vm3303, %v5526, %v5532
      %v5534 = vsel %vm3305, %v5527, %v5533
      %v5535 = vsel %vm3307, %v5528, %v5534
      %v5536 = vsel %vm3309, %v5529, %v5535
      %v5538 = vsel %vm532, %v5536, 0.0
      %5539 = vadd.xlane.f32.xlu0 %v5538
      %v5540 = vpop.xlane.xlu0 %5539
      %v5541 = vrcp.pop %v5540
      %v5543 = vperm.slane %v5541, 0
      %v5544 = vperm.slane %v5541, 1
      %v5545 = vperm.slane %v5541, 2
      %v5546 = vperm.slane %v5541, 3
      %v5547 = vperm.slane %v5541, 4
      %v5548 = vperm.slane %v5541, 5
      %v5549 = vperm.slane %v5541, 6
      %v5550 = vperm.slane %v5541, 7
      %v5559 = vmul.f32 %v5475, %v5543
      %v5560 = vmul.f32 %v5477, %v5544
      %v5561 = vmul.f32 %v5479, %v5545
      %v5562 = vmul.f32 %v5481, %v5546
      %v5563 = vmul.f32 %v5483, %v5547
      %v5564 = vmul.f32 %v5485, %v5548
      %v5565 = vmul.f32 %v5487, %v5549
      %v5566 = vmul.f32 %v5489, %v5550
      %v5575 = vperm.slane %v4460, %v774
      %v5576 = vperm.slane %v4461, %v774
      %v5577 = vperm.slane %v4462, %v774
      %v5578 = vperm.slane %v4463, %v774
      %v5579 = vperm.slane %v4464, %v774
      %v5580 = vperm.slane %v4465, %v774
      %v5581 = vperm.slane %v4466, %v774
      %v5582 = vperm.slane %v4467, %v774
      %v5583 = vsel %vm779, %v5576, %v5575
      %v5584 = vsel %vm781, %v5577, %v5583
      %v5585 = vsel %vm783, %v5578, %v5584
      %v5586 = vsel %vm3303, %v5579, %v5585
      %v5587 = vsel %vm3305, %v5580, %v5586
      %v5588 = vsel %vm3307, %v5581, %v5587
      %v5589 = vsel %vm3309, %v5582, %v5588
      %v5591 = vsel %vm532, %v5589, -inf
      %5592 = vmax.xlane.f32.xlu0 %v5591
      %v5593 = vpop.xlane.xlu0 %5592
      %v5595 = vperm.slane %v5593, 0
      %v5596 = vperm.slane %v5593, 1
      %v5597 = vperm.slane %v5593, 2
      %v5598 = vperm.slane %v5593, 3
      %v5599 = vperm.slane %v5593, 4
      %v5600 = vperm.slane %v5593, 5
      %v5601 = vperm.slane %v5593, 6
      %v5602 = vperm.slane %v5593, 7
      %v5611 = vsub.f32 %v4460, %v5595
      %v5612 = vsub.f32 %v4461, %v5596
      %v5613 = vsub.f32 %v4462, %v5597
      %v5614 = vsub.f32 %v4463, %v5598
      %v5615 = vsub.f32 %v4464, %v5599
      %v5616 = vsub.f32 %v4465, %v5600
      %v5617 = vsub.f32 %v4466, %v5601
      %v5618 = vsub.f32 %v4467, %v5602
      %v5619 = vmul.f32 %v5611, 1.442695
      %v5620 = vpow.pop %v5619
      %v5621 = vmul.f32 %v5612, 1.442695
      %v5622 = vpow.pop %v5621
      %v5623 = vmul.f32 %v5613, 1.442695
      %v5624 = vpow.pop %v5623
      %v5625 = vmul.f32 %v5614, 1.442695
      %v5626 = vpow.pop %v5625
      %v5627 = vmul.f32 %v5615, 1.442695
      %v5628 = vpow.pop %v5627
      %v5629 = vmul.f32 %v5616, 1.442695
      %v5630 = vpow.pop %v5629
      %v5631 = vmul.f32 %v5617, 1.442695
      %v5632 = vpow.pop %v5631
      %v5633 = vmul.f32 %v5618, 1.442695
      %v5634 = vpow.pop %v5633
      %5643 = vset.pattern.permute.xlu0 0
      %5644 = vperm.xlu0 %5643, %v5620
      %v5645 = vpop.permute.xlu0 %5644
      %5646 = vset.pattern.permute.xlu0 0
      %5647 = vperm.xlu0 %5646, %v5622
      %v5648 = vpop.permute.xlu0 %5647
      %5649 = vset.pattern.permute.xlu0 0
      %5650 = vperm.xlu0 %5649, %v5624
      %v5651 = vpop.permute.xlu0 %5650
      %5652 = vset.pattern.permute.xlu0 0
      %5653 = vperm.xlu0 %5652, %v5626
      %v5654 = vpop.permute.xlu0 %5653
      %5655 = vset.pattern.permute.xlu0 0
      %5656 = vperm.xlu0 %5655, %v5628
      %v5657 = vpop.permute.xlu0 %5656
      %5658 = vset.pattern.permute.xlu0 0
      %5659 = vperm.xlu0 %5658, %v5630
      %v5660 = vpop.permute.xlu0 %5659
      %5661 = vset.pattern.permute.xlu0 0
      %5662 = vperm.xlu0 %5661, %v5632
      %v5663 = vpop.permute.xlu0 %5662
      %5664 = vset.pattern.permute.xlu0 0
      %5665 = vperm.xlu0 %5664, %v5634
      %v5666 = vpop.permute.xlu0 %5665
      %v5667 = vperm.slane %v5645, %v774
      %v5668 = vperm.slane %v5648, %v774
      %v5669 = vperm.slane %v5651, %v774
      %v5670 = vperm.slane %v5654, %v774
      %v5671 = vperm.slane %v5657, %v774
      %v5672 = vperm.slane %v5660, %v774
      %v5673 = vperm.slane %v5663, %v774
      %v5674 = vperm.slane %v5666, %v774
      %v5675 = vsel %vm779, %v5668, %v5667
      %v5676 = vsel %vm781, %v5669, %v5675
      %v5677 = vsel %vm783, %v5670, %v5676
      %v5678 = vsel %vm3303, %v5671, %v5677
      %v5679 = vsel %vm3305, %v5672, %v5678
      %v5680 = vsel %vm3307, %v5673, %v5679
      %v5681 = vsel %vm3309, %v5674, %v5680
      %v5683 = vsel %vm532, %v5681, 0.0
      %5684 = vadd.xlane.f32.xlu0 %v5683
      %v5685 = vpop.xlane.xlu0 %5684
      %v5686 = vrcp.pop %v5685
      %v5688 = vperm.slane %v5686, 0
      %v5689 = vperm.slane %v5686, 1
      %v5690 = vperm.slane %v5686, 2
      %v5691 = vperm.slane %v5686, 3
      %v5692 = vperm.slane %v5686, 4
      %v5693 = vperm.slane %v5686, 5
      %v5694 = vperm.slane %v5686, 6
      %v5695 = vperm.slane %v5686, 7
      %v5704 = vmul.f32 %v5620, %v5688
      %v5705 = vmul.f32 %v5622, %v5689
      %v5706 = vmul.f32 %v5624, %v5690
      %v5707 = vmul.f32 %v5626, %v5691
      %v5708 = vmul.f32 %v5628, %v5692
      %v5709 = vmul.f32 %v5630, %v5693
      %v5710 = vmul.f32 %v5632, %v5694
      %v5711 = vmul.f32 %v5634, %v5695
      %v5712 = vadd.f32 %v5269, %v4692
      %v5713 = vadd.f32 %v5270, %v4693
      %v5714 = vadd.f32 %v5271, %v4694
      %v5715 = vadd.f32 %v5272, %v4695
      %v5716 = vadd.f32 %v5273, %v4696
      %v5717 = vadd.f32 %v5274, %v4697
      %v5718 = vadd.f32 %v5275, %v4698
      %v5719 = vadd.f32 %v5276, %v4699
      %v5720 = vadd.f32 %v5414, %v4836
      %v5721 = vadd.f32 %v5415, %v4837
      %v5722 = vadd.f32 %v5416, %v4838
      %v5723 = vadd.f32 %v5417, %v4839
      %v5724 = vadd.f32 %v5418, %v4840
      %v5725 = vadd.f32 %v5419, %v4841
      %v5726 = vadd.f32 %v5420, %v4842
      %v5727 = vadd.f32 %v5421, %v4843
      %v5728 = vadd.f32 %v5559, %v4980
      %v5729 = vadd.f32 %v5560, %v4981
      %v5730 = vadd.f32 %v5561, %v4982
      %v5731 = vadd.f32 %v5562, %v4983
      %v5732 = vadd.f32 %v5563, %v4984
      %v5733 = vadd.f32 %v5564, %v4985
      %v5734 = vadd.f32 %v5565, %v4986
      %v5735 = vadd.f32 %v5566, %v4987
      %v5736 = vadd.f32 %v5704, %v5124
      %v5737 = vadd.f32 %v5705, %v5125
      %v5738 = vadd.f32 %v5706, %v5126
      %v5739 = vadd.f32 %v5707, %v5127
      %v5740 = vadd.f32 %v5708, %v5128
      %v5741 = vadd.f32 %v5709, %v5129
      %v5742 = vadd.f32 %v5710, %v5130
      %v5743 = vadd.f32 %v5711, %v5131
      %5745 = vset.pattern.permute.xlu0 0
      %5746 = vperm.xlu0 %5745, %v5712
      %v5747 = vpop.permute.xlu0 %5746
      %5750 = vset.pattern.permute.xlu0 0
      %5751 = vperm.xlu0 %5750, %v5713
      %v5752 = vpop.permute.xlu0 %5751
      %5755 = vset.pattern.permute.xlu0 0
      %5756 = vperm.xlu0 %5755, %v5714
      %v5757 = vpop.permute.xlu0 %5756
      %5760 = vset.pattern.permute.xlu0 0
      %5761 = vperm.xlu0 %5760, %v5715
      %v5762 = vpop.permute.xlu0 %5761
      %5765 = vset.pattern.permute.xlu0 0
      %5766 = vperm.xlu0 %5765, %v5716
      %v5767 = vpop.permute.xlu0 %5766
      %5770 = vset.pattern.permute.xlu0 0
      %5771 = vperm.xlu0 %5770, %v5717
      %v5772 = vpop.permute.xlu0 %5771
      %5775 = vset.pattern.permute.xlu0 0
      %5776 = vperm.xlu0 %5775, %v5718
      %v5777 = vpop.permute.xlu0 %5776
      %5780 = vset.pattern.permute.xlu0 0
      %5781 = vperm.xlu0 %5780, %v5719
      %v5782 = vpop.permute.xlu0 %5781
      %v5784 = vmul.f32 %v5747, %v1421
      %v5785 = vmul.f32 %v5752, %v1421
      %v5786 = vmul.f32 %v5757, %v1421
      %v5787 = vmul.f32 %v5762, %v1421
      %v5788 = vmul.f32 %v5767, %v1421
      %v5789 = vmul.f32 %v5772, %v1421
      %v5790 = vmul.f32 %v5777, %v1421
      %v5791 = vmul.f32 %v5782, %v1421
      %5793 = vset.pattern.permute.xlu0 0
      %5794 = vperm.xlu0 %5793, %v5720
      %v5795 = vpop.permute.xlu0 %5794
      %5798 = vset.pattern.permute.xlu0 0
      %5799 = vperm.xlu0 %5798, %v5721
      %v5800 = vpop.permute.xlu0 %5799
      %5803 = vset.pattern.permute.xlu0 0
      %5804 = vperm.xlu0 %5803, %v5722
      %v5805 = vpop.permute.xlu0 %5804
      %5808 = vset.pattern.permute.xlu0 0
      %5809 = vperm.xlu0 %5808, %v5723
      %v5810 = vpop.permute.xlu0 %5809
      %5813 = vset.pattern.permute.xlu0 0
      %5814 = vperm.xlu0 %5813, %v5724
      %v5815 = vpop.permute.xlu0 %5814
      %5818 = vset.pattern.permute.xlu0 0
      %5819 = vperm.xlu0 %5818, %v5725
      %v5820 = vpop.permute.xlu0 %5819
      %5823 = vset.pattern.permute.xlu0 0
      %5824 = vperm.xlu0 %5823, %v5726
      %v5825 = vpop.permute.xlu0 %5824
      %5828 = vset.pattern.permute.xlu0 0
      %5829 = vperm.xlu0 %5828, %v5727
      %v5830 = vpop.permute.xlu0 %5829
      %v5832 = vmul.f32 %v5795, %v1427
      %v5833 = vmul.f32 %v5800, %v1427
      %v5834 = vmul.f32 %v5805, %v1427
      %v5835 = vmul.f32 %v5810, %v1427
      %v5836 = vmul.f32 %v5815, %v1427
      %v5837 = vmul.f32 %v5820, %v1427
      %v5838 = vmul.f32 %v5825, %v1427
      %v5839 = vmul.f32 %v5830, %v1427
      %v5840 = vadd.f32 %v5784, %v5832
      %v5841 = vadd.f32 %v5785, %v5833
      %v5842 = vadd.f32 %v5786, %v5834
      %v5843 = vadd.f32 %v5787, %v5835
      %v5844 = vadd.f32 %v5788, %v5836
      %v5845 = vadd.f32 %v5789, %v5837
      %v5846 = vadd.f32 %v5790, %v5838
      %v5847 = vadd.f32 %v5791, %v5839
      %5849 = vset.pattern.permute.xlu0 0
      %5850 = vperm.xlu0 %5849, %v5728
      %v5851 = vpop.permute.xlu0 %5850
      %5854 = vset.pattern.permute.xlu0 0
      %5855 = vperm.xlu0 %5854, %v5729
      %v5856 = vpop.permute.xlu0 %5855
      %5859 = vset.pattern.permute.xlu0 0
      %5860 = vperm.xlu0 %5859, %v5730
      %v5861 = vpop.permute.xlu0 %5860
      %5864 = vset.pattern.permute.xlu0 0
      %5865 = vperm.xlu0 %5864, %v5731
      %v5866 = vpop.permute.xlu0 %5865
      %5869 = vset.pattern.permute.xlu0 0
      %5870 = vperm.xlu0 %5869, %v5732
      %v5871 = vpop.permute.xlu0 %5870
      %5874 = vset.pattern.permute.xlu0 0
      %5875 = vperm.xlu0 %5874, %v5733
      %v5876 = vpop.permute.xlu0 %5875
      %5879 = vset.pattern.permute.xlu0 0
      %5880 = vperm.xlu0 %5879, %v5734
      %v5881 = vpop.permute.xlu0 %5880
      %5884 = vset.pattern.permute.xlu0 0
      %5885 = vperm.xlu0 %5884, %v5735
      %v5886 = vpop.permute.xlu0 %5885
      %v5888 = vmul.f32 %v5851, %v1425
      %v5889 = vmul.f32 %v5856, %v1425
      %v5890 = vmul.f32 %v5861, %v1425
      %v5891 = vmul.f32 %v5866, %v1425
      %v5892 = vmul.f32 %v5871, %v1425
      %v5893 = vmul.f32 %v5876, %v1425
      %v5894 = vmul.f32 %v5881, %v1425
      %v5895 = vmul.f32 %v5886, %v1425
      %v5896 = vadd.f32 %v5840, %v5888
      %v5897 = vadd.f32 %v5841, %v5889
      %v5898 = vadd.f32 %v5842, %v5890
      %v5899 = vadd.f32 %v5843, %v5891
      %v5900 = vadd.f32 %v5844, %v5892
      %v5901 = vadd.f32 %v5845, %v5893
      %v5902 = vadd.f32 %v5846, %v5894
      %v5903 = vadd.f32 %v5847, %v5895
      %5905 = vset.pattern.permute.xlu0 0
      %5906 = vperm.xlu0 %5905, %v5736
      %v5907 = vpop.permute.xlu0 %5906
      %5910 = vset.pattern.permute.xlu0 0
      %5911 = vperm.xlu0 %5910, %v5737
      %v5912 = vpop.permute.xlu0 %5911
      %5915 = vset.pattern.permute.xlu0 0
      %5916 = vperm.xlu0 %5915, %v5738
      %v5917 = vpop.permute.xlu0 %5916
      %5920 = vset.pattern.permute.xlu0 0
      %5921 = vperm.xlu0 %5920, %v5739
      %v5922 = vpop.permute.xlu0 %5921
      %5925 = vset.pattern.permute.xlu0 0
      %5926 = vperm.xlu0 %5925, %v5740
      %v5927 = vpop.permute.xlu0 %5926
      %5930 = vset.pattern.permute.xlu0 0
      %5931 = vperm.xlu0 %5930, %v5741
      %v5932 = vpop.permute.xlu0 %5931
      %5935 = vset.pattern.permute.xlu0 0
      %5936 = vperm.xlu0 %5935, %v5742
      %v5937 = vpop.permute.xlu0 %5936
      %5940 = vset.pattern.permute.xlu0 0
      %5941 = vperm.xlu0 %5940, %v5743
      %v5942 = vpop.permute.xlu0 %5941
      %v5944 = vmul.f32 %v5907, %v1429
      %v5945 = vmul.f32 %v5912, %v1429
      %v5946 = vmul.f32 %v5917, %v1429
      %v5947 = vmul.f32 %v5922, %v1429
      %v5948 = vmul.f32 %v5927, %v1429
      %v5949 = vmul.f32 %v5932, %v1429
      %v5950 = vmul.f32 %v5937, %v1429
      %v5951 = vmul.f32 %v5942, %v1429
      %v5952 = vadd.f32 %v5896, %v5944
      %v5953 = vadd.f32 %v5897, %v5945
      %v5954 = vadd.f32 %v5898, %v5946
      %v5955 = vadd.f32 %v5899, %v5947
      %v5956 = vadd.f32 %v5900, %v5948
      %v5957 = vadd.f32 %v5901, %v5949
      %v5958 = vadd.f32 %v5902, %v5950
      %v5959 = vadd.f32 %v5903, %v5951
      %v5960 = vmul.f32 %v5952, %v5952
      %v5961 = vmul.f32 %v5953, %v5953
      %v5962 = vmul.f32 %v5954, %v5954
      %v5963 = vmul.f32 %v5955, %v5955
      %v5964 = vmul.f32 %v5956, %v5956
      %v5965 = vmul.f32 %v5957, %v5957
      %v5966 = vmul.f32 %v5958, %v5958
      %v5967 = vmul.f32 %v5959, %v5959
      %v5968 = vsel %vm403, %v5960, 0.0
      %5969 = vadd.xlane.f32.xlu0 %v5968
      %v5970 = vpop.xlane.xlu0 %5969
      %v5971 = vsel %vm403, %v5961, 0.0
      %5972 = vadd.xlane.f32.xlu0 %v5971
      %v5973 = vpop.xlane.xlu0 %5972
      %v5974 = vsel %vm403, %v5962, 0.0
      %5975 = vadd.xlane.f32.xlu0 %v5974
      %v5976 = vpop.xlane.xlu0 %5975
      %v5977 = vsel %vm403, %v5963, 0.0
      %5978 = vadd.xlane.f32.xlu0 %v5977
      %v5979 = vpop.xlane.xlu0 %5978
      %v5980 = vsel %vm403, %v5964, 0.0
      %5981 = vadd.xlane.f32.xlu0 %v5980
      %v5982 = vpop.xlane.xlu0 %5981
      %v5983 = vsel %vm403, %v5965, 0.0
      %5984 = vadd.xlane.f32.xlu0 %v5983
      %v5985 = vpop.xlane.xlu0 %5984
      %v5986 = vsel %vm403, %v5966, 0.0
      %5987 = vadd.xlane.f32.xlu0 %v5986
      %v5988 = vpop.xlane.xlu0 %5987
      %v5989 = vsel %vm403, %v5967, 0.0
      %5990 = vadd.xlane.f32.xlu0 %v5989
      %v5991 = vpop.xlane.xlu0 %5990
      %v5992 = vadd.f32 %v5970, 1.0
      %v5993 = vadd.f32 %v5973, 1.0
      %v5994 = vadd.f32 %v5976, 1.0
      %v5995 = vadd.f32 %v5979, 1.0
      %v5996 = vadd.f32 %v5982, 1.0
      %v5997 = vadd.f32 %v5985, 1.0
      %v5998 = vadd.f32 %v5988, 1.0
      %v5999 = vadd.f32 %v5991, 1.0
      %v6000 = vrcp.pop %v5992
      %v6001 = vrcp.pop %v5993
      %v6002 = vrcp.pop %v5994
      %v6003 = vrcp.pop %v5995
      %v6004 = vrcp.pop %v5996
      %v6005 = vrcp.pop %v5997
      %v6006 = vrcp.pop %v5998
      %v6007 = vrcp.pop %v5999
      %v6008 = vmul.f32 %v5970, %v6000
      %v6009 = vmul.f32 %v5973, %v6001
      %v6010 = vmul.f32 %v5976, %v6002
      %v6011 = vmul.f32 %v5979, %v6003
      %v6012 = vmul.f32 %v5982, %v6004
      %v6013 = vmul.f32 %v5985, %v6005
      %v6014 = vmul.f32 %v5988, %v6006
      %v6015 = vmul.f32 %v5991, %v6007
      %v6016 = vadd.f32 %v5970, 1e-08
      %v6017 = vadd.f32 %v5973, 1e-08
      %v6018 = vadd.f32 %v5976, 1e-08
      %v6019 = vadd.f32 %v5979, 1e-08
      %v6020 = vadd.f32 %v5982, 1e-08
      %v6021 = vadd.f32 %v5985, 1e-08
      %v6022 = vadd.f32 %v5988, 1e-08
      %v6023 = vadd.f32 %v5991, 1e-08
      %v6024 = vrsqrt.pop %v6016
      %v6025 = vmul.f32 %v6024, %v6016
      %v6026 = vmul.f32 %v6025, %v6024
      %v6027 = vmul.f32 0.5, %v6026
      %v6028 = vsub.f32 1.5, %v6027
      %v6029 = vmul.f32 %v6024, %v6028
      %vm6030 = vweird.f32 %v6016
      %vm6031 = vweird.f32 %v6024
      %vm6032 = vmor %vm6030, %vm6031
      %v6033 = vsel %vm6032, %v6024, %v6029
      %v6034 = vrsqrt.pop %v6017
      %v6035 = vmul.f32 %v6034, %v6017
      %v6036 = vmul.f32 %v6035, %v6034
      %v6037 = vmul.f32 0.5, %v6036
      %v6038 = vsub.f32 1.5, %v6037
      %v6039 = vmul.f32 %v6034, %v6038
      %vm6040 = vweird.f32 %v6017
      %vm6041 = vweird.f32 %v6034
      %vm6042 = vmor %vm6040, %vm6041
      %v6043 = vsel %vm6042, %v6034, %v6039
      %v6044 = vrsqrt.pop %v6018
      %v6045 = vmul.f32 %v6044, %v6018
      %v6046 = vmul.f32 %v6045, %v6044
      %v6047 = vmul.f32 0.5, %v6046
      %v6048 = vsub.f32 1.5, %v6047
      %v6049 = vmul.f32 %v6044, %v6048
      %vm6050 = vweird.f32 %v6018
      %vm6051 = vweird.f32 %v6044
      %vm6052 = vmor %vm6050, %vm6051
      %v6053 = vsel %vm6052, %v6044, %v6049
      %v6054 = vrsqrt.pop %v6019
      %v6055 = vmul.f32 %v6054, %v6019
      %v6056 = vmul.f32 %v6055, %v6054
      %v6057 = vmul.f32 0.5, %v6056
      %v6058 = vsub.f32 1.5, %v6057
      %v6059 = vmul.f32 %v6054, %v6058
      %vm6060 = vweird.f32 %v6019
      %vm6061 = vweird.f32 %v6054
      %vm6062 = vmor %vm6060, %vm6061
      %v6063 = vsel %vm6062, %v6054, %v6059
      %v6064 = vrsqrt.pop %v6020
      %v6065 = vmul.f32 %v6064, %v6020
      %v6066 = vmul.f32 %v6065, %v6064
      %v6067 = vmul.f32 0.5, %v6066
      %v6068 = vsub.f32 1.5, %v6067
      %v6069 = vmul.f32 %v6064, %v6068
      %vm6070 = vweird.f32 %v6020
      %vm6071 = vweird.f32 %v6064
      %vm6072 = vmor %vm6070, %vm6071
      %v6073 = vsel %vm6072, %v6064, %v6069
      %v6074 = vrsqrt.pop %v6021
      %v6075 = vmul.f32 %v6074, %v6021
      %v6076 = vmul.f32 %v6075, %v6074
      %v6077 = vmul.f32 0.5, %v6076
      %v6078 = vsub.f32 1.5, %v6077
      %v6079 = vmul.f32 %v6074, %v6078
      %vm6080 = vweird.f32 %v6021
      %vm6081 = vweird.f32 %v6074
      %vm6082 = vmor %vm6080, %vm6081
      %v6083 = vsel %vm6082, %v6074, %v6079
      %v6084 = vrsqrt.pop %v6022
      %v6085 = vmul.f32 %v6084, %v6022
      %v6086 = vmul.f32 %v6085, %v6084
      %v6087 = vmul.f32 0.5, %v6086
      %v6088 = vsub.f32 1.5, %v6087
      %v6089 = vmul.f32 %v6084, %v6088
      %vm6090 = vweird.f32 %v6022
      %vm6091 = vweird.f32 %v6084
      %vm6092 = vmor %vm6090, %vm6091
      %v6093 = vsel %vm6092, %v6084, %v6089
      %v6094 = vrsqrt.pop %v6023
      %v6095 = vmul.f32 %v6094, %v6023
      %v6096 = vmul.f32 %v6095, %v6094
      %v6097 = vmul.f32 0.5, %v6096
      %v6098 = vsub.f32 1.5, %v6097
      %v6099 = vmul.f32 %v6094, %v6098
      %vm6100 = vweird.f32 %v6023
      %vm6101 = vweird.f32 %v6094
      %vm6102 = vmor %vm6100, %vm6101
      %v6103 = vsel %vm6102, %v6094, %v6099
      %v6104 = vmul.f32 %v6008, %v6033
      %v6105 = vmul.f32 %v6009, %v6043
      %v6106 = vmul.f32 %v6010, %v6053
      %v6107 = vmul.f32 %v6011, %v6063
      %v6108 = vmul.f32 %v6012, %v6073
      %v6109 = vmul.f32 %v6013, %v6083
      %v6110 = vmul.f32 %v6014, %v6093
      %v6111 = vmul.f32 %v6015, %v6103
      %v6112 = vmul.f32 %v6104, %v5952
      %v6113 = vmul.f32 %v6105, %v5953
      %v6114 = vmul.f32 %v6106, %v5954
      %v6115 = vmul.f32 %v6107, %v5955
      %v6116 = vmul.f32 %v6108, %v5956
      %v6117 = vmul.f32 %v6109, %v5957
      %v6118 = vmul.f32 %v6110, %v5958
      %v6119 = vmul.f32 %v6111, %v5959
      %v6120 = vrot.slane %v6114, 4
      %v6121 = vsel %vm366, %v6120, %v6112
      %v6123 = vunpack.c.l.s4 1983009808
      %v6124 = vunpack.c.0.s8 %v6123
      %v6125 = vperm.slane %v6121, %v6124
      %v6126 = vrot.slane %v6115, 4
      %v6127 = vsel %vm366, %v6126, %v6113
      %v6129 = vunpack.c.l.s4 1983009808
      %v6130 = vunpack.c.0.s8 %v6129
      %v6131 = vperm.slane %v6127, %v6130
      %v6132 = vrot.slane %v6118, 4
      %v6133 = vsel %vm366, %v6132, %v6116
      %v6135 = vunpack.c.l.s4 1983009808
      %v6136 = vunpack.c.0.s8 %v6135
      %v6137 = vperm.slane %v6133, %v6136
      %v6138 = vrot.slane %v6119, 4
      %v6139 = vsel %vm366, %v6138, %v6117
      %v6141 = vunpack.c.l.s4 1983009808
      %v6142 = vunpack.c.0.s8 %v6141
      %v6143 = vperm.slane %v6139, %v6142
      %v6144 = vrot.slane %v6131, 4
      %v6145 = vsel %vm366, %v6144, %v6125
      %v6147 = vunpack.c.l.s4 1934713408
      %v6148 = vunpack.c.0.s8 %v6147
      %v6149 = vperm.slane %v6145, %v6148
      %v6150 = vrot.slane %v6143, 4
      %v6151 = vsel %vm366, %v6150, %v6137
      %v6153 = vunpack.c.l.s4 1934713408
      %v6154 = vunpack.c.0.s8 %v6153
      %v6155 = vperm.slane %v6151, %v6154
      %v6156 = vrot.slane %v6155, 4
      %v6157 = vsel %vm366, %v6156, %v6149
      %v6158 = vrot.slane %v6149, 4
      %v6159 = vsel %vm366, %v6155, %v6158
      %6161 = vrot.lane.b32.xlu0 %v6159, 64
      %v6162 = vpop.permute.xlu0 %6161
      %v6164 = vsel %vm1313, %v6157, %v6162
      %v6165 = vmul.f32 %v1315, %v1315
      %6166 = vadd.xlane.f32.xlu0 %v6165
      %v6167 = vpop.xlane.xlu0 %6166
      %v6168 = vmax.f32 %v6167, 1e-24
      %v6169 = vrsqrt.pop %v6168
      %v6170 = vmul.f32 %v6169, %v6168
      %v6171 = vmul.f32 %v6170, %v6169
      %v6172 = vmul.f32 0.5, %v6171
      %v6173 = vsub.f32 1.5, %v6172
      %v6174 = vmul.f32 %v6169, %v6173
      %vm6175 = vweird.f32 %v6168
      %vm6176 = vweird.f32 %v6169
      %vm6177 = vmor %vm6175, %vm6176
      %v6178 = vsel %vm6177, %v6169, %v6174
      %v6179 = vmul.f32 %v1315, %v6178
      %v6180 = vmul.f32 %v6164, %v6164
      %6181 = vadd.xlane.f32.xlu0 %v6180
      %v6182 = vpop.xlane.xlu0 %6181
      %v6183 = vmax.f32 %v6182, 1e-24
      %v6184 = vrsqrt.pop %v6183
      %v6185 = vmul.f32 %v6184, %v6183
      %v6186 = vmul.f32 %v6185, %v6184
      %v6187 = vmul.f32 0.5, %v6186
      %v6188 = vsub.f32 1.5, %v6187
      %v6189 = vmul.f32 %v6184, %v6188
      %vm6190 = vweird.f32 %v6183
      %vm6191 = vweird.f32 %v6184
      %vm6192 = vmor %vm6190, %vm6191
      %v6193 = vsel %vm6192, %v6184, %v6189
      %v6194 = vmul.f32 %v6164, %v6193
      %v6195 = vmul.f32 %v6194, %v6179
      %6196 = vadd.xlane.f32.xlu0 %v6195
      %v6197 = vpop.xlane.xlu0 %6196
      %vm6198 = vcmask 7168
      %6199 = vst.msk [vmem:[%s273] sm:$0xff] %vm6198, %v6197
      %p6200 = scmp.lt.s32.totalorder %s18, 1
      %s6201 = scalar_select %p6200, %s18, 1
      %s6202 = smul.addr %s6201, 8
      %s6203 = scalar_lea.vmem %s7, %s6202
      // Predicated region
      $region49: #{dmr_induction_forward.1} parent=47 // pred_check
        %p6204 = pneg %p188
      $region50: #{dmr_induction_forward.1} parent=47 // pred_check_branch
        %6206 = sbr.rel (%p6204) target = $region52
      $region51: #{dmr_induction_forward.1} parent=47 // pred_region
        _
      $region52: #{dmr_induction_forward.1} parent=47 // pred_fallthru
        _
    $region48: #{dmr_induction_forward.1} parent=5 // pred_fallthru
      _
    %p6207 = scmp.le.s32.totalorder 2, %s13
    // Predicated region
    $region53: #{dmr_induction_forward.1} parent=5 // pred_check
      %p6208 = pneg %p6207
    $region54: #{dmr_induction_forward.1} parent=5 // pred_check_branch
      %6210 = sbr.rel (%p6208) target = $region56
    $region55: #{dmr_induction_forward.1} parent=5 // pred_region
      %s6211 = ssub.s32 %s13, 2
      // Predicated region
      $region57: #{dmr_induction_forward.1} parent=55 // pred_check
        %p6212 = pneg %p194
      $region58: #{dmr_induction_forward.1} parent=55 // pred_check_branch
        %6214 = sbr.rel (%p6212) target = $region60
      $region59: #{dmr_induction_forward.1} parent=55 // pred_region
        %p6215 = scmp.lt.s32.totalorder %s19, 1
        %s6216 = scalar_select %p6215, %s19, 1
        %s6217 = smul.addr %s6216, 8
        %s6218 = scalar_lea.vmem %s7, %s6217
      $region60: #{dmr_induction_forward.1} parent=55 // pred_fallthru
        _
    $region56: #{dmr_induction_forward.1} parent=5 // pred_fallthru
      _
  $region6: #{dmr_induction_forward.1} parent=0 // loop_footer
    %s17 = sadd.s32 1, %s13
  $region7: #{dmr_induction_forward.1} parent=0 // loop_footer_branch
    %12 = sbr.rel target = $region3
  $region8: #{dmr_induction_forward.1} parent=0 // loop_exit
    _

</llo_original>
